<compile_context>
chip_gen: v7x
topology: tpu7x:2x2x1
jax: 0.10.0
libtpu: 0.0.40
codegen_flags: <defaults>
</compile_context>

<pallas_src>
import functools

import jax
import jax.numpy as jnp
from jax.experimental import pallas as pl
from jax.experimental.pallas import tpu as pltpu


# ---------------------------------------------------------------------------
# In-kernel helpers
# ---------------------------------------------------------------------------
def _sum_all(v):
    # (M, N) -> (1, 1)
    return jnp.sum(jnp.sum(v, axis=1, keepdims=True), axis=0, keepdims=True)


def _shift_lanes(v, shift, hw):
    """z[:, p] = v[:, p + shift], zero where p + shift is outside [0, hw)."""
    if shift == 0:
        return v
    cin = v.shape[0]
    if shift > 0:
        return jnp.concatenate(
            [v[:, shift:], jnp.zeros((cin, shift), v.dtype)], axis=1)
    return jnp.concatenate(
        [jnp.zeros((cin, -shift), v.dtype), v[:, :hw + shift]], axis=1)


def _build_patches(slab_ref, v, mask_ref, H, W):
    """im2col for a 'same' 3x3 conv in (C, H*W) layout.

    Writes slab[k*Cin:(k+1)*Cin, p] = padded(v)[c, y+dy, x+dx]  (bf16),
    with k = dy*3 + dx and p = y*W + x.
    """
    cin = v.shape[0]
    hw = H * W
    for k in range(9):
        dy, dx = divmod(k, 3)
        shift = (dy - 1) * W + (dx - 1)
        patch = _shift_lanes(v, shift, hw)
        if shift != 0:                       # centre tap needs no border mask
            patch = patch * mask_ref[k]      # (1, HW) broadcast over channels
        slab_ref[k * cin:(k + 1) * cin, :] = patch.astype(slab_ref.dtype)


# ---------------------------------------------------------------------------
# Fused level kernel: all flow steps of one level, one batch element per grid b
# ---------------------------------------------------------------------------
def _glow_level_kernel(
        x_ref, cond_ref, mask_ref,
        wf_ref, bf_ref,
        cc_w1_ref, cc_b1_ref, cc_w2_ref, cc_b2_ref, cc_w3_ref, cc_b3_ref,
        cc_scale_ref,
        cp_w1a_ref, cp_w1b_ref, cp_b1_ref, cp_w2_ref, cp_b2_ref, cp_w3_ref,
        cp_b3_ref, cp_scale_ref,
        y_ref, ldj_ref,
        x_act_ref, slab_ref, idslab_ref, ldj_acc_ref,
        *, H, W, C):
    half = C // 2
    s = pl.program_id(1)
    bf16 = jnp.bfloat16
    f32 = jnp.float32

    # Load x / reset the ldj accumulator once per batch element.
    @pl.when(s == 0)
    def _():
        x_act_ref[...] = x_ref[...]
        ldj_acc_ref[...] = jnp.zeros((1, 1), f32)

    x = x_act_ref[...]                      # (C, HW)  f32, resident across steps
    cond = cond_ref[...]                    # (9*Cc, HW) bf16, shared by all steps

    # ---- ActNorm (folded) + invertible 1x1 conv:  xa = Wf @ x + bf ---------
    # TODO(synk): data-dependent ActNorm initialization is not reproduced.
    xa = jnp.dot(wf_ref[...], x.astype(bf16),
                 preferred_element_type=f32) + bf_ref[...]

    # ---- Conditional coupling: st = NN(x_cond) -----------------------------
    # TODO(synk): the reference NN's internal ActNorm layers are omitted
    # (3x3 -> relu -> 1x1 -> relu -> 3x3 as in the previously accepted version).
    h = jnp.dot(cc_w1_ref[...], cond, preferred_element_type=f32) + cc_b1_ref[...]
    h = jnp.maximum(h, 0.0)
    h = jnp.dot(cc_w2_ref[...], h.astype(bf16),
                preferred_element_type=f32) + cc_b2_ref[...]
    h = jnp.maximum(h, 0.0)
    _build_patches(slab_ref, h, mask_ref, H, W)
    st = jnp.dot(cc_w3_ref[...], slab_ref[...],
                 preferred_element_type=f32) + cc_b3_ref[...]       # (2C, HW)
    s1 = cc_scale_ref[...] * jnp.tanh(st[:C, :])
    t1 = st[C:, :]
    xcc = (xa + t1) * jnp.exp(s1)                                   # (C, HW)
    ldj = _sum_all(s1)

    # ---- Coupling on first channel half, conditioned on (x_id, x_cond) -----
    x_change = xcc[:half, :]
    x_id = xcc[half:, :]
    _build_patches(idslab_ref, x_id, mask_ref, H, W)
    g = (jnp.dot(cp_w1a_ref[...], idslab_ref[...], preferred_element_type=f32)
         + jnp.dot(cp_w1b_ref[...], cond, preferred_element_type=f32)
         + cp_b1_ref[...])
    g = jnp.maximum(g, 0.0)
    g = jnp.dot(cp_w2_ref[...], g.astype(bf16),
                preferred_element_type=f32) + cp_b2_ref[...]
    g = jnp.maximum(g, 0.0)
    _build_patches(slab_ref, g, mask_ref, H, W)
    st2 = jnp.dot(cp_w3_ref[...], slab_ref[...],
                  preferred_element_type=f32) + cp_b3_ref[...]      # (C, HW)
    s2 = cp_scale_ref[...] * jnp.tanh(st2[:half, :])
    t2 = st2[half:, :]
    y_change = (x_change + t2) * jnp.exp(s2)
    ldj = ldj + _sum_all(s2)

    # ---- Update resident state (no concatenate); outputs at last step ------
    x_act_ref[:half, :] = y_change
    x_act_ref[half:, :] = x_id
    ldj_acc_ref[...] = ldj_acc_ref[...] + ldj

    @pl.when(s == pl.num_programs(1) - 1)
    def _():
        y_ref[...] = x_act_ref[...]
        ldj_ref[...] = jnp.broadcast_to(ldj_acc_ref[...], (1, 128))


# ---------------------------------------------------------------------------
# Wrapper: one fused pallas_call per level
# ---------------------------------------------------------------------------
_WEIGHT_NAMES = ("wf", "bf", "cc_w1", "cc_b1", "cc_w2", "cc_b2", "cc_w3",
                 "cc_b3", "cc_scale", "cp_w1a", "cp_w1b", "cp_b1", "cp_w2",
                 "cp_b2", "cp_w3", "cp_b3", "cp_scale")


def _const_spec(a):
    n = a.ndim
    return pl.BlockSpec(a.shape, lambda b, s, n=n: (0,) * n)


def _step_spec(a):
    n = a.ndim
    return pl.BlockSpec((None,) + a.shape[1:],
                        lambda b, s, n=n: (s,) + (0,) * (n - 1))


def _cond_patches(x_cond):
    """(B, Cc, H, W) -> im2col patches (B, 9*Cc, H*W), bf16 (matmul operand)."""
    B, Cc, H, W = x_cond.shape
    xp = jnp.pad(x_cond, ((0, 0), (0, 0), (1, 1), (1, 1)))
    taps = [xp[:, :, dy:dy + H, dx:dx + W].reshape(B, Cc, H * W)
            for dy in range(3) for dx in range(3)]
    out = jnp.stack(taps, axis=1).reshape(B, 9 * Cc, H * W)
    return out.astype(jnp.bfloat16)


def _border_masks(H, W):
    """(9, 1, H*W) f32 validity masks for the 9 conv taps."""
    ys, xs = jnp.meshgrid(jnp.arange(H), jnp.arange(W), indexing="ij")
    ys = ys.reshape(-1)
    xs = xs.reshape(-1)
    ms = []
    for dy in range(3):
        for dx in range(3):
            ok = ((ys + dy - 1 >= 0) & (ys + dy - 1 < H) &
                  (xs + dx - 1 >= 0) & (xs + dx - 1 < W))
            ms.append(ok.astype(jnp.float32))
    return jnp.stack(ms, axis=0).reshape(9, 1, H * W)


def glow_level_apply(level_params, x, x_cond):
    """All flow steps of one level fused.  x, x_cond: (B, C, H, W) NCHW f32."""
    B, C, H, W = x.shape
    HW = H * W
    Cc = x_cond.shape[1]
    half = C // 2
    weights = tuple(level_params[name] for name in _WEIGHT_NAMES)
    S = weights[0].shape[0]
    Cmid = level_params["cc_w2"].shape[1]

    x_flat = x.reshape(B, C, HW)                     # NCHW -> (C, HW): pure reshape
    cond_p = _cond_patches(x_cond)                   # once per level, all steps
    masks = _border_masks(H, W)

    kern = functools.partial(_glow_level_kernel, H=H, W=W, C=C)
    in_specs = ([pl.BlockSpec((None, C, HW), lambda b, s: (b, 0, 0)),
                 pl.BlockSpec((None, 9 * Cc, HW), lambda b, s: (b, 0, 0)),
                 _const_spec(masks)]
                + [_step_spec(w) for w in weights])
    out_specs = (pl.BlockSpec((None, C, HW), lambda b, s: (b, 0, 0)),
                 pl.BlockSpec((None, 1, 128), lambda b, s: (b, 0, 0)))

    y_flat, ldj = pl.pallas_call(
        kern,
        out_shape=(jax.ShapeDtypeStruct((B, C, HW), jnp.float32),
                   jax.ShapeDtypeStruct((B, 1, 128), jnp.float32)),
        grid=(B, S),
        in_specs=in_specs,
        out_specs=out_specs,
        scratch_shapes=[
            pltpu.VMEM((C, HW), jnp.float32),            # resident activation
            pltpu.VMEM((9 * Cmid, HW), jnp.bfloat16),    # im2col slab (mid convs)
            pltpu.VMEM((9 * half, HW), jnp.bfloat16),    # im2col slab (x_id)
            pltpu.VMEM((1, 1), jnp.float32),             # ldj accumulator
        ],
        compiler_params=pltpu.CompilerParams(
            dimension_semantics=("parallel", "arbitrary")),
    )(x_flat, cond_p, masks, *weights)
    return y_flat.reshape(B, C, H, W), ldj[:, 0, 0]


# ---------------------------------------------------------------------------
# Glow level stack (NCHW end-to-end, exactly like the PyTorch reference)
# ---------------------------------------------------------------------------
def squeeze_nchw(x, reverse=False):
    b, c, h, w = x.shape
    if reverse:
        x = x.reshape(b, c // 4, 2, 2, h, w)
        x = x.transpose(0, 1, 4, 2, 5, 3)
        return x.reshape(b, c // 4, h * 2, w * 2)
    x = x.reshape(b, c, h // 2, 2, w // 2, 2)
    x = x.transpose(0, 1, 3, 5, 2, 4)
    return x.reshape(b, c * 4, h // 2, w // 2)


def glow_forward(params, x, x_cond, sldj):
    # TODO(synk): reverse=True (sampling) path of _Glow is not implemented.
    _, _, H, W = x.shape
    x, ldj = glow_level_apply(params, x, x_cond)
    sldj = sldj + params["ldj_pp_total"] * (H * W) + ldj
    if params["next"] is not None:
        x = squeeze_nchw(x)
        xc = squeeze_nchw(x_cond)
        x, sldj = glow_forward(params["next"], x, xc, sldj)
        x = squeeze_nchw(x, reverse=True)
    return x, sldj


# ---------------------------------------------------------------------------
# Parameter init (PyTorch-style layouts) + one-time kernel-layout preparation
# ---------------------------------------------------------------------------
def init_nn(key, c_in, c_mid, c_out):
    k = jax.random.split(key, 3)
    return {
        "w1": 0.1 * jax.random.normal(k[0], (c_mid, c_in, 3, 3), jnp.float32),
        "b1": jnp.zeros((c_mid,), jnp.float32),
        "w2": 0.1 * jax.random.normal(k[1], (c_mid, c_mid), jnp.float32),
        "b2": jnp.zeros((c_mid,), jnp.float32),
        "w3": 0.05 * jax.random.normal(k[2], (c_out, c_mid, 3, 3), jnp.float32),
        "b3": jnp.zeros((c_out,), jnp.float32),
    }


def init_flow_step(key, C, Cc, mid):
    k = jax.random.split(key, 5)
    q, _ = jnp.linalg.qr(jax.random.normal(k[2], (C, C), jnp.float32))
    return {
        "norm": {"bias": 0.1 * jax.random.normal(k[0], (C,), jnp.float32),
                 "logs": 0.05 * jax.random.normal(k[1], (C,), jnp.float32)},
        "conv": {"w": q.astype(jnp.float32)},
        "cond_coup": {"nn": init_nn(k[3], Cc, mid, 2 * C),
                      "scale": jnp.ones((C, 1, 1), jnp.float32)},
        "coup": {"nn": init_nn(k[4], C // 2 + Cc, mid, C),
                 "scale": jnp.ones((C // 2, 1, 1), jnp.float32)},
    }


def init_glow(key, C, Cc, mid, num_levels, num_steps):
    keys = jax.random.split(key, num_steps + 1)
    steps = [init_flow_step(keys[i], C, Cc, mid) for i in range(num_steps)]
    nxt = None
    if num_levels > 1:
        nxt = init_glow(keys[-1], 4 * C, 4 * Cc, mid, num_levels - 1, num_steps)
    return {"steps": steps, "next": nxt}


def _conv3x3_matrix(w):
    # (Cout, Cin, 3, 3) -> (Cout, 9*Cin), column index = (ky*3 + kx)*Cin + cin
    c_out, c_in = w.shape[0], w.shape[1]
    return jnp.transpose(w, (0, 2, 3, 1)).reshape(c_out, 9 * c_in)


def prepare_flow_step(p, C, Cc):
    """Fold ActNorm into the 1x1 InvConv, hoist slogdet, reshape conv weights
    to (Cout, 9*Cin) matmul form and cast matmul operands to bf16 (once)."""
    bf16 = jnp.bfloat16
    logs, bias = p["norm"]["logs"], p["norm"]["bias"]
    w = p["conv"]["w"]
    e = jnp.exp(logs)
    wf = w * e[None, :]                              # (C, C):  xa = wf @ x + bf
    bfv = (w @ (bias * e)).reshape(C, 1)
    _, logdet = jnp.linalg.slogdet(w)
    ldj_pp = jnp.sum(logs) + logdet                  # per-pixel sldj constant
    ccn, cpn = p["cond_coup"]["nn"], p["coup"]["nn"]
    half = C // 2
    cp_w1 = jnp.transpose(cpn["w1"], (0, 2, 3, 1))   # (Cmid, 3, 3, half+Cc)
    cp_w1a = cp_w1[..., :half].reshape(cp_w1.shape[0], 9 * half)
    cp_w1b = cp_w1[..., half:].reshape(cp_w1.shape[0], 9 * Cc)
    # TODO(synk): s|t heads taken as contiguous output-channel halves; a real
    # checkpoint with an interleaved convention needs a channel permutation here.
    return {
        "ldj_pp": ldj_pp,
        "wf": wf.astype(bf16), "bf": bfv,
        "cc_w1": _conv3x3_matrix(ccn["w1"]).astype(bf16),
        "cc_b1": ccn["b1"].reshape(-1, 1),
        "cc_w2": ccn["w2"].astype(bf16), "cc_b2": ccn["b2"].reshape(-1, 1),
        "cc_w3": _conv3x3_matrix(ccn["w3"]).astype(bf16),
        "cc_b3": ccn["b3"].reshape(-1, 1),
        "cc_scale": p["cond_coup"]["scale"].reshape(C, 1),
        "cp_w1a": cp_w1a.astype(bf16), "cp_w1b": cp_w1b.astype(bf16),
        "cp_b1": cpn["b1"].reshape(-1, 1),
        "cp_w2": cpn["w2"].astype(bf16), "cp_b2": cpn["b2"].reshape(-1, 1),
        "cp_w3": _conv3x3_matrix(cpn["w3"]).astype(bf16),
        "cp_b3": cpn["b3"].reshape(-1, 1),
        "cp_scale": p["coup"]["scale"].reshape(half, 1),
    }


def prepare_glow(params, C, Cc):
    steps = [prepare_flow_step(sp, C, Cc) for sp in params["steps"]]
    level = {name: jnp.stack([st[name] for st in steps], axis=0)
             for name in _WEIGHT_NAMES}
    level["ldj_pp_total"] = jnp.sum(jnp.stack([st["ldj_pp"] for st in steps]))
    level["next"] = (prepare_glow(params["next"], 4 * C, 4 * Cc)
                     if params["next"] is not None else None)
    return level


# ---------------------------------------------------------------------------
if __name__ == "__main__":
    key = jax.random.PRNGKey(0)
    kx, kc, kp = jax.random.split(key, 3)

    B, C, H, W = 2, 4, 16, 16
    mid_channels, num_levels, num_steps = 32, 2, 2

    x = jax.random.normal(kx, (B, C, H, W), jnp.float32)
    x_cond = jax.random.normal(kc, (B, C, H, W), jnp.float32)
    sldj = jnp.zeros((B,), jnp.float32)

    raw_params = init_glow(kp, C, C, mid_channels, num_levels, num_steps)
    params = prepare_glow(raw_params, C, C)   # fold actnorm/invconv, slogdet once

    fwd = jax.jit(glow_forward)
    out_x, out_sldj = fwd(params, x, x_cond, sldj)
    out_x, out_sldj = jax.block_until_ready((out_x, out_sldj))

    assert out_x.shape == (B, C, H, W)
    assert out_sldj.shape == (B,)
    assert bool(jnp.all(jnp.isfinite(out_x))) and bool(jnp.all(jnp.isfinite(out_sldj)))
    print("KERNEL_OK")
</pallas_src>

<mosaic_0001>
module attributes {stable_mosaic.version = 11 : i64} {
  func.func @_glow_level_kernel(%arg0: i32, %arg1: i32, %arg2: memref<1x4x256xf32, #tpu.memory_space<vmem>>, %arg3: memref<1x36x256xbf16, #tpu.memory_space<vmem>>, %arg4: memref<9x1x256xf32, #tpu.memory_space<vmem>>, %arg5: memref<1x4x4xbf16, #tpu.memory_space<vmem>>, %arg6: memref<1x4x1xf32, #tpu.memory_space<vmem>>, %arg7: memref<1x32x36xbf16, #tpu.memory_space<vmem>>, %arg8: memref<1x32x1xf32, #tpu.memory_space<vmem>>, %arg9: memref<1x32x32xbf16, #tpu.memory_space<vmem>>, %arg10: memref<1x32x1xf32, #tpu.memory_space<vmem>>, %arg11: memref<1x8x288xbf16, #tpu.memory_space<vmem>>, %arg12: memref<1x8x1xf32, #tpu.memory_space<vmem>>, %arg13: memref<1x4x1xf32, #tpu.memory_space<vmem>>, %arg14: memref<1x32x18xbf16, #tpu.memory_space<vmem>>, %arg15: memref<1x32x36xbf16, #tpu.memory_space<vmem>>, %arg16: memref<1x32x1xf32, #tpu.memory_space<vmem>>, %arg17: memref<1x32x32xbf16, #tpu.memory_space<vmem>>, %arg18: memref<1x32x1xf32, #tpu.memory_space<vmem>>, %arg19: memref<1x4x288xbf16, #tpu.memory_space<vmem>>, %arg20: memref<1x4x1xf32, #tpu.memory_space<vmem>>, %arg21: memref<1x2x1xf32, #tpu.memory_space<vmem>>, %arg22: memref<1x4x256xf32, #tpu.memory_space<vmem>>, %arg23: memref<1x1x128xf32, #tpu.memory_space<vmem>>, %arg24: memref<4x256xf32, #tpu.memory_space<vmem>>, %arg25: memref<288x256xbf16, #tpu.memory_space<vmem>>, %arg26: memref<18x256xbf16, #tpu.memory_space<vmem>>, %arg27: memref<1x1xf32, #tpu.memory_space<vmem>>) attributes {dimension_semantics = [#tpu.dimension_semantics<parallel>, #tpu.dimension_semantics<arbitrary>], iteration_bounds = array<i64: 2, 2>, scalar_prefetch = 0 : i64, scratch_operands = 4 : i64, tpu.core_type = #tpu.core_type<tc>, window_params = [{transform_indices = @transform_0, window_bounds = array<i64: 1, 4, 256>}, {transform_indices = @transform_1, window_bounds = array<i64: 1, 36, 256>}, {pipeline_mode = #tpu.pipeline_mode<synchronous>, transform_indices = @transform_2, window_bounds = array<i64: 9, 1, 256>}, {transform_indices = @transform_3, window_bounds = array<i64: 1, 4, 4>}, {transform_indices = @transform_4, window_bounds = array<i64: 1, 4, 1>}, {transform_indices = @transform_5, window_bounds = array<i64: 1, 32, 36>}, {transform_indices = @transform_6, window_bounds = array<i64: 1, 32, 1>}, {transform_indices = @transform_7, window_bounds = array<i64: 1, 32, 32>}, {transform_indices = @transform_8, window_bounds = array<i64: 1, 32, 1>}, {transform_indices = @transform_9, window_bounds = array<i64: 1, 8, 288>}, {transform_indices = @transform_10, window_bounds = array<i64: 1, 8, 1>}, {transform_indices = @transform_11, window_bounds = array<i64: 1, 4, 1>}, {transform_indices = @transform_12, window_bounds = array<i64: 1, 32, 18>}, {transform_indices = @transform_13, window_bounds = array<i64: 1, 32, 36>}, {transform_indices = @transform_14, window_bounds = array<i64: 1, 32, 1>}, {transform_indices = @transform_15, window_bounds = array<i64: 1, 32, 32>}, {transform_indices = @transform_16, window_bounds = array<i64: 1, 32, 1>}, {transform_indices = @transform_17, window_bounds = array<i64: 1, 4, 288>}, {transform_indices = @transform_18, window_bounds = array<i64: 1, 4, 1>}, {transform_indices = @transform_19, window_bounds = array<i64: 1, 2, 1>}, {transform_indices = @transform_20, window_bounds = array<i64: 1, 4, 256>}, {transform_indices = @transform_21, window_bounds = array<i64: 1, 1, 128>}]} {
    %c0_i32 = arith.constant 0 : i32
    %0 = arith.cmpi eq, %arg1, %c0_i32 : i32
    %1 = arith.extui %0 : i1 to i32
    %c0_i32_0 = arith.constant 0 : i32
    %2 = arith.cmpi ne, %1, %c0_i32_0 : i32
    scf.if %2 {
      %c0_216 = arith.constant 0 : index
      %c0_217 = arith.constant 0 : index
      %c0_218 = arith.constant 0 : index
      %334 = vector.load %arg2[%c0_216, %c0_217, %c0_218] : memref<1x4x256xf32, #tpu.memory_space<vmem>>, vector<1x4x256xf32>
      %335 = vector.shape_cast %334 : vector<1x4x256xf32> to vector<4x256xf32>
      %c0_219 = arith.constant 0 : index
      %c0_220 = arith.constant 0 : index
      %336 = vector.load %arg24[%c0_219, %c0_220] : memref<4x256xf32, #tpu.memory_space<vmem>>, vector<4x256xf32>
      tpu.vector_store %arg24[%c0_219, %c0_220], %335 {strides = array<i32>} : memref<4x256xf32, #tpu.memory_space<vmem>>, vector<4x256xf32>,
      %cst_221 = arith.constant 0.000000e+00 : f32
      %337 = vector.broadcast %cst_221 : f32 to vector<1x1xf32>
      %c0_222 = arith.constant 0 : index
      %c0_223 = arith.constant 0 : index
      %338 = vector.load %arg27[%c0_222, %c0_223] : memref<1x1xf32, #tpu.memory_space<vmem>>, vector<1x1xf32>
      tpu.vector_store %arg27[%c0_222, %c0_223], %337 {strides = array<i32>} : memref<1x1xf32, #tpu.memory_space<vmem>>, vector<1x1xf32>,
    } else {
    }
    %c0 = arith.constant 0 : index
    %c0_1 = arith.constant 0 : index
    %3 = vector.load %arg24[%c0, %c0_1] : memref<4x256xf32, #tpu.memory_space<vmem>>, vector<4x256xf32>
    %c0_2 = arith.constant 0 : index
    %c0_3 = arith.constant 0 : index
    %c0_4 = arith.constant 0 : index
    %4 = vector.load %arg3[%c0_2, %c0_3, %c0_4] : memref<1x36x256xbf16, #tpu.memory_space<vmem>>, vector<1x36x256xbf16>
    %5 = vector.shape_cast %4 : vector<1x36x256xbf16> to vector<36x256xbf16>
    %c0_5 = arith.constant 0 : index
    %c0_6 = arith.constant 0 : index
    %c0_7 = arith.constant 0 : index
    %6 = vector.load %arg5[%c0_5, %c0_6, %c0_7] : memref<1x4x4xbf16, #tpu.memory_space<vmem>>, vector<1x4x4xbf16>
    %7 = vector.shape_cast %6 : vector<1x4x4xbf16> to vector<4x4xbf16>
    %8 = arith.truncf %3 : vector<4x256xf32> to vector<4x256xbf16>
    %cst = arith.constant dense<0.000000e+00> : vector<4x256xf32>
    %9 = tpu.matmul %7, %8, %cst {dimension_numbers = #tpu.dot_dimension_numbers<[1], [0], [0], [1], [0, 0, 1, 1], [], []>} : vector<4x4xbf16>, vector<4x256xbf16>, vector<4x256xf32> -> vector<4x256xf32>
    %c0_8 = arith.constant 0 : index
    %c0_9 = arith.constant 0 : index
    %c0_10 = arith.constant 0 : index
    %10 = vector.load %arg6[%c0_8, %c0_9, %c0_10] : memref<1x4x1xf32, #tpu.memory_space<vmem>>, vector<1x4x1xf32>
    %11 = vector.shape_cast %10 : vector<1x4x1xf32> to vector<4x1xf32>
    %12 = vector.broadcast %11 : vector<4x1xf32> to vector<4x256xf32>
    %13 = arith.addf %9, %12 : vector<4x256xf32>
    %c0_11 = arith.constant 0 : index
    %c0_12 = arith.constant 0 : index
    %c0_13 = arith.constant 0 : index
    %14 = vector.load %arg7[%c0_11, %c0_12, %c0_13] : memref<1x32x36xbf16, #tpu.memory_space<vmem>>, vector<1x32x36xbf16>
    %15 = vector.shape_cast %14 : vector<1x32x36xbf16> to vector<32x36xbf16>
    %cst_14 = arith.constant dense<0.000000e+00> : vector<32x256xf32>
    %16 = tpu.matmul %15, %5, %cst_14 {dimension_numbers = #tpu.dot_dimension_numbers<[1], [0], [0], [1], [0, 0, 1, 1], [], []>} : vector<32x36xbf16>, vector<36x256xbf16>, vector<32x256xf32> -> vector<32x256xf32>
    %c0_15 = arith.constant 0 : index
    %c0_16 = arith.constant 0 : index
    %c0_17 = arith.constant 0 : index
    %17 = vector.load %arg8[%c0_15, %c0_16, %c0_17] : memref<1x32x1xf32, #tpu.memory_space<vmem>>, vector<1x32x1xf32>
    %18 = vector.shape_cast %17 : vector<1x32x1xf32> to vector<32x1xf32>
    %19 = vector.broadcast %18 : vector<32x1xf32> to vector<32x256xf32>
    %20 = arith.addf %16, %19 : vector<32x256xf32>
    %cst_18 = arith.constant 0.000000e+00 : f32
    %21 = vector.broadcast %cst_18 : f32 to vector<32x256xf32>
    %22 = arith.maximumf %20, %21 : vector<32x256xf32>
    %c0_19 = arith.constant 0 : index
    %c0_20 = arith.constant 0 : index
    %c0_21 = arith.constant 0 : index
    %23 = vector.load %arg9[%c0_19, %c0_20, %c0_21] : memref<1x32x32xbf16, #tpu.memory_space<vmem>>, vector<1x32x32xbf16>
    %24 = vector.shape_cast %23 : vector<1x32x32xbf16> to vector<32x32xbf16>
    %25 = arith.truncf %22 : vector<32x256xf32> to vector<32x256xbf16>
    %cst_22 = arith.constant dense<0.000000e+00> : vector<32x256xf32>
    %26 = tpu.matmul %24, %25, %cst_22 {dimension_numbers = #tpu.dot_dimension_numbers<[1], [0], [0], [1], [0, 0, 1, 1], [], []>} : vector<32x32xbf16>, vector<32x256xbf16>, vector<32x256xf32> -> vector<32x256xf32>
    %c0_23 = arith.constant 0 : index
    %c0_24 = arith.constant 0 : index
    %c0_25 = arith.constant 0 : index
    %27 = vector.load %arg10[%c0_23, %c0_24, %c0_25] : memref<1x32x1xf32, #tpu.memory_space<vmem>>, vector<1x32x1xf32>
    %28 = vector.shape_cast %27 : vector<1x32x1xf32> to vector<32x1xf32>
    %29 = vector.broadcast %28 : vector<32x1xf32> to vector<32x256xf32>
    %30 = arith.addf %26, %29 : vector<32x256xf32>
    %cst_26 = arith.constant 0.000000e+00 : f32
    %31 = vector.broadcast %cst_26 : f32 to vector<32x256xf32>
    %32 = arith.maximumf %30, %31 : vector<32x256xf32>
    %cst_27 = arith.constant 0.000000e+00 : f32
    %33 = vector.broadcast %cst_27 : f32 to vector<32x17xf32>
    %34 = vector.extract_strided_slice %32 {offsets = [0, 0], sizes = [32, 239], strides = [1, 1]} : vector<32x256xf32> to vector<32x239xf32>
    %35 = tpu.concatenate %33, %34 in 1 : vector<32x17xf32>, vector<32x239xf32> -> vector<32x256xf32>
    %c0_28 = arith.constant 0 : index
    %c0_29 = arith.constant 0 : index
    %c0_30 = arith.constant 0 : index
    %36 = vector.load %arg4[%c0_28, %c0_29, %c0_30] : memref<9x1x256xf32, #tpu.memory_space<vmem>>, vector<1x1x256xf32>
    %37 = vector.shape_cast %36 : vector<1x1x256xf32> to vector<1x256xf32>
    %38 = vector.broadcast %37 : vector<1x256xf32> to vector<32x256xf32>
    %39 = arith.mulf %35, %38 : vector<32x256xf32>
    %40 = arith.truncf %39 : vector<32x256xf32> to vector<32x256xbf16>
    %c0_31 = arith.constant 0 : index
    %c0_32 = arith.constant 0 : index
    %41 = vector.load %arg25[%c0_31, %c0_32] : memref<288x256xbf16, #tpu.memory_space<vmem>>, vector<32x256xbf16>
    tpu.vector_store %arg25[%c0_31, %c0_32], %40 {strides = array<i32>} : memref<288x256xbf16, #tpu.memory_space<vmem>>, vector<32x256xbf16>,
    %cst_33 = arith.constant 0.000000e+00 : f32
    %42 = vector.broadcast %cst_33 : f32 to vector<32x16xf32>
    %43 = vector.extract_strided_slice %32 {offsets = [0, 0], sizes = [32, 240], strides = [1, 1]} : vector<32x256xf32> to vector<32x240xf32>
    %44 = tpu.concatenate %42, %43 in 1 : vector<32x16xf32>, vector<32x240xf32> -> vector<32x256xf32>
    %c1 = arith.constant 1 : index
    %c0_34 = arith.constant 0 : index
    %c0_35 = arith.constant 0 : index
    %45 = vector.load %arg4[%c1, %c0_34, %c0_35] : memref<9x1x256xf32, #tpu.memory_space<vmem>>, vector<1x1x256xf32>
    %46 = vector.shape_cast %45 : vector<1x1x256xf32> to vector<1x256xf32>
    %47 = vector.broadcast %46 : vector<1x256xf32> to vector<32x256xf32>
    %48 = arith.mulf %44, %47 : vector<32x256xf32>
    %49 = arith.truncf %48 : vector<32x256xf32> to vector<32x256xbf16>
    %c32 = arith.constant 32 : index
    %c0_36 = arith.constant 0 : index
    %50 = vector.load %arg25[%c32, %c0_36] : memref<288x256xbf16, #tpu.memory_space<vmem>>, vector<32x256xbf16>
    tpu.vector_store %arg25[%c32, %c0_36], %49 {strides = array<i32>} : memref<288x256xbf16, #tpu.memory_space<vmem>>, vector<32x256xbf16>,
    %cst_37 = arith.constant 0.000000e+00 : f32
    %51 = vector.broadcast %cst_37 : f32 to vector<32x15xf32>
    %52 = vector.extract_strided_slice %32 {offsets = [0, 0], sizes = [32, 241], strides = [1, 1]} : vector<32x256xf32> to vector<32x241xf32>
    %53 = tpu.concatenate %51, %52 in 1 : vector<32x15xf32>, vector<32x241xf32> -> vector<32x256xf32>
    %c2 = arith.constant 2 : index
    %c0_38 = arith.constant 0 : index
    %c0_39 = arith.constant 0 : index
    %54 = vector.load %arg4[%c2, %c0_38, %c0_39] : memref<9x1x256xf32, #tpu.memory_space<vmem>>, vector<1x1x256xf32>
    %55 = vector.shape_cast %54 : vector<1x1x256xf32> to vector<1x256xf32>
    %56 = vector.broadcast %55 : vector<1x256xf32> to vector<32x256xf32>
    %57 = arith.mulf %53, %56 : vector<32x256xf32>
    %58 = arith.truncf %57 : vector<32x256xf32> to vector<32x256xbf16>
    %c64 = arith.constant 64 : index
    %c0_40 = arith.constant 0 : index
    %59 = vector.load %arg25[%c64, %c0_40] : memref<288x256xbf16, #tpu.memory_space<vmem>>, vector<32x256xbf16>
    tpu.vector_store %arg25[%c64, %c0_40], %58 {strides = array<i32>} : memref<288x256xbf16, #tpu.memory_space<vmem>>, vector<32x256xbf16>,
    %cst_41 = arith.constant 0.000000e+00 : f32
    %60 = vector.broadcast %cst_41 : f32 to vector<32x1xf32>
    %61 = vector.extract_strided_slice %32 {offsets = [0, 0], sizes = [32, 255], strides = [1, 1]} : vector<32x256xf32> to vector<32x255xf32>
    %62 = tpu.concatenate %60, %61 in 1 : vector<32x1xf32>, vector<32x255xf32> -> vector<32x256xf32>
    %c3 = arith.constant 3 : index
    %c0_42 = arith.constant 0 : index
    %c0_43 = arith.constant 0 : index
    %63 = vector.load %arg4[%c3, %c0_42, %c0_43] : memref<9x1x256xf32, #tpu.memory_space<vmem>>, vector<1x1x256xf32>
    %64 = vector.shape_cast %63 : vector<1x1x256xf32> to vector<1x256xf32>
    %65 = vector.broadcast %64 : vector<1x256xf32> to vector<32x256xf32>
    %66 = arith.mulf %62, %65 : vector<32x256xf32>
    %67 = arith.truncf %66 : vector<32x256xf32> to vector<32x256xbf16>
    %c96 = arith.constant 96 : index
    %c0_44 = arith.constant 0 : index
    %68 = vector.load %arg25[%c96, %c0_44] : memref<288x256xbf16, #tpu.memory_space<vmem>>, vector<32x256xbf16>
    tpu.vector_store %arg25[%c96, %c0_44], %67 {strides = array<i32>} : memref<288x256xbf16, #tpu.memory_space<vmem>>, vector<32x256xbf16>,
    %69 = arith.truncf %32 : vector<32x256xf32> to vector<32x256xbf16>
    %c128 = arith.constant 128 : index
    %c0_45 = arith.constant 0 : index
    %70 = vector.load %arg25[%c128, %c0_45] : memref<288x256xbf16, #tpu.memory_space<vmem>>, vector<32x256xbf16>
    tpu.vector_store %arg25[%c128, %c0_45], %69 {strides = array<i32>} : memref<288x256xbf16, #tpu.memory_space<vmem>>, vector<32x256xbf16>,
    %71 = vector.extract_strided_slice %32 {offsets = [0, 1], sizes = [32, 255], strides = [1, 1]} : vector<32x256xf32> to vector<32x255xf32>
    %cst_46 = arith.constant 0.000000e+00 : f32
    %72 = vector.broadcast %cst_46 : f32 to vector<32x1xf32>
    %73 = tpu.concatenate %71, %72 in 1 : vector<32x255xf32>, vector<32x1xf32> -> vector<32x256xf32>
    %c5 = arith.constant 5 : index
    %c0_47 = arith.constant 0 : index
    %c0_48 = arith.constant 0 : index
    %74 = vector.load %arg4[%c5, %c0_47, %c0_48] : memref<9x1x256xf32, #tpu.memory_space<vmem>>, vector<1x1x256xf32>
    %75 = vector.shape_cast %74 : vector<1x1x256xf32> to vector<1x256xf32>
    %76 = vector.broadcast %75 : vector<1x256xf32> to vector<32x256xf32>
    %77 = arith.mulf %73, %76 : vector<32x256xf32>
    %78 = arith.truncf %77 : vector<32x256xf32> to vector<32x256xbf16>
    %c160 = arith.constant 160 : index
    %c0_49 = arith.constant 0 : index
    %79 = vector.load %arg25[%c160, %c0_49] : memref<288x256xbf16, #tpu.memory_space<vmem>>, vector<32x256xbf16>
    tpu.vector_store %arg25[%c160, %c0_49], %78 {strides = array<i32>} : memref<288x256xbf16, #tpu.memory_space<vmem>>, vector<32x256xbf16>,
    %80 = vector.extract_strided_slice %32 {offsets = [0, 15], sizes = [32, 241], strides = [1, 1]} : vector<32x256xf32> to vector<32x241xf32>
    %cst_50 = arith.constant 0.000000e+00 : f32
    %81 = vector.broadcast %cst_50 : f32 to vector<32x15xf32>
    %82 = tpu.concatenate %80, %81 in 1 : vector<32x241xf32>, vector<32x15xf32> -> vector<32x256xf32>
    %c6 = arith.constant 6 : index
    %c0_51 = arith.constant 0 : index
    %c0_52 = arith.constant 0 : index
    %83 = vector.load %arg4[%c6, %c0_51, %c0_52] : memref<9x1x256xf32, #tpu.memory_space<vmem>>, vector<1x1x256xf32>
    %84 = vector.shape_cast %83 : vector<1x1x256xf32> to vector<1x256xf32>
    %85 = vector.broadcast %84 : vector<1x256xf32> to vector<32x256xf32>
    %86 = arith.mulf %82, %85 : vector<32x256xf32>
    %87 = arith.truncf %86 : vector<32x256xf32> to vector<32x256xbf16>
    %c192 = arith.constant 192 : index
    %c0_53 = arith.constant 0 : index
    %88 = vector.load %arg25[%c192, %c0_53] : memref<288x256xbf16, #tpu.memory_space<vmem>>, vector<32x256xbf16>
    tpu.vector_store %arg25[%c192, %c0_53], %87 {strides = array<i32>} : memref<288x256xbf16, #tpu.memory_space<vmem>>, vector<32x256xbf16>,
    %89 = vector.extract_strided_slice %32 {offsets = [0, 16], sizes = [32, 240], strides = [1, 1]} : vector<32x256xf32> to vector<32x240xf32>
    %cst_54 = arith.constant 0.000000e+00 : f32
    %90 = vector.broadcast %cst_54 : f32 to vector<32x16xf32>
    %91 = tpu.concatenate %89, %90 in 1 : vector<32x240xf32>, vector<32x16xf32> -> vector<32x256xf32>
    %c7 = arith.constant 7 : index
    %c0_55 = arith.constant 0 : index
    %c0_56 = arith.constant 0 : index
    %92 = vector.load %arg4[%c7, %c0_55, %c0_56] : memref<9x1x256xf32, #tpu.memory_space<vmem>>, vector<1x1x256xf32>
    %93 = vector.shape_cast %92 : vector<1x1x256xf32> to vector<1x256xf32>
    %94 = vector.broadcast %93 : vector<1x256xf32> to vector<32x256xf32>
    %95 = arith.mulf %91, %94 : vector<32x256xf32>
    %96 = arith.truncf %95 : vector<32x256xf32> to vector<32x256xbf16>
    %c224 = arith.constant 224 : index
    %c0_57 = arith.constant 0 : index
    %97 = vector.load %arg25[%c224, %c0_57] : memref<288x256xbf16, #tpu.memory_space<vmem>>, vector<32x256xbf16>
    tpu.vector_store %arg25[%c224, %c0_57], %96 {strides = array<i32>} : memref<288x256xbf16, #tpu.memory_space<vmem>>, vector<32x256xbf16>,
    %98 = vector.extract_strided_slice %32 {offsets = [0, 17], sizes = [32, 239], strides = [1, 1]} : vector<32x256xf32> to vector<32x239xf32>
    %cst_58 = arith.constant 0.000000e+00 : f32
    %99 = vector.broadcast %cst_58 : f32 to vector<32x17xf32>
    %100 = tpu.concatenate %98, %99 in 1 : vector<32x239xf32>, vector<32x17xf32> -> vector<32x256xf32>
    %c8 = arith.constant 8 : index
    %c0_59 = arith.constant 0 : index
    %c0_60 = arith.constant 0 : index
    %101 = vector.load %arg4[%c8, %c0_59, %c0_60] : memref<9x1x256xf32, #tpu.memory_space<vmem>>, vector<1x1x256xf32>
    %102 = vector.shape_cast %101 : vector<1x1x256xf32> to vector<1x256xf32>
    %103 = vector.broadcast %102 : vector<1x256xf32> to vector<32x256xf32>
    %104 = arith.mulf %100, %103 : vector<32x256xf32>
    %105 = arith.truncf %104 : vector<32x256xf32> to vector<32x256xbf16>
    %c256 = arith.constant 256 : index
    %c0_61 = arith.constant 0 : index
    %106 = vector.load %arg25[%c256, %c0_61] : memref<288x256xbf16, #tpu.memory_space<vmem>>, vector<32x256xbf16>
    tpu.vector_store %arg25[%c256, %c0_61], %105 {strides = array<i32>} : memref<288x256xbf16, #tpu.memory_space<vmem>>, vector<32x256xbf16>,
    %c0_62 = arith.constant 0 : index
    %c0_63 = arith.constant 0 : index
    %c0_64 = arith.constant 0 : index
    %107 = vector.load %arg11[%c0_62, %c0_63, %c0_64] : memref<1x8x288xbf16, #tpu.memory_space<vmem>>, vector<1x8x288xbf16>
    %108 = vector.shape_cast %107 : vector<1x8x288xbf16> to vector<8x288xbf16>
    %c0_65 = arith.constant 0 : index
    %c0_66 = arith.constant 0 : index
    %109 = vector.load %arg25[%c0_65, %c0_66] : memref<288x256xbf16, #tpu.memory_space<vmem>>, vector<288x256xbf16>
    %cst_67 = arith.constant dense<0.000000e+00> : vector<8x256xf32>
    %110 = tpu.matmul %108, %109, %cst_67 {dimension_numbers = #tpu.dot_dimension_numbers<[1], [0], [0], [1], [0, 0, 1, 1], [], []>} : vector<8x288xbf16>, vector<288x256xbf16>, vector<8x256xf32> -> vector<8x256xf32>
    %c0_68 = arith.constant 0 : index
    %c0_69 = arith.constant 0 : index
    %c0_70 = arith.constant 0 : index
    %111 = vector.load %arg12[%c0_68, %c0_69, %c0_70] : memref<1x8x1xf32, #tpu.memory_space<vmem>>, vector<1x8x1xf32>
    %112 = vector.shape_cast %111 : vector<1x8x1xf32> to vector<8x1xf32>
    %113 = vector.broadcast %112 : vector<8x1xf32> to vector<8x256xf32>
    %114 = arith.addf %110, %113 : vector<8x256xf32>
    %c0_71 = arith.constant 0 : index
    %c0_72 = arith.constant 0 : index
    %c0_73 = arith.constant 0 : index
    %115 = vector.load %arg13[%c0_71, %c0_72, %c0_73] : memref<1x4x1xf32, #tpu.memory_space<vmem>>, vector<1x4x1xf32>
    %116 = vector.shape_cast %115 : vector<1x4x1xf32> to vector<4x1xf32>
    %117 = vector.extract_strided_slice %114 {offsets = [0, 0], sizes = [4, 256], strides = [1, 1]} : vector<8x256xf32> to vector<4x256xf32>
    %118 = math.tanh %117 : vector<4x256xf32>
    %119 = vector.broadcast %116 : vector<4x1xf32> to vector<4x256xf32>
    %120 = arith.mulf %119, %118 : vector<4x256xf32>
    %121 = vector.extract_strided_slice %114 {offsets = [4, 0], sizes = [4, 256], strides = [1, 1]} : vector<8x256xf32> to vector<4x256xf32>
    %122 = arith.addf %13, %121 : vector<4x256xf32>
    %123 = math.exp %120 : vector<4x256xf32>
    %124 = arith.mulf %122, %123 : vector<4x256xf32>
    %cst_74 = arith.constant dense<0.000000e+00> : vector<4xf32>
    %125 = vector.multi_reduction <add>, %120, %cst_74 [1] : vector<4x256xf32> to vector<4xf32>
    %126 = vector.shape_cast %125 : vector<4xf32> to vector<4x1xf32>
    %cst_75 = arith.constant dense<0.000000e+00> : vector<1xf32>
    %127 = vector.multi_reduction <add>, %126, %cst_75 [0] : vector<4x1xf32> to vector<1xf32>
    %128 = vector.shape_cast %127 : vector<1xf32> to vector<1x1xf32>
    %129 = vector.extract_strided_slice %124 {offsets = [0, 0], sizes = [2, 256], strides = [1, 1]} : vector<4x256xf32> to vector<2x256xf32>
    %130 = vector.extract_strided_slice %124 {offsets = [2, 0], sizes = [2, 256], strides = [1, 1]} : vector<4x256xf32> to vector<2x256xf32>
    %cst_76 = arith.constant 0.000000e+00 : f32
    %131 = vector.broadcast %cst_76 : f32 to vector<2x17xf32>
    %132 = vector.extract_strided_slice %130 {offsets = [0, 0], sizes = [2, 239], strides = [1, 1]} : vector<2x256xf32> to vector<2x239xf32>
    %133 = tpu.concatenate %131, %132 in 1 : vector<2x17xf32>, vector<2x239xf32> -> vector<2x256xf32>
    %c0_77 = arith.constant 0 : index
    %c0_78 = arith.constant 0 : index
    %c0_79 = arith.constant 0 : index
    %134 = vector.load %arg4[%c0_77, %c0_78, %c0_79] : memref<9x1x256xf32, #tpu.memory_space<vmem>>, vector<1x1x256xf32>
    %135 = vector.shape_cast %134 : vector<1x1x256xf32> to vector<1x256xf32>
    %136 = vector.broadcast %135 : vector<1x256xf32> to vector<2x256xf32>
    %137 = arith.mulf %133, %136 : vector<2x256xf32>
    %138 = arith.truncf %137 : vector<2x256xf32> to vector<2x256xbf16>
    %c0_80 = arith.constant 0 : index
    %c0_81 = arith.constant 0 : index
    %139 = vector.load %arg26[%c0_80, %c0_81] : memref<18x256xbf16, #tpu.memory_space<vmem>>, vector<2x256xbf16>
    tpu.vector_store %arg26[%c0_80, %c0_81], %138 {strides = array<i32>} : memref<18x256xbf16, #tpu.memory_space<vmem>>, vector<2x256xbf16>,
    %cst_82 = arith.constant 0.000000e+00 : f32
    %140 = vector.broadcast %cst_82 : f32 to vector<2x16xf32>
    %141 = vector.extract_strided_slice %130 {offsets = [0, 0], sizes = [2, 240], strides = [1, 1]} : vector<2x256xf32> to vector<2x240xf32>
    %142 = tpu.concatenate %140, %141 in 1 : vector<2x16xf32>, vector<2x240xf32> -> vector<2x256xf32>
    %c1_83 = arith.constant 1 : index
    %c0_84 = arith.constant 0 : index
    %c0_85 = arith.constant 0 : index
    %143 = vector.load %arg4[%c1_83, %c0_84, %c0_85] : memref<9x1x256xf32, #tpu.memory_space<vmem>>, vector<1x1x256xf32>
    %144 = vector.shape_cast %143 : vector<1x1x256xf32> to vector<1x256xf32>
    %145 = vector.broadcast %144 : vector<1x256xf32> to vector<2x256xf32>
    %146 = arith.mulf %142, %145 : vector<2x256xf32>
    %147 = arith.truncf %146 : vector<2x256xf32> to vector<2x256xbf16>
    %c2_86 = arith.constant 2 : index
    %c0_87 = arith.constant 0 : index
    %148 = vector.load %arg26[%c2_86, %c0_87] : memref<18x256xbf16, #tpu.memory_space<vmem>>, vector<2x256xbf16>
    tpu.vector_store %arg26[%c2_86, %c0_87], %147 {strides = array<i32>} : memref<18x256xbf16, #tpu.memory_space<vmem>>, vector<2x256xbf16>,
    %cst_88 = arith.constant 0.000000e+00 : f32
    %149 = vector.broadcast %cst_88 : f32 to vector<2x15xf32>
    %150 = vector.extract_strided_slice %130 {offsets = [0, 0], sizes = [2, 241], strides = [1, 1]} : vector<2x256xf32> to vector<2x241xf32>
    %151 = tpu.concatenate %149, %150 in 1 : vector<2x15xf32>, vector<2x241xf32> -> vector<2x256xf32>
    %c2_89 = arith.constant 2 : index
    %c0_90 = arith.constant 0 : index
    %c0_91 = arith.constant 0 : index
    %152 = vector.load %arg4[%c2_89, %c0_90, %c0_91] : memref<9x1x256xf32, #tpu.memory_space<vmem>>, vector<1x1x256xf32>
    %153 = vector.shape_cast %152 : vector<1x1x256xf32> to vector<1x256xf32>
    %154 = vector.broadcast %153 : vector<1x256xf32> to vector<2x256xf32>
    %155 = arith.mulf %151, %154 : vector<2x256xf32>
    %156 = arith.truncf %155 : vector<2x256xf32> to vector<2x256xbf16>
    %c4 = arith.constant 4 : index
    %c0_92 = arith.constant 0 : index
    %157 = vector.load %arg26[%c4, %c0_92] : memref<18x256xbf16, #tpu.memory_space<vmem>>, vector<2x256xbf16>
    tpu.vector_store %arg26[%c4, %c0_92], %156 {strides = array<i32>} : memref<18x256xbf16, #tpu.memory_space<vmem>>, vector<2x256xbf16>,
    %cst_93 = arith.constant 0.000000e+00 : f32
    %158 = vector.broadcast %cst_93 : f32 to vector<2x1xf32>
    %159 = vector.extract_strided_slice %130 {offsets = [0, 0], sizes = [2, 255], strides = [1, 1]} : vector<2x256xf32> to vector<2x255xf32>
    %160 = tpu.concatenate %158, %159 in 1 : vector<2x1xf32>, vector<2x255xf32> -> vector<2x256xf32>
    %c3_94 = arith.constant 3 : index
    %c0_95 = arith.constant 0 : index
    %c0_96 = arith.constant 0 : index
    %161 = vector.load %arg4[%c3_94, %c0_95, %c0_96] : memref<9x1x256xf32, #tpu.memory_space<vmem>>, vector<1x1x256xf32>
    %162 = vector.shape_cast %161 : vector<1x1x256xf32> to vector<1x256xf32>
    %163 = vector.broadcast %162 : vector<1x256xf32> to vector<2x256xf32>
    %164 = arith.mulf %160, %163 : vector<2x256xf32>
    %165 = arith.truncf %164 : vector<2x256xf32> to vector<2x256xbf16>
    %c6_97 = arith.constant 6 : index
    %c0_98 = arith.constant 0 : index
    %166 = vector.load %arg26[%c6_97, %c0_98] : memref<18x256xbf16, #tpu.memory_space<vmem>>, vector<2x256xbf16>
    tpu.vector_store %arg26[%c6_97, %c0_98], %165 {strides = array<i32>} : memref<18x256xbf16, #tpu.memory_space<vmem>>, vector<2x256xbf16>,
    %167 = arith.truncf %130 : vector<2x256xf32> to vector<2x256xbf16>
    %c8_99 = arith.constant 8 : index
    %c0_100 = arith.constant 0 : index
    %168 = vector.load %arg26[%c8_99, %c0_100] : memref<18x256xbf16, #tpu.memory_space<vmem>>, vector<2x256xbf16>
    tpu.vector_store %arg26[%c8_99, %c0_100], %167 {strides = array<i32>} : memref<18x256xbf16, #tpu.memory_space<vmem>>, vector<2x256xbf16>,
    %169 = vector.extract_strided_slice %130 {offsets = [0, 1], sizes = [2, 255], strides = [1, 1]} : vector<2x256xf32> to vector<2x255xf32>
    %cst_101 = arith.constant 0.000000e+00 : f32
    %170 = vector.broadcast %cst_101 : f32 to vector<2x1xf32>
    %171 = tpu.concatenate %169, %170 in 1 : vector<2x255xf32>, vector<2x1xf32> -> vector<2x256xf32>
    %c5_102 = arith.constant 5 : index
    %c0_103 = arith.constant 0 : index
    %c0_104 = arith.constant 0 : index
    %172 = vector.load %arg4[%c5_102, %c0_103, %c0_104] : memref<9x1x256xf32, #tpu.memory_space<vmem>>, vector<1x1x256xf32>
    %173 = vector.shape_cast %172 : vector<1x1x256xf32> to vector<1x256xf32>
    %174 = vector.broadcast %173 : vector<1x256xf32> to vector<2x256xf32>
    %175 = arith.mulf %171, %174 : vector<2x256xf32>
    %176 = arith.truncf %175 : vector<2x256xf32> to vector<2x256xbf16>
    %c10 = arith.constant 10 : index
    %c0_105 = arith.constant 0 : index
    %177 = vector.load %arg26[%c10, %c0_105] : memref<18x256xbf16, #tpu.memory_space<vmem>>, vector<2x256xbf16>
    tpu.vector_store %arg26[%c10, %c0_105], %176 {strides = array<i32>} : memref<18x256xbf16, #tpu.memory_space<vmem>>, vector<2x256xbf16>,
    %178 = vector.extract_strided_slice %130 {offsets = [0, 15], sizes = [2, 241], strides = [1, 1]} : vector<2x256xf32> to vector<2x241xf32>
    %cst_106 = arith.constant 0.000000e+00 : f32
    %179 = vector.broadcast %cst_106 : f32 to vector<2x15xf32>
    %180 = tpu.concatenate %178, %179 in 1 : vector<2x241xf32>, vector<2x15xf32> -> vector<2x256xf32>
    %c6_107 = arith.constant 6 : index
    %c0_108 = arith.constant 0 : index
    %c0_109 = arith.constant 0 : index
    %181 = vector.load %arg4[%c6_107, %c0_108, %c0_109] : memref<9x1x256xf32, #tpu.memory_space<vmem>>, vector<1x1x256xf32>
    %182 = vector.shape_cast %181 : vector<1x1x256xf32> to vector<1x256xf32>
    %183 = vector.broadcast %182 : vector<1x256xf32> to vector<2x256xf32>
    %184 = arith.mulf %180, %183 : vector<2x256xf32>
    %185 = arith.truncf %184 : vector<2x256xf32> to vector<2x256xbf16>
    %c12 = arith.constant 12 : index
    %c0_110 = arith.constant 0 : index
    %186 = vector.load %arg26[%c12, %c0_110] : memref<18x256xbf16, #tpu.memory_space<vmem>>, vector<2x256xbf16>
    tpu.vector_store %arg26[%c12, %c0_110], %185 {strides = array<i32>} : memref<18x256xbf16, #tpu.memory_space<vmem>>, vector<2x256xbf16>,
    %187 = vector.extract_strided_slice %130 {offsets = [0, 16], sizes = [2, 240], strides = [1, 1]} : vector<2x256xf32> to vector<2x240xf32>
    %cst_111 = arith.constant 0.000000e+00 : f32
    %188 = vector.broadcast %cst_111 : f32 to vector<2x16xf32>
    %189 = tpu.concatenate %187, %188 in 1 : vector<2x240xf32>, vector<2x16xf32> -> vector<2x256xf32>
    %c7_112 = arith.constant 7 : index
    %c0_113 = arith.constant 0 : index
    %c0_114 = arith.constant 0 : index
    %190 = vector.load %arg4[%c7_112, %c0_113, %c0_114] : memref<9x1x256xf32, #tpu.memory_space<vmem>>, vector<1x1x256xf32>
    %191 = vector.shape_cast %190 : vector<1x1x256xf32> to vector<1x256xf32>
    %192 = vector.broadcast %191 : vector<1x256xf32> to vector<2x256xf32>
    %193 = arith.mulf %189, %192 : vector<2x256xf32>
    %194 = arith.truncf %193 : vector<2x256xf32> to vector<2x256xbf16>
    %c14 = arith.constant 14 : index
    %c0_115 = arith.constant 0 : index
    %195 = vector.load %arg26[%c14, %c0_115] : memref<18x256xbf16, #tpu.memory_space<vmem>>, vector<2x256xbf16>
    tpu.vector_store %arg26[%c14, %c0_115], %194 {strides = array<i32>} : memref<18x256xbf16, #tpu.memory_space<vmem>>, vector<2x256xbf16>,
    %196 = vector.extract_strided_slice %130 {offsets = [0, 17], sizes = [2, 239], strides = [1, 1]} : vector<2x256xf32> to vector<2x239xf32>
    %cst_116 = arith.constant 0.000000e+00 : f32
    %197 = vector.broadcast %cst_116 : f32 to vector<2x17xf32>
    %198 = tpu.concatenate %196, %197 in 1 : vector<2x239xf32>, vector<2x17xf32> -> vector<2x256xf32>
    %c8_117 = arith.constant 8 : index
    %c0_118 = arith.constant 0 : index
    %c0_119 = arith.constant 0 : index
    %199 = vector.load %arg4[%c8_117, %c0_118, %c0_119] : memref<9x1x256xf32, #tpu.memory_space<vmem>>, vector<1x1x256xf32>
    %200 = vector.shape_cast %199 : vector<1x1x256xf32> to vector<1x256xf32>
    %201 = vector.broadcast %200 : vector<1x256xf32> to vector<2x256xf32>
    %202 = arith.mulf %198, %201 : vector<2x256xf32>
    %203 = arith.truncf %202 : vector<2x256xf32> to vector<2x256xbf16>
    %c16 = arith.constant 16 : index
    %c0_120 = arith.constant 0 : index
    %204 = vector.load %arg26[%c16, %c0_120] : memref<18x256xbf16, #tpu.memory_space<vmem>>, vector<2x256xbf16>
    tpu.vector_store %arg26[%c16, %c0_120], %203 {strides = array<i32>} : memref<18x256xbf16, #tpu.memory_space<vmem>>, vector<2x256xbf16>,
    %c0_121 = arith.constant 0 : index
    %c0_122 = arith.constant 0 : index
    %c0_123 = arith.constant 0 : index
    %205 = vector.load %arg14[%c0_121, %c0_122, %c0_123] : memref<1x32x18xbf16, #tpu.memory_space<vmem>>, vector<1x32x18xbf16>
    %206 = vector.shape_cast %205 : vector<1x32x18xbf16> to vector<32x18xbf16>
    %c0_124 = arith.constant 0 : index
    %c0_125 = arith.constant 0 : index
    %207 = vector.load %arg26[%c0_124, %c0_125] : memref<18x256xbf16, #tpu.memory_space<vmem>>, vector<18x256xbf16>
    %cst_126 = arith.constant dense<0.000000e+00> : vector<32x256xf32>
    %208 = tpu.matmul %206, %207, %cst_126 {dimension_numbers = #tpu.dot_dimension_numbers<[1], [0], [0], [1], [0, 0, 1, 1], [], []>} : vector<32x18xbf16>, vector<18x256xbf16>, vector<32x256xf32> -> vector<32x256xf32>
    %c0_127 = arith.constant 0 : index
    %c0_128 = arith.constant 0 : index
    %c0_129 = arith.constant 0 : index
    %209 = vector.load %arg15[%c0_127, %c0_128, %c0_129] : memref<1x32x36xbf16, #tpu.memory_space<vmem>>, vector<1x32x36xbf16>
    %210 = vector.shape_cast %209 : vector<1x32x36xbf16> to vector<32x36xbf16>
    %cst_130 = arith.constant dense<0.000000e+00> : vector<32x256xf32>
    %211 = tpu.matmul %210, %5, %cst_130 {dimension_numbers = #tpu.dot_dimension_numbers<[1], [0], [0], [1], [0, 0, 1, 1], [], []>} : vector<32x36xbf16>, vector<36x256xbf16>, vector<32x256xf32> -> vector<32x256xf32>
    %212 = arith.addf %208, %211 : vector<32x256xf32>
    %c0_131 = arith.constant 0 : index
    %c0_132 = arith.constant 0 : index
    %c0_133 = arith.constant 0 : index
    %213 = vector.load %arg16[%c0_131, %c0_132, %c0_133] : memref<1x32x1xf32, #tpu.memory_space<vmem>>, vector<1x32x1xf32>
    %214 = vector.shape_cast %213 : vector<1x32x1xf32> to vector<32x1xf32>
    %215 = vector.broadcast %214 : vector<32x1xf32> to vector<32x256xf32>
    %216 = arith.addf %212, %215 : vector<32x256xf32>
    %cst_134 = arith.constant 0.000000e+00 : f32
    %217 = vector.broadcast %cst_134 : f32 to vector<32x256xf32>
    %218 = arith.maximumf %216, %217 : vector<32x256xf32>
    %c0_135 = arith.constant 0 : index
    %c0_136 = arith.constant 0 : index
    %c0_137 = arith.constant 0 : index
    %219 = vector.load %arg17[%c0_135, %c0_136, %c0_137] : memref<1x32x32xbf16, #tpu.memory_space<vmem>>, vector<1x32x32xbf16>
    %220 = vector.shape_cast %219 : vector<1x32x32xbf16> to vector<32x32xbf16>
    %221 = arith.truncf %218 : vector<32x256xf32> to vector<32x256xbf16>
    %cst_138 = arith.constant dense<0.000000e+00> : vector<32x256xf32>
    %222 = tpu.matmul %220, %221, %cst_138 {dimension_numbers = #tpu.dot_dimension_numbers<[1], [0], [0], [1], [0, 0, 1, 1], [], []>} : vector<32x32xbf16>, vector<32x256xbf16>, vector<32x256xf32> -> vector<32x256xf32>
    %c0_139 = arith.constant 0 : index
    %c0_140 = arith.constant 0 : index
    %c0_141 = arith.constant 0 : index
    %223 = vector.load %arg18[%c0_139, %c0_140, %c0_141] : memref<1x32x1xf32, #tpu.memory_space<vmem>>, vector<1x32x1xf32>
    %224 = vector.shape_cast %223 : vector<1x32x1xf32> to vector<32x1xf32>
    %225 = vector.broadcast %224 : vector<32x1xf32> to vector<32x256xf32>
    %226 = arith.addf %222, %225 : vector<32x256xf32>
    %cst_142 = arith.constant 0.000000e+00 : f32
    %227 = vector.broadcast %cst_142 : f32 to vector<32x256xf32>
    %228 = arith.maximumf %226, %227 : vector<32x256xf32>
    %cst_143 = arith.constant 0.000000e+00 : f32
    %229 = vector.broadcast %cst_143 : f32 to vector<32x17xf32>
    %230 = vector.extract_strided_slice %228 {offsets = [0, 0], sizes = [32, 239], strides = [1, 1]} : vector<32x256xf32> to vector<32x239xf32>
    %231 = tpu.concatenate %229, %230 in 1 : vector<32x17xf32>, vector<32x239xf32> -> vector<32x256xf32>
    %c0_144 = arith.constant 0 : index
    %c0_145 = arith.constant 0 : index
    %c0_146 = arith.constant 0 : index
    %232 = vector.load %arg4[%c0_144, %c0_145, %c0_146] : memref<9x1x256xf32, #tpu.memory_space<vmem>>, vector<1x1x256xf32>
    %233 = vector.shape_cast %232 : vector<1x1x256xf32> to vector<1x256xf32>
    %234 = vector.broadcast %233 : vector<1x256xf32> to vector<32x256xf32>
    %235 = arith.mulf %231, %234 : vector<32x256xf32>
    %236 = arith.truncf %235 : vector<32x256xf32> to vector<32x256xbf16>
    %c0_147 = arith.constant 0 : index
    %c0_148 = arith.constant 0 : index
    %237 = vector.load %arg25[%c0_147, %c0_148] : memref<288x256xbf16, #tpu.memory_space<vmem>>, vector<32x256xbf16>
    tpu.vector_store %arg25[%c0_147, %c0_148], %236 {strides = array<i32>} : memref<288x256xbf16, #tpu.memory_space<vmem>>, vector<32x256xbf16>,
    %cst_149 = arith.constant 0.000000e+00 : f32
    %238 = vector.broadcast %cst_149 : f32 to vector<32x16xf32>
    %239 = vector.extract_strided_slice %228 {offsets = [0, 0], sizes = [32, 240], strides = [1, 1]} : vector<32x256xf32> to vector<32x240xf32>
    %240 = tpu.concatenate %238, %239 in 1 : vector<32x16xf32>, vector<32x240xf32> -> vector<32x256xf32>
    %c1_150 = arith.constant 1 : index
    %c0_151 = arith.constant 0 : index
    %c0_152 = arith.constant 0 : index
    %241 = vector.load %arg4[%c1_150, %c0_151, %c0_152] : memref<9x1x256xf32, #tpu.memory_space<vmem>>, vector<1x1x256xf32>
    %242 = vector.shape_cast %241 : vector<1x1x256xf32> to vector<1x256xf32>
    %243 = vector.broadcast %242 : vector<1x256xf32> to vector<32x256xf32>
    %244 = arith.mulf %240, %243 : vector<32x256xf32>
    %245 = arith.truncf %244 : vector<32x256xf32> to vector<32x256xbf16>
    %c32_153 = arith.constant 32 : index
    %c0_154 = arith.constant 0 : index
    %246 = vector.load %arg25[%c32_153, %c0_154] : memref<288x256xbf16, #tpu.memory_space<vmem>>, vector<32x256xbf16>
    tpu.vector_store %arg25[%c32_153, %c0_154], %245 {strides = array<i32>} : memref<288x256xbf16, #tpu.memory_space<vmem>>, vector<32x256xbf16>,
    %cst_155 = arith.constant 0.000000e+00 : f32
    %247 = vector.broadcast %cst_155 : f32 to vector<32x15xf32>
    %248 = vector.extract_strided_slice %228 {offsets = [0, 0], sizes = [32, 241], strides = [1, 1]} : vector<32x256xf32> to vector<32x241xf32>
    %249 = tpu.concatenate %247, %248 in 1 : vector<32x15xf32>, vector<32x241xf32> -> vector<32x256xf32>
    %c2_156 = arith.constant 2 : index
    %c0_157 = arith.constant 0 : index
    %c0_158 = arith.constant 0 : index
    %250 = vector.load %arg4[%c2_156, %c0_157, %c0_158] : memref<9x1x256xf32, #tpu.memory_space<vmem>>, vector<1x1x256xf32>
    %251 = vector.shape_cast %250 : vector<1x1x256xf32> to vector<1x256xf32>
    %252 = vector.broadcast %251 : vector<1x256xf32> to vector<32x256xf32>
    %253 = arith.mulf %249, %252 : vector<32x256xf32>
    %254 = arith.truncf %253 : vector<32x256xf32> to vector<32x256xbf16>
    %c64_159 = arith.constant 64 : index
    %c0_160 = arith.constant 0 : index
    %255 = vector.load %arg25[%c64_159, %c0_160] : memref<288x256xbf16, #tpu.memory_space<vmem>>, vector<32x256xbf16>
    tpu.vector_store %arg25[%c64_159, %c0_160], %254 {strides = array<i32>} : memref<288x256xbf16, #tpu.memory_space<vmem>>, vector<32x256xbf16>,
    %cst_161 = arith.constant 0.000000e+00 : f32
    %256 = vector.broadcast %cst_161 : f32 to vector<32x1xf32>
    %257 = vector.extract_strided_slice %228 {offsets = [0, 0], sizes = [32, 255], strides = [1, 1]} : vector<32x256xf32> to vector<32x255xf32>
    %258 = tpu.concatenate %256, %257 in 1 : vector<32x1xf32>, vector<32x255xf32> -> vector<32x256xf32>
    %c3_162 = arith.constant 3 : index
    %c0_163 = arith.constant 0 : index
    %c0_164 = arith.constant 0 : index
    %259 = vector.load %arg4[%c3_162, %c0_163, %c0_164] : memref<9x1x256xf32, #tpu.memory_space<vmem>>, vector<1x1x256xf32>
    %260 = vector.shape_cast %259 : vector<1x1x256xf32> to vector<1x256xf32>
    %261 = vector.broadcast %260 : vector<1x256xf32> to vector<32x256xf32>
    %262 = arith.mulf %258, %261 : vector<32x256xf32>
    %263 = arith.truncf %262 : vector<32x256xf32> to vector<32x256xbf16>
    %c96_165 = arith.constant 96 : index
    %c0_166 = arith.constant 0 : index
    %264 = vector.load %arg25[%c96_165, %c0_166] : memref<288x256xbf16, #tpu.memory_space<vmem>>, vector<32x256xbf16>
    tpu.vector_store %arg25[%c96_165, %c0_166], %263 {strides = array<i32>} : memref<288x256xbf16, #tpu.memory_space<vmem>>, vector<32x256xbf16>,
    %265 = arith.truncf %228 : vector<32x256xf32> to vector<32x256xbf16>
    %c128_167 = arith.constant 128 : index
    %c0_168 = arith.constant 0 : index
    %266 = vector.load %arg25[%c128_167, %c0_168] : memref<288x256xbf16, #tpu.memory_space<vmem>>, vector<32x256xbf16>
    tpu.vector_store %arg25[%c128_167, %c0_168], %265 {strides = array<i32>} : memref<288x256xbf16, #tpu.memory_space<vmem>>, vector<32x256xbf16>,
    %267 = vector.extract_strided_slice %228 {offsets = [0, 1], sizes = [32, 255], strides = [1, 1]} : vector<32x256xf32> to vector<32x255xf32>
    %cst_169 = arith.constant 0.000000e+00 : f32
    %268 = vector.broadcast %cst_169 : f32 to vector<32x1xf32>
    %269 = tpu.concatenate %267, %268 in 1 : vector<32x255xf32>, vector<32x1xf32> -> vector<32x256xf32>
    %c5_170 = arith.constant 5 : index
    %c0_171 = arith.constant 0 : index
    %c0_172 = arith.constant 0 : index
    %270 = vector.load %arg4[%c5_170, %c0_171, %c0_172] : memref<9x1x256xf32, #tpu.memory_space<vmem>>, vector<1x1x256xf32>
    %271 = vector.shape_cast %270 : vector<1x1x256xf32> to vector<1x256xf32>
    %272 = vector.broadcast %271 : vector<1x256xf32> to vector<32x256xf32>
    %273 = arith.mulf %269, %272 : vector<32x256xf32>
    %274 = arith.truncf %273 : vector<32x256xf32> to vector<32x256xbf16>
    %c160_173 = arith.constant 160 : index
    %c0_174 = arith.constant 0 : index
    %275 = vector.load %arg25[%c160_173, %c0_174] : memref<288x256xbf16, #tpu.memory_space<vmem>>, vector<32x256xbf16>
    tpu.vector_store %arg25[%c160_173, %c0_174], %274 {strides = array<i32>} : memref<288x256xbf16, #tpu.memory_space<vmem>>, vector<32x256xbf16>,
    %276 = vector.extract_strided_slice %228 {offsets = [0, 15], sizes = [32, 241], strides = [1, 1]} : vector<32x256xf32> to vector<32x241xf32>
    %cst_175 = arith.constant 0.000000e+00 : f32
    %277 = vector.broadcast %cst_175 : f32 to vector<32x15xf32>
    %278 = tpu.concatenate %276, %277 in 1 : vector<32x241xf32>, vector<32x15xf32> -> vector<32x256xf32>
    %c6_176 = arith.constant 6 : index
    %c0_177 = arith.constant 0 : index
    %c0_178 = arith.constant 0 : index
    %279 = vector.load %arg4[%c6_176, %c0_177, %c0_178] : memref<9x1x256xf32, #tpu.memory_space<vmem>>, vector<1x1x256xf32>
    %280 = vector.shape_cast %279 : vector<1x1x256xf32> to vector<1x256xf32>
    %281 = vector.broadcast %280 : vector<1x256xf32> to vector<32x256xf32>
    %282 = arith.mulf %278, %281 : vector<32x256xf32>
    %283 = arith.truncf %282 : vector<32x256xf32> to vector<32x256xbf16>
    %c192_179 = arith.constant 192 : index
    %c0_180 = arith.constant 0 : index
    %284 = vector.load %arg25[%c192_179, %c0_180] : memref<288x256xbf16, #tpu.memory_space<vmem>>, vector<32x256xbf16>
    tpu.vector_store %arg25[%c192_179, %c0_180], %283 {strides = array<i32>} : memref<288x256xbf16, #tpu.memory_space<vmem>>, vector<32x256xbf16>,
    %285 = vector.extract_strided_slice %228 {offsets = [0, 16], sizes = [32, 240], strides = [1, 1]} : vector<32x256xf32> to vector<32x240xf32>
    %cst_181 = arith.constant 0.000000e+00 : f32
    %286 = vector.broadcast %cst_181 : f32 to vector<32x16xf32>
    %287 = tpu.concatenate %285, %286 in 1 : vector<32x240xf32>, vector<32x16xf32> -> vector<32x256xf32>
    %c7_182 = arith.constant 7 : index
    %c0_183 = arith.constant 0 : index
    %c0_184 = arith.constant 0 : index
    %288 = vector.load %arg4[%c7_182, %c0_183, %c0_184] : memref<9x1x256xf32, #tpu.memory_space<vmem>>, vector<1x1x256xf32>
    %289 = vector.shape_cast %288 : vector<1x1x256xf32> to vector<1x256xf32>
    %290 = vector.broadcast %289 : vector<1x256xf32> to vector<32x256xf32>
    %291 = arith.mulf %287, %290 : vector<32x256xf32>
    %292 = arith.truncf %291 : vector<32x256xf32> to vector<32x256xbf16>
    %c224_185 = arith.constant 224 : index
    %c0_186 = arith.constant 0 : index
    %293 = vector.load %arg25[%c224_185, %c0_186] : memref<288x256xbf16, #tpu.memory_space<vmem>>, vector<32x256xbf16>
    tpu.vector_store %arg25[%c224_185, %c0_186], %292 {strides = array<i32>} : memref<288x256xbf16, #tpu.memory_space<vmem>>, vector<32x256xbf16>,
    %294 = vector.extract_strided_slice %228 {offsets = [0, 17], sizes = [32, 239], strides = [1, 1]} : vector<32x256xf32> to vector<32x239xf32>
    %cst_187 = arith.constant 0.000000e+00 : f32
    %295 = vector.broadcast %cst_187 : f32 to vector<32x17xf32>
    %296 = tpu.concatenate %294, %295 in 1 : vector<32x239xf32>, vector<32x17xf32> -> vector<32x256xf32>
    %c8_188 = arith.constant 8 : index
    %c0_189 = arith.constant 0 : index
    %c0_190 = arith.constant 0 : index
    %297 = vector.load %arg4[%c8_188, %c0_189, %c0_190] : memref<9x1x256xf32, #tpu.memory_space<vmem>>, vector<1x1x256xf32>
    %298 = vector.shape_cast %297 : vector<1x1x256xf32> to vector<1x256xf32>
    %299 = vector.broadcast %298 : vector<1x256xf32> to vector<32x256xf32>
    %300 = arith.mulf %296, %299 : vector<32x256xf32>
    %301 = arith.truncf %300 : vector<32x256xf32> to vector<32x256xbf16>
    %c256_191 = arith.constant 256 : index
    %c0_192 = arith.constant 0 : index
    %302 = vector.load %arg25[%c256_191, %c0_192] : memref<288x256xbf16, #tpu.memory_space<vmem>>, vector<32x256xbf16>
    tpu.vector_store %arg25[%c256_191, %c0_192], %301 {strides = array<i32>} : memref<288x256xbf16, #tpu.memory_space<vmem>>, vector<32x256xbf16>,
    %c0_193 = arith.constant 0 : index
    %c0_194 = arith.constant 0 : index
    %c0_195 = arith.constant 0 : index
    %303 = vector.load %arg19[%c0_193, %c0_194, %c0_195] : memref<1x4x288xbf16, #tpu.memory_space<vmem>>, vector<1x4x288xbf16>
    %304 = vector.shape_cast %303 : vector<1x4x288xbf16> to vector<4x288xbf16>
    %c0_196 = arith.constant 0 : index
    %c0_197 = arith.constant 0 : index
    %305 = vector.load %arg25[%c0_196, %c0_197] : memref<288x256xbf16, #tpu.memory_space<vmem>>, vector<288x256xbf16>
    %cst_198 = arith.constant dense<0.000000e+00> : vector<4x256xf32>
    %306 = tpu.matmul %304, %305, %cst_198 {dimension_numbers = #tpu.dot_dimension_numbers<[1], [0], [0], [1], [0, 0, 1, 1], [], []>} : vector<4x288xbf16>, vector<288x256xbf16>, vector<4x256xf32> -> vector<4x256xf32>
    %c0_199 = arith.constant 0 : index
    %c0_200 = arith.constant 0 : index
    %c0_201 = arith.constant 0 : index
    %307 = vector.load %arg20[%c0_199, %c0_200, %c0_201] : memref<1x4x1xf32, #tpu.memory_space<vmem>>, vector<1x4x1xf32>
    %308 = vector.shape_cast %307 : vector<1x4x1xf32> to vector<4x1xf32>
    %309 = vector.broadcast %308 : vector<4x1xf32> to vector<4x256xf32>
    %310 = arith.addf %306, %309 : vector<4x256xf32>
    %c0_202 = arith.constant 0 : index
    %c0_203 = arith.constant 0 : index
    %c0_204 = arith.constant 0 : index
    %311 = vector.load %arg21[%c0_202, %c0_203, %c0_204] : memref<1x2x1xf32, #tpu.memory_space<vmem>>, vector<1x2x1xf32>
    %312 = vector.shape_cast %311 : vector<1x2x1xf32> to vector<2x1xf32>
    %313 = vector.extract_strided_slice %310 {offsets = [0, 0], sizes = [2, 256], strides = [1, 1]} : vector<4x256xf32> to vector<2x256xf32>
    %314 = math.tanh %313 : vector<2x256xf32>
    %315 = vector.broadcast %312 : vector<2x1xf32> to vector<2x256xf32>
    %316 = arith.mulf %315, %314 : vector<2x256xf32>
    %317 = vector.extract_strided_slice %310 {offsets = [2, 0], sizes = [2, 256], strides = [1, 1]} : vector<4x256xf32> to vector<2x256xf32>
    %318 = arith.addf %129, %317 : vector<2x256xf32>
    %319 = math.exp %316 : vector<2x256xf32>
    %320 = arith.mulf %318, %319 : vector<2x256xf32>
    %cst_205 = arith.constant dense<0.000000e+00> : vector<2xf32>
    %321 = vector.multi_reduction <add>, %316, %cst_205 [1] : vector<2x256xf32> to vector<2xf32>
    %322 = vector.shape_cast %321 : vector<2xf32> to vector<2x1xf32>
    %cst_206 = arith.constant dense<0.000000e+00> : vector<1xf32>
    %323 = vector.multi_reduction <add>, %322, %cst_206 [0] : vector<2x1xf32> to vector<1xf32>
    %324 = vector.shape_cast %323 : vector<1xf32> to vector<1x1xf32>
    %325 = arith.addf %128, %324 : vector<1x1xf32>
    %c0_207 = arith.constant 0 : index
    %c0_208 = arith.constant 0 : index
    %326 = vector.load %arg24[%c0_207, %c0_208] : memref<4x256xf32, #tpu.memory_space<vmem>>, vector<2x256xf32>
    tpu.vector_store %arg24[%c0_207, %c0_208], %320 {strides = array<i32>} : memref<4x256xf32, #tpu.memory_space<vmem>>, vector<2x256xf32>,
    %c2_209 = arith.constant 2 : index
    %c0_210 = arith.constant 0 : index
    %327 = vector.load %arg24[%c2_209, %c0_210] : memref<4x256xf32, #tpu.memory_space<vmem>>, vector<2x256xf32>
    tpu.vector_store %arg24[%c2_209, %c0_210], %130 {strides = array<i32>} : memref<4x256xf32, #tpu.memory_space<vmem>>, vector<2x256xf32>,
    %c0_211 = arith.constant 0 : index
    %c0_212 = arith.constant 0 : index
    %328 = vector.load %arg27[%c0_211, %c0_212] : memref<1x1xf32, #tpu.memory_space<vmem>>, vector<1x1xf32>
    %329 = arith.addf %328, %325 : vector<1x1xf32>
    %c0_213 = arith.constant 0 : index
    %c0_214 = arith.constant 0 : index
    %330 = vector.load %arg27[%c0_213, %c0_214] : memref<1x1xf32, #tpu.memory_space<vmem>>, vector<1x1xf32>
    tpu.vector_store %arg27[%c0_213, %c0_214], %329 {strides = array<i32>} : memref<1x1xf32, #tpu.memory_space<vmem>>, vector<1x1xf32>,
    %c1_i32 = arith.constant 1 : i32
    %331 = arith.cmpi eq, %arg1, %c1_i32 : i32
    %332 = arith.extui %331 : i1 to i32
    %c0_i32_215 = arith.constant 0 : i32
    %333 = arith.cmpi ne, %332, %c0_i32_215 : i32
    scf.if %333 {
      %c0_216 = arith.constant 0 : index
      %c0_217 = arith.constant 0 : index
      %334 = vector.load %arg24[%c0_216, %c0_217] : memref<4x256xf32, #tpu.memory_space<vmem>>, vector<4x256xf32>
      %c0_218 = arith.constant 0 : index
      %c0_219 = arith.constant 0 : index
      %c0_220 = arith.constant 0 : index
      %335 = vector.load %arg22[%c0_218, %c0_219, %c0_220] : memref<1x4x256xf32, #tpu.memory_space<vmem>>, vector<1x4x256xf32>
      %336 = vector.shape_cast %335 : vector<1x4x256xf32> to vector<4x256xf32>
      %337 = vector.shape_cast %334 : vector<4x256xf32> to vector<1x4x256xf32>
      tpu.vector_store %arg22[%c0_218, %c0_219, %c0_220], %337 {strides = array<i32>} : memref<1x4x256xf32, #tpu.memory_space<vmem>>, vector<1x4x256xf32>,
      %c0_221 = arith.constant 0 : index
      %c0_222 = arith.constant 0 : index
      %338 = vector.load %arg27[%c0_221, %c0_222] : memref<1x1xf32, #tpu.memory_space<vmem>>, vector<1x1xf32>
      %339 = vector.shape_cast %338 : vector<1x1xf32> to vector<1x1xf32>
      %340 = vector.broadcast %339 : vector<1x1xf32> to vector<1x128xf32>
      %c0_223 = arith.constant 0 : index
      %c0_224 = arith.constant 0 : index
      %c0_225 = arith.constant 0 : index
      %341 = vector.load %arg23[%c0_223, %c0_224, %c0_225] : memref<1x1x128xf32, #tpu.memory_space<vmem>>, vector<1x1x128xf32>
      %342 = vector.shape_cast %341 : vector<1x1x128xf32> to vector<1x128xf32>
      %343 = vector.shape_cast %340 : vector<1x128xf32> to vector<1x1x128xf32>
      tpu.vector_store %arg23[%c0_223, %c0_224, %c0_225], %343 {strides = array<i32>} : memref<1x1x128xf32, #tpu.memory_space<vmem>>, vector<1x1x128xf32>,
    } else {
    }
    return
  }
  func.func @transform_0(%arg0: i32, %arg1: i32) -> (i32, i32, i32) {
    %c0_i32 = arith.constant 0 : i32
    %c0_i32_0 = arith.constant 0 : i32
    %c0_i32_1 = arith.constant 0 : i32
    return %arg0, %c0_i32, %c0_i32_0 : i32, i32, i32
  }
  func.func @transform_1(%arg0: i32, %arg1: i32) -> (i32, i32, i32) {
    %c0_i32 = arith.constant 0 : i32
    %c0_i32_0 = arith.constant 0 : i32
    %c0_i32_1 = arith.constant 0 : i32
    return %arg0, %c0_i32, %c0_i32_0 : i32, i32, i32
  }
  func.func @transform_2(%arg0: i32, %arg1: i32) -> (i32, i32, i32) {
    %c0_i32 = arith.constant 0 : i32
    %c0_i32_0 = arith.constant 0 : i32
    %c0_i32_1 = arith.constant 0 : i32
    %c0_i32_2 = arith.constant 0 : i32
    return %c0_i32, %c0_i32_0, %c0_i32_1 : i32, i32, i32
  }
  func.func @transform_3(%arg0: i32, %arg1: i32) -> (i32, i32, i32) {
    %c0_i32 = arith.constant 0 : i32
    %c0_i32_0 = arith.constant 0 : i32
    %c0_i32_1 = arith.constant 0 : i32
    return %arg1, %c0_i32, %c0_i32_0 : i32, i32, i32
  }
  func.func @transform_4(%arg0: i32, %arg1: i32) -> (i32, i32, i32) {
    %c0_i32 = arith.constant 0 : i32
    %c0_i32_0 = arith.constant 0 : i32
    %c0_i32_1 = arith.constant 0 : i32
    return %arg1, %c0_i32, %c0_i32_0 : i32, i32, i32
  }
  func.func @transform_5(%arg0: i32, %arg1: i32) -> (i32, i32, i32) {
    %c0_i32 = arith.constant 0 : i32
    %c0_i32_0 = arith.constant 0 : i32
    %c0_i32_1 = arith.constant 0 : i32
    return %arg1, %c0_i32, %c0_i32_0 : i32, i32, i32
  }
  func.func @transform_6(%arg0: i32, %arg1: i32) -> (i32, i32, i32) {
    %c0_i32 = arith.constant 0 : i32
    %c0_i32_0 = arith.constant 0 : i32
    %c0_i32_1 = arith.constant 0 : i32
    return %arg1, %c0_i32, %c0_i32_0 : i32, i32, i32
  }
  func.func @transform_7(%arg0: i32, %arg1: i32) -> (i32, i32, i32) {
    %c0_i32 = arith.constant 0 : i32
    %c0_i32_0 = arith.constant 0 : i32
    %c0_i32_1 = arith.constant 0 : i32
    return %arg1, %c0_i32, %c0_i32_0 : i32, i32, i32
  }
  func.func @transform_8(%arg0: i32, %arg1: i32) -> (i32, i32, i32) {
    %c0_i32 = arith.constant 0 : i32
    %c0_i32_0 = arith.constant 0 : i32
    %c0_i32_1 = arith.constant 0 : i32
    return %arg1, %c0_i32, %c0_i32_0 : i32, i32, i32
  }
  func.func @transform_9(%arg0: i32, %arg1: i32) -> (i32, i32, i32) {
    %c0_i32 = arith.constant 0 : i32
    %c0_i32_0 = arith.constant 0 : i32
    %c0_i32_1 = arith.constant 0 : i32
    return %arg1, %c0_i32, %c0_i32_0 : i32, i32, i32
  }
  func.func @transform_10(%arg0: i32, %arg1: i32) -> (i32, i32, i32) {
    %c0_i32 = arith.constant 0 : i32
    %c0_i32_0 = arith.constant 0 : i32
    %c0_i32_1 = arith.constant 0 : i32
    return %arg1, %c0_i32, %c0_i32_0 : i32, i32, i32
  }
  func.func @transform_11(%arg0: i32, %arg1: i32) -> (i32, i32, i32) {
    %c0_i32 = arith.constant 0 : i32
    %c0_i32_0 = arith.constant 0 : i32
    %c0_i32_1 = arith.constant 0 : i32
    return %arg1, %c0_i32, %c0_i32_0 : i32, i32, i32
  }
  func.func @transform_12(%arg0: i32, %arg1: i32) -> (i32, i32, i32) {
    %c0_i32 = arith.constant 0 : i32
    %c0_i32_0 = arith.constant 0 : i32
    %c0_i32_1 = arith.constant 0 : i32
    return %arg1, %c0_i32, %c0_i32_0 : i32, i32, i32
  }
  func.func @transform_13(%arg0: i32, %arg1: i32) -> (i32, i32, i32) {
    %c0_i32 = arith.constant 0 : i32
    %c0_i32_0 = arith.constant 0 : i32
    %c0_i32_1 = arith.constant 0 : i32
    return %arg1, %c0_i32, %c0_i32_0 : i32, i32, i32
  }
  func.func @transform_14(%arg0: i32, %arg1: i32) -> (i32, i32, i32) {
    %c0_i32 = arith.constant 0 : i32
    %c0_i32_0 = arith.constant 0 : i32
    %c0_i32_1 = arith.constant 0 : i32
    return %arg1, %c0_i32, %c0_i32_0 : i32, i32, i32
  }
  func.func @transform_15(%arg0: i32, %arg1: i32) -> (i32, i32, i32) {
    %c0_i32 = arith.constant 0 : i32
    %c0_i32_0 = arith.constant 0 : i32
    %c0_i32_1 = arith.constant 0 : i32
    return %arg1, %c0_i32, %c0_i32_0 : i32, i32, i32
  }
  func.func @transform_16(%arg0: i32, %arg1: i32) -> (i32, i32, i32) {
    %c0_i32 = arith.constant 0 : i32
    %c0_i32_0 = arith.constant 0 : i32
    %c0_i32_1 = arith.constant 0 : i32
    return %arg1, %c0_i32, %c0_i32_0 : i32, i32, i32
  }
  func.func @transform_17(%arg0: i32, %arg1: i32) -> (i32, i32, i32) {
    %c0_i32 = arith.constant 0 : i32
    %c0_i32_0 = arith.constant 0 : i32
    %c0_i32_1 = arith.constant 0 : i32
    return %arg1, %c0_i32, %c0_i32_0 : i32, i32, i32
  }
  func.func @transform_18(%arg0: i32, %arg1: i32) -> (i32, i32, i32) {
    %c0_i32 = arith.constant 0 : i32
    %c0_i32_0 = arith.constant 0 : i32
    %c0_i32_1 = arith.constant 0 : i32
    return %arg1, %c0_i32, %c0_i32_0 : i32, i32, i32
  }
  func.func @transform_19(%arg0: i32, %arg1: i32) -> (i32, i32, i32) {
    %c0_i32 = arith.constant 0 : i32
    %c0_i32_0 = arith.constant 0 : i32
    %c0_i32_1 = arith.constant 0 : i32
    return %arg1, %c0_i32, %c0_i32_0 : i32, i32, i32
  }
  func.func @transform_20(%arg0: i32, %arg1: i32) -> (i32, i32, i32) {
    %c0_i32 = arith.constant 0 : i32
    %c0_i32_0 = arith.constant 0 : i32
    %c0_i32_1 = arith.constant 0 : i32
    return %arg0, %c0_i32, %c0_i32_0 : i32, i32, i32
  }
  func.func @transform_21(%arg0: i32, %arg1: i32) -> (i32, i32, i32) {
    %c0_i32 = arith.constant 0 : i32
    %c0_i32_0 = arith.constant 0 : i32
    %c0_i32_1 = arith.constant 0 : i32
    return %arg0, %c0_i32, %c0_i32_0 : i32, i32, i32
  }
}

module attributes {stable_mosaic.version = 11 : i64} {
  func.func @_glow_level_kernel(%arg0: i32, %arg1: i32, %arg2: memref<1x16x64xf32, #tpu.memory_space<vmem>>, %arg3: memref<1x144x64xbf16, #tpu.memory_space<vmem>>, %arg4: memref<9x1x64xf32, #tpu.memory_space<vmem>>, %arg5: memref<1x16x16xbf16, #tpu.memory_space<vmem>>, %arg6: memref<1x16x1xf32, #tpu.memory_space<vmem>>, %arg7: memref<1x32x144xbf16, #tpu.memory_space<vmem>>, %arg8: memref<1x32x1xf32, #tpu.memory_space<vmem>>, %arg9: memref<1x32x32xbf16, #tpu.memory_space<vmem>>, %arg10: memref<1x32x1xf32, #tpu.memory_space<vmem>>, %arg11: memref<1x32x288xbf16, #tpu.memory_space<vmem>>, %arg12: memref<1x32x1xf32, #tpu.memory_space<vmem>>, %arg13: memref<1x16x1xf32, #tpu.memory_space<vmem>>, %arg14: memref<1x32x72xbf16, #tpu.memory_space<vmem>>, %arg15: memref<1x32x144xbf16, #tpu.memory_space<vmem>>, %arg16: memref<1x32x1xf32, #tpu.memory_space<vmem>>, %arg17: memref<1x32x32xbf16, #tpu.memory_space<vmem>>, %arg18: memref<1x32x1xf32, #tpu.memory_space<vmem>>, %arg19: memref<1x16x288xbf16, #tpu.memory_space<vmem>>, %arg20: memref<1x16x1xf32, #tpu.memory_space<vmem>>, %arg21: memref<1x8x1xf32, #tpu.memory_space<vmem>>, %arg22: memref<1x16x64xf32, #tpu.memory_space<vmem>>, %arg23: memref<1x1x128xf32, #tpu.memory_space<vmem>>, %arg24: memref<16x64xf32, #tpu.memory_space<vmem>>, %arg25: memref<288x64xbf16, #tpu.memory_space<vmem>>, %arg26: memref<72x64xbf16, #tpu.memory_space<vmem>>, %arg27: memref<1x1xf32, #tpu.memory_space<vmem>>) attributes {dimension_semantics = [#tpu.dimension_semantics<parallel>, #tpu.dimension_semantics<arbitrary>], iteration_bounds = array<i64: 2, 2>, scalar_prefetch = 0 : i64, scratch_operands = 4 : i64, tpu.core_type = #tpu.core_type<tc>, window_params = [{transform_indices = @transform_0, window_bounds = array<i64: 1, 16, 64>}, {transform_indices = @transform_1, window_bounds = array<i64: 1, 144, 64>}, {pipeline_mode = #tpu.pipeline_mode<synchronous>, transform_indices = @transform_2, window_bounds = array<i64: 9, 1, 64>}, {transform_indices = @transform_3, window_bounds = array<i64: 1, 16, 16>}, {transform_indices = @transform_4, window_bounds = array<i64: 1, 16, 1>}, {transform_indices = @transform_5, window_bounds = array<i64: 1, 32, 144>}, {transform_indices = @transform_6, window_bounds = array<i64: 1, 32, 1>}, {transform_indices = @transform_7, window_bounds = array<i64: 1, 32, 32>}, {transform_indices = @transform_8, window_bounds = array<i64: 1, 32, 1>}, {transform_indices = @transform_9, window_bounds = array<i64: 1, 32, 288>}, {transform_indices = @transform_10, window_bounds = array<i64: 1, 32, 1>}, {transform_indices = @transform_11, window_bounds = array<i64: 1, 16, 1>}, {transform_indices = @transform_12, window_bounds = array<i64: 1, 32, 72>}, {transform_indices = @transform_13, window_bounds = array<i64: 1, 32, 144>}, {transform_indices = @transform_14, window_bounds = array<i64: 1, 32, 1>}, {transform_indices = @transform_15, window_bounds = array<i64: 1, 32, 32>}, {transform_indices = @transform_16, window_bounds = array<i64: 1, 32, 1>}, {transform_indices = @transform_17, window_bounds = array<i64: 1, 16, 288>}, {transform_indices = @transform_18, window_bounds = array<i64: 1, 16, 1>}, {transform_indices = @transform_19, window_bounds = array<i64: 1, 8, 1>}, {transform_indices = @transform_20, window_bounds = array<i64: 1, 16, 64>}, {transform_indices = @transform_21, window_bounds = array<i64: 1, 1, 128>}]} {
    %c0_i32 = arith.constant 0 : i32
    %0 = arith.cmpi eq, %arg1, %c0_i32 : i32
    %1 = arith.extui %0 : i1 to i32
    %c0_i32_0 = arith.constant 0 : i32
    %2 = arith.cmpi ne, %1, %c0_i32_0 : i32
    scf.if %2 {
      %c0_216 = arith.constant 0 : index
      %c0_217 = arith.constant 0 : index
      %c0_218 = arith.constant 0 : index
      %334 = vector.load %arg2[%c0_216, %c0_217, %c0_218] : memref<1x16x64xf32, #tpu.memory_space<vmem>>, vector<1x16x64xf32>
      %335 = vector.shape_cast %334 : vector<1x16x64xf32> to vector<16x64xf32>
      %c0_219 = arith.constant 0 : index
      %c0_220 = arith.constant 0 : index
      %336 = vector.load %arg24[%c0_219, %c0_220] : memref<16x64xf32, #tpu.memory_space<vmem>>, vector<16x64xf32>
      tpu.vector_store %arg24[%c0_219, %c0_220], %335 {strides = array<i32>} : memref<16x64xf32, #tpu.memory_space<vmem>>, vector<16x64xf32>,
      %cst_221 = arith.constant 0.000000e+00 : f32
      %337 = vector.broadcast %cst_221 : f32 to vector<1x1xf32>
      %c0_222 = arith.constant 0 : index
      %c0_223 = arith.constant 0 : index
      %338 = vector.load %arg27[%c0_222, %c0_223] : memref<1x1xf32, #tpu.memory_space<vmem>>, vector<1x1xf32>
      tpu.vector_store %arg27[%c0_222, %c0_223], %337 {strides = array<i32>} : memref<1x1xf32, #tpu.memory_space<vmem>>, vector<1x1xf32>,
    } else {
    }
    %c0 = arith.constant 0 : index
    %c0_1 = arith.constant 0 : index
    %3 = vector.load %arg24[%c0, %c0_1] : memref<16x64xf32, #tpu.memory_space<vmem>>, vector<16x64xf32>
    %c0_2 = arith.constant 0 : index
    %c0_3 = arith.constant 0 : index
    %c0_4 = arith.constant 0 : index
    %4 = vector.load %arg3[%c0_2, %c0_3, %c0_4] : memref<1x144x64xbf16, #tpu.memory_space<vmem>>, vector<1x144x64xbf16>
    %5 = vector.shape_cast %4 : vector<1x144x64xbf16> to vector<144x64xbf16>
    %c0_5 = arith.constant 0 : index
    %c0_6 = arith.constant 0 : index
    %c0_7 = arith.constant 0 : index
    %6 = vector.load %arg5[%c0_5, %c0_6, %c0_7] : memref<1x16x16xbf16, #tpu.memory_space<vmem>>, vector<1x16x16xbf16>
    %7 = vector.shape_cast %6 : vector<1x16x16xbf16> to vector<16x16xbf16>
    %8 = arith.truncf %3 : vector<16x64xf32> to vector<16x64xbf16>
    %cst = arith.constant dense<0.000000e+00> : vector<16x64xf32>
    %9 = tpu.matmul %7, %8, %cst {dimension_numbers = #tpu.dot_dimension_numbers<[1], [0], [0], [1], [0, 0, 1, 1], [], []>} : vector<16x16xbf16>, vector<16x64xbf16>, vector<16x64xf32> -> vector<16x64xf32>
    %c0_8 = arith.constant 0 : index
    %c0_9 = arith.constant 0 : index
    %c0_10 = arith.constant 0 : index
    %10 = vector.load %arg6[%c0_8, %c0_9, %c0_10] : memref<1x16x1xf32, #tpu.memory_space<vmem>>, vector<1x16x1xf32>
    %11 = vector.shape_cast %10 : vector<1x16x1xf32> to vector<16x1xf32>
    %12 = vector.broadcast %11 : vector<16x1xf32> to vector<16x64xf32>
    %13 = arith.addf %9, %12 : vector<16x64xf32>
    %c0_11 = arith.constant 0 : index
    %c0_12 = arith.constant 0 : index
    %c0_13 = arith.constant 0 : index
    %14 = vector.load %arg7[%c0_11, %c0_12, %c0_13] : memref<1x32x144xbf16, #tpu.memory_space<vmem>>, vector<1x32x144xbf16>
    %15 = vector.shape_cast %14 : vector<1x32x144xbf16> to vector<32x144xbf16>
    %cst_14 = arith.constant dense<0.000000e+00> : vector<32x64xf32>
    %16 = tpu.matmul %15, %5, %cst_14 {dimension_numbers = #tpu.dot_dimension_numbers<[1], [0], [0], [1], [0, 0, 1, 1], [], []>} : vector<32x144xbf16>, vector<144x64xbf16>, vector<32x64xf32> -> vector<32x64xf32>
    %c0_15 = arith.constant 0 : index
    %c0_16 = arith.constant 0 : index
    %c0_17 = arith.constant 0 : index
    %17 = vector.load %arg8[%c0_15, %c0_16, %c0_17] : memref<1x32x1xf32, #tpu.memory_space<vmem>>, vector<1x32x1xf32>
    %18 = vector.shape_cast %17 : vector<1x32x1xf32> to vector<32x1xf32>
    %19 = vector.broadcast %18 : vector<32x1xf32> to vector<32x64xf32>
    %20 = arith.addf %16, %19 : vector<32x64xf32>
    %cst_18 = arith.constant 0.000000e+00 : f32
    %21 = vector.broadcast %cst_18 : f32 to vector<32x64xf32>
    %22 = arith.maximumf %20, %21 : vector<32x64xf32>
    %c0_19 = arith.constant 0 : index
    %c0_20 = arith.constant 0 : index
    %c0_21 = arith.constant 0 : index
    %23 = vector.load %arg9[%c0_19, %c0_20, %c0_21] : memref<1x32x32xbf16, #tpu.memory_space<vmem>>, vector<1x32x32xbf16>
    %24 = vector.shape_cast %23 : vector<1x32x32xbf16> to vector<32x32xbf16>
    %25 = arith.truncf %22 : vector<32x64xf32> to vector<32x64xbf16>
    %cst_22 = arith.constant dense<0.000000e+00> : vector<32x64xf32>
    %26 = tpu.matmul %24, %25, %cst_22 {dimension_numbers = #tpu.dot_dimension_numbers<[1], [0], [0], [1], [0, 0, 1, 1], [], []>} : vector<32x32xbf16>, vector<32x64xbf16>, vector<32x64xf32> -> vector<32x64xf32>
    %c0_23 = arith.constant 0 : index
    %c0_24 = arith.constant 0 : index
    %c0_25 = arith.constant 0 : index
    %27 = vector.load %arg10[%c0_23, %c0_24, %c0_25] : memref<1x32x1xf32, #tpu.memory_space<vmem>>, vector<1x32x1xf32>
    %28 = vector.shape_cast %27 : vector<1x32x1xf32> to vector<32x1xf32>
    %29 = vector.broadcast %28 : vector<32x1xf32> to vector<32x64xf32>
    %30 = arith.addf %26, %29 : vector<32x64xf32>
    %cst_26 = arith.constant 0.000000e+00 : f32
    %31 = vector.broadcast %cst_26 : f32 to vector<32x64xf32>
    %32 = arith.maximumf %30, %31 : vector<32x64xf32>
    %cst_27 = arith.constant 0.000000e+00 : f32
    %33 = vector.broadcast %cst_27 : f32 to vector<32x9xf32>
    %34 = vector.extract_strided_slice %32 {offsets = [0, 0], sizes = [32, 55], strides = [1, 1]} : vector<32x64xf32> to vector<32x55xf32>
    %35 = tpu.concatenate %33, %34 in 1 : vector<32x9xf32>, vector<32x55xf32> -> vector<32x64xf32>
    %c0_28 = arith.constant 0 : index
    %c0_29 = arith.constant 0 : index
    %c0_30 = arith.constant 0 : index
    %36 = vector.load %arg4[%c0_28, %c0_29, %c0_30] : memref<9x1x64xf32, #tpu.memory_space<vmem>>, vector<1x1x64xf32>
    %37 = vector.shape_cast %36 : vector<1x1x64xf32> to vector<1x64xf32>
    %38 = vector.broadcast %37 : vector<1x64xf32> to vector<32x64xf32>
    %39 = arith.mulf %35, %38 : vector<32x64xf32>
    %40 = arith.truncf %39 : vector<32x64xf32> to vector<32x64xbf16>
    %c0_31 = arith.constant 0 : index
    %c0_32 = arith.constant 0 : index
    %41 = vector.load %arg25[%c0_31, %c0_32] : memref<288x64xbf16, #tpu.memory_space<vmem>>, vector<32x64xbf16>
    tpu.vector_store %arg25[%c0_31, %c0_32], %40 {strides = array<i32>} : memref<288x64xbf16, #tpu.memory_space<vmem>>, vector<32x64xbf16>,
    %cst_33 = arith.constant 0.000000e+00 : f32
    %42 = vector.broadcast %cst_33 : f32 to vector<32x8xf32>
    %43 = vector.extract_strided_slice %32 {offsets = [0, 0], sizes = [32, 56], strides = [1, 1]} : vector<32x64xf32> to vector<32x56xf32>
    %44 = tpu.concatenate %42, %43 in 1 : vector<32x8xf32>, vector<32x56xf32> -> vector<32x64xf32>
    %c1 = arith.constant 1 : index
    %c0_34 = arith.constant 0 : index
    %c0_35 = arith.constant 0 : index
    %45 = vector.load %arg4[%c1, %c0_34, %c0_35] : memref<9x1x64xf32, #tpu.memory_space<vmem>>, vector<1x1x64xf32>
    %46 = vector.shape_cast %45 : vector<1x1x64xf32> to vector<1x64xf32>
    %47 = vector.broadcast %46 : vector<1x64xf32> to vector<32x64xf32>
    %48 = arith.mulf %44, %47 : vector<32x64xf32>
    %49 = arith.truncf %48 : vector<32x64xf32> to vector<32x64xbf16>
    %c32 = arith.constant 32 : index
    %c0_36 = arith.constant 0 : index
    %50 = vector.load %arg25[%c32, %c0_36] : memref<288x64xbf16, #tpu.memory_space<vmem>>, vector<32x64xbf16>
    tpu.vector_store %arg25[%c32, %c0_36], %49 {strides = array<i32>} : memref<288x64xbf16, #tpu.memory_space<vmem>>, vector<32x64xbf16>,
    %cst_37 = arith.constant 0.000000e+00 : f32
    %51 = vector.broadcast %cst_37 : f32 to vector<32x7xf32>
    %52 = vector.extract_strided_slice %32 {offsets = [0, 0], sizes = [32, 57], strides = [1, 1]} : vector<32x64xf32> to vector<32x57xf32>
    %53 = tpu.concatenate %51, %52 in 1 : vector<32x7xf32>, vector<32x57xf32> -> vector<32x64xf32>
    %c2 = arith.constant 2 : index
    %c0_38 = arith.constant 0 : index
    %c0_39 = arith.constant 0 : index
    %54 = vector.load %arg4[%c2, %c0_38, %c0_39] : memref<9x1x64xf32, #tpu.memory_space<vmem>>, vector<1x1x64xf32>
    %55 = vector.shape_cast %54 : vector<1x1x64xf32> to vector<1x64xf32>
    %56 = vector.broadcast %55 : vector<1x64xf32> to vector<32x64xf32>
    %57 = arith.mulf %53, %56 : vector<32x64xf32>
    %58 = arith.truncf %57 : vector<32x64xf32> to vector<32x64xbf16>
    %c64 = arith.constant 64 : index
    %c0_40 = arith.constant 0 : index
    %59 = vector.load %arg25[%c64, %c0_40] : memref<288x64xbf16, #tpu.memory_space<vmem>>, vector<32x64xbf16>
    tpu.vector_store %arg25[%c64, %c0_40], %58 {strides = array<i32>} : memref<288x64xbf16, #tpu.memory_space<vmem>>, vector<32x64xbf16>,
    %cst_41 = arith.constant 0.000000e+00 : f32
    %60 = vector.broadcast %cst_41 : f32 to vector<32x1xf32>
    %61 = vector.extract_strided_slice %32 {offsets = [0, 0], sizes = [32, 63], strides = [1, 1]} : vector<32x64xf32> to vector<32x63xf32>
    %62 = tpu.concatenate %60, %61 in 1 : vector<32x1xf32>, vector<32x63xf32> -> vector<32x64xf32>
    %c3 = arith.constant 3 : index
    %c0_42 = arith.constant 0 : index
    %c0_43 = arith.constant 0 : index
    %63 = vector.load %arg4[%c3, %c0_42, %c0_43] : memref<9x1x64xf32, #tpu.memory_space<vmem>>, vector<1x1x64xf32>
    %64 = vector.shape_cast %63 : vector<1x1x64xf32> to vector<1x64xf32>
    %65 = vector.broadcast %64 : vector<1x64xf32> to vector<32x64xf32>
    %66 = arith.mulf %62, %65 : vector<32x64xf32>
    %67 = arith.truncf %66 : vector<32x64xf32> to vector<32x64xbf16>
    %c96 = arith.constant 96 : index
    %c0_44 = arith.constant 0 : index
    %68 = vector.load %arg25[%c96, %c0_44] : memref<288x64xbf16, #tpu.memory_space<vmem>>, vector<32x64xbf16>
    tpu.vector_store %arg25[%c96, %c0_44], %67 {strides = array<i32>} : memref<288x64xbf16, #tpu.memory_space<vmem>>, vector<32x64xbf16>,
    %69 = arith.truncf %32 : vector<32x64xf32> to vector<32x64xbf16>
    %c128 = arith.constant 128 : index
    %c0_45 = arith.constant 0 : index
    %70 = vector.load %arg25[%c128, %c0_45] : memref<288x64xbf16, #tpu.memory_space<vmem>>, vector<32x64xbf16>
    tpu.vector_store %arg25[%c128, %c0_45], %69 {strides = array<i32>} : memref<288x64xbf16, #tpu.memory_space<vmem>>, vector<32x64xbf16>,
    %71 = vector.extract_strided_slice %32 {offsets = [0, 1], sizes = [32, 63], strides = [1, 1]} : vector<32x64xf32> to vector<32x63xf32>
    %cst_46 = arith.constant 0.000000e+00 : f32
    %72 = vector.broadcast %cst_46 : f32 to vector<32x1xf32>
    %73 = tpu.concatenate %71, %72 in 1 : vector<32x63xf32>, vector<32x1xf32> -> vector<32x64xf32>
    %c5 = arith.constant 5 : index
    %c0_47 = arith.constant 0 : index
    %c0_48 = arith.constant 0 : index
    %74 = vector.load %arg4[%c5, %c0_47, %c0_48] : memref<9x1x64xf32, #tpu.memory_space<vmem>>, vector<1x1x64xf32>
    %75 = vector.shape_cast %74 : vector<1x1x64xf32> to vector<1x64xf32>
    %76 = vector.broadcast %75 : vector<1x64xf32> to vector<32x64xf32>
    %77 = arith.mulf %73, %76 : vector<32x64xf32>
    %78 = arith.truncf %77 : vector<32x64xf32> to vector<32x64xbf16>
    %c160 = arith.constant 160 : index
    %c0_49 = arith.constant 0 : index
    %79 = vector.load %arg25[%c160, %c0_49] : memref<288x64xbf16, #tpu.memory_space<vmem>>, vector<32x64xbf16>
    tpu.vector_store %arg25[%c160, %c0_49], %78 {strides = array<i32>} : memref<288x64xbf16, #tpu.memory_space<vmem>>, vector<32x64xbf16>,
    %80 = vector.extract_strided_slice %32 {offsets = [0, 7], sizes = [32, 57], strides = [1, 1]} : vector<32x64xf32> to vector<32x57xf32>
    %cst_50 = arith.constant 0.000000e+00 : f32
    %81 = vector.broadcast %cst_50 : f32 to vector<32x7xf32>
    %82 = tpu.concatenate %80, %81 in 1 : vector<32x57xf32>, vector<32x7xf32> -> vector<32x64xf32>
    %c6 = arith.constant 6 : index
    %c0_51 = arith.constant 0 : index
    %c0_52 = arith.constant 0 : index
    %83 = vector.load %arg4[%c6, %c0_51, %c0_52] : memref<9x1x64xf32, #tpu.memory_space<vmem>>, vector<1x1x64xf32>
    %84 = vector.shape_cast %83 : vector<1x1x64xf32> to vector<1x64xf32>
    %85 = vector.broadcast %84 : vector<1x64xf32> to vector<32x64xf32>
    %86 = arith.mulf %82, %85 : vector<32x64xf32>
    %87 = arith.truncf %86 : vector<32x64xf32> to vector<32x64xbf16>
    %c192 = arith.constant 192 : index
    %c0_53 = arith.constant 0 : index
    %88 = vector.load %arg25[%c192, %c0_53] : memref<288x64xbf16, #tpu.memory_space<vmem>>, vector<32x64xbf16>
    tpu.vector_store %arg25[%c192, %c0_53], %87 {strides = array<i32>} : memref<288x64xbf16, #tpu.memory_space<vmem>>, vector<32x64xbf16>,
    %89 = vector.extract_strided_slice %32 {offsets = [0, 8], sizes = [32, 56], strides = [1, 1]} : vector<32x64xf32> to vector<32x56xf32>
    %cst_54 = arith.constant 0.000000e+00 : f32
    %90 = vector.broadcast %cst_54 : f32 to vector<32x8xf32>
    %91 = tpu.concatenate %89, %90 in 1 : vector<32x56xf32>, vector<32x8xf32> -> vector<32x64xf32>
    %c7 = arith.constant 7 : index
    %c0_55 = arith.constant 0 : index
    %c0_56 = arith.constant 0 : index
    %92 = vector.load %arg4[%c7, %c0_55, %c0_56] : memref<9x1x64xf32, #tpu.memory_space<vmem>>, vector<1x1x64xf32>
    %93 = vector.shape_cast %92 : vector<1x1x64xf32> to vector<1x64xf32>
    %94 = vector.broadcast %93 : vector<1x64xf32> to vector<32x64xf32>
    %95 = arith.mulf %91, %94 : vector<32x64xf32>
    %96 = arith.truncf %95 : vector<32x64xf32> to vector<32x64xbf16>
    %c224 = arith.constant 224 : index
    %c0_57 = arith.constant 0 : index
    %97 = vector.load %arg25[%c224, %c0_57] : memref<288x64xbf16, #tpu.memory_space<vmem>>, vector<32x64xbf16>
    tpu.vector_store %arg25[%c224, %c0_57], %96 {strides = array<i32>} : memref<288x64xbf16, #tpu.memory_space<vmem>>, vector<32x64xbf16>,
    %98 = vector.extract_strided_slice %32 {offsets = [0, 9], sizes = [32, 55], strides = [1, 1]} : vector<32x64xf32> to vector<32x55xf32>
    %cst_58 = arith.constant 0.000000e+00 : f32
    %99 = vector.broadcast %cst_58 : f32 to vector<32x9xf32>
    %100 = tpu.concatenate %98, %99 in 1 : vector<32x55xf32>, vector<32x9xf32> -> vector<32x64xf32>
    %c8 = arith.constant 8 : index
    %c0_59 = arith.constant 0 : index
    %c0_60 = arith.constant 0 : index
    %101 = vector.load %arg4[%c8, %c0_59, %c0_60] : memref<9x1x64xf32, #tpu.memory_space<vmem>>, vector<1x1x64xf32>
    %102 = vector.shape_cast %101 : vector<1x1x64xf32> to vector<1x64xf32>
    %103 = vector.broadcast %102 : vector<1x64xf32> to vector<32x64xf32>
    %104 = arith.mulf %100, %103 : vector<32x64xf32>
    %105 = arith.truncf %104 : vector<32x64xf32> to vector<32x64xbf16>
    %c256 = arith.constant 256 : index
    %c0_61 = arith.constant 0 : index
    %106 = vector.load %arg25[%c256, %c0_61] : memref<288x64xbf16, #tpu.memory_space<vmem>>, vector<32x64xbf16>
    tpu.vector_store %arg25[%c256, %c0_61], %105 {strides = array<i32>} : memref<288x64xbf16, #tpu.memory_space<vmem>>, vector<32x64xbf16>,
    %c0_62 = arith.constant 0 : index
    %c0_63 = arith.constant 0 : index
    %c0_64 = arith.constant 0 : index
    %107 = vector.load %arg11[%c0_62, %c0_63, %c0_64] : memref<1x32x288xbf16, #tpu.memory_space<vmem>>, vector<1x32x288xbf16>
    %108 = vector.shape_cast %107 : vector<1x32x288xbf16> to vector<32x288xbf16>
    %c0_65 = arith.constant 0 : index
    %c0_66 = arith.constant 0 : index
    %109 = vector.load %arg25[%c0_65, %c0_66] : memref<288x64xbf16, #tpu.memory_space<vmem>>, vector<288x64xbf16>
    %cst_67 = arith.constant dense<0.000000e+00> : vector<32x64xf32>
    %110 = tpu.matmul %108, %109, %cst_67 {dimension_numbers = #tpu.dot_dimension_numbers<[1], [0], [0], [1], [0, 0, 1, 1], [], []>} : vector<32x288xbf16>, vector<288x64xbf16>, vector<32x64xf32> -> vector<32x64xf32>
    %c0_68 = arith.constant 0 : index
    %c0_69 = arith.constant 0 : index
    %c0_70 = arith.constant 0 : index
    %111 = vector.load %arg12[%c0_68, %c0_69, %c0_70] : memref<1x32x1xf32, #tpu.memory_space<vmem>>, vector<1x32x1xf32>
    %112 = vector.shape_cast %111 : vector<1x32x1xf32> to vector<32x1xf32>
    %113 = vector.broadcast %112 : vector<32x1xf32> to vector<32x64xf32>
    %114 = arith.addf %110, %113 : vector<32x64xf32>
    %c0_71 = arith.constant 0 : index
    %c0_72 = arith.constant 0 : index
    %c0_73 = arith.constant 0 : index
    %115 = vector.load %arg13[%c0_71, %c0_72, %c0_73] : memref<1x16x1xf32, #tpu.memory_space<vmem>>, vector<1x16x1xf32>
    %116 = vector.shape_cast %115 : vector<1x16x1xf32> to vector<16x1xf32>
    %117 = vector.extract_strided_slice %114 {offsets = [0, 0], sizes = [16, 64], strides = [1, 1]} : vector<32x64xf32> to vector<16x64xf32>
    %118 = math.tanh %117 : vector<16x64xf32>
    %119 = vector.broadcast %116 : vector<16x1xf32> to vector<16x64xf32>
    %120 = arith.mulf %119, %118 : vector<16x64xf32>
    %121 = vector.extract_strided_slice %114 {offsets = [16, 0], sizes = [16, 64], strides = [1, 1]} : vector<32x64xf32> to vector<16x64xf32>
    %122 = arith.addf %13, %121 : vector<16x64xf32>
    %123 = math.exp %120 : vector<16x64xf32>
    %124 = arith.mulf %122, %123 : vector<16x64xf32>
    %cst_74 = arith.constant dense<0.000000e+00> : vector<16xf32>
    %125 = vector.multi_reduction <add>, %120, %cst_74 [1] : vector<16x64xf32> to vector<16xf32>
    %126 = vector.shape_cast %125 : vector<16xf32> to vector<16x1xf32>
    %cst_75 = arith.constant dense<0.000000e+00> : vector<1xf32>
    %127 = vector.multi_reduction <add>, %126, %cst_75 [0] : vector<16x1xf32> to vector<1xf32>
    %128 = vector.shape_cast %127 : vector<1xf32> to vector<1x1xf32>
    %129 = vector.extract_strided_slice %124 {offsets = [0, 0], sizes = [8, 64], strides = [1, 1]} : vector<16x64xf32> to vector<8x64xf32>
    %130 = vector.extract_strided_slice %124 {offsets = [8, 0], sizes = [8, 64], strides = [1, 1]} : vector<16x64xf32> to vector<8x64xf32>
    %cst_76 = arith.constant 0.000000e+00 : f32
    %131 = vector.broadcast %cst_76 : f32 to vector<8x9xf32>
    %132 = vector.extract_strided_slice %130 {offsets = [0, 0], sizes = [8, 55], strides = [1, 1]} : vector<8x64xf32> to vector<8x55xf32>
    %133 = tpu.concatenate %131, %132 in 1 : vector<8x9xf32>, vector<8x55xf32> -> vector<8x64xf32>
    %c0_77 = arith.constant 0 : index
    %c0_78 = arith.constant 0 : index
    %c0_79 = arith.constant 0 : index
    %134 = vector.load %arg4[%c0_77, %c0_78, %c0_79] : memref<9x1x64xf32, #tpu.memory_space<vmem>>, vector<1x1x64xf32>
    %135 = vector.shape_cast %134 : vector<1x1x64xf32> to vector<1x64xf32>
    %136 = vector.broadcast %135 : vector<1x64xf32> to vector<8x64xf32>
    %137 = arith.mulf %133, %136 : vector<8x64xf32>
    %138 = arith.truncf %137 : vector<8x64xf32> to vector<8x64xbf16>
    %c0_80 = arith.constant 0 : index
    %c0_81 = arith.constant 0 : index
    %139 = vector.load %arg26[%c0_80, %c0_81] : memref<72x64xbf16, #tpu.memory_space<vmem>>, vector<8x64xbf16>
    tpu.vector_store %arg26[%c0_80, %c0_81], %138 {strides = array<i32>} : memref<72x64xbf16, #tpu.memory_space<vmem>>, vector<8x64xbf16>,
    %cst_82 = arith.constant 0.000000e+00 : f32
    %140 = vector.broadcast %cst_82 : f32 to vector<8x8xf32>
    %141 = vector.extract_strided_slice %130 {offsets = [0, 0], sizes = [8, 56], strides = [1, 1]} : vector<8x64xf32> to vector<8x56xf32>
    %142 = tpu.concatenate %140, %141 in 1 : vector<8x8xf32>, vector<8x56xf32> -> vector<8x64xf32>
    %c1_83 = arith.constant 1 : index
    %c0_84 = arith.constant 0 : index
    %c0_85 = arith.constant 0 : index
    %143 = vector.load %arg4[%c1_83, %c0_84, %c0_85] : memref<9x1x64xf32, #tpu.memory_space<vmem>>, vector<1x1x64xf32>
    %144 = vector.shape_cast %143 : vector<1x1x64xf32> to vector<1x64xf32>
    %145 = vector.broadcast %144 : vector<1x64xf32> to vector<8x64xf32>
    %146 = arith.mulf %142, %145 : vector<8x64xf32>
    %147 = arith.truncf %146 : vector<8x64xf32> to vector<8x64xbf16>
    %c8_86 = arith.constant 8 : index
    %c0_87 = arith.constant 0 : index
    %148 = vector.load %arg26[%c8_86, %c0_87] : memref<72x64xbf16, #tpu.memory_space<vmem>>, vector<8x64xbf16>
    tpu.vector_store %arg26[%c8_86, %c0_87], %147 {strides = array<i32>} : memref<72x64xbf16, #tpu.memory_space<vmem>>, vector<8x64xbf16>,
    %cst_88 = arith.constant 0.000000e+00 : f32
    %149 = vector.broadcast %cst_88 : f32 to vector<8x7xf32>
    %150 = vector.extract_strided_slice %130 {offsets = [0, 0], sizes = [8, 57], strides = [1, 1]} : vector<8x64xf32> to vector<8x57xf32>
    %151 = tpu.concatenate %149, %150 in 1 : vector<8x7xf32>, vector<8x57xf32> -> vector<8x64xf32>
    %c2_89 = arith.constant 2 : index
    %c0_90 = arith.constant 0 : index
    %c0_91 = arith.constant 0 : index
    %152 = vector.load %arg4[%c2_89, %c0_90, %c0_91] : memref<9x1x64xf32, #tpu.memory_space<vmem>>, vector<1x1x64xf32>
    %153 = vector.shape_cast %152 : vector<1x1x64xf32> to vector<1x64xf32>
    %154 = vector.broadcast %153 : vector<1x64xf32> to vector<8x64xf32>
    %155 = arith.mulf %151, %154 : vector<8x64xf32>
    %156 = arith.truncf %155 : vector<8x64xf32> to vector<8x64xbf16>
    %c16 = arith.constant 16 : index
    %c0_92 = arith.constant 0 : index
    %157 = vector.load %arg26[%c16, %c0_92] : memref<72x64xbf16, #tpu.memory_space<vmem>>, vector<8x64xbf16>
    tpu.vector_store %arg26[%c16, %c0_92], %156 {strides = array<i32>} : memref<72x64xbf16, #tpu.memory_space<vmem>>, vector<8x64xbf16>,
    %cst_93 = arith.constant 0.000000e+00 : f32
    %158 = vector.broadcast %cst_93 : f32 to vector<8x1xf32>
    %159 = vector.extract_strided_slice %130 {offsets = [0, 0], sizes = [8, 63], strides = [1, 1]} : vector<8x64xf32> to vector<8x63xf32>
    %160 = tpu.concatenate %158, %159 in 1 : vector<8x1xf32>, vector<8x63xf32> -> vector<8x64xf32>
    %c3_94 = arith.constant 3 : index
    %c0_95 = arith.constant 0 : index
    %c0_96 = arith.constant 0 : index
    %161 = vector.load %arg4[%c3_94, %c0_95, %c0_96] : memref<9x1x64xf32, #tpu.memory_space<vmem>>, vector<1x1x64xf32>
    %162 = vector.shape_cast %161 : vector<1x1x64xf32> to vector<1x64xf32>
    %163 = vector.broadcast %162 : vector<1x64xf32> to vector<8x64xf32>
    %164 = arith.mulf %160, %163 : vector<8x64xf32>
    %165 = arith.truncf %164 : vector<8x64xf32> to vector<8x64xbf16>
    %c24 = arith.constant 24 : index
    %c0_97 = arith.constant 0 : index
    %166 = vector.load %arg26[%c24, %c0_97] : memref<72x64xbf16, #tpu.memory_space<vmem>>, vector<8x64xbf16>
    tpu.vector_store %arg26[%c24, %c0_97], %165 {strides = array<i32>} : memref<72x64xbf16, #tpu.memory_space<vmem>>, vector<8x64xbf16>,
    %167 = arith.truncf %130 : vector<8x64xf32> to vector<8x64xbf16>
    %c32_98 = arith.constant 32 : index
    %c0_99 = arith.constant 0 : index
    %168 = vector.load %arg26[%c32_98, %c0_99] : memref<72x64xbf16, #tpu.memory_space<vmem>>, vector<8x64xbf16>
    tpu.vector_store %arg26[%c32_98, %c0_99], %167 {strides = array<i32>} : memref<72x64xbf16, #tpu.memory_space<vmem>>, vector<8x64xbf16>,
    %169 = vector.extract_strided_slice %130 {offsets = [0, 1], sizes = [8, 63], strides = [1, 1]} : vector<8x64xf32> to vector<8x63xf32>
    %cst_100 = arith.constant 0.000000e+00 : f32
    %170 = vector.broadcast %cst_100 : f32 to vector<8x1xf32>
    %171 = tpu.concatenate %169, %170 in 1 : vector<8x63xf32>, vector<8x1xf32> -> vector<8x64xf32>
    %c5_101 = arith.constant 5 : index
    %c0_102 = arith.constant 0 : index
    %c0_103 = arith.constant 0 : index
    %172 = vector.load %arg4[%c5_101, %c0_102, %c0_103] : memref<9x1x64xf32, #tpu.memory_space<vmem>>, vector<1x1x64xf32>
    %173 = vector.shape_cast %172 : vector<1x1x64xf32> to vector<1x64xf32>
    %174 = vector.broadcast %173 : vector<1x64xf32> to vector<8x64xf32>
    %175 = arith.mulf %171, %174 : vector<8x64xf32>
    %176 = arith.truncf %175 : vector<8x64xf32> to vector<8x64xbf16>
    %c40 = arith.constant 40 : index
    %c0_104 = arith.constant 0 : index
    %177 = vector.load %arg26[%c40, %c0_104] : memref<72x64xbf16, #tpu.memory_space<vmem>>, vector<8x64xbf16>
    tpu.vector_store %arg26[%c40, %c0_104], %176 {strides = array<i32>} : memref<72x64xbf16, #tpu.memory_space<vmem>>, vector<8x64xbf16>,
    %178 = vector.extract_strided_slice %130 {offsets = [0, 7], sizes = [8, 57], strides = [1, 1]} : vector<8x64xf32> to vector<8x57xf32>
    %cst_105 = arith.constant 0.000000e+00 : f32
    %179 = vector.broadcast %cst_105 : f32 to vector<8x7xf32>
    %180 = tpu.concatenate %178, %179 in 1 : vector<8x57xf32>, vector<8x7xf32> -> vector<8x64xf32>
    %c6_106 = arith.constant 6 : index
    %c0_107 = arith.constant 0 : index
    %c0_108 = arith.constant 0 : index
    %181 = vector.load %arg4[%c6_106, %c0_107, %c0_108] : memref<9x1x64xf32, #tpu.memory_space<vmem>>, vector<1x1x64xf32>
    %182 = vector.shape_cast %181 : vector<1x1x64xf32> to vector<1x64xf32>
    %183 = vector.broadcast %182 : vector<1x64xf32> to vector<8x64xf32>
    %184 = arith.mulf %180, %183 : vector<8x64xf32>
    %185 = arith.truncf %184 : vector<8x64xf32> to vector<8x64xbf16>
    %c48 = arith.constant 48 : index
    %c0_109 = arith.constant 0 : index
    %186 = vector.load %arg26[%c48, %c0_109] : memref<72x64xbf16, #tpu.memory_space<vmem>>, vector<8x64xbf16>
    tpu.vector_store %arg26[%c48, %c0_109], %185 {strides = array<i32>} : memref<72x64xbf16, #tpu.memory_space<vmem>>, vector<8x64xbf16>,
    %187 = vector.extract_strided_slice %130 {offsets = [0, 8], sizes = [8, 56], strides = [1, 1]} : vector<8x64xf32> to vector<8x56xf32>
    %cst_110 = arith.constant 0.000000e+00 : f32
    %188 = vector.broadcast %cst_110 : f32 to vector<8x8xf32>
    %189 = tpu.concatenate %187, %188 in 1 : vector<8x56xf32>, vector<8x8xf32> -> vector<8x64xf32>
    %c7_111 = arith.constant 7 : index
    %c0_112 = arith.constant 0 : index
    %c0_113 = arith.constant 0 : index
    %190 = vector.load %arg4[%c7_111, %c0_112, %c0_113] : memref<9x1x64xf32, #tpu.memory_space<vmem>>, vector<1x1x64xf32>
    %191 = vector.shape_cast %190 : vector<1x1x64xf32> to vector<1x64xf32>
    %192 = vector.broadcast %191 : vector<1x64xf32> to vector<8x64xf32>
    %193 = arith.mulf %189, %192 : vector<8x64xf32>
    %194 = arith.truncf %193 : vector<8x64xf32> to vector<8x64xbf16>
    %c56 = arith.constant 56 : index
    %c0_114 = arith.constant 0 : index
    %195 = vector.load %arg26[%c56, %c0_114] : memref<72x64xbf16, #tpu.memory_space<vmem>>, vector<8x64xbf16>
    tpu.vector_store %arg26[%c56, %c0_114], %194 {strides = array<i32>} : memref<72x64xbf16, #tpu.memory_space<vmem>>, vector<8x64xbf16>,
    %196 = vector.extract_strided_slice %130 {offsets = [0, 9], sizes = [8, 55], strides = [1, 1]} : vector<8x64xf32> to vector<8x55xf32>
    %cst_115 = arith.constant 0.000000e+00 : f32
    %197 = vector.broadcast %cst_115 : f32 to vector<8x9xf32>
    %198 = tpu.concatenate %196, %197 in 1 : vector<8x55xf32>, vector<8x9xf32> -> vector<8x64xf32>
    %c8_116 = arith.constant 8 : index
    %c0_117 = arith.constant 0 : index
    %c0_118 = arith.constant 0 : index
    %199 = vector.load %arg4[%c8_116, %c0_117, %c0_118] : memref<9x1x64xf32, #tpu.memory_space<vmem>>, vector<1x1x64xf32>
    %200 = vector.shape_cast %199 : vector<1x1x64xf32> to vector<1x64xf32>
    %201 = vector.broadcast %200 : vector<1x64xf32> to vector<8x64xf32>
    %202 = arith.mulf %198, %201 : vector<8x64xf32>
    %203 = arith.truncf %202 : vector<8x64xf32> to vector<8x64xbf16>
    %c64_119 = arith.constant 64 : index
    %c0_120 = arith.constant 0 : index
    %204 = vector.load %arg26[%c64_119, %c0_120] : memref<72x64xbf16, #tpu.memory_space<vmem>>, vector<8x64xbf16>
    tpu.vector_store %arg26[%c64_119, %c0_120], %203 {strides = array<i32>} : memref<72x64xbf16, #tpu.memory_space<vmem>>, vector<8x64xbf16>,
    %c0_121 = arith.constant 0 : index
    %c0_122 = arith.constant 0 : index
    %c0_123 = arith.constant 0 : index
    %205 = vector.load %arg14[%c0_121, %c0_122, %c0_123] : memref<1x32x72xbf16, #tpu.memory_space<vmem>>, vector<1x32x72xbf16>
    %206 = vector.shape_cast %205 : vector<1x32x72xbf16> to vector<32x72xbf16>
    %c0_124 = arith.constant 0 : index
    %c0_125 = arith.constant 0 : index
    %207 = vector.load %arg26[%c0_124, %c0_125] : memref<72x64xbf16, #tpu.memory_space<vmem>>, vector<72x64xbf16>
    %cst_126 = arith.constant dense<0.000000e+00> : vector<32x64xf32>
    %208 = tpu.matmul %206, %207, %cst_126 {dimension_numbers = #tpu.dot_dimension_numbers<[1], [0], [0], [1], [0, 0, 1, 1], [], []>} : vector<32x72xbf16>, vector<72x64xbf16>, vector<32x64xf32> -> vector<32x64xf32>
    %c0_127 = arith.constant 0 : index
    %c0_128 = arith.constant 0 : index
    %c0_129 = arith.constant 0 : index
    %209 = vector.load %arg15[%c0_127, %c0_128, %c0_129] : memref<1x32x144xbf16, #tpu.memory_space<vmem>>, vector<1x32x144xbf16>
    %210 = vector.shape_cast %209 : vector<1x32x144xbf16> to vector<32x144xbf16>
    %cst_130 = arith.constant dense<0.000000e+00> : vector<32x64xf32>
    %211 = tpu.matmul %210, %5, %cst_130 {dimension_numbers = #tpu.dot_dimension_numbers<[1], [0], [0], [1], [0, 0, 1, 1], [], []>} : vector<32x144xbf16>, vector<144x64xbf16>, vector<32x64xf32> -> vector<32x64xf32>
    %212 = arith.addf %208, %211 : vector<32x64xf32>
    %c0_131 = arith.constant 0 : index
    %c0_132 = arith.constant 0 : index
    %c0_133 = arith.constant 0 : index
    %213 = vector.load %arg16[%c0_131, %c0_132, %c0_133] : memref<1x32x1xf32, #tpu.memory_space<vmem>>, vector<1x32x1xf32>
    %214 = vector.shape_cast %213 : vector<1x32x1xf32> to vector<32x1xf32>
    %215 = vector.broadcast %214 : vector<32x1xf32> to vector<32x64xf32>
    %216 = arith.addf %212, %215 : vector<32x64xf32>
    %cst_134 = arith.constant 0.000000e+00 : f32
    %217 = vector.broadcast %cst_134 : f32 to vector<32x64xf32>
    %218 = arith.maximumf %216, %217 : vector<32x64xf32>
    %c0_135 = arith.constant 0 : index
    %c0_136 = arith.constant 0 : index
    %c0_137 = arith.constant 0 : index
    %219 = vector.load %arg17[%c0_135, %c0_136, %c0_137] : memref<1x32x32xbf16, #tpu.memory_space<vmem>>, vector<1x32x32xbf16>
    %220 = vector.shape_cast %219 : vector<1x32x32xbf16> to vector<32x32xbf16>
    %221 = arith.truncf %218 : vector<32x64xf32> to vector<32x64xbf16>
    %cst_138 = arith.constant dense<0.000000e+00> : vector<32x64xf32>
    %222 = tpu.matmul %220, %221, %cst_138 {dimension_numbers = #tpu.dot_dimension_numbers<[1], [0], [0], [1], [0, 0, 1, 1], [], []>} : vector<32x32xbf16>, vector<32x64xbf16>, vector<32x64xf32> -> vector<32x64xf32>
    %c0_139 = arith.constant 0 : index
    %c0_140 = arith.constant 0 : index
    %c0_141 = arith.constant 0 : index
    %223 = vector.load %arg18[%c0_139, %c0_140, %c0_141] : memref<1x32x1xf32, #tpu.memory_space<vmem>>, vector<1x32x1xf32>
    %224 = vector.shape_cast %223 : vector<1x32x1xf32> to vector<32x1xf32>
    %225 = vector.broadcast %224 : vector<32x1xf32> to vector<32x64xf32>
    %226 = arith.addf %222, %225 : vector<32x64xf32>
    %cst_142 = arith.constant 0.000000e+00 : f32
    %227 = vector.broadcast %cst_142 : f32 to vector<32x64xf32>
    %228 = arith.maximumf %226, %227 : vector<32x64xf32>
    %cst_143 = arith.constant 0.000000e+00 : f32
    %229 = vector.broadcast %cst_143 : f32 to vector<32x9xf32>
    %230 = vector.extract_strided_slice %228 {offsets = [0, 0], sizes = [32, 55], strides = [1, 1]} : vector<32x64xf32> to vector<32x55xf32>
    %231 = tpu.concatenate %229, %230 in 1 : vector<32x9xf32>, vector<32x55xf32> -> vector<32x64xf32>
    %c0_144 = arith.constant 0 : index
    %c0_145 = arith.constant 0 : index
    %c0_146 = arith.constant 0 : index
    %232 = vector.load %arg4[%c0_144, %c0_145, %c0_146] : memref<9x1x64xf32, #tpu.memory_space<vmem>>, vector<1x1x64xf32>
    %233 = vector.shape_cast %232 : vector<1x1x64xf32> to vector<1x64xf32>
    %234 = vector.broadcast %233 : vector<1x64xf32> to vector<32x64xf32>
    %235 = arith.mulf %231, %234 : vector<32x64xf32>
    %236 = arith.truncf %235 : vector<32x64xf32> to vector<32x64xbf16>
    %c0_147 = arith.constant 0 : index
    %c0_148 = arith.constant 0 : index
    %237 = vector.load %arg25[%c0_147, %c0_148] : memref<288x64xbf16, #tpu.memory_space<vmem>>, vector<32x64xbf16>
    tpu.vector_store %arg25[%c0_147, %c0_148], %236 {strides = array<i32>} : memref<288x64xbf16, #tpu.memory_space<vmem>>, vector<32x64xbf16>,
    %cst_149 = arith.constant 0.000000e+00 : f32
    %238 = vector.broadcast %cst_149 : f32 to vector<32x8xf32>
    %239 = vector.extract_strided_slice %228 {offsets = [0, 0], sizes = [32, 56], strides = [1, 1]} : vector<32x64xf32> to vector<32x56xf32>
    %240 = tpu.concatenate %238, %239 in 1 : vector<32x8xf32>, vector<32x56xf32> -> vector<32x64xf32>
    %c1_150 = arith.constant 1 : index
    %c0_151 = arith.constant 0 : index
    %c0_152 = arith.constant 0 : index
    %241 = vector.load %arg4[%c1_150, %c0_151, %c0_152] : memref<9x1x64xf32, #tpu.memory_space<vmem>>, vector<1x1x64xf32>
    %242 = vector.shape_cast %241 : vector<1x1x64xf32> to vector<1x64xf32>
    %243 = vector.broadcast %242 : vector<1x64xf32> to vector<32x64xf32>
    %244 = arith.mulf %240, %243 : vector<32x64xf32>
    %245 = arith.truncf %244 : vector<32x64xf32> to vector<32x64xbf16>
    %c32_153 = arith.constant 32 : index
    %c0_154 = arith.constant 0 : index
    %246 = vector.load %arg25[%c32_153, %c0_154] : memref<288x64xbf16, #tpu.memory_space<vmem>>, vector<32x64xbf16>
    tpu.vector_store %arg25[%c32_153, %c0_154], %245 {strides = array<i32>} : memref<288x64xbf16, #tpu.memory_space<vmem>>, vector<32x64xbf16>,
    %cst_155 = arith.constant 0.000000e+00 : f32
    %247 = vector.broadcast %cst_155 : f32 to vector<32x7xf32>
    %248 = vector.extract_strided_slice %228 {offsets = [0, 0], sizes = [32, 57], strides = [1, 1]} : vector<32x64xf32> to vector<32x57xf32>
    %249 = tpu.concatenate %247, %248 in 1 : vector<32x7xf32>, vector<32x57xf32> -> vector<32x64xf32>
    %c2_156 = arith.constant 2 : index
    %c0_157 = arith.constant 0 : index
    %c0_158 = arith.constant 0 : index
    %250 = vector.load %arg4[%c2_156, %c0_157, %c0_158] : memref<9x1x64xf32, #tpu.memory_space<vmem>>, vector<1x1x64xf32>
    %251 = vector.shape_cast %250 : vector<1x1x64xf32> to vector<1x64xf32>
    %252 = vector.broadcast %251 : vector<1x64xf32> to vector<32x64xf32>
    %253 = arith.mulf %249, %252 : vector<32x64xf32>
    %254 = arith.truncf %253 : vector<32x64xf32> to vector<32x64xbf16>
    %c64_159 = arith.constant 64 : index
    %c0_160 = arith.constant 0 : index
    %255 = vector.load %arg25[%c64_159, %c0_160] : memref<288x64xbf16, #tpu.memory_space<vmem>>, vector<32x64xbf16>
    tpu.vector_store %arg25[%c64_159, %c0_160], %254 {strides = array<i32>} : memref<288x64xbf16, #tpu.memory_space<vmem>>, vector<32x64xbf16>,
    %cst_161 = arith.constant 0.000000e+00 : f32
    %256 = vector.broadcast %cst_161 : f32 to vector<32x1xf32>
    %257 = vector.extract_strided_slice %228 {offsets = [0, 0], sizes = [32, 63], strides = [1, 1]} : vector<32x64xf32> to vector<32x63xf32>
    %258 = tpu.concatenate %256, %257 in 1 : vector<32x1xf32>, vector<32x63xf32> -> vector<32x64xf32>
    %c3_162 = arith.constant 3 : index
    %c0_163 = arith.constant 0 : index
    %c0_164 = arith.constant 0 : index
    %259 = vector.load %arg4[%c3_162, %c0_163, %c0_164] : memref<9x1x64xf32, #tpu.memory_space<vmem>>, vector<1x1x64xf32>
    %260 = vector.shape_cast %259 : vector<1x1x64xf32> to vector<1x64xf32>
    %261 = vector.broadcast %260 : vector<1x64xf32> to vector<32x64xf32>
    %262 = arith.mulf %258, %261 : vector<32x64xf32>
    %263 = arith.truncf %262 : vector<32x64xf32> to vector<32x64xbf16>
    %c96_165 = arith.constant 96 : index
    %c0_166 = arith.constant 0 : index
    %264 = vector.load %arg25[%c96_165, %c0_166] : memref<288x64xbf16, #tpu.memory_space<vmem>>, vector<32x64xbf16>
    tpu.vector_store %arg25[%c96_165, %c0_166], %263 {strides = array<i32>} : memref<288x64xbf16, #tpu.memory_space<vmem>>, vector<32x64xbf16>,
    %265 = arith.truncf %228 : vector<32x64xf32> to vector<32x64xbf16>
    %c128_167 = arith.constant 128 : index
    %c0_168 = arith.constant 0 : index
    %266 = vector.load %arg25[%c128_167, %c0_168] : memref<288x64xbf16, #tpu.memory_space<vmem>>, vector<32x64xbf16>
    tpu.vector_store %arg25[%c128_167, %c0_168], %265 {strides = array<i32>} : memref<288x64xbf16, #tpu.memory_space<vmem>>, vector<32x64xbf16>,
    %267 = vector.extract_strided_slice %228 {offsets = [0, 1], sizes = [32, 63], strides = [1, 1]} : vector<32x64xf32> to vector<32x63xf32>
    %cst_169 = arith.constant 0.000000e+00 : f32
    %268 = vector.broadcast %cst_169 : f32 to vector<32x1xf32>
    %269 = tpu.concatenate %267, %268 in 1 : vector<32x63xf32>, vector<32x1xf32> -> vector<32x64xf32>
    %c5_170 = arith.constant 5 : index
    %c0_171 = arith.constant 0 : index
    %c0_172 = arith.constant 0 : index
    %270 = vector.load %arg4[%c5_170, %c0_171, %c0_172] : memref<9x1x64xf32, #tpu.memory_space<vmem>>, vector<1x1x64xf32>
    %271 = vector.shape_cast %270 : vector<1x1x64xf32> to vector<1x64xf32>
    %272 = vector.broadcast %271 : vector<1x64xf32> to vector<32x64xf32>
    %273 = arith.mulf %269, %272 : vector<32x64xf32>
    %274 = arith.truncf %273 : vector<32x64xf32> to vector<32x64xbf16>
    %c160_173 = arith.constant 160 : index
    %c0_174 = arith.constant 0 : index
    %275 = vector.load %arg25[%c160_173, %c0_174] : memref<288x64xbf16, #tpu.memory_space<vmem>>, vector<32x64xbf16>
    tpu.vector_store %arg25[%c160_173, %c0_174], %274 {strides = array<i32>} : memref<288x64xbf16, #tpu.memory_space<vmem>>, vector<32x64xbf16>,
    %276 = vector.extract_strided_slice %228 {offsets = [0, 7], sizes = [32, 57], strides = [1, 1]} : vector<32x64xf32> to vector<32x57xf32>
    %cst_175 = arith.constant 0.000000e+00 : f32
    %277 = vector.broadcast %cst_175 : f32 to vector<32x7xf32>
    %278 = tpu.concatenate %276, %277 in 1 : vector<32x57xf32>, vector<32x7xf32> -> vector<32x64xf32>
    %c6_176 = arith.constant 6 : index
    %c0_177 = arith.constant 0 : index
    %c0_178 = arith.constant 0 : index
    %279 = vector.load %arg4[%c6_176, %c0_177, %c0_178] : memref<9x1x64xf32, #tpu.memory_space<vmem>>, vector<1x1x64xf32>
    %280 = vector.shape_cast %279 : vector<1x1x64xf32> to vector<1x64xf32>
    %281 = vector.broadcast %280 : vector<1x64xf32> to vector<32x64xf32>
    %282 = arith.mulf %278, %281 : vector<32x64xf32>
    %283 = arith.truncf %282 : vector<32x64xf32> to vector<32x64xbf16>
    %c192_179 = arith.constant 192 : index
    %c0_180 = arith.constant 0 : index
    %284 = vector.load %arg25[%c192_179, %c0_180] : memref<288x64xbf16, #tpu.memory_space<vmem>>, vector<32x64xbf16>
    tpu.vector_store %arg25[%c192_179, %c0_180], %283 {strides = array<i32>} : memref<288x64xbf16, #tpu.memory_space<vmem>>, vector<32x64xbf16>,
    %285 = vector.extract_strided_slice %228 {offsets = [0, 8], sizes = [32, 56], strides = [1, 1]} : vector<32x64xf32> to vector<32x56xf32>
    %cst_181 = arith.constant 0.000000e+00 : f32
    %286 = vector.broadcast %cst_181 : f32 to vector<32x8xf32>
    %287 = tpu.concatenate %285, %286 in 1 : vector<32x56xf32>, vector<32x8xf32> -> vector<32x64xf32>
    %c7_182 = arith.constant 7 : index
    %c0_183 = arith.constant 0 : index
    %c0_184 = arith.constant 0 : index
    %288 = vector.load %arg4[%c7_182, %c0_183, %c0_184] : memref<9x1x64xf32, #tpu.memory_space<vmem>>, vector<1x1x64xf32>
    %289 = vector.shape_cast %288 : vector<1x1x64xf32> to vector<1x64xf32>
    %290 = vector.broadcast %289 : vector<1x64xf32> to vector<32x64xf32>
    %291 = arith.mulf %287, %290 : vector<32x64xf32>
    %292 = arith.truncf %291 : vector<32x64xf32> to vector<32x64xbf16>
    %c224_185 = arith.constant 224 : index
    %c0_186 = arith.constant 0 : index
    %293 = vector.load %arg25[%c224_185, %c0_186] : memref<288x64xbf16, #tpu.memory_space<vmem>>, vector<32x64xbf16>
    tpu.vector_store %arg25[%c224_185, %c0_186], %292 {strides = array<i32>} : memref<288x64xbf16, #tpu.memory_space<vmem>>, vector<32x64xbf16>,
    %294 = vector.extract_strided_slice %228 {offsets = [0, 9], sizes = [32, 55], strides = [1, 1]} : vector<32x64xf32> to vector<32x55xf32>
    %cst_187 = arith.constant 0.000000e+00 : f32
    %295 = vector.broadcast %cst_187 : f32 to vector<32x9xf32>
    %296 = tpu.concatenate %294, %295 in 1 : vector<32x55xf32>, vector<32x9xf32> -> vector<32x64xf32>
    %c8_188 = arith.constant 8 : index
    %c0_189 = arith.constant 0 : index
    %c0_190 = arith.constant 0 : index
    %297 = vector.load %arg4[%c8_188, %c0_189, %c0_190] : memref<9x1x64xf32, #tpu.memory_space<vmem>>, vector<1x1x64xf32>
    %298 = vector.shape_cast %297 : vector<1x1x64xf32> to vector<1x64xf32>
    %299 = vector.broadcast %298 : vector<1x64xf32> to vector<32x64xf32>
    %300 = arith.mulf %296, %299 : vector<32x64xf32>
    %301 = arith.truncf %300 : vector<32x64xf32> to vector<32x64xbf16>
    %c256_191 = arith.constant 256 : index
    %c0_192 = arith.constant 0 : index
    %302 = vector.load %arg25[%c256_191, %c0_192] : memref<288x64xbf16, #tpu.memory_space<vmem>>, vector<32x64xbf16>
    tpu.vector_store %arg25[%c256_191, %c0_192], %301 {strides = array<i32>} : memref<288x64xbf16, #tpu.memory_space<vmem>>, vector<32x64xbf16>,
    %c0_193 = arith.constant 0 : index
    %c0_194 = arith.constant 0 : index
    %c0_195 = arith.constant 0 : index
    %303 = vector.load %arg19[%c0_193, %c0_194, %c0_195] : memref<1x16x288xbf16, #tpu.memory_space<vmem>>, vector<1x16x288xbf16>
    %304 = vector.shape_cast %303 : vector<1x16x288xbf16> to vector<16x288xbf16>
    %c0_196 = arith.constant 0 : index
    %c0_197 = arith.constant 0 : index
    %305 = vector.load %arg25[%c0_196, %c0_197] : memref<288x64xbf16, #tpu.memory_space<vmem>>, vector<288x64xbf16>
    %cst_198 = arith.constant dense<0.000000e+00> : vector<16x64xf32>
    %306 = tpu.matmul %304, %305, %cst_198 {dimension_numbers = #tpu.dot_dimension_numbers<[1], [0], [0], [1], [0, 0, 1, 1], [], []>} : vector<16x288xbf16>, vector<288x64xbf16>, vector<16x64xf32> -> vector<16x64xf32>
    %c0_199 = arith.constant 0 : index
    %c0_200 = arith.constant 0 : index
    %c0_201 = arith.constant 0 : index
    %307 = vector.load %arg20[%c0_199, %c0_200, %c0_201] : memref<1x16x1xf32, #tpu.memory_space<vmem>>, vector<1x16x1xf32>
    %308 = vector.shape_cast %307 : vector<1x16x1xf32> to vector<16x1xf32>
    %309 = vector.broadcast %308 : vector<16x1xf32> to vector<16x64xf32>
    %310 = arith.addf %306, %309 : vector<16x64xf32>
    %c0_202 = arith.constant 0 : index
    %c0_203 = arith.constant 0 : index
    %c0_204 = arith.constant 0 : index
    %311 = vector.load %arg21[%c0_202, %c0_203, %c0_204] : memref<1x8x1xf32, #tpu.memory_space<vmem>>, vector<1x8x1xf32>
    %312 = vector.shape_cast %311 : vector<1x8x1xf32> to vector<8x1xf32>
    %313 = vector.extract_strided_slice %310 {offsets = [0, 0], sizes = [8, 64], strides = [1, 1]} : vector<16x64xf32> to vector<8x64xf32>
    %314 = math.tanh %313 : vector<8x64xf32>
    %315 = vector.broadcast %312 : vector<8x1xf32> to vector<8x64xf32>
    %316 = arith.mulf %315, %314 : vector<8x64xf32>
    %317 = vector.extract_strided_slice %310 {offsets = [8, 0], sizes = [8, 64], strides = [1, 1]} : vector<16x64xf32> to vector<8x64xf32>
    %318 = arith.addf %129, %317 : vector<8x64xf32>
    %319 = math.exp %316 : vector<8x64xf32>
    %320 = arith.mulf %318, %319 : vector<8x64xf32>
    %cst_205 = arith.constant dense<0.000000e+00> : vector<8xf32>
    %321 = vector.multi_reduction <add>, %316, %cst_205 [1] : vector<8x64xf32> to vector<8xf32>
    %322 = vector.shape_cast %321 : vector<8xf32> to vector<8x1xf32>
    %cst_206 = arith.constant dense<0.000000e+00> : vector<1xf32>
    %323 = vector.multi_reduction <add>, %322, %cst_206 [0] : vector<8x1xf32> to vector<1xf32>
    %324 = vector.shape_cast %323 : vector<1xf32> to vector<1x1xf32>
    %325 = arith.addf %128, %324 : vector<1x1xf32>
    %c0_207 = arith.constant 0 : index
    %c0_208 = arith.constant 0 : index
    %326 = vector.load %arg24[%c0_207, %c0_208] : memref<16x64xf32, #tpu.memory_space<vmem>>, vector<8x64xf32>
    tpu.vector_store %arg24[%c0_207, %c0_208], %320 {strides = array<i32>} : memref<16x64xf32, #tpu.memory_space<vmem>>, vector<8x64xf32>,
    %c8_209 = arith.constant 8 : index
    %c0_210 = arith.constant 0 : index
    %327 = vector.load %arg24[%c8_209, %c0_210] : memref<16x64xf32, #tpu.memory_space<vmem>>, vector<8x64xf32>
    tpu.vector_store %arg24[%c8_209, %c0_210], %130 {strides = array<i32>} : memref<16x64xf32, #tpu.memory_space<vmem>>, vector<8x64xf32>,
    %c0_211 = arith.constant 0 : index
    %c0_212 = arith.constant 0 : index
    %328 = vector.load %arg27[%c0_211, %c0_212] : memref<1x1xf32, #tpu.memory_space<vmem>>, vector<1x1xf32>
    %329 = arith.addf %328, %325 : vector<1x1xf32>
    %c0_213 = arith.constant 0 : index
    %c0_214 = arith.constant 0 : index
    %330 = vector.load %arg27[%c0_213, %c0_214] : memref<1x1xf32, #tpu.memory_space<vmem>>, vector<1x1xf32>
    tpu.vector_store %arg27[%c0_213, %c0_214], %329 {strides = array<i32>} : memref<1x1xf32, #tpu.memory_space<vmem>>, vector<1x1xf32>,
    %c1_i32 = arith.constant 1 : i32
    %331 = arith.cmpi eq, %arg1, %c1_i32 : i32
    %332 = arith.extui %331 : i1 to i32
    %c0_i32_215 = arith.constant 0 : i32
    %333 = arith.cmpi ne, %332, %c0_i32_215 : i32
    scf.if %333 {
      %c0_216 = arith.constant 0 : index
      %c0_217 = arith.constant 0 : index
      %334 = vector.load %arg24[%c0_216, %c0_217] : memref<16x64xf32, #tpu.memory_space<vmem>>, vector<16x64xf32>
      %c0_218 = arith.constant 0 : index
      %c0_219 = arith.constant 0 : index
      %c0_220 = arith.constant 0 : index
      %335 = vector.load %arg22[%c0_218, %c0_219, %c0_220] : memref<1x16x64xf32, #tpu.memory_space<vmem>>, vector<1x16x64xf32>
      %336 = vector.shape_cast %335 : vector<1x16x64xf32> to vector<16x64xf32>
      %337 = vector.shape_cast %334 : vector<16x64xf32> to vector<1x16x64xf32>
      tpu.vector_store %arg22[%c0_218, %c0_219, %c0_220], %337 {strides = array<i32>} : memref<1x16x64xf32, #tpu.memory_space<vmem>>, vector<1x16x64xf32>,
      %c0_221 = arith.constant 0 : index
      %c0_222 = arith.constant 0 : index
      %338 = vector.load %arg27[%c0_221, %c0_222] : memref<1x1xf32, #tpu.memory_space<vmem>>, vector<1x1xf32>
      %339 = vector.shape_cast %338 : vector<1x1xf32> to vector<1x1xf32>
      %340 = vector.broadcast %339 : vector<1x1xf32> to vector<1x128xf32>
      %c0_223 = arith.constant 0 : index
      %c0_224 = arith.constant 0 : index
      %c0_225 = arith.constant 0 : index
      %341 = vector.load %arg23[%c0_223, %c0_224, %c0_225] : memref<1x1x128xf32, #tpu.memory_space<vmem>>, vector<1x1x128xf32>
      %342 = vector.shape_cast %341 : vector<1x1x128xf32> to vector<1x128xf32>
      %343 = vector.shape_cast %340 : vector<1x128xf32> to vector<1x1x128xf32>
      tpu.vector_store %arg23[%c0_223, %c0_224, %c0_225], %343 {strides = array<i32>} : memref<1x1x128xf32, #tpu.memory_space<vmem>>, vector<1x1x128xf32>,
    } else {
    }
    return
  }
  func.func @transform_0(%arg0: i32, %arg1: i32) -> (i32, i32, i32) {
    %c0_i32 = arith.constant 0 : i32
    %c0_i32_0 = arith.constant 0 : i32
    %c0_i32_1 = arith.constant 0 : i32
    return %arg0, %c0_i32, %c0_i32_0 : i32, i32, i32
  }
  func.func @transform_1(%arg0: i32, %arg1: i32) -> (i32, i32, i32) {
    %c0_i32 = arith.constant 0 : i32
    %c0_i32_0 = arith.constant 0 : i32
    %c0_i32_1 = arith.constant 0 : i32
    return %arg0, %c0_i32, %c0_i32_0 : i32, i32, i32
  }
  func.func @transform_2(%arg0: i32, %arg1: i32) -> (i32, i32, i32) {
    %c0_i32 = arith.constant 0 : i32
    %c0_i32_0 = arith.constant 0 : i32
    %c0_i32_1 = arith.constant 0 : i32
    %c0_i32_2 = arith.constant 0 : i32
    return %c0_i32, %c0_i32_0, %c0_i32_1 : i32, i32, i32
  }
  func.func @transform_3(%arg0: i32, %arg1: i32) -> (i32, i32, i32) {
    %c0_i32 = arith.constant 0 : i32
    %c0_i32_0 = arith.constant 0 : i32
    %c0_i32_1 = arith.constant 0 : i32
    return %arg1, %c0_i32, %c0_i32_0 : i32, i32, i32
  }
  func.func @transform_4(%arg0: i32, %arg1: i32) -> (i32, i32, i32) {
    %c0_i32 = arith.constant 0 : i32
    %c0_i32_0 = arith.constant 0 : i32
    %c0_i32_1 = arith.constant 0 : i32
    return %arg1, %c0_i32, %c0_i32_0 : i32, i32, i32
  }
  func.func @transform_5(%arg0: i32, %arg1: i32) -> (i32, i32, i32) {
    %c0_i32 = arith.constant 0 : i32
    %c0_i32_0 = arith.constant 0 : i32
    %c0_i32_1 = arith.constant 0 : i32
    return %arg1, %c0_i32, %c0_i32_0 : i32, i32, i32
  }
  func.func @transform_6(%arg0: i32, %arg1: i32) -> (i32, i32, i32) {
    %c0_i32 = arith.constant 0 : i32
    %c0_i32_0 = arith.constant 0 : i32
    %c0_i32_1 = arith.constant 0 : i32
    return %arg1, %c0_i32, %c0_i32_0 : i32, i32, i32
  }
  func.func @transform_7(%arg0: i32, %arg1: i32) -> (i32, i32, i32) {
    %c0_i32 = arith.constant 0 : i32
    %c0_i32_0 = arith.constant 0 : i32
    %c0_i32_1 = arith.constant 0 : i32
    return %arg1, %c0_i32, %c0_i32_0 : i32, i32, i32
  }
  func.func @transform_8(%arg0: i32, %arg1: i32) -> (i32, i32, i32) {
    %c0_i32 = arith.constant 0 : i32
    %c0_i32_0 = arith.constant 0 : i32
    %c0_i32_1 = arith.constant 0 : i32
    return %arg1, %c0_i32, %c0_i32_0 : i32, i32, i32
  }
  func.func @transform_9(%arg0: i32, %arg1: i32) -> (i32, i32, i32) {
    %c0_i32 = arith.constant 0 : i32
    %c0_i32_0 = arith.constant 0 : i32
    %c0_i32_1 = arith.constant 0 : i32
    return %arg1, %c0_i32, %c0_i32_0 : i32, i32, i32
  }
  func.func @transform_10(%arg0: i32, %arg1: i32) -> (i32, i32, i32) {
    %c0_i32 = arith.constant 0 : i32
    %c0_i32_0 = arith.constant 0 : i32
    %c0_i32_1 = arith.constant 0 : i32
    return %arg1, %c0_i32, %c0_i32_0 : i32, i32, i32
  }
  func.func @transform_11(%arg0: i32, %arg1: i32) -> (i32, i32, i32) {
    %c0_i32 = arith.constant 0 : i32
    %c0_i32_0 = arith.constant 0 : i32
    %c0_i32_1 = arith.constant 0 : i32
    return %arg1, %c0_i32, %c0_i32_0 : i32, i32, i32
  }
  func.func @transform_12(%arg0: i32, %arg1: i32) -> (i32, i32, i32) {
    %c0_i32 = arith.constant 0 : i32
    %c0_i32_0 = arith.constant 0 : i32
    %c0_i32_1 = arith.constant 0 : i32
    return %arg1, %c0_i32, %c0_i32_0 : i32, i32, i32
  }
  func.func @transform_13(%arg0: i32, %arg1: i32) -> (i32, i32, i32) {
    %c0_i32 = arith.constant 0 : i32
    %c0_i32_0 = arith.constant 0 : i32
    %c0_i32_1 = arith.constant 0 : i32
    return %arg1, %c0_i32, %c0_i32_0 : i32, i32, i32
  }
  func.func @transform_14(%arg0: i32, %arg1: i32) -> (i32, i32, i32) {
    %c0_i32 = arith.constant 0 : i32
    %c0_i32_0 = arith.constant 0 : i32
    %c0_i32_1 = arith.constant 0 : i32
    return %arg1, %c0_i32, %c0_i32_0 : i32, i32, i32
  }
  func.func @transform_15(%arg0: i32, %arg1: i32) -> (i32, i32, i32) {
    %c0_i32 = arith.constant 0 : i32
    %c0_i32_0 = arith.constant 0 : i32
    %c0_i32_1 = arith.constant 0 : i32
    return %arg1, %c0_i32, %c0_i32_0 : i32, i32, i32
  }
  func.func @transform_16(%arg0: i32, %arg1: i32) -> (i32, i32, i32) {
    %c0_i32 = arith.constant 0 : i32
    %c0_i32_0 = arith.constant 0 : i32
    %c0_i32_1 = arith.constant 0 : i32
    return %arg1, %c0_i32, %c0_i32_0 : i32, i32, i32
  }
  func.func @transform_17(%arg0: i32, %arg1: i32) -> (i32, i32, i32) {
    %c0_i32 = arith.constant 0 : i32
    %c0_i32_0 = arith.constant 0 : i32
    %c0_i32_1 = arith.constant 0 : i32
    return %arg1, %c0_i32, %c0_i32_0 : i32, i32, i32
  }
  func.func @transform_18(%arg0: i32, %arg1: i32) -> (i32, i32, i32) {
    %c0_i32 = arith.constant 0 : i32
    %c0_i32_0 = arith.constant 0 : i32
    %c0_i32_1 = arith.constant 0 : i32
    return %arg1, %c0_i32, %c0_i32_0 : i32, i32, i32
  }
  func.func @transform_19(%arg0: i32, %arg1: i32) -> (i32, i32, i32) {
    %c0_i32 = arith.constant 0 : i32
    %c0_i32_0 = arith.constant 0 : i32
    %c0_i32_1 = arith.constant 0 : i32
    return %arg1, %c0_i32, %c0_i32_0 : i32, i32, i32
  }
  func.func @transform_20(%arg0: i32, %arg1: i32) -> (i32, i32, i32) {
    %c0_i32 = arith.constant 0 : i32
    %c0_i32_0 = arith.constant 0 : i32
    %c0_i32_1 = arith.constant 0 : i32
    return %arg0, %c0_i32, %c0_i32_0 : i32, i32, i32
  }
  func.func @transform_21(%arg0: i32, %arg1: i32) -> (i32, i32, i32) {
    %c0_i32 = arith.constant 0 : i32
    %c0_i32_0 = arith.constant 0 : i32
    %c0_i32_1 = arith.constant 0 : i32
    return %arg0, %c0_i32, %c0_i32_0 : i32, i32, i32
  }
}

</mosaic_0001>

<llo_original>
// kernel: glow_forward.3
$region0: #{glow_forward.3}
  #allocation0 [shape = 'u32[]', space=smem, size = 0x4, offset = 0x4, fixed_abs, tag = 'smem constant byte address 0x4 - core index']
  #allocation1 [shape = 'u32[144,128]{1,0:T(1,128)}', space=vmem, size = 0x12000, scoped, tag = 'internal scratch']
  #allocation2 [shape = 'f32[16,64]{1,0:T(8,128)}', space=vmem, size = 0x2000, scoped, tag = 'scratch operand']
  #allocation3 [shape = 'bf16[288,64]{1,0:T(16,128)(2,1)}', space=vmem, size = 0x12000, scoped, tag = 'scratch operand']
  #allocation4 [shape = 'bf16[72,64]{1,0:T(8,128)(2,1)}', space=vmem, size = 0x4800, scoped, tag = 'scratch operand']
  #allocation5 [shape = 'f32[1,1]{1,0:T(1,128)}', space=vmem, size = 0x200, scoped, tag = 'scratch operand']
  %s0 = inlined_call_operand.vmem [shape: f32[2,16,64], index: 0, kind: input, shape index: {}]
  %s1 = inlined_call_operand.vmem [shape: bf16[2,144,64], index: 1, kind: input, shape index: {}]
  %s2 = inlined_call_operand.vmem [shape: f32[9,1,64], index: 2, kind: input, shape index: {}]
  %s3 = inlined_call_operand.vmem [shape: bf16[2,16,16], index: 3, kind: input, shape index: {}]
  %s4 = inlined_call_operand.vmem [shape: f32[2,16,1], index: 4, kind: input, shape index: {}]
  %s5 = inlined_call_operand.vmem [shape: bf16[2,32,144], index: 5, kind: input, shape index: {}]
  %s6 = inlined_call_operand.vmem [shape: f32[2,32,1], index: 6, kind: input, shape index: {}]
  %s7 = inlined_call_operand.vmem [shape: bf16[2,32,32], index: 7, kind: input, shape index: {}]
  %s8 = inlined_call_operand.vmem [shape: f32[2,32,1], index: 8, kind: input, shape index: {}]
  %s9 = inlined_call_operand.vmem [shape: bf16[2,32,288], index: 9, kind: input, shape index: {}]
  %s10 = inlined_call_operand.vmem [shape: f32[2,32,1], index: 10, kind: input, shape index: {}]
  %s11 = inlined_call_operand.vmem [shape: f32[2,16,1], index: 11, kind: input, shape index: {}]
  %s12 = inlined_call_operand.vmem [shape: bf16[2,32,72], index: 12, kind: input, shape index: {}]
  %s13 = inlined_call_operand.vmem [shape: bf16[2,32,144], index: 13, kind: input, shape index: {}]
  %s14 = inlined_call_operand.vmem [shape: f32[2,32,1], index: 14, kind: input, shape index: {}]
  %s15 = inlined_call_operand.vmem [shape: bf16[2,32,32], index: 15, kind: input, shape index: {}]
  %s16 = inlined_call_operand.vmem [shape: f32[2,32,1], index: 16, kind: input, shape index: {}]
  %s17 = inlined_call_operand.vmem [shape: bf16[2,16,288], index: 17, kind: input, shape index: {}]
  %s18 = inlined_call_operand.vmem [shape: f32[2,16,1], index: 18, kind: input, shape index: {}]
  %s19 = inlined_call_operand.vmem [shape: f32[2,8,1], index: 19, kind: input, shape index: {}]
  %s20 = inlined_call_operand.vmem [shape: f32[2,16,64], index: 20, kind: output, shape index: {0}]
  %s21 = inlined_call_operand.vmem [shape: f32[2,1,128], index: 21, kind: output, shape index: {1}]
  %22 = xla_tuple %s20, %s21
  %s23 = sld [smem:[#allocation0]]
  $region129: #{glow_forward.3} parent=0
    _
  %s25 = ssub.s32 1, %s23
  %s26 = scalar_select 0, %s25, %s23
  loop: start=0, step=1, limit=6
  $region2: #{glow_forward.3} parent=0 // loop_pre_header
    _
  $region3: #{glow_forward.3} parent=0 // loop_header
    %s28 = sphi 0, %s32
    %p29 = scmp.ge.s32.totalorder %s28, 6
    %s35 = sphi 0, %s47
    %s36 = sphi 0, %s43
    %s37 = sphi 0, %s35
    %s38 = sphi 0, %s36
    %s39 = sphi 0, %s37
    %s40 = sphi 0, %s38
    %s50 = sphi 0, %s52
    %s53 = sphi 0, %s50
    %s54 = sphi 0, %s53
    %s70 = sphi 0, %s54
    %s76 = sphi 0, %s78
    %s79 = sphi 0, %s76
    %s80 = sphi 0, %s79
    %s96 = sphi 0, %s80
    %s100 = sphi 0, %s100
    %s102 = sphi 0, %s100
    %s103 = sphi 0, %s102
    %s117 = sphi 0, %s103
    %s123 = sphi 0, %s125
    %s126 = sphi 0, %s123
    %s127 = sphi 0, %s126
    %s143 = sphi 0, %s127
    %s149 = sphi 0, %s151
    %s152 = sphi 0, %s149
    %s153 = sphi 0, %s152
    %s169 = sphi 0, %s153
    %s175 = sphi 0, %s177
    %s178 = sphi 0, %s175
    %s179 = sphi 0, %s178
    %s195 = sphi 0, %s179
    %s201 = sphi 0, %s203
    %s204 = sphi 0, %s201
    %s205 = sphi 0, %s204
    %s221 = sphi 0, %s205
    %s227 = sphi 0, %s229
    %s230 = sphi 0, %s227
    %s231 = sphi 0, %s230
    %s247 = sphi 0, %s231
    %s253 = sphi 0, %s255
    %s256 = sphi 0, %s253
    %s257 = sphi 0, %s256
    %s273 = sphi 0, %s257
    %s279 = sphi 0, %s281
    %s282 = sphi 0, %s279
    %s283 = sphi 0, %s282
    %s299 = sphi 0, %s283
    %s305 = sphi 0, %s307
    %s308 = sphi 0, %s305
    %s309 = sphi 0, %s308
    %s325 = sphi 0, %s309
    %s331 = sphi 0, %s333
    %s334 = sphi 0, %s331
    %s335 = sphi 0, %s334
    %s351 = sphi 0, %s335
    %s357 = sphi 0, %s359
    %s360 = sphi 0, %s357
    %s361 = sphi 0, %s360
    %s377 = sphi 0, %s361
    %s383 = sphi 0, %s385
    %s386 = sphi 0, %s383
    %s387 = sphi 0, %s386
    %s403 = sphi 0, %s387
    %s409 = sphi 0, %s411
    %s412 = sphi 0, %s409
    %s413 = sphi 0, %s412
    %s429 = sphi 0, %s413
    %s435 = sphi 0, %s437
    %s438 = sphi 0, %s435
    %s439 = sphi 0, %s438
    %s455 = sphi 0, %s439
    %s461 = sphi 0, %s463
    %s464 = sphi 0, %s461
    %s465 = sphi 0, %s464
    %s481 = sphi 0, %s465
    %s487 = sphi 0, %s489
    %s490 = sphi 0, %s487
    %s491 = sphi 0, %s490
    %s507 = sphi 0, %s491
    %s513 = sphi 0, %s515
    %s516 = sphi 0, %s513
    %s517 = sphi 0, %s516
    %s533 = sphi 0, %s517
    %s539 = sphi 0, %s541
    %s542 = sphi 0, %s539
    %s543 = sphi 0, %s542
    %s559 = sphi 0, %s543
    %s565 = sphi 0, %s567
    %s568 = sphi 0, %s565
    %s569 = sphi 0, %s568
    %s585 = sphi 0, %s569
    %s591 = sphi 0, %s593
    %s594 = sphi 0, %s591
    %s595 = sphi 0, %s594
    %s611 = sphi 0, %s595
  $region4: #{glow_forward.3} parent=0 // loop_header_branch
    %31 = sbr.rel (%p29) target = $region8
  $region5: #{glow_forward.3} parent=0 // loop_body
    %s33 = ssub.s32 %s28, 1
    %s34 = ssub.s32 %s28, 2
    %s41 = sadd.s32 1, %s36
    %p42 = scmp.ge.s32.totalorder %s41, 2
    %s43 = scalar_select %p42, 0, %s41
    %s44 = sadd.s32 1, %s35
    %s45 = scalar_select %p42, %s44, %s35
    %p46 = scmp.ge.s32.totalorder %s45, 2
    %s47 = scalar_select %p46, 0, %s45
    %s48 = ssub.s32 %s35, %s47
    %p49 = scmp.eq.s32.totalorder %s48, 0
    %s51 = sadd.s32 %s50, 1
    %s52 = scalar_select %p49, %s50, %s51
    %p55 = pneg %p49
    %p56 = scmp.eq.s32.totalorder %s28, 3
    %p57 = por %p55, %p56
    %p58 = scmp.ne.s32.totalorder %s50, %s53
    %p59 = scmp.eq.s32.totalorder %s28, 0
    %p60 = por %p58, %p59
    %p61 = scmp.ne.s32.totalorder %s50, %s53
    %p62 = scmp.eq.s32.totalorder %s33, 3
    %p63 = por %p61, %p62
    %p64 = scmp.ne.s32.totalorder %s53, %s54
    %p65 = scmp.eq.s32.totalorder %s33, 0
    %p66 = por %p64, %p65
    %p67 = scmp.ne.s32.totalorder %s53, %s54
    %p68 = scmp.eq.s32.totalorder %s34, 3
    %p69 = por %p67, %p68
    %p71 = scmp.ne.s32.totalorder %s54, %s70
    %p72 = scmp.eq.s32.totalorder %s34, 0
    %p73 = por %p71, %p72
    %s74 = ssub.s32 %s35, %s47
    %p75 = scmp.eq.s32.totalorder %s74, 0
    %s77 = sadd.s32 %s76, 1
    %s78 = scalar_select %p75, %s76, %s77
    %p81 = pneg %p75
    %p82 = scmp.eq.s32.totalorder %s28, 3
    %p83 = por %p81, %p82
    %p84 = scmp.ne.s32.totalorder %s76, %s79
    %p85 = scmp.eq.s32.totalorder %s28, 0
    %p86 = por %p84, %p85
    %p87 = scmp.ne.s32.totalorder %s76, %s79
    %p88 = scmp.eq.s32.totalorder %s33, 3
    %p89 = por %p87, %p88
    %p90 = scmp.ne.s32.totalorder %s79, %s80
    %p91 = scmp.eq.s32.totalorder %s33, 0
    %p92 = por %p90, %p91
    %p93 = scmp.ne.s32.totalorder %s79, %s80
    %p94 = scmp.eq.s32.totalorder %s34, 3
    %p95 = por %p93, %p94
    %p97 = scmp.ne.s32.totalorder %s80, %s96
    %p98 = scmp.eq.s32.totalorder %s34, 0
    %p99 = por %p97, %p98
    %s101 = sadd.s32 %s100, 1
    %p104 = scmp.eq.s32.totalorder %s28, 3
    %p105 = scmp.ne.s32.totalorder %s100, %s102
    %p106 = scmp.eq.s32.totalorder %s28, 0
    %p107 = por %p105, %p106
    %p108 = scmp.ne.s32.totalorder %s100, %s102
    %p109 = scmp.eq.s32.totalorder %s33, 3
    %p110 = por %p108, %p109
    %p111 = scmp.ne.s32.totalorder %s102, %s103
    %p112 = scmp.eq.s32.totalorder %s33, 0
    %p113 = por %p111, %p112
    %p114 = scmp.ne.s32.totalorder %s102, %s103
    %p115 = scmp.eq.s32.totalorder %s34, 3
    %p116 = por %p114, %p115
    %p118 = scmp.ne.s32.totalorder %s103, %s117
    %p119 = scmp.eq.s32.totalorder %s34, 0
    %p120 = por %p118, %p119
    %s121 = ssub.s32 %s36, %s43
    %p122 = scmp.eq.s32.totalorder %s121, 0
    %s124 = sadd.s32 %s123, 1
    %s125 = scalar_select %p122, %s123, %s124
    %p128 = pneg %p122
    %p129 = scmp.eq.s32.totalorder %s28, 3
    %p130 = por %p128, %p129
    %p131 = scmp.ne.s32.totalorder %s123, %s126
    %p132 = scmp.eq.s32.totalorder %s28, 0
    %p133 = por %p131, %p132
    %p134 = scmp.ne.s32.totalorder %s123, %s126
    %p135 = scmp.eq.s32.totalorder %s33, 3
    %p136 = por %p134, %p135
    %p137 = scmp.ne.s32.totalorder %s126, %s127
    %p138 = scmp.eq.s32.totalorder %s33, 0
    %p139 = por %p137, %p138
    %p140 = scmp.ne.s32.totalorder %s126, %s127
    %p141 = scmp.eq.s32.totalorder %s34, 3
    %p142 = por %p140, %p141
    %p144 = scmp.ne.s32.totalorder %s127, %s143
    %p145 = scmp.eq.s32.totalorder %s34, 0
    %p146 = por %p144, %p145
    %s147 = ssub.s32 %s36, %s43
    %p148 = scmp.eq.s32.totalorder %s147, 0
    %s150 = sadd.s32 %s149, 1
    %s151 = scalar_select %p148, %s149, %s150
    %p154 = pneg %p148
    %p155 = scmp.eq.s32.totalorder %s28, 3
    %p156 = por %p154, %p155
    %p157 = scmp.ne.s32.totalorder %s149, %s152
    %p158 = scmp.eq.s32.totalorder %s28, 0
    %p159 = por %p157, %p158
    %p160 = scmp.ne.s32.totalorder %s149, %s152
    %p161 = scmp.eq.s32.totalorder %s33, 3
    %p162 = por %p160, %p161
    %p163 = scmp.ne.s32.totalorder %s152, %s153
    %p164 = scmp.eq.s32.totalorder %s33, 0
    %p165 = por %p163, %p164
    %p166 = scmp.ne.s32.totalorder %s152, %s153
    %p167 = scmp.eq.s32.totalorder %s34, 3
    %p168 = por %p166, %p167
    %p170 = scmp.ne.s32.totalorder %s153, %s169
    %p171 = scmp.eq.s32.totalorder %s34, 0
    %p172 = por %p170, %p171
    %s173 = ssub.s32 %s36, %s43
    %p174 = scmp.eq.s32.totalorder %s173, 0
    %s176 = sadd.s32 %s175, 1
    %s177 = scalar_select %p174, %s175, %s176
    %p180 = pneg %p174
    %p181 = scmp.eq.s32.totalorder %s28, 3
    %p182 = por %p180, %p181
    %p183 = scmp.ne.s32.totalorder %s175, %s178
    %p184 = scmp.eq.s32.totalorder %s28, 0
    %p185 = por %p183, %p184
    %p186 = scmp.ne.s32.totalorder %s175, %s178
    %p187 = scmp.eq.s32.totalorder %s33, 3
    %p188 = por %p186, %p187
    %p189 = scmp.ne.s32.totalorder %s178, %s179
    %p190 = scmp.eq.s32.totalorder %s33, 0
    %p191 = por %p189, %p190
    %p192 = scmp.ne.s32.totalorder %s178, %s179
    %p193 = scmp.eq.s32.totalorder %s34, 3
    %p194 = por %p192, %p193
    %p196 = scmp.ne.s32.totalorder %s179, %s195
    %p197 = scmp.eq.s32.totalorder %s34, 0
    %p198 = por %p196, %p197
    %s199 = ssub.s32 %s36, %s43
    %p200 = scmp.eq.s32.totalorder %s199, 0
    %s202 = sadd.s32 %s201, 1
    %s203 = scalar_select %p200, %s201, %s202
    %p206 = pneg %p200
    %p207 = scmp.eq.s32.totalorder %s28, 3
    %p208 = por %p206, %p207
    %p209 = scmp.ne.s32.totalorder %s201, %s204
    %p210 = scmp.eq.s32.totalorder %s28, 0
    %p211 = por %p209, %p210
    %p212 = scmp.ne.s32.totalorder %s201, %s204
    %p213 = scmp.eq.s32.totalorder %s33, 3
    %p214 = por %p212, %p213
    %p215 = scmp.ne.s32.totalorder %s204, %s205
    %p216 = scmp.eq.s32.totalorder %s33, 0
    %p217 = por %p215, %p216
    %p218 = scmp.ne.s32.totalorder %s204, %s205
    %p219 = scmp.eq.s32.totalorder %s34, 3
    %p220 = por %p218, %p219
    %p222 = scmp.ne.s32.totalorder %s205, %s221
    %p223 = scmp.eq.s32.totalorder %s34, 0
    %p224 = por %p222, %p223
    %s225 = ssub.s32 %s36, %s43
    %p226 = scmp.eq.s32.totalorder %s225, 0
    %s228 = sadd.s32 %s227, 1
    %s229 = scalar_select %p226, %s227, %s228
    %p232 = pneg %p226
    %p233 = scmp.eq.s32.totalorder %s28, 3
    %p234 = por %p232, %p233
    %p235 = scmp.ne.s32.totalorder %s227, %s230
    %p236 = scmp.eq.s32.totalorder %s28, 0
    %p237 = por %p235, %p236
    %p238 = scmp.ne.s32.totalorder %s227, %s230
    %p239 = scmp.eq.s32.totalorder %s33, 3
    %p240 = por %p238, %p239
    %p241 = scmp.ne.s32.totalorder %s230, %s231
    %p242 = scmp.eq.s32.totalorder %s33, 0
    %p243 = por %p241, %p242
    %p244 = scmp.ne.s32.totalorder %s230, %s231
    %p245 = scmp.eq.s32.totalorder %s34, 3
    %p246 = por %p244, %p245
    %p248 = scmp.ne.s32.totalorder %s231, %s247
    %p249 = scmp.eq.s32.totalorder %s34, 0
    %p250 = por %p248, %p249
    %s251 = ssub.s32 %s36, %s43
    %p252 = scmp.eq.s32.totalorder %s251, 0
    %s254 = sadd.s32 %s253, 1
    %s255 = scalar_select %p252, %s253, %s254
    %p258 = pneg %p252
    %p259 = scmp.eq.s32.totalorder %s28, 3
    %p260 = por %p258, %p259
    %p261 = scmp.ne.s32.totalorder %s253, %s256
    %p262 = scmp.eq.s32.totalorder %s28, 0
    %p263 = por %p261, %p262
    %p264 = scmp.ne.s32.totalorder %s253, %s256
    %p265 = scmp.eq.s32.totalorder %s33, 3
    %p266 = por %p264, %p265
    %p267 = scmp.ne.s32.totalorder %s256, %s257
    %p268 = scmp.eq.s32.totalorder %s33, 0
    %p269 = por %p267, %p268
    %p270 = scmp.ne.s32.totalorder %s256, %s257
    %p271 = scmp.eq.s32.totalorder %s34, 3
    %p272 = por %p270, %p271
    %p274 = scmp.ne.s32.totalorder %s257, %s273
    %p275 = scmp.eq.s32.totalorder %s34, 0
    %p276 = por %p274, %p275
    %s277 = ssub.s32 %s36, %s43
    %p278 = scmp.eq.s32.totalorder %s277, 0
    %s280 = sadd.s32 %s279, 1
    %s281 = scalar_select %p278, %s279, %s280
    %p284 = pneg %p278
    %p285 = scmp.eq.s32.totalorder %s28, 3
    %p286 = por %p284, %p285
    %p287 = scmp.ne.s32.totalorder %s279, %s282
    %p288 = scmp.eq.s32.totalorder %s28, 0
    %p289 = por %p287, %p288
    %p290 = scmp.ne.s32.totalorder %s279, %s282
    %p291 = scmp.eq.s32.totalorder %s33, 3
    %p292 = por %p290, %p291
    %p293 = scmp.ne.s32.totalorder %s282, %s283
    %p294 = scmp.eq.s32.totalorder %s33, 0
    %p295 = por %p293, %p294
    %p296 = scmp.ne.s32.totalorder %s282, %s283
    %p297 = scmp.eq.s32.totalorder %s34, 3
    %p298 = por %p296, %p297
    %p300 = scmp.ne.s32.totalorder %s283, %s299
    %p301 = scmp.eq.s32.totalorder %s34, 0
    %p302 = por %p300, %p301
    %s303 = ssub.s32 %s36, %s43
    %p304 = scmp.eq.s32.totalorder %s303, 0
    %s306 = sadd.s32 %s305, 1
    %s307 = scalar_select %p304, %s305, %s306
    %p310 = pneg %p304
    %p311 = scmp.eq.s32.totalorder %s28, 3
    %p312 = por %p310, %p311
    %p313 = scmp.ne.s32.totalorder %s305, %s308
    %p314 = scmp.eq.s32.totalorder %s28, 0
    %p315 = por %p313, %p314
    %p316 = scmp.ne.s32.totalorder %s305, %s308
    %p317 = scmp.eq.s32.totalorder %s33, 3
    %p318 = por %p316, %p317
    %p319 = scmp.ne.s32.totalorder %s308, %s309
    %p320 = scmp.eq.s32.totalorder %s33, 0
    %p321 = por %p319, %p320
    %p322 = scmp.ne.s32.totalorder %s308, %s309
    %p323 = scmp.eq.s32.totalorder %s34, 3
    %p324 = por %p322, %p323
    %p326 = scmp.ne.s32.totalorder %s309, %s325
    %p327 = scmp.eq.s32.totalorder %s34, 0
    %p328 = por %p326, %p327
    %s329 = ssub.s32 %s36, %s43
    %p330 = scmp.eq.s32.totalorder %s329, 0
    %s332 = sadd.s32 %s331, 1
    %s333 = scalar_select %p330, %s331, %s332
    %p336 = pneg %p330
    %p337 = scmp.eq.s32.totalorder %s28, 3
    %p338 = por %p336, %p337
    %p339 = scmp.ne.s32.totalorder %s331, %s334
    %p340 = scmp.eq.s32.totalorder %s28, 0
    %p341 = por %p339, %p340
    %p342 = scmp.ne.s32.totalorder %s331, %s334
    %p343 = scmp.eq.s32.totalorder %s33, 3
    %p344 = por %p342, %p343
    %p345 = scmp.ne.s32.totalorder %s334, %s335
    %p346 = scmp.eq.s32.totalorder %s33, 0
    %p347 = por %p345, %p346
    %p348 = scmp.ne.s32.totalorder %s334, %s335
    %p349 = scmp.eq.s32.totalorder %s34, 3
    %p350 = por %p348, %p349
    %p352 = scmp.ne.s32.totalorder %s335, %s351
    %p353 = scmp.eq.s32.totalorder %s34, 0
    %p354 = por %p352, %p353
    %s355 = ssub.s32 %s36, %s43
    %p356 = scmp.eq.s32.totalorder %s355, 0
    %s358 = sadd.s32 %s357, 1
    %s359 = scalar_select %p356, %s357, %s358
    %p362 = pneg %p356
    %p363 = scmp.eq.s32.totalorder %s28, 3
    %p364 = por %p362, %p363
    %p365 = scmp.ne.s32.totalorder %s357, %s360
    %p366 = scmp.eq.s32.totalorder %s28, 0
    %p367 = por %p365, %p366
    %p368 = scmp.ne.s32.totalorder %s357, %s360
    %p369 = scmp.eq.s32.totalorder %s33, 3
    %p370 = por %p368, %p369
    %p371 = scmp.ne.s32.totalorder %s360, %s361
    %p372 = scmp.eq.s32.totalorder %s33, 0
    %p373 = por %p371, %p372
    %p374 = scmp.ne.s32.totalorder %s360, %s361
    %p375 = scmp.eq.s32.totalorder %s34, 3
    %p376 = por %p374, %p375
    %p378 = scmp.ne.s32.totalorder %s361, %s377
    %p379 = scmp.eq.s32.totalorder %s34, 0
    %p380 = por %p378, %p379
    %s381 = ssub.s32 %s36, %s43
    %p382 = scmp.eq.s32.totalorder %s381, 0
    %s384 = sadd.s32 %s383, 1
    %s385 = scalar_select %p382, %s383, %s384
    %p388 = pneg %p382
    %p389 = scmp.eq.s32.totalorder %s28, 3
    %p390 = por %p388, %p389
    %p391 = scmp.ne.s32.totalorder %s383, %s386
    %p392 = scmp.eq.s32.totalorder %s28, 0
    %p393 = por %p391, %p392
    %p394 = scmp.ne.s32.totalorder %s383, %s386
    %p395 = scmp.eq.s32.totalorder %s33, 3
    %p396 = por %p394, %p395
    %p397 = scmp.ne.s32.totalorder %s386, %s387
    %p398 = scmp.eq.s32.totalorder %s33, 0
    %p399 = por %p397, %p398
    %p400 = scmp.ne.s32.totalorder %s386, %s387
    %p401 = scmp.eq.s32.totalorder %s34, 3
    %p402 = por %p400, %p401
    %p404 = scmp.ne.s32.totalorder %s387, %s403
    %p405 = scmp.eq.s32.totalorder %s34, 0
    %p406 = por %p404, %p405
    %s407 = ssub.s32 %s36, %s43
    %p408 = scmp.eq.s32.totalorder %s407, 0
    %s410 = sadd.s32 %s409, 1
    %s411 = scalar_select %p408, %s409, %s410
    %p414 = pneg %p408
    %p415 = scmp.eq.s32.totalorder %s28, 3
    %p416 = por %p414, %p415
    %p417 = scmp.ne.s32.totalorder %s409, %s412
    %p418 = scmp.eq.s32.totalorder %s28, 0
    %p419 = por %p417, %p418
    %p420 = scmp.ne.s32.totalorder %s409, %s412
    %p421 = scmp.eq.s32.totalorder %s33, 3
    %p422 = por %p420, %p421
    %p423 = scmp.ne.s32.totalorder %s412, %s413
    %p424 = scmp.eq.s32.totalorder %s33, 0
    %p425 = por %p423, %p424
    %p426 = scmp.ne.s32.totalorder %s412, %s413
    %p427 = scmp.eq.s32.totalorder %s34, 3
    %p428 = por %p426, %p427
    %p430 = scmp.ne.s32.totalorder %s413, %s429
    %p431 = scmp.eq.s32.totalorder %s34, 0
    %p432 = por %p430, %p431
    %s433 = ssub.s32 %s36, %s43
    %p434 = scmp.eq.s32.totalorder %s433, 0
    %s436 = sadd.s32 %s435, 1
    %s437 = scalar_select %p434, %s435, %s436
    %p440 = pneg %p434
    %p441 = scmp.eq.s32.totalorder %s28, 3
    %p442 = por %p440, %p441
    %p443 = scmp.ne.s32.totalorder %s435, %s438
    %p444 = scmp.eq.s32.totalorder %s28, 0
    %p445 = por %p443, %p444
    %p446 = scmp.ne.s32.totalorder %s435, %s438
    %p447 = scmp.eq.s32.totalorder %s33, 3
    %p448 = por %p446, %p447
    %p449 = scmp.ne.s32.totalorder %s438, %s439
    %p450 = scmp.eq.s32.totalorder %s33, 0
    %p451 = por %p449, %p450
    %p452 = scmp.ne.s32.totalorder %s438, %s439
    %p453 = scmp.eq.s32.totalorder %s34, 3
    %p454 = por %p452, %p453
    %p456 = scmp.ne.s32.totalorder %s439, %s455
    %p457 = scmp.eq.s32.totalorder %s34, 0
    %p458 = por %p456, %p457
    %s459 = ssub.s32 %s36, %s43
    %p460 = scmp.eq.s32.totalorder %s459, 0
    %s462 = sadd.s32 %s461, 1
    %s463 = scalar_select %p460, %s461, %s462
    %p466 = pneg %p460
    %p467 = scmp.eq.s32.totalorder %s28, 3
    %p468 = por %p466, %p467
    %p469 = scmp.ne.s32.totalorder %s461, %s464
    %p470 = scmp.eq.s32.totalorder %s28, 0
    %p471 = por %p469, %p470
    %p472 = scmp.ne.s32.totalorder %s461, %s464
    %p473 = scmp.eq.s32.totalorder %s33, 3
    %p474 = por %p472, %p473
    %p475 = scmp.ne.s32.totalorder %s464, %s465
    %p476 = scmp.eq.s32.totalorder %s33, 0
    %p477 = por %p475, %p476
    %p478 = scmp.ne.s32.totalorder %s464, %s465
    %p479 = scmp.eq.s32.totalorder %s34, 3
    %p480 = por %p478, %p479
    %p482 = scmp.ne.s32.totalorder %s465, %s481
    %p483 = scmp.eq.s32.totalorder %s34, 0
    %p484 = por %p482, %p483
    %s485 = ssub.s32 %s36, %s43
    %p486 = scmp.eq.s32.totalorder %s485, 0
    %s488 = sadd.s32 %s487, 1
    %s489 = scalar_select %p486, %s487, %s488
    %p492 = pneg %p486
    %p493 = scmp.eq.s32.totalorder %s28, 3
    %p494 = por %p492, %p493
    %p495 = scmp.ne.s32.totalorder %s487, %s490
    %p496 = scmp.eq.s32.totalorder %s28, 0
    %p497 = por %p495, %p496
    %p498 = scmp.ne.s32.totalorder %s487, %s490
    %p499 = scmp.eq.s32.totalorder %s33, 3
    %p500 = por %p498, %p499
    %p501 = scmp.ne.s32.totalorder %s490, %s491
    %p502 = scmp.eq.s32.totalorder %s33, 0
    %p503 = por %p501, %p502
    %p504 = scmp.ne.s32.totalorder %s490, %s491
    %p505 = scmp.eq.s32.totalorder %s34, 3
    %p506 = por %p504, %p505
    %p508 = scmp.ne.s32.totalorder %s491, %s507
    %p509 = scmp.eq.s32.totalorder %s34, 0
    %p510 = por %p508, %p509
    %s511 = ssub.s32 %s36, %s43
    %p512 = scmp.eq.s32.totalorder %s511, 0
    %s514 = sadd.s32 %s513, 1
    %s515 = scalar_select %p512, %s513, %s514
    %p518 = pneg %p512
    %p519 = scmp.eq.s32.totalorder %s28, 3
    %p520 = por %p518, %p519
    %p521 = scmp.ne.s32.totalorder %s513, %s516
    %p522 = scmp.eq.s32.totalorder %s28, 0
    %p523 = por %p521, %p522
    %p524 = scmp.ne.s32.totalorder %s513, %s516
    %p525 = scmp.eq.s32.totalorder %s33, 3
    %p526 = por %p524, %p525
    %p527 = scmp.ne.s32.totalorder %s516, %s517
    %p528 = scmp.eq.s32.totalorder %s33, 0
    %p529 = por %p527, %p528
    %p530 = scmp.ne.s32.totalorder %s516, %s517
    %p531 = scmp.eq.s32.totalorder %s34, 3
    %p532 = por %p530, %p531
    %p534 = scmp.ne.s32.totalorder %s517, %s533
    %p535 = scmp.eq.s32.totalorder %s34, 0
    %p536 = por %p534, %p535
    %s537 = ssub.s32 %s36, %s43
    %p538 = scmp.eq.s32.totalorder %s537, 0
    %s540 = sadd.s32 %s539, 1
    %s541 = scalar_select %p538, %s539, %s540
    %p544 = pneg %p538
    %p545 = scmp.eq.s32.totalorder %s28, 3
    %p546 = por %p544, %p545
    %p547 = scmp.ne.s32.totalorder %s539, %s542
    %p548 = scmp.eq.s32.totalorder %s28, 0
    %p549 = por %p547, %p548
    %p550 = scmp.ne.s32.totalorder %s539, %s542
    %p551 = scmp.eq.s32.totalorder %s33, 3
    %p552 = por %p550, %p551
    %p553 = scmp.ne.s32.totalorder %s542, %s543
    %p554 = scmp.eq.s32.totalorder %s33, 0
    %p555 = por %p553, %p554
    %p556 = scmp.ne.s32.totalorder %s542, %s543
    %p557 = scmp.eq.s32.totalorder %s34, 3
    %p558 = por %p556, %p557
    %p560 = scmp.ne.s32.totalorder %s543, %s559
    %p561 = scmp.eq.s32.totalorder %s34, 0
    %p562 = por %p560, %p561
    %s563 = ssub.s32 %s35, %s47
    %p564 = scmp.eq.s32.totalorder %s563, 0
    %s566 = sadd.s32 %s565, 1
    %s567 = scalar_select %p564, %s565, %s566
    %p570 = pneg %p564
    %p571 = scmp.eq.s32.totalorder %s28, 3
    %p572 = por %p570, %p571
    %p573 = scmp.ne.s32.totalorder %s565, %s568
    %p574 = scmp.eq.s32.totalorder %s28, 0
    %p575 = por %p573, %p574
    %p576 = scmp.ne.s32.totalorder %s565, %s568
    %p577 = scmp.eq.s32.totalorder %s33, 3
    %p578 = por %p576, %p577
    %p579 = scmp.ne.s32.totalorder %s568, %s569
    %p580 = scmp.eq.s32.totalorder %s33, 0
    %p581 = por %p579, %p580
    %p582 = scmp.ne.s32.totalorder %s568, %s569
    %p583 = scmp.eq.s32.totalorder %s34, 3
    %p584 = por %p582, %p583
    %p586 = scmp.ne.s32.totalorder %s569, %s585
    %p587 = scmp.eq.s32.totalorder %s34, 0
    %p588 = por %p586, %p587
    %s589 = ssub.s32 %s35, %s47
    %p590 = scmp.eq.s32.totalorder %s589, 0
    %s592 = sadd.s32 %s591, 1
    %s593 = scalar_select %p590, %s591, %s592
    %p596 = pneg %p590
    %p597 = scmp.eq.s32.totalorder %s28, 3
    %p598 = por %p596, %p597
    %p599 = scmp.ne.s32.totalorder %s591, %s594
    %p600 = scmp.eq.s32.totalorder %s28, 0
    %p601 = por %p599, %p600
    %p602 = scmp.ne.s32.totalorder %s591, %s594
    %p603 = scmp.eq.s32.totalorder %s33, 3
    %p604 = por %p602, %p603
    %p605 = scmp.ne.s32.totalorder %s594, %s595
    %p606 = scmp.eq.s32.totalorder %s33, 0
    %p607 = por %p605, %p606
    %p608 = scmp.ne.s32.totalorder %s594, %s595
    %p609 = scmp.eq.s32.totalorder %s34, 3
    %p610 = por %p608, %p609
    %p612 = scmp.ne.s32.totalorder %s595, %s611
    %p613 = scmp.eq.s32.totalorder %s34, 0
    %p614 = por %p612, %p613
    %p615 = scmp.le.s32.totalorder 1, %s28
    %p616 = scmp.lt.s32.totalorder %s28, 5
    %p617 = pnand %p615, %p616
    %p618 = pneg %p617
    // Predicated region
    $region9: #{glow_forward.3} parent=5 // pred_check
      _
    $region10: #{glow_forward.3} parent=5 // pred_check_branch
      %620 = sbr.rel (%p617) target = $region12
    $region11: #{glow_forward.3} parent=5 // pred_region
      %s621 = ssub.s32 %s28, 1
      // Predicated region
      $region13: #{glow_forward.3} parent=11 // pred_check
        %p622 = pneg %p113
      $region14: #{glow_forward.3} parent=11 // pred_check_branch
        %624 = sbr.rel (%p622) target = $region16
      $region15: #{glow_forward.3} parent=11 // pred_region
        _
      $region16: #{glow_forward.3} parent=11 // pred_fallthru
        _
    $region12: #{glow_forward.3} parent=5 // pred_fallthru
      _
    %p625 = scmp.lt.s32.totalorder %s28, 4
    // Predicated region
    $region17: #{glow_forward.3} parent=5 // pred_check
      %p626 = pneg %p625
    $region18: #{glow_forward.3} parent=5 // pred_check_branch
      %628 = sbr.rel (%p626) target = $region20
    $region19: #{glow_forward.3} parent=5 // pred_region
      // Predicated region
      $region21: #{glow_forward.3} parent=19 // pred_check
        %p629 = pneg %p60
      $region22: #{glow_forward.3} parent=19 // pred_check_branch
        %631 = sbr.rel (%p629) target = $region24
      $region23: #{glow_forward.3} parent=19 // pred_region
        %p632 = scmp.lt.s32.totalorder %s35, 1
        %s633 = scalar_select %p632, %s35, 1
        %s634 = smul.addr %s633, 2
        %s635 = smul.addr %s634, 8
        %s636 = scalar_lea.vmem %s0, %s635
      $region24: #{glow_forward.3} parent=19 // pred_fallthru
        _
      // Predicated region
      $region25: #{glow_forward.3} parent=19 // pred_check
        %p637 = pneg %p86
      $region26: #{glow_forward.3} parent=19 // pred_check_branch
        %639 = sbr.rel (%p637) target = $region28
      $region27: #{glow_forward.3} parent=19 // pred_region
        %p640 = scmp.lt.s32.totalorder %s35, 1
        %s641 = scalar_select %p640, %s35, 1
        %s642 = smul.addr %s641, 18
        %s643 = smul.addr %s642, 4
        %s644 = scalar_lea.vmem %s1, %s643
      $region28: #{glow_forward.3} parent=19 // pred_fallthru
        _
      // Predicated region
      $region29: #{glow_forward.3} parent=19 // pred_check
        %p645 = pneg %p133
      $region30: #{glow_forward.3} parent=19 // pred_check_branch
        %647 = sbr.rel (%p645) target = $region32
      $region31: #{glow_forward.3} parent=19 // pred_region
        %p648 = scmp.lt.s32.totalorder %s36, 1
        %s649 = scalar_select %p648, %s36, 1
        %s650 = smul.addr %s649, 2
        %s651 = smul.addr %s650, 4
        %s652 = scalar_lea.vmem %s3, %s651
      $region32: #{glow_forward.3} parent=19 // pred_fallthru
        _
      // Predicated region
      $region33: #{glow_forward.3} parent=19 // pred_check
        %p653 = pneg %p159
      $region34: #{glow_forward.3} parent=19 // pred_check_branch
        %655 = sbr.rel (%p653) target = $region36
      $region35: #{glow_forward.3} parent=19 // pred_region
        %p656 = scmp.lt.s32.totalorder %s36, 1
        %s657 = scalar_select %p656, %s36, 1
        %s658 = smul.addr %s657, 2
        %s659 = smul.addr %s658, 8
        %s660 = scalar_lea.vmem %s4, %s659
      $region36: #{glow_forward.3} parent=19 // pred_fallthru
        _
      // Predicated region
      $region37: #{glow_forward.3} parent=19 // pred_check
        %p661 = pneg %p185
      $region38: #{glow_forward.3} parent=19 // pred_check_branch
        %663 = sbr.rel (%p661) target = $region40
      $region39: #{glow_forward.3} parent=19 // pred_region
        %p664 = scmp.lt.s32.totalorder %s36, 1
        %s665 = scalar_select %p664, %s36, 1
        %s666 = smul.addr %s665, 8
        %s667 = smul.addr %s666, 4
        %s668 = scalar_lea.vmem %s5, %s667
      $region40: #{glow_forward.3} parent=19 // pred_fallthru
        _
      // Predicated region
      $region41: #{glow_forward.3} parent=19 // pred_check
        %p669 = pneg %p211
      $region42: #{glow_forward.3} parent=19 // pred_check_branch
        %671 = sbr.rel (%p669) target = $region44
      $region43: #{glow_forward.3} parent=19 // pred_region
        %p672 = scmp.lt.s32.totalorder %s36, 1
        %s673 = scalar_select %p672, %s36, 1
        %s674 = smul.addr %s673, 4
        %s675 = smul.addr %s674, 8
        %s676 = scalar_lea.vmem %s6, %s675
      $region44: #{glow_forward.3} parent=19 // pred_fallthru
        _
      // Predicated region
      $region45: #{glow_forward.3} parent=19 // pred_check
        %p677 = pneg %p237
      $region46: #{glow_forward.3} parent=19 // pred_check_branch
        %679 = sbr.rel (%p677) target = $region48
      $region47: #{glow_forward.3} parent=19 // pred_region
        %p680 = scmp.lt.s32.totalorder %s36, 1
        %s681 = scalar_select %p680, %s36, 1
        %s682 = smul.addr %s681, 4
        %s683 = smul.addr %s682, 4
        %s684 = scalar_lea.vmem %s7, %s683
      $region48: #{glow_forward.3} parent=19 // pred_fallthru
        _
      // Predicated region
      $region49: #{glow_forward.3} parent=19 // pred_check
        %p685 = pneg %p263
      $region50: #{glow_forward.3} parent=19 // pred_check_branch
        %687 = sbr.rel (%p685) target = $region52
      $region51: #{glow_forward.3} parent=19 // pred_region
        %p688 = scmp.lt.s32.totalorder %s36, 1
        %s689 = scalar_select %p688, %s36, 1
        %s690 = smul.addr %s689, 4
        %s691 = smul.addr %s690, 8
        %s692 = scalar_lea.vmem %s8, %s691
      $region52: #{glow_forward.3} parent=19 // pred_fallthru
        _
      // Predicated region
      $region53: #{glow_forward.3} parent=19 // pred_check
        %p693 = pneg %p289
      $region54: #{glow_forward.3} parent=19 // pred_check_branch
        %695 = sbr.rel (%p693) target = $region56
      $region55: #{glow_forward.3} parent=19 // pred_region
        %p696 = scmp.lt.s32.totalorder %s36, 1
        %s697 = scalar_select %p696, %s36, 1
        %s698 = smul.addr %s697, 12
        %s699 = smul.addr %s698, 4
        %s700 = scalar_lea.vmem %s9, %s699
      $region56: #{glow_forward.3} parent=19 // pred_fallthru
        _
      // Predicated region
      $region57: #{glow_forward.3} parent=19 // pred_check
        %p701 = pneg %p315
      $region58: #{glow_forward.3} parent=19 // pred_check_branch
        %703 = sbr.rel (%p701) target = $region60
      $region59: #{glow_forward.3} parent=19 // pred_region
        %p704 = scmp.lt.s32.totalorder %s36, 1
        %s705 = scalar_select %p704, %s36, 1
        %s706 = smul.addr %s705, 4
        %s707 = smul.addr %s706, 8
        %s708 = scalar_lea.vmem %s10, %s707
      $region60: #{glow_forward.3} parent=19 // pred_fallthru
        _
      // Predicated region
      $region61: #{glow_forward.3} parent=19 // pred_check
        %p709 = pneg %p341
      $region62: #{glow_forward.3} parent=19 // pred_check_branch
        %711 = sbr.rel (%p709) target = $region64
      $region63: #{glow_forward.3} parent=19 // pred_region
        %p712 = scmp.lt.s32.totalorder %s36, 1
        %s713 = scalar_select %p712, %s36, 1
        %s714 = smul.addr %s713, 2
        %s715 = smul.addr %s714, 8
        %s716 = scalar_lea.vmem %s11, %s715
      $region64: #{glow_forward.3} parent=19 // pred_fallthru
        _
      // Predicated region
      $region65: #{glow_forward.3} parent=19 // pred_check
        %p717 = pneg %p367
      $region66: #{glow_forward.3} parent=19 // pred_check_branch
        %719 = sbr.rel (%p717) target = $region68
      $region67: #{glow_forward.3} parent=19 // pred_region
        %p720 = scmp.lt.s32.totalorder %s36, 1
        %s721 = scalar_select %p720, %s36, 1
        %s722 = smul.addr %s721, 4
        %s723 = smul.addr %s722, 4
        %s724 = scalar_lea.vmem %s12, %s723
      $region68: #{glow_forward.3} parent=19 // pred_fallthru
        _
      // Predicated region
      $region69: #{glow_forward.3} parent=19 // pred_check
        %p725 = pneg %p393
      $region70: #{glow_forward.3} parent=19 // pred_check_branch
        %727 = sbr.rel (%p725) target = $region72
      $region71: #{glow_forward.3} parent=19 // pred_region
        %p728 = scmp.lt.s32.totalorder %s36, 1
        %s729 = scalar_select %p728, %s36, 1
        %s730 = smul.addr %s729, 8
        %s731 = smul.addr %s730, 4
        %s732 = scalar_lea.vmem %s13, %s731
      $region72: #{glow_forward.3} parent=19 // pred_fallthru
        _
      // Predicated region
      $region73: #{glow_forward.3} parent=19 // pred_check
        %p733 = pneg %p419
      $region74: #{glow_forward.3} parent=19 // pred_check_branch
        %735 = sbr.rel (%p733) target = $region76
      $region75: #{glow_forward.3} parent=19 // pred_region
        %p736 = scmp.lt.s32.totalorder %s36, 1
        %s737 = scalar_select %p736, %s36, 1
        %s738 = smul.addr %s737, 4
        %s739 = smul.addr %s738, 8
        %s740 = scalar_lea.vmem %s14, %s739
      $region76: #{glow_forward.3} parent=19 // pred_fallthru
        _
      // Predicated region
      $region77: #{glow_forward.3} parent=19 // pred_check
        %p741 = pneg %p445
      $region78: #{glow_forward.3} parent=19 // pred_check_branch
        %743 = sbr.rel (%p741) target = $region80
      $region79: #{glow_forward.3} parent=19 // pred_region
        %p744 = scmp.lt.s32.totalorder %s36, 1
        %s745 = scalar_select %p744, %s36, 1
        %s746 = smul.addr %s745, 4
        %s747 = smul.addr %s746, 4
        %s748 = scalar_lea.vmem %s15, %s747
      $region80: #{glow_forward.3} parent=19 // pred_fallthru
        _
      // Predicated region
      $region81: #{glow_forward.3} parent=19 // pred_check
        %p749 = pneg %p471
      $region82: #{glow_forward.3} parent=19 // pred_check_branch
        %751 = sbr.rel (%p749) target = $region84
      $region83: #{glow_forward.3} parent=19 // pred_region
        %p752 = scmp.lt.s32.totalorder %s36, 1
        %s753 = scalar_select %p752, %s36, 1
        %s754 = smul.addr %s753, 4
        %s755 = smul.addr %s754, 8
        %s756 = scalar_lea.vmem %s16, %s755
      $region84: #{glow_forward.3} parent=19 // pred_fallthru
        _
      // Predicated region
      $region85: #{glow_forward.3} parent=19 // pred_check
        %p757 = pneg %p497
      $region86: #{glow_forward.3} parent=19 // pred_check_branch
        %759 = sbr.rel (%p757) target = $region88
      $region87: #{glow_forward.3} parent=19 // pred_region
        %p760 = scmp.lt.s32.totalorder %s36, 1
        %s761 = scalar_select %p760, %s36, 1
        %s762 = smul.addr %s761, 6
        %s763 = smul.addr %s762, 4
        %s764 = scalar_lea.vmem %s17, %s763
      $region88: #{glow_forward.3} parent=19 // pred_fallthru
        _
      // Predicated region
      $region89: #{glow_forward.3} parent=19 // pred_check
        %p765 = pneg %p523
      $region90: #{glow_forward.3} parent=19 // pred_check_branch
        %767 = sbr.rel (%p765) target = $region92
      $region91: #{glow_forward.3} parent=19 // pred_region
        %p768 = scmp.lt.s32.totalorder %s36, 1
        %s769 = scalar_select %p768, %s36, 1
        %s770 = smul.addr %s769, 2
        %s771 = smul.addr %s770, 8
        %s772 = scalar_lea.vmem %s18, %s771
      $region92: #{glow_forward.3} parent=19 // pred_fallthru
        _
      // Predicated region
      $region93: #{glow_forward.3} parent=19 // pred_check
        %p773 = pneg %p549
      $region94: #{glow_forward.3} parent=19 // pred_check_branch
        %775 = sbr.rel (%p773) target = $region96
      $region95: #{glow_forward.3} parent=19 // pred_region
        %p776 = scmp.lt.s32.totalorder %s36, 1
        %s777 = scalar_select %p776, %s36, 1
        %s778 = smul.addr %s777, 8
        %s779 = scalar_lea.vmem %s19, %s778
      $region96: #{glow_forward.3} parent=19 // pred_fallthru
        _
    $region20: #{glow_forward.3} parent=5 // pred_fallthru
      _
    %p780 = scmp.le.s32.totalorder 1, %s28
    %p781 = scmp.lt.s32.totalorder %s28, 5
    %p782 = pnand %p780, %p781
    %p783 = pneg %p782
    // Predicated region
    $region97: #{glow_forward.3} parent=5 // pred_check
      _
    $region98: #{glow_forward.3} parent=5 // pred_check_branch
      %785 = sbr.rel (%p782) target = $region100
    $region99: #{glow_forward.3} parent=5 // pred_region
      %s786 = ssub.s32 %s28, 1
      %p787 = scmp.lt.s32.totalorder %s37, 1
      %s788 = scalar_select %p787, %s37, 1
      %s789 = smul.addr %s788, 2
      %s790 = smul.addr %s789, 8
      %s791 = scalar_lea.vmem %s0, %s790
      %p792 = pneg %p66
      %p793 = pneg %p63
      %p794 = scmp.lt.s32.totalorder %s37, 1
      %s795 = scalar_select %p794, %s37, 1
      %s796 = smul.addr %s795, 18
      %s797 = smul.addr %s796, 4
      %s798 = scalar_lea.vmem %s1, %s797
      %p799 = pneg %p92
      %p800 = pneg %p89
      %p801 = pneg %p113
      %p802 = pneg %p110
      %p803 = scmp.lt.s32.totalorder %s38, 1
      %s804 = scalar_select %p803, %s38, 1
      %s805 = smul.addr %s804, 2
      %s806 = smul.addr %s805, 4
      %s807 = scalar_lea.vmem %s3, %s806
      %p808 = pneg %p139
      %p809 = pneg %p136
      %p810 = scmp.lt.s32.totalorder %s38, 1
      %s811 = scalar_select %p810, %s38, 1
      %s812 = smul.addr %s811, 2
      %s813 = smul.addr %s812, 8
      %s814 = scalar_lea.vmem %s4, %s813
      %p815 = pneg %p165
      %p816 = pneg %p162
      %p817 = scmp.lt.s32.totalorder %s38, 1
      %s818 = scalar_select %p817, %s38, 1
      %s819 = smul.addr %s818, 8
      %s820 = smul.addr %s819, 4
      %s821 = scalar_lea.vmem %s5, %s820
      %p822 = pneg %p191
      %p823 = pneg %p188
      %p824 = scmp.lt.s32.totalorder %s38, 1
      %s825 = scalar_select %p824, %s38, 1
      %s826 = smul.addr %s825, 4
      %s827 = smul.addr %s826, 8
      %s828 = scalar_lea.vmem %s6, %s827
      %p829 = pneg %p217
      %p830 = pneg %p214
      %p831 = scmp.lt.s32.totalorder %s38, 1
      %s832 = scalar_select %p831, %s38, 1
      %s833 = smul.addr %s832, 4
      %s834 = smul.addr %s833, 4
      %s835 = scalar_lea.vmem %s7, %s834
      %p836 = pneg %p243
      %p837 = pneg %p240
      %p838 = scmp.lt.s32.totalorder %s38, 1
      %s839 = scalar_select %p838, %s38, 1
      %s840 = smul.addr %s839, 4
      %s841 = smul.addr %s840, 8
      %s842 = scalar_lea.vmem %s8, %s841
      %p843 = pneg %p269
      %p844 = pneg %p266
      %p845 = scmp.lt.s32.totalorder %s38, 1
      %s846 = scalar_select %p845, %s38, 1
      %s847 = smul.addr %s846, 12
      %s848 = smul.addr %s847, 4
      %s849 = scalar_lea.vmem %s9, %s848
      %p850 = pneg %p295
      %p851 = pneg %p292
      %p852 = scmp.lt.s32.totalorder %s38, 1
      %s853 = scalar_select %p852, %s38, 1
      %s854 = smul.addr %s853, 4
      %s855 = smul.addr %s854, 8
      %s856 = scalar_lea.vmem %s10, %s855
      %p857 = pneg %p321
      %p858 = pneg %p318
      %p859 = scmp.lt.s32.totalorder %s38, 1
      %s860 = scalar_select %p859, %s38, 1
      %s861 = smul.addr %s860, 2
      %s862 = smul.addr %s861, 8
      %s863 = scalar_lea.vmem %s11, %s862
      %p864 = pneg %p347
      %p865 = pneg %p344
      %p866 = scmp.lt.s32.totalorder %s38, 1
      %s867 = scalar_select %p866, %s38, 1
      %s868 = smul.addr %s867, 4
      %s869 = smul.addr %s868, 4
      %s870 = scalar_lea.vmem %s12, %s869
      %p871 = pneg %p373
      %p872 = pneg %p370
      %p873 = scmp.lt.s32.totalorder %s38, 1
      %s874 = scalar_select %p873, %s38, 1
      %s875 = smul.addr %s874, 8
      %s876 = smul.addr %s875, 4
      %s877 = scalar_lea.vmem %s13, %s876
      %p878 = pneg %p399
      %p879 = pneg %p396
      %p880 = scmp.lt.s32.totalorder %s38, 1
      %s881 = scalar_select %p880, %s38, 1
      %s882 = smul.addr %s881, 4
      %s883 = smul.addr %s882, 8
      %s884 = scalar_lea.vmem %s14, %s883
      %p885 = pneg %p425
      %p886 = pneg %p422
      %p887 = scmp.lt.s32.totalorder %s38, 1
      %s888 = scalar_select %p887, %s38, 1
      %s889 = smul.addr %s888, 4
      %s890 = smul.addr %s889, 4
      %s891 = scalar_lea.vmem %s15, %s890
      %p892 = pneg %p451
      %p893 = pneg %p448
      %p894 = scmp.lt.s32.totalorder %s38, 1
      %s895 = scalar_select %p894, %s38, 1
      %s896 = smul.addr %s895, 4
      %s897 = smul.addr %s896, 8
      %s898 = scalar_lea.vmem %s16, %s897
      %p899 = pneg %p477
      %p900 = pneg %p474
      %p901 = scmp.lt.s32.totalorder %s38, 1
      %s902 = scalar_select %p901, %s38, 1
      %s903 = smul.addr %s902, 6
      %s904 = smul.addr %s903, 4
      %s905 = scalar_lea.vmem %s17, %s904
      %p906 = pneg %p503
      %p907 = pneg %p500
      %p908 = scmp.lt.s32.totalorder %s38, 1
      %s909 = scalar_select %p908, %s38, 1
      %s910 = smul.addr %s909, 2
      %s911 = smul.addr %s910, 8
      %s912 = scalar_lea.vmem %s18, %s911
      %p913 = pneg %p529
      %p914 = pneg %p526
      %p915 = scmp.lt.s32.totalorder %s38, 1
      %s916 = scalar_select %p915, %s38, 1
      %s917 = smul.addr %s916, 8
      %s918 = scalar_lea.vmem %s19, %s917
      %p919 = pneg %p555
      %p920 = pneg %p552
      %p921 = pneg %p581
      %p922 = pneg %p578
      %p923 = scmp.lt.s32.totalorder %s37, 1
      %s924 = scalar_select %p923, %s37, 1
      %s925 = smul.addr %s924, 2
      %s926 = smul.addr %s925, 8
      %s927 = scalar_lea.vmem %s20, %s926
      %p928 = pneg %p607
      %p929 = pneg %p604
      %p930 = scmp.lt.s32.totalorder %s37, 1
      %s931 = scalar_select %p930, %s37, 1
      %s932 = scalar_lea.vmem %s21, %s931
      %p933 = scmp.lt.s32.totalorder %s37, 1
      %s934 = scalar_select %p933, %s37, 1
      %s935 = smul.addr %s934, 2
      %s936 = smul.addr %s935, 8
      %s937 = scalar_lea.vmem %s0, %s936
      %p938 = scmp.lt.s32.totalorder %s37, 1
      %s939 = scalar_select %p938, %s37, 1
      %s940 = smul.addr %s939, 18
      %s941 = smul.addr %s940, 4
      %s942 = scalar_lea.vmem %s1, %s941
      %p943 = scmp.lt.s32.totalorder %s38, 1
      %s944 = scalar_select %p943, %s38, 1
      %s945 = smul.addr %s944, 2
      %s946 = smul.addr %s945, 4
      %s947 = scalar_lea.vmem %s3, %s946
      %p948 = scmp.lt.s32.totalorder %s38, 1
      %s949 = scalar_select %p948, %s38, 1
      %s950 = smul.addr %s949, 2
      %s951 = smul.addr %s950, 8
      %s952 = scalar_lea.vmem %s4, %s951
      %p953 = scmp.lt.s32.totalorder %s38, 1
      %s954 = scalar_select %p953, %s38, 1
      %s955 = smul.addr %s954, 8
      %s956 = smul.addr %s955, 4
      %s957 = scalar_lea.vmem %s5, %s956
      %p958 = scmp.lt.s32.totalorder %s38, 1
      %s959 = scalar_select %p958, %s38, 1
      %s960 = smul.addr %s959, 4
      %s961 = smul.addr %s960, 8
      %s962 = scalar_lea.vmem %s6, %s961
      %p963 = scmp.lt.s32.totalorder %s38, 1
      %s964 = scalar_select %p963, %s38, 1
      %s965 = smul.addr %s964, 4
      %s966 = smul.addr %s965, 4
      %s967 = scalar_lea.vmem %s7, %s966
      %p968 = scmp.lt.s32.totalorder %s38, 1
      %s969 = scalar_select %p968, %s38, 1
      %s970 = smul.addr %s969, 4
      %s971 = smul.addr %s970, 8
      %s972 = scalar_lea.vmem %s8, %s971
      %p973 = scmp.lt.s32.totalorder %s38, 1
      %s974 = scalar_select %p973, %s38, 1
      %s975 = smul.addr %s974, 12
      %s976 = smul.addr %s975, 4
      %s977 = scalar_lea.vmem %s9, %s976
      %p978 = scmp.lt.s32.totalorder %s38, 1
      %s979 = scalar_select %p978, %s38, 1
      %s980 = smul.addr %s979, 4
      %s981 = smul.addr %s980, 8
      %s982 = scalar_lea.vmem %s10, %s981
      %p983 = scmp.lt.s32.totalorder %s38, 1
      %s984 = scalar_select %p983, %s38, 1
      %s985 = smul.addr %s984, 2
      %s986 = smul.addr %s985, 8
      %s987 = scalar_lea.vmem %s11, %s986
      %p988 = scmp.lt.s32.totalorder %s38, 1
      %s989 = scalar_select %p988, %s38, 1
      %s990 = smul.addr %s989, 4
      %s991 = smul.addr %s990, 4
      %s992 = scalar_lea.vmem %s12, %s991
      %p993 = scmp.lt.s32.totalorder %s38, 1
      %s994 = scalar_select %p993, %s38, 1
      %s995 = smul.addr %s994, 8
      %s996 = smul.addr %s995, 4
      %s997 = scalar_lea.vmem %s13, %s996
      %p998 = scmp.lt.s32.totalorder %s38, 1
      %s999 = scalar_select %p998, %s38, 1
      %s1000 = smul.addr %s999, 4
      %s1001 = smul.addr %s1000, 8
      %s1002 = scalar_lea.vmem %s14, %s1001
      %p1003 = scmp.lt.s32.totalorder %s38, 1
      %s1004 = scalar_select %p1003, %s38, 1
      %s1005 = smul.addr %s1004, 4
      %s1006 = smul.addr %s1005, 4
      %s1007 = scalar_lea.vmem %s15, %s1006
      %p1008 = scmp.lt.s32.totalorder %s38, 1
      %s1009 = scalar_select %p1008, %s38, 1
      %s1010 = smul.addr %s1009, 4
      %s1011 = smul.addr %s1010, 8
      %s1012 = scalar_lea.vmem %s16, %s1011
      %p1013 = scmp.lt.s32.totalorder %s38, 1
      %s1014 = scalar_select %p1013, %s38, 1
      %s1015 = smul.addr %s1014, 6
      %s1016 = smul.addr %s1015, 4
      %s1017 = scalar_lea.vmem %s17, %s1016
      %p1018 = scmp.lt.s32.totalorder %s38, 1
      %s1019 = scalar_select %p1018, %s38, 1
      %s1020 = smul.addr %s1019, 2
      %s1021 = smul.addr %s1020, 8
      %s1022 = scalar_lea.vmem %s18, %s1021
      %p1023 = scmp.lt.s32.totalorder %s38, 1
      %s1024 = scalar_select %p1023, %s38, 1
      %s1025 = smul.addr %s1024, 8
      %s1026 = scalar_lea.vmem %s19, %s1025
      %p1027 = scmp.lt.s32.totalorder %s37, 1
      %s1028 = scalar_select %p1027, %s37, 1
      %s1029 = smul.addr %s1028, 2
      %s1030 = smul.addr %s1029, 8
      %s1031 = scalar_lea.vmem %s20, %s1030
      %p1032 = scmp.lt.s32.totalorder %s37, 1
      %s1033 = scalar_select %p1032, %s37, 1
      %s1034 = scalar_lea.vmem %s21, %s1033
      %p1036 = scmp.eq.s32.totalorder %s38, 0
      // Predicated region
      $region101: #{glow_forward.3} parent=99 // pred_check
        %p1037 = pneg %p1036
      $region102: #{glow_forward.3} parent=99 // pred_check_branch
        %1039 = sbr.rel (%p1037) target = $region104
      $region103: #{glow_forward.3} parent=99 // pred_region
        %v1040 = vld [vmem:[%s937] sm:$0xff]
        %v1041 = vld [vmem:[%s937 + $0x8] sm:$0xff]
        %vm1042 = vcmask 523264
        %1043 = vst.msk [vmem:[#allocation2] sm:$0xff] %vm1042, %v1040
        %1044 = vst.msk [vmem:[#allocation2 + $0x8] sm:$0xff] %vm1042, %v1041
        %vm1045 = vcmask 0
        %1046 = vst.msk [vmem:[#allocation5] sm:$0x1] %vm1045, 0.0
      $region104: #{glow_forward.3} parent=99 // pred_fallthru
        _
      %v1047 = vld [vmem:[#allocation2] sm:$0xff]
      %v1048 = vld [vmem:[#allocation2 + $0x8] sm:$0xff]
      %v1049 = vld [vmem:[%s942] sm:$0xf]
      %v1050 = vld [vmem:[%s942 + $0x4] sm:$0xf]
      %v1051 = vld [vmem:[%s942 + $0x8] sm:$0xf]
      %v1052 = vld [vmem:[%s942 + $0xc] sm:$0xf]
      %v1053 = vld [vmem:[%s942 + $0x10] sm:$0xf]
      %v1054 = vld [vmem:[%s942 + $0x14] sm:$0xf]
      %v1055 = vld [vmem:[%s942 + $0x18] sm:$0xf]
      %v1056 = vld [vmem:[%s942 + $0x1c] sm:$0xf]
      %v1057 = vld [vmem:[%s942 + $0x20] sm:$0xf]
      %v1058 = vld [vmem:[%s942 + $0x24] sm:$0xf]
      %v1059 = vld [vmem:[%s942 + $0x28] sm:$0xf]
      %v1060 = vld [vmem:[%s942 + $0x2c] sm:$0xf]
      %v1061 = vld [vmem:[%s942 + $0x30] sm:$0xf]
      %v1062 = vld [vmem:[%s942 + $0x34] sm:$0xf]
      %v1063 = vld [vmem:[%s942 + $0x38] sm:$0xf]
      %v1064 = vld [vmem:[%s942 + $0x3c] sm:$0xf]
      %v1065 = vld [vmem:[%s942 + $0x40] sm:$0xf]
      %v1066 = vld [vmem:[%s942 + $0x44] sm:$0xf]
      %v1067 = vld [vmem:[%s947] sm:$0xf]
      %v1068 = vld [vmem:[%s947 + $0x4] sm:$0xf]
      %v1069 = vpack.c.bf16 %v1048, %v1047
      %v1070 = vld [vmem:[%s952] sm:$0xff]
      %v1071 = vld [vmem:[%s952 + $0x8] sm:$0xff]
      %1073 = vset.pattern.permute.xlu0 0
      %1074 = vperm.xlu0 %1073, %v1070
      %v1075 = vpop.permute.xlu0 %1074
      %1078 = vset.pattern.permute.xlu0 0
      %1079 = vperm.xlu0 %1078, %v1071
      %v1080 = vpop.permute.xlu0 %1079
      %v1084 = vunpack.c.l.b16 %v1067
      %v1085 = vunpack.c.l.b16 %v1068
      %v1086 = vpack.c.b16 %v1085, %v1084
      %vm1087 = vcmask 130048
      %v1089 = vsel %vm1087, %v1086, 0
      %1091 = vmatprep.subr.bf16.mxu0 0
      %1092 = vmatpush1.bf16.msra.mxu0 %v1069
      %1093 = vmatprep.subr.bf16.mxu0 0
      %1094 = vmatpush1.bf16.msra.mxu0 0
      %1095 = vmatprep.subr.bf16.mxu0 0
      %1096 = vmatpush1.bf16.msra.mxu0 0
      %1097 = vmatprep.subr.bf16.mxu0 0
      %1098 = vmatpush1.bf16.msra.mxu0 0
      %1099 = vmatprep.subr.bf16.mxu0 0
      %1100 = vmatpush1.bf16.msra.mxu0 0
      %1101 = vmatprep.subr.bf16.mxu0 0
      %1102 = vmatpush1.bf16.msra.mxu0 0
      %1103 = vmatprep.subr.bf16.mxu0 0
      %1104 = vmatpush1.bf16.msra.mxu0 0
      %1105 = vmatprep.subr.bf16.mxu0 0
      %1106 = vmatpush1.bf16.msra.mxu0 0
      %1107 = vmatprep.subr.bf16.mxu0 0
      %1108 = vmatpush1.bf16.msra.mxu0 0
      %1109 = vmatprep.subr.bf16.mxu0 0
      %1110 = vmatpush1.bf16.msra.mxu0 0
      %1111 = vmatprep.subr.bf16.mxu0 0
      %1112 = vmatpush1.bf16.msra.mxu0 0
      %1113 = vmatprep.subr.bf16.mxu0 0
      %1114 = vmatpush1.bf16.msra.mxu0 0
      %1115 = vmatprep.subr.bf16.mxu0 0
      %1116 = vmatpush1.bf16.msra.mxu0 0
      %1117 = vmatprep.subr.bf16.mxu0 0
      %1118 = vmatpush1.bf16.msra.mxu0 0
      %1119 = vmatprep.subr.bf16.mxu0 0
      %1120 = vmatpush1.bf16.msra.mxu0 0
      %1121 = vmatprep.subr.bf16.mxu0 0
      %1122 = vmatpush1.bf16.msra.mxu0 0
      %1123 = vmatprep.mubr.bf16.mxu0 0
      %1124 = vmatmul.mubr.bf16.gmra.mrb[0].mxu0 %v1089
      %v1125 = vpop.f32.mrb[0].mxu0
      %v1126 = vadd.f32 %v1075, %v1125
      %v1127 = vpop.f32.mrb[0].mxu0
      %v1128 = vpop.f32.mrb[0].mxu0
      %v1129 = vadd.f32 %v1080, %v1128
      %v1130 = vpop.f32.mrb[0].mxu0
      %1131 = vdwg.mxu0
      %v1132 = vld [vmem:[%s957] sm:$0xff]
      %v1133 = vld [vmem:[%s957 + $0x8] sm:$0xff]
      %v1134 = vld [vmem:[%s957 + $0x10] sm:$0xff]
      %v1135 = vld [vmem:[%s957 + $0x18] sm:$0xff]
      %v1136 = vld [vmem:[%s962] sm:$0xff]
      %v1137 = vld [vmem:[%s962 + $0x8] sm:$0xff]
      %v1138 = vld [vmem:[%s962 + $0x10] sm:$0xff]
      %v1139 = vld [vmem:[%s962 + $0x18] sm:$0xff]
      %1141 = vset.pattern.permute.xlu0 0
      %1142 = vperm.xlu0 %1141, %v1136
      %v1143 = vpop.permute.xlu0 %1142
      %1146 = vset.pattern.permute.xlu0 0
      %1147 = vperm.xlu0 %1146, %v1137
      %v1148 = vpop.permute.xlu0 %1147
      %1151 = vset.pattern.permute.xlu0 0
      %1152 = vperm.xlu0 %1151, %v1138
      %v1153 = vpop.permute.xlu0 %1152
      %1156 = vset.pattern.permute.xlu0 0
      %1157 = vperm.xlu0 %1156, %v1139
      %v1158 = vpop.permute.xlu0 %1157
      %v1164 = vunpack.c.l.b16 %v1132
      %v1165 = vunpack.c.h.b16 %v1132
      %v1166 = vunpack.c.l.b16 %v1133
      %v1167 = vunpack.c.h.b16 %v1133
      %v1168 = vunpack.c.l.b16 %v1134
      %v1169 = vunpack.c.h.b16 %v1134
      %v1170 = vunpack.c.l.b16 %v1135
      %v1171 = vunpack.c.h.b16 %v1135
      %v1172 = vpack.c.b16 %v1166, %v1164
      %v1173 = vpack.c.b16 %v1167, %v1165
      %v1174 = vpack.c.b16 %v1170, %v1168
      %v1175 = vpack.c.b16 %v1171, %v1169
      %v1196 = vunpack.c.l.b16 %v1049
      %v1197 = vunpack.c.l.b16 %v1050
      %v1198 = vunpack.c.l.b16 %v1051
      %v1199 = vunpack.c.l.b16 %v1052
      %v1200 = vunpack.c.l.b16 %v1053
      %v1201 = vunpack.c.l.b16 %v1054
      %v1202 = vunpack.c.l.b16 %v1055
      %v1203 = vunpack.c.l.b16 %v1056
      %v1204 = vunpack.c.l.b16 %v1057
      %v1205 = vunpack.c.l.b16 %v1058
      %v1206 = vunpack.c.l.b16 %v1059
      %v1207 = vunpack.c.l.b16 %v1060
      %v1208 = vunpack.c.l.b16 %v1061
      %v1209 = vunpack.c.l.b16 %v1062
      %v1210 = vunpack.c.l.b16 %v1063
      %v1211 = vunpack.c.l.b16 %v1064
      %v1212 = vunpack.c.l.b16 %v1065
      %v1213 = vunpack.c.l.b16 %v1066
      %v1214 = vpack.c.b16 %v1197, %v1196
      %v1215 = vpack.c.b16 %v1199, %v1198
      %v1216 = vpack.c.b16 %v1201, %v1200
      %v1217 = vpack.c.b16 %v1203, %v1202
      %v1218 = vpack.c.b16 %v1205, %v1204
      %v1219 = vpack.c.b16 %v1207, %v1206
      %v1220 = vpack.c.b16 %v1209, %v1208
      %v1221 = vpack.c.b16 %v1211, %v1210
      %v1222 = vpack.c.b16 %v1213, %v1212
      %v1233 = vsel %vm1087, %v1173, 0
      %v1236 = vsel %vm1087, %v1175, 0
      %1238 = vmatprep.subr.bf16.mxu0 0
      %1239 = vmatpush1.bf16.msra.mxu0 %v1214
      %1240 = vmatprep.subr.bf16.mxu0 0
      %1241 = vmatpush1.bf16.msra.mxu0 %v1215
      %1242 = vmatprep.subr.bf16.mxu0 0
      %1243 = vmatpush1.bf16.msra.mxu0 %v1216
      %1244 = vmatprep.subr.bf16.mxu0 0
      %1245 = vmatpush1.bf16.msra.mxu0 %v1217
      %1246 = vmatprep.subr.bf16.mxu0 0
      %1247 = vmatpush1.bf16.msra.mxu0 %v1218
      %1248 = vmatprep.subr.bf16.mxu0 0
      %1249 = vmatpush1.bf16.msra.mxu0 %v1219
      %1250 = vmatprep.subr.bf16.mxu0 0
      %1251 = vmatpush1.bf16.msra.mxu0 %v1220
      %1252 = vmatprep.subr.bf16.mxu0 0
      %1253 = vmatpush1.bf16.msra.mxu0 %v1221
      %1254 = vmatprep.subr.bf16.mxu0 0
      %1255 = vmatpush1.bf16.msra.mxu0 %v1222
      %1256 = vmatprep.subr.bf16.mxu0 0
      %1257 = vmatpush1.bf16.msra.mxu0 0
      %1258 = vmatprep.subr.bf16.mxu0 0
      %1259 = vmatpush1.bf16.msra.mxu0 0
      %1260 = vmatprep.subr.bf16.mxu0 0
      %1261 = vmatpush1.bf16.msra.mxu0 0
      %1262 = vmatprep.subr.bf16.mxu0 0
      %1263 = vmatpush1.bf16.msra.mxu0 0
      %1264 = vmatprep.subr.bf16.mxu0 0
      %1265 = vmatpush1.bf16.msra.mxu0 0
      %1266 = vmatprep.subr.bf16.mxu0 0
      %1267 = vmatpush1.bf16.msra.mxu0 0
      %1268 = vmatprep.subr.bf16.mxu0 0
      %1269 = vmatpush1.bf16.msra.mxu0 0
      %1270 = vmatprep.mubr.bf16.mxu0 %v1233
      %1271 = vmatmul.mubr.bf16.gmra.mrb[0].mxu0 %v1172
      %v1272 = vpop.f32.mrb[0].mxu0
      %v1273 = vadd.f32 %v1143, %v1272
      %v1274 = vpop.f32.mrb[0].mxu0
      %v1275 = vpop.f32.mrb[0].mxu0
      %v1276 = vadd.f32 %v1148, %v1275
      %v1277 = vpop.f32.mrb[0].mxu0
      %1278 = vmatprep.mubr.bf16.mxu0 %v1236
      %1279 = vmatmul.mubr.bf16.gmra.mrb[0].mxu0 %v1174
      %v1280 = vpop.f32.mrb[0].mxu0
      %v1281 = vadd.f32 %v1153, %v1280
      %v1282 = vpop.f32.mrb[0].mxu0
      %v1283 = vpop.f32.mrb[0].mxu0
      %v1284 = vadd.f32 %v1158, %v1283
      %v1285 = vpop.f32.mrb[0].mxu0
      %1286 = vdwg.mxu0
      %v1287 = vmax.f32 %v1273, 0.0
      %v1288 = vmax.f32 %v1276, 0.0
      %v1289 = vmax.f32 %v1281, 0.0
      %v1290 = vmax.f32 %v1284, 0.0
      %v1291 = vld [vmem:[%s967] sm:$0xf]
      %v1292 = vld [vmem:[%s967 + $0x4] sm:$0xf]
      %v1293 = vld [vmem:[%s967 + $0x8] sm:$0xf]
      %v1294 = vld [vmem:[%s967 + $0xc] sm:$0xf]
      %v1295 = vpack.c.bf16 %v1288, %v1287
      %v1296 = vpack.c.bf16 %v1290, %v1289
      %v1297 = vld [vmem:[%s972] sm:$0xff]
      %v1298 = vld [vmem:[%s972 + $0x8] sm:$0xff]
      %v1299 = vld [vmem:[%s972 + $0x10] sm:$0xff]
      %v1300 = vld [vmem:[%s972 + $0x18] sm:$0xff]
      %1302 = vset.pattern.permute.xlu0 0
      %1303 = vperm.xlu0 %1302, %v1297
      %v1304 = vpop.permute.xlu0 %1303
      %1307 = vset.pattern.permute.xlu0 0
      %1308 = vperm.xlu0 %1307, %v1298
      %v1309 = vpop.permute.xlu0 %1308
      %1312 = vset.pattern.permute.xlu0 0
      %1313 = vperm.xlu0 %1312, %v1299
      %v1314 = vpop.permute.xlu0 %1313
      %1317 = vset.pattern.permute.xlu0 0
      %1318 = vperm.xlu0 %1317, %v1300
      %v1319 = vpop.permute.xlu0 %1318
      %v1325 = vunpack.c.l.b16 %v1291
      %v1326 = vunpack.c.l.b16 %v1292
      %v1327 = vunpack.c.l.b16 %v1293
      %v1328 = vunpack.c.l.b16 %v1294
      %v1329 = vpack.c.b16 %v1326, %v1325
      %v1330 = vpack.c.b16 %v1328, %v1327
      %vm1331 = vcmask 261120
      %v1333 = vsel %vm1331, %v1329, 0
      %v1336 = vsel %vm1331, %v1330, 0
      %1338 = vmatprep.subr.bf16.mxu0 0
      %1339 = vmatpush1.bf16.msra.mxu0 %v1295
      %1340 = vmatprep.subr.bf16.mxu0 0
      %1341 = vmatpush1.bf16.msra.mxu0 %v1296
      %1342 = vmatprep.subr.bf16.mxu0 0
      %1343 = vmatpush1.bf16.msra.mxu0 0
      %1344 = vmatprep.subr.bf16.mxu0 0
      %1345 = vmatpush1.bf16.msra.mxu0 0
      %1346 = vmatprep.subr.bf16.mxu0 0
      %1347 = vmatpush1.bf16.msra.mxu0 0
      %1348 = vmatprep.subr.bf16.mxu0 0
      %1349 = vmatpush1.bf16.msra.mxu0 0
      %1350 = vmatprep.subr.bf16.mxu0 0
      %1351 = vmatpush1.bf16.msra.mxu0 0
      %1352 = vmatprep.subr.bf16.mxu0 0
      %1353 = vmatpush1.bf16.msra.mxu0 0
      %1354 = vmatprep.subr.bf16.mxu0 0
      %1355 = vmatpush1.bf16.msra.mxu0 0
      %1356 = vmatprep.subr.bf16.mxu0 0
      %1357 = vmatpush1.bf16.msra.mxu0 0
      %1358 = vmatprep.subr.bf16.mxu0 0
      %1359 = vmatpush1.bf16.msra.mxu0 0
      %1360 = vmatprep.subr.bf16.mxu0 0
      %1361 = vmatpush1.bf16.msra.mxu0 0
      %1362 = vmatprep.subr.bf16.mxu0 0
      %1363 = vmatpush1.bf16.msra.mxu0 0
      %1364 = vmatprep.subr.bf16.mxu0 0
      %1365 = vmatpush1.bf16.msra.mxu0 0
      %1366 = vmatprep.subr.bf16.mxu0 0
      %1367 = vmatpush1.bf16.msra.mxu0 0
      %1368 = vmatprep.subr.bf16.mxu0 0
      %1369 = vmatpush1.bf16.msra.mxu0 0
      %1370 = vmatprep.mubr.bf16.mxu0 0
      %1371 = vmatmul.mubr.bf16.gmra.mrb[0].mxu0 %v1333
      %v1372 = vpop.f32.mrb[0].mxu0
      %v1373 = vadd.f32 %v1304, %v1372
      %v1374 = vpop.f32.mrb[0].mxu0
      %v1375 = vpop.f32.mrb[0].mxu0
      %v1376 = vadd.f32 %v1309, %v1375
      %v1377 = vpop.f32.mrb[0].mxu0
      %1378 = vmatprep.mubr.bf16.mxu0 0
      %1379 = vmatmul.mubr.bf16.gmra.mrb[0].mxu0 %v1336
      %v1380 = vpop.f32.mrb[0].mxu0
      %v1381 = vadd.f32 %v1314, %v1380
      %v1382 = vpop.f32.mrb[0].mxu0
      %v1383 = vpop.f32.mrb[0].mxu0
      %v1384 = vadd.f32 %v1319, %v1383
      %v1385 = vpop.f32.mrb[0].mxu0
      %1386 = vdwg.mxu0
      %v1387 = vmax.f32 %v1373, 0.0
      %v1388 = vmax.f32 %v1376, 0.0
      %v1389 = vmax.f32 %v1381, 0.0
      %v1390 = vmax.f32 %v1384, 0.0
      %1395 = vrot.lane.b32.xlu0 %v1387, 9
      %v1396 = vpop.permute.xlu0 %1395
      %1397 = vrot.lane.b32.xlu0 %v1388, 9
      %v1398 = vpop.permute.xlu0 %1397
      %1399 = vrot.lane.b32.xlu0 %v1389, 9
      %v1400 = vpop.permute.xlu0 %1399
      %1401 = vrot.lane.b32.xlu0 %v1390, 9
      %v1402 = vpop.permute.xlu0 %1401
      %vm1407 = vcmask 72704
      %v1408 = vsel %vm1407, 0.0, %v1396
      %v1409 = vsel %vm1407, 0.0, %v1398
      %v1410 = vsel %vm1407, 0.0, %v1400
      %v1411 = vsel %vm1407, 0.0, %v1402
      %v1412 = vld [vmem:[%s2] sm:$0x1]
      %v1414 = vlaneseq
      %v1415 = vshrl.u32 %v1414, 7
      %v1416 = vsub.s32 0, %v1415
      %v1417 = vrot.slane %v1412, %v1416
      %v1419 = vmul.f32 %v1408, %v1417
      %v1420 = vmul.f32 %v1409, %v1417
      %v1421 = vmul.f32 %v1410, %v1417
      %v1422 = vmul.f32 %v1411, %v1417
      %v1423 = vpack.c.bf16 %v1420, %v1419
      %v1424 = vpack.c.bf16 %v1422, %v1421
      %vm1425 = vcmask 523264
      %1426 = vst.msk [vmem:[#allocation3] sm:$0xff] %vm1425, %v1423
      %1427 = vst.msk [vmem:[#allocation3 + $0x8] sm:$0xff] %vm1425, %v1424
      %1428 = vrot.lane.b32.xlu0 %v1387, 8
      %v1429 = vpop.permute.xlu0 %1428
      %1430 = vrot.lane.b32.xlu0 %v1388, 8
      %v1431 = vpop.permute.xlu0 %1430
      %1432 = vrot.lane.b32.xlu0 %v1389, 8
      %v1433 = vpop.permute.xlu0 %1432
      %1434 = vrot.lane.b32.xlu0 %v1390, 8
      %v1435 = vpop.permute.xlu0 %1434
      %vm1440 = vcmask 64512
      %v1441 = vsel %vm1440, 0.0, %v1429
      %v1442 = vsel %vm1440, 0.0, %v1431
      %v1443 = vsel %vm1440, 0.0, %v1433
      %v1444 = vsel %vm1440, 0.0, %v1435
      %s1445 = scalar_lea.vmem %s2, 1
      %v1446 = vld [vmem:[%s1445] sm:$0x1]
      %v1448 = vlaneseq
      %v1449 = vshrl.u32 %v1448, 7
      %v1450 = vsub.s32 0, %v1449
      %v1451 = vrot.slane %v1446, %v1450
      %v1453 = vmul.f32 %v1441, %v1451
      %v1454 = vmul.f32 %v1442, %v1451
      %v1455 = vmul.f32 %v1443, %v1451
      %v1456 = vmul.f32 %v1444, %v1451
      %v1457 = vpack.c.bf16 %v1454, %v1453
      %v1458 = vpack.c.bf16 %v1456, %v1455
      %1459 = vst.msk [vmem:[#allocation3 + $0x10] sm:$0xff] %vm1425, %v1457
      %1460 = vst.msk [vmem:[#allocation3 + $0x18] sm:$0xff] %vm1425, %v1458
      %1461 = vrot.lane.b32.xlu0 %v1387, 7
      %v1462 = vpop.permute.xlu0 %1461
      %1463 = vrot.lane.b32.xlu0 %v1388, 7
      %v1464 = vpop.permute.xlu0 %1463
      %1465 = vrot.lane.b32.xlu0 %v1389, 7
      %v1466 = vpop.permute.xlu0 %1465
      %1467 = vrot.lane.b32.xlu0 %v1390, 7
      %v1468 = vpop.permute.xlu0 %1467
      %vm1473 = vcmask 56320
      %v1474 = vsel %vm1473, 0.0, %v1462
      %v1475 = vsel %vm1473, 0.0, %v1464
      %v1476 = vsel %vm1473, 0.0, %v1466
      %v1477 = vsel %vm1473, 0.0, %v1468
      %s1478 = scalar_lea.vmem %s2, 2
      %v1479 = vld [vmem:[%s1478] sm:$0x1]
      %v1481 = vlaneseq
      %v1482 = vshrl.u32 %v1481, 7
      %v1483 = vsub.s32 0, %v1482
      %v1484 = vrot.slane %v1479, %v1483
      %v1486 = vmul.f32 %v1474, %v1484
      %v1487 = vmul.f32 %v1475, %v1484
      %v1488 = vmul.f32 %v1476, %v1484
      %v1489 = vmul.f32 %v1477, %v1484
      %v1490 = vpack.c.bf16 %v1487, %v1486
      %v1491 = vpack.c.bf16 %v1489, %v1488
      %1492 = vst.msk [vmem:[#allocation3 + $0x20] sm:$0xff] %vm1425, %v1490
      %1493 = vst.msk [vmem:[#allocation3 + $0x28] sm:$0xff] %vm1425, %v1491
      %1494 = vrot.lane.b32.xlu0 %v1387, 1
      %v1495 = vpop.permute.xlu0 %1494
      %1496 = vrot.lane.b32.xlu0 %v1388, 1
      %v1497 = vpop.permute.xlu0 %1496
      %1498 = vrot.lane.b32.xlu0 %v1389, 1
      %v1499 = vpop.permute.xlu0 %1498
      %1500 = vrot.lane.b32.xlu0 %v1390, 1
      %v1501 = vpop.permute.xlu0 %1500
      %vm1506 = vcmask 7168
      %v1507 = vsel %vm1506, 0.0, %v1495
      %v1508 = vsel %vm1506, 0.0, %v1497
      %v1509 = vsel %vm1506, 0.0, %v1499
      %v1510 = vsel %vm1506, 0.0, %v1501
      %s1511 = scalar_lea.vmem %s2, 3
      %v1512 = vld [vmem:[%s1511] sm:$0x1]
      %v1514 = vlaneseq
      %v1515 = vshrl.u32 %v1514, 7
      %v1516 = vsub.s32 0, %v1515
      %v1517 = vrot.slane %v1512, %v1516
      %v1519 = vmul.f32 %v1507, %v1517
      %v1520 = vmul.f32 %v1508, %v1517
      %v1521 = vmul.f32 %v1509, %v1517
      %v1522 = vmul.f32 %v1510, %v1517
      %v1523 = vpack.c.bf16 %v1520, %v1519
      %v1524 = vpack.c.bf16 %v1522, %v1521
      %1525 = vst.msk [vmem:[#allocation3 + $0x30] sm:$0xff] %vm1425, %v1523
      %1526 = vst.msk [vmem:[#allocation3 + $0x38] sm:$0xff] %vm1425, %v1524
      %v1527 = vpack.c.bf16 %v1388, %v1387
      %v1528 = vpack.c.bf16 %v1390, %v1389
      %1529 = vst.msk [vmem:[#allocation3 + $0x40] sm:$0xff] %vm1425, %v1527
      %1530 = vst.msk [vmem:[#allocation3 + $0x48] sm:$0xff] %vm1425, %v1528
      %1531 = vrot.lane.b32.xlu0 %v1387, 127
      %v1532 = vpop.permute.xlu0 %1531
      %1533 = vrot.lane.b32.xlu0 %v1388, 127
      %v1534 = vpop.permute.xlu0 %1533
      %1535 = vrot.lane.b32.xlu0 %v1389, 127
      %v1536 = vpop.permute.xlu0 %1535
      %1537 = vrot.lane.b32.xlu0 %v1390, 127
      %v1538 = vpop.permute.xlu0 %1537
      %vm1543 = vcmask 515072
      %v1544 = vsel %vm1543, %v1532, 0.0
      %v1545 = vsel %vm1543, %v1534, 0.0
      %v1546 = vsel %vm1543, %v1536, 0.0
      %v1547 = vsel %vm1543, %v1538, 0.0
      %s1548 = scalar_lea.vmem %s2, 5
      %v1549 = vld [vmem:[%s1548] sm:$0x1]
      %v1551 = vlaneseq
      %v1552 = vshrl.u32 %v1551, 7
      %v1553 = vsub.s32 0, %v1552
      %v1554 = vrot.slane %v1549, %v1553
      %v1556 = vmul.f32 %v1544, %v1554
      %v1557 = vmul.f32 %v1545, %v1554
      %v1558 = vmul.f32 %v1546, %v1554
      %v1559 = vmul.f32 %v1547, %v1554
      %v1560 = vpack.c.bf16 %v1557, %v1556
      %v1561 = vpack.c.bf16 %v1559, %v1558
      %1562 = vst.msk [vmem:[#allocation3 + $0x50] sm:$0xff] %vm1425, %v1560
      %1563 = vst.msk [vmem:[#allocation3 + $0x58] sm:$0xff] %vm1425, %v1561
      %1564 = vrot.lane.b32.xlu0 %v1387, 121
      %v1565 = vpop.permute.xlu0 %1564
      %1566 = vrot.lane.b32.xlu0 %v1388, 121
      %v1567 = vpop.permute.xlu0 %1566
      %1568 = vrot.lane.b32.xlu0 %v1389, 121
      %v1569 = vpop.permute.xlu0 %1568
      %1570 = vrot.lane.b32.xlu0 %v1390, 121
      %v1571 = vpop.permute.xlu0 %1570
      %vm1576 = vcmask 465920
      %v1577 = vsel %vm1576, %v1565, 0.0
      %v1578 = vsel %vm1576, %v1567, 0.0
      %v1579 = vsel %vm1576, %v1569, 0.0
      %v1580 = vsel %vm1576, %v1571, 0.0
      %s1581 = scalar_lea.vmem %s2, 6
      %v1582 = vld [vmem:[%s1581] sm:$0x1]
      %v1584 = vlaneseq
      %v1585 = vshrl.u32 %v1584, 7
      %v1586 = vsub.s32 0, %v1585
      %v1587 = vrot.slane %v1582, %v1586
      %v1589 = vmul.f32 %v1577, %v1587
      %v1590 = vmul.f32 %v1578, %v1587
      %v1591 = vmul.f32 %v1579, %v1587
      %v1592 = vmul.f32 %v1580, %v1587
      %v1593 = vpack.c.bf16 %v1590, %v1589
      %v1594 = vpack.c.bf16 %v1592, %v1591
      %1595 = vst.msk [vmem:[#allocation3 + $0x60] sm:$0xff] %vm1425, %v1593
      %1596 = vst.msk [vmem:[#allocation3 + $0x68] sm:$0xff] %vm1425, %v1594
      %1597 = vrot.lane.b32.xlu0 %v1387, 120
      %v1598 = vpop.permute.xlu0 %1597
      %1599 = vrot.lane.b32.xlu0 %v1388, 120
      %v1600 = vpop.permute.xlu0 %1599
      %1601 = vrot.lane.b32.xlu0 %v1389, 120
      %v1602 = vpop.permute.xlu0 %1601
      %1603 = vrot.lane.b32.xlu0 %v1390, 120
      %v1604 = vpop.permute.xlu0 %1603
      %vm1609 = vcmask 457728
      %v1610 = vsel %vm1609, %v1598, 0.0
      %v1611 = vsel %vm1609, %v1600, 0.0
      %v1612 = vsel %vm1609, %v1602, 0.0
      %v1613 = vsel %vm1609, %v1604, 0.0
      %s1614 = scalar_lea.vmem %s2, 7
      %v1615 = vld [vmem:[%s1614] sm:$0x1]
      %v1617 = vlaneseq
      %v1618 = vshrl.u32 %v1617, 7
      %v1619 = vsub.s32 0, %v1618
      %v1620 = vrot.slane %v1615, %v1619
      %v1622 = vmul.f32 %v1610, %v1620
      %v1623 = vmul.f32 %v1611, %v1620
      %v1624 = vmul.f32 %v1612, %v1620
      %v1625 = vmul.f32 %v1613, %v1620
      %v1626 = vpack.c.bf16 %v1623, %v1622
      %v1627 = vpack.c.bf16 %v1625, %v1624
      %1628 = vst.msk [vmem:[#allocation3 + $0x70] sm:$0xff] %vm1425, %v1626
      %1629 = vst.msk [vmem:[#allocation3 + $0x78] sm:$0xff] %vm1425, %v1627
      %1630 = vrot.lane.b32.xlu0 %v1387, 119
      %v1631 = vpop.permute.xlu0 %1630
      %1632 = vrot.lane.b32.xlu0 %v1388, 119
      %v1633 = vpop.permute.xlu0 %1632
      %1634 = vrot.lane.b32.xlu0 %v1389, 119
      %v1635 = vpop.permute.xlu0 %1634
      %1636 = vrot.lane.b32.xlu0 %v1390, 119
      %v1637 = vpop.permute.xlu0 %1636
      %vm1642 = vcmask 449536
      %v1643 = vsel %vm1642, %v1631, 0.0
      %v1644 = vsel %vm1642, %v1633, 0.0
      %v1645 = vsel %vm1642, %v1635, 0.0
      %v1646 = vsel %vm1642, %v1637, 0.0
      %s1647 = scalar_lea.vmem %s2, 8
      %v1648 = vld [vmem:[%s1647] sm:$0x1]
      %v1650 = vlaneseq
      %v1651 = vshrl.u32 %v1650, 7
      %v1652 = vsub.s32 0, %v1651
      %v1653 = vrot.slane %v1648, %v1652
      %v1655 = vmul.f32 %v1643, %v1653
      %v1656 = vmul.f32 %v1644, %v1653
      %v1657 = vmul.f32 %v1645, %v1653
      %v1658 = vmul.f32 %v1646, %v1653
      %v1659 = vpack.c.bf16 %v1656, %v1655
      %v1660 = vpack.c.bf16 %v1658, %v1657
      %1661 = vst.msk [vmem:[#allocation3 + $0x80] sm:$0xff] %vm1425, %v1659
      %1662 = vst.msk [vmem:[#allocation3 + $0x88] sm:$0xff] %vm1425, %v1660
      %v1663 = vld [vmem:[%s977] sm:$0xff]
      %v1664 = vld [vmem:[%s977 + $0x8] sm:$0xf]
      %v1665 = vld [vmem:[%s977 + $0xc] sm:$0xff]
      %v1666 = vld [vmem:[%s977 + $0x14] sm:$0xf]
      %v1667 = vld [vmem:[%s977 + $0x18] sm:$0xff]
      %v1668 = vld [vmem:[%s977 + $0x20] sm:$0xf]
      %v1669 = vld [vmem:[%s977 + $0x24] sm:$0xff]
      %v1670 = vld [vmem:[%s977 + $0x2c] sm:$0xf]
      %v1671 = vld [vmem:[#allocation3] sm:$0xff]
      %v1672 = vld [vmem:[#allocation3 + $0x8] sm:$0xff]
      %v1673 = vld [vmem:[#allocation3 + $0x10] sm:$0xff]
      %v1674 = vld [vmem:[#allocation3 + $0x18] sm:$0xff]
      %v1675 = vld [vmem:[#allocation3 + $0x20] sm:$0xff]
      %v1676 = vld [vmem:[#allocation3 + $0x28] sm:$0xff]
      %v1677 = vld [vmem:[#allocation3 + $0x30] sm:$0xff]
      %v1678 = vld [vmem:[#allocation3 + $0x38] sm:$0xff]
      %v1679 = vld [vmem:[#allocation3 + $0x40] sm:$0xff]
      %v1680 = vld [vmem:[#allocation3 + $0x48] sm:$0xff]
      %v1681 = vld [vmem:[#allocation3 + $0x50] sm:$0xff]
      %v1682 = vld [vmem:[#allocation3 + $0x58] sm:$0xff]
      %v1683 = vld [vmem:[#allocation3 + $0x60] sm:$0xff]
      %v1684 = vld [vmem:[#allocation3 + $0x68] sm:$0xff]
      %v1685 = vld [vmem:[#allocation3 + $0x70] sm:$0xff]
      %v1686 = vld [vmem:[#allocation3 + $0x78] sm:$0xff]
      %v1687 = vld [vmem:[#allocation3 + $0x80] sm:$0xff]
      %v1688 = vld [vmem:[#allocation3 + $0x88] sm:$0xff]
      %v1689 = vld [vmem:[%s982] sm:$0xff]
      %v1690 = vld [vmem:[%s982 + $0x8] sm:$0xff]
      %v1691 = vld [vmem:[%s982 + $0x10] sm:$0xff]
      %v1692 = vld [vmem:[%s982 + $0x18] sm:$0xff]
      %1694 = vset.pattern.permute.xlu0 0
      %1695 = vperm.xlu0 %1694, %v1689
      %v1696 = vpop.permute.xlu0 %1695
      %1699 = vset.pattern.permute.xlu0 0
      %1700 = vperm.xlu0 %1699, %v1690
      %v1701 = vpop.permute.xlu0 %1700
      %1704 = vset.pattern.permute.xlu0 0
      %1705 = vperm.xlu0 %1704, %v1691
      %v1706 = vpop.permute.xlu0 %1705
      %1709 = vset.pattern.permute.xlu0 0
      %1710 = vperm.xlu0 %1709, %v1692
      %v1711 = vpop.permute.xlu0 %1710
      %v1721 = vunpack.c.l.b16 %v1663
      %v1722 = vunpack.c.h.b16 %v1663
      %v1723 = vunpack.c.l.b16 %v1664
      %v1724 = vunpack.c.l.b16 %v1665
      %v1725 = vunpack.c.h.b16 %v1665
      %v1726 = vunpack.c.l.b16 %v1666
      %v1727 = vunpack.c.l.b16 %v1667
      %v1728 = vunpack.c.h.b16 %v1667
      %v1729 = vunpack.c.l.b16 %v1668
      %v1730 = vunpack.c.l.b16 %v1669
      %v1731 = vunpack.c.h.b16 %v1669
      %v1732 = vunpack.c.l.b16 %v1670
      %v1733 = vpack.c.b16 %v1724, %v1721
      %v1734 = vpack.c.b16 %v1725, %v1722
      %v1735 = vpack.c.b16 %v1726, %v1723
      %v1736 = vpack.c.b16 %v1730, %v1727
      %v1737 = vpack.c.b16 %v1731, %v1728
      %v1738 = vpack.c.b16 %v1732, %v1729
      %v1744 = vsel %vm1331, %v1735, 0
      %v1747 = vsel %vm1331, %v1738, 0
      %1749 = vmatprep.subr.bf16.mxu0 0
      %1750 = vmatpush1.bf16.msra.mxu0 %v1671
      %1751 = vmatprep.subr.bf16.mxu0 0
      %1752 = vmatpush1.bf16.msra.mxu0 %v1672
      %1753 = vmatprep.subr.bf16.mxu0 0
      %1754 = vmatpush1.bf16.msra.mxu0 %v1673
      %1755 = vmatprep.subr.bf16.mxu0 0
      %1756 = vmatpush1.bf16.msra.mxu0 %v1674
      %1757 = vmatprep.subr.bf16.mxu0 0
      %1758 = vmatpush1.bf16.msra.mxu0 %v1675
      %1759 = vmatprep.subr.bf16.mxu0 0
      %1760 = vmatpush1.bf16.msra.mxu0 %v1676
      %1761 = vmatprep.subr.bf16.mxu0 0
      %1762 = vmatpush1.bf16.msra.mxu0 %v1677
      %1763 = vmatprep.subr.bf16.mxu0 0
      %1764 = vmatpush1.bf16.msra.mxu0 %v1678
      %1765 = vmatprep.subr.bf16.mxu0 0
      %1766 = vmatpush1.bf16.msra.mxu0 %v1679
      %1767 = vmatprep.subr.bf16.mxu0 0
      %1768 = vmatpush1.bf16.msra.mxu0 %v1680
      %1769 = vmatprep.subr.bf16.mxu0 0
      %1770 = vmatpush1.bf16.msra.mxu0 %v1681
      %1771 = vmatprep.subr.bf16.mxu0 0
      %1772 = vmatpush1.bf16.msra.mxu0 %v1682
      %1773 = vmatprep.subr.bf16.mxu0 0
      %1774 = vmatpush1.bf16.msra.mxu0 %v1683
      %1775 = vmatprep.subr.bf16.mxu0 0
      %1776 = vmatpush1.bf16.msra.mxu0 %v1684
      %1777 = vmatprep.subr.bf16.mxu0 0
      %1778 = vmatpush1.bf16.msra.mxu0 %v1685
      %1779 = vmatprep.subr.bf16.mxu0 0
      %1780 = vmatpush1.bf16.msra.mxu0 %v1686
      %1781 = vmatprep.mubr.bf16.mxu0 %v1734
      %1782 = vmatmul.mubr.bf16.gmra.mrb[0].mxu0 %v1733
      %v1783 = vpop.f32.mrb[0].mxu0
      %v1784 = vadd.f32 %v1696, %v1783
      %v1785 = vpop.f32.mrb[0].mxu0
      %v1786 = vpop.f32.mrb[0].mxu0
      %v1787 = vadd.f32 %v1701, %v1786
      %v1788 = vpop.f32.mrb[0].mxu0
      %1789 = vmatprep.mubr.bf16.mxu0 %v1737
      %1790 = vmatmul.mubr.bf16.gmra.mrb[0].mxu0 %v1736
      %v1791 = vpop.f32.mrb[0].mxu0
      %v1792 = vadd.f32 %v1706, %v1791
      %v1793 = vpop.f32.mrb[0].mxu0
      %v1794 = vpop.f32.mrb[0].mxu0
      %v1795 = vadd.f32 %v1711, %v1794
      %v1796 = vpop.f32.mrb[0].mxu0
      %1797 = vdwg.mxu0
      %1798 = vmatprep.subr.bf16.mxu0 0
      %1799 = vmatpush1.bf16.msra.mxu0 %v1687
      %1800 = vmatprep.subr.bf16.mxu0 0
      %1801 = vmatpush1.bf16.msra.mxu0 %v1688
      %1802 = vmatprep.subr.bf16.mxu0 0
      %1803 = vmatpush1.bf16.msra.mxu0 0
      %1804 = vmatprep.subr.bf16.mxu0 0
      %1805 = vmatpush1.bf16.msra.mxu0 0
      %1806 = vmatprep.subr.bf16.mxu0 0
      %1807 = vmatpush1.bf16.msra.mxu0 0
      %1808 = vmatprep.subr.bf16.mxu0 0
      %1809 = vmatpush1.bf16.msra.mxu0 0
      %1810 = vmatprep.subr.bf16.mxu0 0
      %1811 = vmatpush1.bf16.msra.mxu0 0
      %1812 = vmatprep.subr.bf16.mxu0 0
      %1813 = vmatpush1.bf16.msra.mxu0 0
      %1814 = vmatprep.subr.bf16.mxu0 0
      %1815 = vmatpush1.bf16.msra.mxu0 0
      %1816 = vmatprep.subr.bf16.mxu0 0
      %1817 = vmatpush1.bf16.msra.mxu0 0
      %1818 = vmatprep.subr.bf16.mxu0 0
      %1819 = vmatpush1.bf16.msra.mxu0 0
      %1820 = vmatprep.subr.bf16.mxu0 0
      %1821 = vmatpush1.bf16.msra.mxu0 0
      %1822 = vmatprep.subr.bf16.mxu0 0
      %1823 = vmatpush1.bf16.msra.mxu0 0
      %1824 = vmatprep.subr.bf16.mxu0 0
      %1825 = vmatpush1.bf16.msra.mxu0 0
      %1826 = vmatprep.subr.bf16.mxu0 0
      %1827 = vmatpush1.bf16.msra.mxu0 0
      %1828 = vmatprep.subr.bf16.mxu0 0
      %1829 = vmatpush1.bf16.msra.mxu0 0
      %1830 = vmatprep.mubr.bf16.mxu0 0
      %1831 = vmatmul.mubr.bf16.gmra.mrb[0].mxu0 %v1744
      %v1832 = vpop.f32.mrb[0].mxu0
      %v1833 = vadd.f32 %v1784, %v1832
      %v1834 = vpop.f32.mrb[0].mxu0
      %v1835 = vpop.f32.mrb[0].mxu0
      %v1836 = vadd.f32 %v1787, %v1835
      %v1837 = vpop.f32.mrb[0].mxu0
      %1838 = vmatprep.mubr.bf16.mxu0 0
      %1839 = vmatmul.mubr.bf16.gmra.mrb[0].mxu0 %v1747
      %v1840 = vpop.f32.mrb[0].mxu0
      %v1841 = vadd.f32 %v1792, %v1840
      %v1842 = vpop.f32.mrb[0].mxu0
      %v1843 = vpop.f32.mrb[0].mxu0
      %v1844 = vadd.f32 %v1795, %v1843
      %v1845 = vpop.f32.mrb[0].mxu0
      %1846 = vdwg.mxu0
      %v1847 = vld [vmem:[%s987] sm:$0xff]
      %v1848 = vld [vmem:[%s987 + $0x8] sm:$0xff]
      %v1849 = vtanh.pop %v1833
      %v1850 = vtanh.pop %v1836
      %1852 = vset.pattern.permute.xlu0 0
      %1853 = vperm.xlu0 %1852, %v1847
      %v1854 = vpop.permute.xlu0 %1853
      %1857 = vset.pattern.permute.xlu0 0
      %1858 = vperm.xlu0 %1857, %v1848
      %v1859 = vpop.permute.xlu0 %1858
      %v1861 = vmul.f32 %v1854, %v1849
      %v1862 = vmul.f32 %v1859, %v1850
      %v1863 = vadd.f32 %v1126, %v1841
      %v1864 = vadd.f32 %v1129, %v1844
      %v1865 = vmul.f32 %v1861, 1.442695
      %v1866 = vpow.pop %v1865
      %v1867 = vmul.f32 %v1862, 1.442695
      %v1868 = vpow.pop %v1867
      %v1869 = vmul.f32 %v1863, %v1866
      %v1870 = vmul.f32 %v1864, %v1868
      %v1871 = vsel %vm1425, %v1861, 0.0
      %1872 = vadd.xlane.f32.xlu0 %v1871
      %v1873 = vpop.xlane.xlu0 %1872
      %v1874 = vsel %vm1425, %v1862, 0.0
      %1875 = vadd.xlane.f32.xlu0 %v1874
      %v1876 = vpop.xlane.xlu0 %1875
      %v1877 = vadd.f32 %v1873, %v1876
      %v1878 = vrot.slane %v1877, 4
      %v1879 = vadd.f32 %v1877, %v1878
      %v1880 = vrot.slane %v1879, 2
      %v1881 = vadd.f32 %v1879, %v1880
      %v1882 = vrot.slane %v1881, 1
      %v1883 = vadd.f32 %v1881, %v1882
      %1885 = vrot.lane.b32.xlu0 %v1870, 9
      %v1886 = vpop.permute.xlu0 %1885
      %v1888 = vsel %vm1407, 0.0, %v1886
      %v1889 = vld [vmem:[%s2] sm:$0x1]
      %v1891 = vlaneseq
      %v1892 = vshrl.u32 %v1891, 7
      %v1893 = vsub.s32 0, %v1892
      %v1894 = vrot.slane %v1889, %v1893
      %v1896 = vmul.f32 %v1888, %v1894
      %v1897 = vpack.c.bf16 %v1896, %v1896
      %vm1898 = vcmask 519168
      %1899 = vst.msk [vmem:[#allocation4] sm:$0xf] %vm1898, %v1897
      %1900 = vrot.lane.b32.xlu0 %v1870, 8
      %v1901 = vpop.permute.xlu0 %1900
      %v1903 = vsel %vm1440, 0.0, %v1901
      %v1904 = vld [vmem:[%s1445] sm:$0x1]
      %v1906 = vlaneseq
      %v1907 = vshrl.u32 %v1906, 7
      %v1908 = vsub.s32 0, %v1907
      %v1909 = vrot.slane %v1904, %v1908
      %v1911 = vmul.f32 %v1903, %v1909
      %v1912 = vpack.c.bf16 %v1911, %v1911
      %1913 = vst.msk [vmem:[#allocation4 + $0x4] sm:$0xf] %vm1898, %v1912
      %1914 = vrot.lane.b32.xlu0 %v1870, 7
      %v1915 = vpop.permute.xlu0 %1914
      %v1917 = vsel %vm1473, 0.0, %v1915
      %v1918 = vld [vmem:[%s1478] sm:$0x1]
      %v1920 = vlaneseq
      %v1921 = vshrl.u32 %v1920, 7
      %v1922 = vsub.s32 0, %v1921
      %v1923 = vrot.slane %v1918, %v1922
      %v1925 = vmul.f32 %v1917, %v1923
      %v1926 = vpack.c.bf16 %v1925, %v1925
      %1927 = vst.msk [vmem:[#allocation4 + $0x8] sm:$0xf] %vm1898, %v1926
      %1928 = vrot.lane.b32.xlu0 %v1870, 1
      %v1929 = vpop.permute.xlu0 %1928
      %v1931 = vsel %vm1506, 0.0, %v1929
      %v1932 = vld [vmem:[%s1511] sm:$0x1]
      %v1934 = vlaneseq
      %v1935 = vshrl.u32 %v1934, 7
      %v1936 = vsub.s32 0, %v1935
      %v1937 = vrot.slane %v1932, %v1936
      %v1939 = vmul.f32 %v1931, %v1937
      %v1940 = vpack.c.bf16 %v1939, %v1939
      %1941 = vst.msk [vmem:[#allocation4 + $0xc] sm:$0xf] %vm1898, %v1940
      %v1942 = vpack.c.bf16 %v1870, %v1870
      %1943 = vst.msk [vmem:[#allocation4 + $0x10] sm:$0xf] %vm1898, %v1942
      %1944 = vrot.lane.b32.xlu0 %v1870, 127
      %v1945 = vpop.permute.xlu0 %1944
      %v1947 = vsel %vm1543, %v1945, 0.0
      %v1948 = vld [vmem:[%s1548] sm:$0x1]
      %v1950 = vlaneseq
      %v1951 = vshrl.u32 %v1950, 7
      %v1952 = vsub.s32 0, %v1951
      %v1953 = vrot.slane %v1948, %v1952
      %v1955 = vmul.f32 %v1947, %v1953
      %v1956 = vpack.c.bf16 %v1955, %v1955
      %1957 = vst.msk [vmem:[#allocation4 + $0x14] sm:$0xf] %vm1898, %v1956
      %1958 = vrot.lane.b32.xlu0 %v1870, 121
      %v1959 = vpop.permute.xlu0 %1958
      %v1961 = vsel %vm1576, %v1959, 0.0
      %v1962 = vld [vmem:[%s1581] sm:$0x1]
      %v1964 = vlaneseq
      %v1965 = vshrl.u32 %v1964, 7
      %v1966 = vsub.s32 0, %v1965
      %v1967 = vrot.slane %v1962, %v1966
      %v1969 = vmul.f32 %v1961, %v1967
      %v1970 = vpack.c.bf16 %v1969, %v1969
      %1971 = vst.msk [vmem:[#allocation4 + $0x18] sm:$0xf] %vm1898, %v1970
      %1972 = vrot.lane.b32.xlu0 %v1870, 120
      %v1973 = vpop.permute.xlu0 %1972
      %v1975 = vsel %vm1609, %v1973, 0.0
      %v1976 = vld [vmem:[%s1614] sm:$0x1]
      %v1978 = vlaneseq
      %v1979 = vshrl.u32 %v1978, 7
      %v1980 = vsub.s32 0, %v1979
      %v1981 = vrot.slane %v1976, %v1980
      %v1983 = vmul.f32 %v1975, %v1981
      %v1984 = vpack.c.bf16 %v1983, %v1983
      %1985 = vst.msk [vmem:[#allocation4 + $0x1c] sm:$0xf] %vm1898, %v1984
      %1986 = vrot.lane.b32.xlu0 %v1870, 119
      %v1987 = vpop.permute.xlu0 %1986
      %v1989 = vsel %vm1642, %v1987, 0.0
      %v1990 = vld [vmem:[%s1647] sm:$0x1]
      %v1992 = vlaneseq
      %v1993 = vshrl.u32 %v1992, 7
      %v1994 = vsub.s32 0, %v1993
      %v1995 = vrot.slane %v1990, %v1994
      %v1997 = vmul.f32 %v1989, %v1995
      %v1998 = vpack.c.bf16 %v1997, %v1997
      %1999 = vst.msk [vmem:[#allocation4 + $0x20] sm:$0xf] %vm1898, %v1998
      %v2000 = vld [vmem:[%s992] sm:$0xf]
      %v2001 = vld [vmem:[%s992 + $0x4] sm:$0xf]
      %v2002 = vld [vmem:[%s992 + $0x8] sm:$0xf]
      %v2003 = vld [vmem:[%s992 + $0xc] sm:$0xf]
      %v2004 = vld [vmem:[#allocation4] sm:$0xf]
      %v2005 = vld [vmem:[#allocation4 + $0x4] sm:$0xf]
      %v2006 = vld [vmem:[#allocation4 + $0x8] sm:$0xf]
      %v2007 = vld [vmem:[#allocation4 + $0xc] sm:$0xf]
      %v2008 = vld [vmem:[#allocation4 + $0x10] sm:$0xf]
      %v2009 = vld [vmem:[#allocation4 + $0x14] sm:$0xf]
      %v2010 = vld [vmem:[#allocation4 + $0x18] sm:$0xf]
      %v2011 = vld [vmem:[#allocation4 + $0x1c] sm:$0xf]
      %v2012 = vld [vmem:[#allocation4 + $0x20] sm:$0xf]
      %v2013 = vld [vmem:[%s997] sm:$0xff]
      %v2014 = vld [vmem:[%s997 + $0x8] sm:$0xff]
      %v2015 = vld [vmem:[%s997 + $0x10] sm:$0xff]
      %v2016 = vld [vmem:[%s997 + $0x18] sm:$0xff]
      %v2021 = vunpack.c.l.b16 %v2013
      %v2022 = vunpack.c.h.b16 %v2013
      %v2023 = vunpack.c.l.b16 %v2014
      %v2024 = vunpack.c.h.b16 %v2014
      %v2025 = vunpack.c.l.b16 %v2015
      %v2026 = vunpack.c.h.b16 %v2015
      %v2027 = vunpack.c.l.b16 %v2016
      %v2028 = vunpack.c.h.b16 %v2016
      %v2029 = vpack.c.b16 %v2023, %v2021
      %v2030 = vpack.c.b16 %v2024, %v2022
      %v2031 = vpack.c.b16 %v2027, %v2025
      %v2032 = vpack.c.b16 %v2028, %v2026
      %v2036 = vsel %vm1087, %v2030, 0
      %v2039 = vsel %vm1087, %v2032, 0
      %2041 = vmatprep.subr.bf16.mxu0 0
      %2042 = vmatpush1.bf16.msra.mxu0 %v1214
      %2043 = vmatprep.subr.bf16.mxu0 0
      %2044 = vmatpush1.bf16.msra.mxu0 %v1215
      %2045 = vmatprep.subr.bf16.mxu0 0
      %2046 = vmatpush1.bf16.msra.mxu0 %v1216
      %2047 = vmatprep.subr.bf16.mxu0 0
      %2048 = vmatpush1.bf16.msra.mxu0 %v1217
      %2049 = vmatprep.subr.bf16.mxu0 0
      %2050 = vmatpush1.bf16.msra.mxu0 %v1218
      %2051 = vmatprep.subr.bf16.mxu0 0
      %2052 = vmatpush1.bf16.msra.mxu0 %v1219
      %2053 = vmatprep.subr.bf16.mxu0 0
      %2054 = vmatpush1.bf16.msra.mxu0 %v1220
      %2055 = vmatprep.subr.bf16.mxu0 0
      %2056 = vmatpush1.bf16.msra.mxu0 %v1221
      %2057 = vmatprep.subr.bf16.mxu0 0
      %2058 = vmatpush1.bf16.msra.mxu0 %v1222
      %2059 = vmatprep.subr.bf16.mxu0 0
      %2060 = vmatpush1.bf16.msra.mxu0 0
      %2061 = vmatprep.subr.bf16.mxu0 0
      %2062 = vmatpush1.bf16.msra.mxu0 0
      %2063 = vmatprep.subr.bf16.mxu0 0
      %2064 = vmatpush1.bf16.msra.mxu0 0
      %2065 = vmatprep.subr.bf16.mxu0 0
      %2066 = vmatpush1.bf16.msra.mxu0 0
      %2067 = vmatprep.subr.bf16.mxu0 0
      %2068 = vmatpush1.bf16.msra.mxu0 0
      %2069 = vmatprep.subr.bf16.mxu0 0
      %2070 = vmatpush1.bf16.msra.mxu0 0
      %2071 = vmatprep.subr.bf16.mxu0 0
      %2072 = vmatpush1.bf16.msra.mxu0 0
      %2073 = vmatprep.mubr.bf16.mxu0 %v2036
      %2074 = vmatmul.mubr.bf16.gmra.mrb[0].mxu0 %v2029
      %v2075 = vpop.f32.mrb[0].mxu0
      %v2076 = vadd.f32 0.0, %v2075
      %v2077 = vpop.f32.mrb[0].mxu0
      %v2078 = vpop.f32.mrb[0].mxu0
      %v2079 = vadd.f32 0.0, %v2078
      %v2080 = vpop.f32.mrb[0].mxu0
      %2081 = vmatprep.mubr.bf16.mxu0 %v2039
      %2082 = vmatmul.mubr.bf16.gmra.mrb[0].mxu0 %v2031
      %v2083 = vpop.f32.mrb[0].mxu0
      %v2084 = vadd.f32 0.0, %v2083
      %v2085 = vpop.f32.mrb[0].mxu0
      %v2086 = vpop.f32.mrb[0].mxu0
      %v2087 = vadd.f32 0.0, %v2086
      %v2088 = vpop.f32.mrb[0].mxu0
      %2089 = vdwg.mxu0
      %v2094 = vunpack.c.l.b16 %v2000
      %v2095 = vunpack.c.l.b16 %v2001
      %v2096 = vunpack.c.l.b16 %v2002
      %v2097 = vunpack.c.l.b16 %v2003
      %v2098 = vpack.c.b16 %v2095, %v2094
      %v2099 = vpack.c.b16 %v2097, %v2096
      %v2109 = vunpack.c.l.b16 %v2004
      %v2110 = vunpack.c.l.b16 %v2005
      %v2111 = vunpack.c.l.b16 %v2006
      %v2112 = vunpack.c.l.b16 %v2007
      %v2113 = vunpack.c.l.b16 %v2008
      %v2114 = vunpack.c.l.b16 %v2009
      %v2115 = vunpack.c.l.b16 %v2010
      %v2116 = vunpack.c.l.b16 %v2011
      %v2117 = vunpack.c.l.b16 %v2012
      %v2118 = vpack.c.b16 %v2110, %v2109
      %v2119 = vpack.c.b16 %v2112, %v2111
      %v2120 = vpack.c.b16 %v2114, %v2113
      %v2121 = vpack.c.b16 %v2116, %v2115
      %v2122 = vpack.c.b16 %v2117, %v2117
      %vm2127 = vcmask 588800
      %v2129 = vsel %vm2127, %v2098, 0
      %v2132 = vsel %vm2127, %v2099, 0
      %vm2134 = vcmask 1043456
      %v2136 = vsel %vm2134, %v2122, 0
      %2138 = vmatprep.subr.bf16.mxu0 0
      %2139 = vmatpush1.bf16.msra.mxu0 %v2118
      %2140 = vmatprep.subr.bf16.mxu0 0
      %2141 = vmatpush1.bf16.msra.mxu0 %v2119
      %2142 = vmatprep.subr.bf16.mxu0 0
      %2143 = vmatpush1.bf16.msra.mxu0 %v2120
      %2144 = vmatprep.subr.bf16.mxu0 0
      %2145 = vmatpush1.bf16.msra.mxu0 %v2121
      %2146 = vmatprep.subr.bf16.mxu0 0
      %2147 = vmatpush1.bf16.msra.mxu0 %v2136
      %2148 = vmatprep.subr.bf16.mxu0 0
      %2149 = vmatpush1.bf16.msra.mxu0 0
      %2150 = vmatprep.subr.bf16.mxu0 0
      %2151 = vmatpush1.bf16.msra.mxu0 0
      %2152 = vmatprep.subr.bf16.mxu0 0
      %2153 = vmatpush1.bf16.msra.mxu0 0
      %2154 = vmatprep.subr.bf16.mxu0 0
      %2155 = vmatpush1.bf16.msra.mxu0 0
      %2156 = vmatprep.subr.bf16.mxu0 0
      %2157 = vmatpush1.bf16.msra.mxu0 0
      %2158 = vmatprep.subr.bf16.mxu0 0
      %2159 = vmatpush1.bf16.msra.mxu0 0
      %2160 = vmatprep.subr.bf16.mxu0 0
      %2161 = vmatpush1.bf16.msra.mxu0 0
      %2162 = vmatprep.subr.bf16.mxu0 0
      %2163 = vmatpush1.bf16.msra.mxu0 0
      %2164 = vmatprep.subr.bf16.mxu0 0
      %2165 = vmatpush1.bf16.msra.mxu0 0
      %2166 = vmatprep.subr.bf16.mxu0 0
      %2167 = vmatpush1.bf16.msra.mxu0 0
      %2168 = vmatprep.subr.bf16.mxu0 0
      %2169 = vmatpush1.bf16.msra.mxu0 0
      %2170 = vmatprep.mubr.bf16.mxu0 0
      %2171 = vmatmul.mubr.bf16.gmra.mrb[0].mxu0 %v2129
      %v2172 = vpop.f32.mrb[0].mxu0
      %v2173 = vadd.f32 %v2076, %v2172
      %v2174 = vpop.f32.mrb[0].mxu0
      %v2175 = vpop.f32.mrb[0].mxu0
      %v2176 = vadd.f32 %v2079, %v2175
      %v2177 = vpop.f32.mrb[0].mxu0
      %2178 = vmatprep.mubr.bf16.mxu0 0
      %2179 = vmatmul.mubr.bf16.gmra.mrb[0].mxu0 %v2132
      %v2180 = vpop.f32.mrb[0].mxu0
      %v2181 = vadd.f32 %v2084, %v2180
      %v2182 = vpop.f32.mrb[0].mxu0
      %v2183 = vpop.f32.mrb[0].mxu0
      %v2184 = vadd.f32 %v2087, %v2183
      %v2185 = vpop.f32.mrb[0].mxu0
      %2186 = vdwg.mxu0
      %v2187 = vld [vmem:[%s1002] sm:$0xff]
      %v2188 = vld [vmem:[%s1002 + $0x8] sm:$0xff]
      %v2189 = vld [vmem:[%s1002 + $0x10] sm:$0xff]
      %v2190 = vld [vmem:[%s1002 + $0x18] sm:$0xff]
      %2192 = vset.pattern.permute.xlu0 0
      %2193 = vperm.xlu0 %2192, %v2187
      %v2194 = vpop.permute.xlu0 %2193
      %2197 = vset.pattern.permute.xlu0 0
      %2198 = vperm.xlu0 %2197, %v2188
      %v2199 = vpop.permute.xlu0 %2198
      %2202 = vset.pattern.permute.xlu0 0
      %2203 = vperm.xlu0 %2202, %v2189
      %v2204 = vpop.permute.xlu0 %2203
      %2207 = vset.pattern.permute.xlu0 0
      %2208 = vperm.xlu0 %2207, %v2190
      %v2209 = vpop.permute.xlu0 %2208
      %v2211 = vadd.f32 %v2173, %v2194
      %v2212 = vadd.f32 %v2176, %v2199
      %v2213 = vadd.f32 %v2181, %v2204
      %v2214 = vadd.f32 %v2184, %v2209
      %v2215 = vmax.f32 %v2211, 0.0
      %v2216 = vmax.f32 %v2212, 0.0
      %v2217 = vmax.f32 %v2213, 0.0
      %v2218 = vmax.f32 %v2214, 0.0
      %v2219 = vld [vmem:[%s1007] sm:$0xf]
      %v2220 = vld [vmem:[%s1007 + $0x4] sm:$0xf]
      %v2221 = vld [vmem:[%s1007 + $0x8] sm:$0xf]
      %v2222 = vld [vmem:[%s1007 + $0xc] sm:$0xf]
      %v2223 = vpack.c.bf16 %v2216, %v2215
      %v2224 = vpack.c.bf16 %v2218, %v2217
      %v2225 = vld [vmem:[%s1012] sm:$0xff]
      %v2226 = vld [vmem:[%s1012 + $0x8] sm:$0xff]
      %v2227 = vld [vmem:[%s1012 + $0x10] sm:$0xff]
      %v2228 = vld [vmem:[%s1012 + $0x18] sm:$0xff]
      %2230 = vset.pattern.permute.xlu0 0
      %2231 = vperm.xlu0 %2230, %v2225
      %v2232 = vpop.permute.xlu0 %2231
      %2235 = vset.pattern.permute.xlu0 0
      %2236 = vperm.xlu0 %2235, %v2226
      %v2237 = vpop.permute.xlu0 %2236
      %2240 = vset.pattern.permute.xlu0 0
      %2241 = vperm.xlu0 %2240, %v2227
      %v2242 = vpop.permute.xlu0 %2241
      %2245 = vset.pattern.permute.xlu0 0
      %2246 = vperm.xlu0 %2245, %v2228
      %v2247 = vpop.permute.xlu0 %2246
      %v2253 = vunpack.c.l.b16 %v2219
      %v2254 = vunpack.c.l.b16 %v2220
      %v2255 = vunpack.c.l.b16 %v2221
      %v2256 = vunpack.c.l.b16 %v2222
      %v2257 = vpack.c.b16 %v2254, %v2253
      %v2258 = vpack.c.b16 %v2256, %v2255
      %v2260 = vsel %vm1331, %v2257, 0
      %v2263 = vsel %vm1331, %v2258, 0
      %2265 = vmatprep.subr.bf16.mxu0 0
      %2266 = vmatpush1.bf16.msra.mxu0 %v2223
      %2267 = vmatprep.subr.bf16.mxu0 0
      %2268 = vmatpush1.bf16.msra.mxu0 %v2224
      %2269 = vmatprep.subr.bf16.mxu0 0
      %2270 = vmatpush1.bf16.msra.mxu0 0
      %2271 = vmatprep.subr.bf16.mxu0 0
      %2272 = vmatpush1.bf16.msra.mxu0 0
      %2273 = vmatprep.subr.bf16.mxu0 0
      %2274 = vmatpush1.bf16.msra.mxu0 0
      %2275 = vmatprep.subr.bf16.mxu0 0
      %2276 = vmatpush1.bf16.msra.mxu0 0
      %2277 = vmatprep.subr.bf16.mxu0 0
      %2278 = vmatpush1.bf16.msra.mxu0 0
      %2279 = vmatprep.subr.bf16.mxu0 0
      %2280 = vmatpush1.bf16.msra.mxu0 0
      %2281 = vmatprep.subr.bf16.mxu0 0
      %2282 = vmatpush1.bf16.msra.mxu0 0
      %2283 = vmatprep.subr.bf16.mxu0 0
      %2284 = vmatpush1.bf16.msra.mxu0 0
      %2285 = vmatprep.subr.bf16.mxu0 0
      %2286 = vmatpush1.bf16.msra.mxu0 0
      %2287 = vmatprep.subr.bf16.mxu0 0
      %2288 = vmatpush1.bf16.msra.mxu0 0
      %2289 = vmatprep.subr.bf16.mxu0 0
      %2290 = vmatpush1.bf16.msra.mxu0 0
      %2291 = vmatprep.subr.bf16.mxu0 0
      %2292 = vmatpush1.bf16.msra.mxu0 0
      %2293 = vmatprep.subr.bf16.mxu0 0
      %2294 = vmatpush1.bf16.msra.mxu0 0
      %2295 = vmatprep.subr.bf16.mxu0 0
      %2296 = vmatpush1.bf16.msra.mxu0 0
      %2297 = vmatprep.mubr.bf16.mxu0 0
      %2298 = vmatmul.mubr.bf16.gmra.mrb[0].mxu0 %v2260
      %v2299 = vpop.f32.mrb[0].mxu0
      %v2300 = vadd.f32 %v2232, %v2299
      %v2301 = vpop.f32.mrb[0].mxu0
      %v2302 = vpop.f32.mrb[0].mxu0
      %v2303 = vadd.f32 %v2237, %v2302
      %v2304 = vpop.f32.mrb[0].mxu0
      %2305 = vmatprep.mubr.bf16.mxu0 0
      %2306 = vmatmul.mubr.bf16.gmra.mrb[0].mxu0 %v2263
      %v2307 = vpop.f32.mrb[0].mxu0
      %v2308 = vadd.f32 %v2242, %v2307
      %v2309 = vpop.f32.mrb[0].mxu0
      %v2310 = vpop.f32.mrb[0].mxu0
      %v2311 = vadd.f32 %v2247, %v2310
      %v2312 = vpop.f32.mrb[0].mxu0
      %2313 = vdwg.mxu0
      %v2314 = vmax.f32 %v2300, 0.0
      %v2315 = vmax.f32 %v2303, 0.0
      %v2316 = vmax.f32 %v2308, 0.0
      %v2317 = vmax.f32 %v2311, 0.0
      %2322 = vrot.lane.b32.xlu0 %v2314, 9
      %v2323 = vpop.permute.xlu0 %2322
      %2324 = vrot.lane.b32.xlu0 %v2315, 9
      %v2325 = vpop.permute.xlu0 %2324
      %2326 = vrot.lane.b32.xlu0 %v2316, 9
      %v2327 = vpop.permute.xlu0 %2326
      %2328 = vrot.lane.b32.xlu0 %v2317, 9
      %v2329 = vpop.permute.xlu0 %2328
      %v2334 = vsel %vm1407, 0.0, %v2323
      %v2335 = vsel %vm1407, 0.0, %v2325
      %v2336 = vsel %vm1407, 0.0, %v2327
      %v2337 = vsel %vm1407, 0.0, %v2329
      %v2338 = vld [vmem:[%s2] sm:$0x1]
      %v2340 = vlaneseq
      %v2341 = vshrl.u32 %v2340, 7
      %v2342 = vsub.s32 0, %v2341
      %v2343 = vrot.slane %v2338, %v2342
      %v2345 = vmul.f32 %v2334, %v2343
      %v2346 = vmul.f32 %v2335, %v2343
      %v2347 = vmul.f32 %v2336, %v2343
      %v2348 = vmul.f32 %v2337, %v2343
      %v2349 = vpack.c.bf16 %v2346, %v2345
      %v2350 = vpack.c.bf16 %v2348, %v2347
      %2351 = vst.msk [vmem:[#allocation3] sm:$0xff] %vm1425, %v2349
      %2352 = vst.msk [vmem:[#allocation3 + $0x8] sm:$0xff] %vm1425, %v2350
      %2353 = vrot.lane.b32.xlu0 %v2314, 8
      %v2354 = vpop.permute.xlu0 %2353
      %2355 = vrot.lane.b32.xlu0 %v2315, 8
      %v2356 = vpop.permute.xlu0 %2355
      %2357 = vrot.lane.b32.xlu0 %v2316, 8
      %v2358 = vpop.permute.xlu0 %2357
      %2359 = vrot.lane.b32.xlu0 %v2317, 8
      %v2360 = vpop.permute.xlu0 %2359
      %v2365 = vsel %vm1440, 0.0, %v2354
      %v2366 = vsel %vm1440, 0.0, %v2356
      %v2367 = vsel %vm1440, 0.0, %v2358
      %v2368 = vsel %vm1440, 0.0, %v2360
      %v2369 = vld [vmem:[%s1445] sm:$0x1]
      %v2371 = vlaneseq
      %v2372 = vshrl.u32 %v2371, 7
      %v2373 = vsub.s32 0, %v2372
      %v2374 = vrot.slane %v2369, %v2373
      %v2376 = vmul.f32 %v2365, %v2374
      %v2377 = vmul.f32 %v2366, %v2374
      %v2378 = vmul.f32 %v2367, %v2374
      %v2379 = vmul.f32 %v2368, %v2374
      %v2380 = vpack.c.bf16 %v2377, %v2376
      %v2381 = vpack.c.bf16 %v2379, %v2378
      %2382 = vst.msk [vmem:[#allocation3 + $0x10] sm:$0xff] %vm1425, %v2380
      %2383 = vst.msk [vmem:[#allocation3 + $0x18] sm:$0xff] %vm1425, %v2381
      %2384 = vrot.lane.b32.xlu0 %v2314, 7
      %v2385 = vpop.permute.xlu0 %2384
      %2386 = vrot.lane.b32.xlu0 %v2315, 7
      %v2387 = vpop.permute.xlu0 %2386
      %2388 = vrot.lane.b32.xlu0 %v2316, 7
      %v2389 = vpop.permute.xlu0 %2388
      %2390 = vrot.lane.b32.xlu0 %v2317, 7
      %v2391 = vpop.permute.xlu0 %2390
      %v2396 = vsel %vm1473, 0.0, %v2385
      %v2397 = vsel %vm1473, 0.0, %v2387
      %v2398 = vsel %vm1473, 0.0, %v2389
      %v2399 = vsel %vm1473, 0.0, %v2391
      %v2400 = vld [vmem:[%s1478] sm:$0x1]
      %v2402 = vlaneseq
      %v2403 = vshrl.u32 %v2402, 7
      %v2404 = vsub.s32 0, %v2403
      %v2405 = vrot.slane %v2400, %v2404
      %v2407 = vmul.f32 %v2396, %v2405
      %v2408 = vmul.f32 %v2397, %v2405
      %v2409 = vmul.f32 %v2398, %v2405
      %v2410 = vmul.f32 %v2399, %v2405
      %v2411 = vpack.c.bf16 %v2408, %v2407
      %v2412 = vpack.c.bf16 %v2410, %v2409
      %2413 = vst.msk [vmem:[#allocation3 + $0x20] sm:$0xff] %vm1425, %v2411
      %2414 = vst.msk [vmem:[#allocation3 + $0x28] sm:$0xff] %vm1425, %v2412
      %2415 = vrot.lane.b32.xlu0 %v2314, 1
      %v2416 = vpop.permute.xlu0 %2415
      %2417 = vrot.lane.b32.xlu0 %v2315, 1
      %v2418 = vpop.permute.xlu0 %2417
      %2419 = vrot.lane.b32.xlu0 %v2316, 1
      %v2420 = vpop.permute.xlu0 %2419
      %2421 = vrot.lane.b32.xlu0 %v2317, 1
      %v2422 = vpop.permute.xlu0 %2421
      %v2427 = vsel %vm1506, 0.0, %v2416
      %v2428 = vsel %vm1506, 0.0, %v2418
      %v2429 = vsel %vm1506, 0.0, %v2420
      %v2430 = vsel %vm1506, 0.0, %v2422
      %v2431 = vld [vmem:[%s1511] sm:$0x1]
      %v2433 = vlaneseq
      %v2434 = vshrl.u32 %v2433, 7
      %v2435 = vsub.s32 0, %v2434
      %v2436 = vrot.slane %v2431, %v2435
      %v2438 = vmul.f32 %v2427, %v2436
      %v2439 = vmul.f32 %v2428, %v2436
      %v2440 = vmul.f32 %v2429, %v2436
      %v2441 = vmul.f32 %v2430, %v2436
      %v2442 = vpack.c.bf16 %v2439, %v2438
      %v2443 = vpack.c.bf16 %v2441, %v2440
      %2444 = vst.msk [vmem:[#allocation3 + $0x30] sm:$0xff] %vm1425, %v2442
      %2445 = vst.msk [vmem:[#allocation3 + $0x38] sm:$0xff] %vm1425, %v2443
      %v2446 = vpack.c.bf16 %v2315, %v2314
      %v2447 = vpack.c.bf16 %v2317, %v2316
      %2448 = vst.msk [vmem:[#allocation3 + $0x40] sm:$0xff] %vm1425, %v2446
      %2449 = vst.msk [vmem:[#allocation3 + $0x48] sm:$0xff] %vm1425, %v2447
      %2450 = vrot.lane.b32.xlu0 %v2314, 127
      %v2451 = vpop.permute.xlu0 %2450
      %2452 = vrot.lane.b32.xlu0 %v2315, 127
      %v2453 = vpop.permute.xlu0 %2452
      %2454 = vrot.lane.b32.xlu0 %v2316, 127
      %v2455 = vpop.permute.xlu0 %2454
      %2456 = vrot.lane.b32.xlu0 %v2317, 127
      %v2457 = vpop.permute.xlu0 %2456
      %v2462 = vsel %vm1543, %v2451, 0.0
      %v2463 = vsel %vm1543, %v2453, 0.0
      %v2464 = vsel %vm1543, %v2455, 0.0
      %v2465 = vsel %vm1543, %v2457, 0.0
      %v2466 = vld [vmem:[%s1548] sm:$0x1]
      %v2468 = vlaneseq
      %v2469 = vshrl.u32 %v2468, 7
      %v2470 = vsub.s32 0, %v2469
      %v2471 = vrot.slane %v2466, %v2470
      %v2473 = vmul.f32 %v2462, %v2471
      %v2474 = vmul.f32 %v2463, %v2471
      %v2475 = vmul.f32 %v2464, %v2471
      %v2476 = vmul.f32 %v2465, %v2471
      %v2477 = vpack.c.bf16 %v2474, %v2473
      %v2478 = vpack.c.bf16 %v2476, %v2475
      %2479 = vst.msk [vmem:[#allocation3 + $0x50] sm:$0xff] %vm1425, %v2477
      %2480 = vst.msk [vmem:[#allocation3 + $0x58] sm:$0xff] %vm1425, %v2478
      %2481 = vrot.lane.b32.xlu0 %v2314, 121
      %v2482 = vpop.permute.xlu0 %2481
      %2483 = vrot.lane.b32.xlu0 %v2315, 121
      %v2484 = vpop.permute.xlu0 %2483
      %2485 = vrot.lane.b32.xlu0 %v2316, 121
      %v2486 = vpop.permute.xlu0 %2485
      %2487 = vrot.lane.b32.xlu0 %v2317, 121
      %v2488 = vpop.permute.xlu0 %2487
      %v2493 = vsel %vm1576, %v2482, 0.0
      %v2494 = vsel %vm1576, %v2484, 0.0
      %v2495 = vsel %vm1576, %v2486, 0.0
      %v2496 = vsel %vm1576, %v2488, 0.0
      %v2497 = vld [vmem:[%s1581] sm:$0x1]
      %v2499 = vlaneseq
      %v2500 = vshrl.u32 %v2499, 7
      %v2501 = vsub.s32 0, %v2500
      %v2502 = vrot.slane %v2497, %v2501
      %v2504 = vmul.f32 %v2493, %v2502
      %v2505 = vmul.f32 %v2494, %v2502
      %v2506 = vmul.f32 %v2495, %v2502
      %v2507 = vmul.f32 %v2496, %v2502
      %v2508 = vpack.c.bf16 %v2505, %v2504
      %v2509 = vpack.c.bf16 %v2507, %v2506
      %2510 = vst.msk [vmem:[#allocation3 + $0x60] sm:$0xff] %vm1425, %v2508
      %2511 = vst.msk [vmem:[#allocation3 + $0x68] sm:$0xff] %vm1425, %v2509
      %2512 = vrot.lane.b32.xlu0 %v2314, 120
      %v2513 = vpop.permute.xlu0 %2512
      %2514 = vrot.lane.b32.xlu0 %v2315, 120
      %v2515 = vpop.permute.xlu0 %2514
      %2516 = vrot.lane.b32.xlu0 %v2316, 120
      %v2517 = vpop.permute.xlu0 %2516
      %2518 = vrot.lane.b32.xlu0 %v2317, 120
      %v2519 = vpop.permute.xlu0 %2518
      %v2524 = vsel %vm1609, %v2513, 0.0
      %v2525 = vsel %vm1609, %v2515, 0.0
      %v2526 = vsel %vm1609, %v2517, 0.0
      %v2527 = vsel %vm1609, %v2519, 0.0
      %v2528 = vld [vmem:[%s1614] sm:$0x1]
      %v2530 = vlaneseq
      %v2531 = vshrl.u32 %v2530, 7
      %v2532 = vsub.s32 0, %v2531
      %v2533 = vrot.slane %v2528, %v2532
      %v2535 = vmul.f32 %v2524, %v2533
      %v2536 = vmul.f32 %v2525, %v2533
      %v2537 = vmul.f32 %v2526, %v2533
      %v2538 = vmul.f32 %v2527, %v2533
      %v2539 = vpack.c.bf16 %v2536, %v2535
      %v2540 = vpack.c.bf16 %v2538, %v2537
      %2541 = vst.msk [vmem:[#allocation3 + $0x70] sm:$0xff] %vm1425, %v2539
      %2542 = vst.msk [vmem:[#allocation3 + $0x78] sm:$0xff] %vm1425, %v2540
      %2543 = vrot.lane.b32.xlu0 %v2314, 119
      %v2544 = vpop.permute.xlu0 %2543
      %2545 = vrot.lane.b32.xlu0 %v2315, 119
      %v2546 = vpop.permute.xlu0 %2545
      %2547 = vrot.lane.b32.xlu0 %v2316, 119
      %v2548 = vpop.permute.xlu0 %2547
      %2549 = vrot.lane.b32.xlu0 %v2317, 119
      %v2550 = vpop.permute.xlu0 %2549
      %v2555 = vsel %vm1642, %v2544, 0.0
      %v2556 = vsel %vm1642, %v2546, 0.0
      %v2557 = vsel %vm1642, %v2548, 0.0
      %v2558 = vsel %vm1642, %v2550, 0.0
      %v2559 = vld [vmem:[%s1647] sm:$0x1]
      %v2561 = vlaneseq
      %v2562 = vshrl.u32 %v2561, 7
      %v2563 = vsub.s32 0, %v2562
      %v2564 = vrot.slane %v2559, %v2563
      %v2566 = vmul.f32 %v2555, %v2564
      %v2567 = vmul.f32 %v2556, %v2564
      %v2568 = vmul.f32 %v2557, %v2564
      %v2569 = vmul.f32 %v2558, %v2564
      %v2570 = vpack.c.bf16 %v2567, %v2566
      %v2571 = vpack.c.bf16 %v2569, %v2568
      %2572 = vst.msk [vmem:[#allocation3 + $0x80] sm:$0xff] %vm1425, %v2570
      %2573 = vst.msk [vmem:[#allocation3 + $0x88] sm:$0xff] %vm1425, %v2571
      %v2574 = vld [vmem:[%s1017] sm:$0xff]
      %v2575 = vld [vmem:[%s1017 + $0x8] sm:$0xf]
      %v2576 = vld [vmem:[%s1017 + $0xc] sm:$0xff]
      %v2577 = vld [vmem:[%s1017 + $0x14] sm:$0xf]
      %v2578 = vld [vmem:[#allocation3] sm:$0xff]
      %v2579 = vld [vmem:[#allocation3 + $0x8] sm:$0xff]
      %v2580 = vld [vmem:[#allocation3 + $0x10] sm:$0xff]
      %v2581 = vld [vmem:[#allocation3 + $0x18] sm:$0xff]
      %v2582 = vld [vmem:[#allocation3 + $0x20] sm:$0xff]
      %v2583 = vld [vmem:[#allocation3 + $0x28] sm:$0xff]
      %v2584 = vld [vmem:[#allocation3 + $0x30] sm:$0xff]
      %v2585 = vld [vmem:[#allocation3 + $0x38] sm:$0xff]
      %v2586 = vld [vmem:[#allocation3 + $0x40] sm:$0xff]
      %v2587 = vld [vmem:[#allocation3 + $0x48] sm:$0xff]
      %v2588 = vld [vmem:[#allocation3 + $0x50] sm:$0xff]
      %v2589 = vld [vmem:[#allocation3 + $0x58] sm:$0xff]
      %v2590 = vld [vmem:[#allocation3 + $0x60] sm:$0xff]
      %v2591 = vld [vmem:[#allocation3 + $0x68] sm:$0xff]
      %v2592 = vld [vmem:[#allocation3 + $0x70] sm:$0xff]
      %v2593 = vld [vmem:[#allocation3 + $0x78] sm:$0xff]
      %v2594 = vld [vmem:[#allocation3 + $0x80] sm:$0xff]
      %v2595 = vld [vmem:[#allocation3 + $0x88] sm:$0xff]
      %v2596 = vld [vmem:[%s1022] sm:$0xff]
      %v2597 = vld [vmem:[%s1022 + $0x8] sm:$0xff]
      %2599 = vset.pattern.permute.xlu0 0
      %2600 = vperm.xlu0 %2599, %v2596
      %v2601 = vpop.permute.xlu0 %2600
      %2604 = vset.pattern.permute.xlu0 0
      %2605 = vperm.xlu0 %2604, %v2597
      %v2606 = vpop.permute.xlu0 %2605
      %v2612 = vunpack.c.l.b16 %v2574
      %v2613 = vunpack.c.h.b16 %v2574
      %v2614 = vunpack.c.l.b16 %v2575
      %v2615 = vunpack.c.l.b16 %v2576
      %v2616 = vunpack.c.h.b16 %v2576
      %v2617 = vunpack.c.l.b16 %v2577
      %v2618 = vpack.c.b16 %v2615, %v2612
      %v2619 = vpack.c.b16 %v2616, %v2613
      %v2620 = vpack.c.b16 %v2617, %v2614
      %v2624 = vsel %vm1331, %v2620, 0
      %2626 = vmatprep.subr.bf16.mxu0 0
      %2627 = vmatpush1.bf16.msra.mxu0 %v2578
      %2628 = vmatprep.subr.bf16.mxu0 0
      %2629 = vmatpush1.bf16.msra.mxu0 %v2579
      %2630 = vmatprep.subr.bf16.mxu0 0
      %2631 = vmatpush1.bf16.msra.mxu0 %v2580
      %2632 = vmatprep.subr.bf16.mxu0 0
      %2633 = vmatpush1.bf16.msra.mxu0 %v2581
      %2634 = vmatprep.subr.bf16.mxu0 0
      %2635 = vmatpush1.bf16.msra.mxu0 %v2582
      %2636 = vmatprep.subr.bf16.mxu0 0
      %2637 = vmatpush1.bf16.msra.mxu0 %v2583
      %2638 = vmatprep.subr.bf16.mxu0 0
      %2639 = vmatpush1.bf16.msra.mxu0 %v2584
      %2640 = vmatprep.subr.bf16.mxu0 0
      %2641 = vmatpush1.bf16.msra.mxu0 %v2585
      %2642 = vmatprep.subr.bf16.mxu0 0
      %2643 = vmatpush1.bf16.msra.mxu0 %v2586
      %2644 = vmatprep.subr.bf16.mxu0 0
      %2645 = vmatpush1.bf16.msra.mxu0 %v2587
      %2646 = vmatprep.subr.bf16.mxu0 0
      %2647 = vmatpush1.bf16.msra.mxu0 %v2588
      %2648 = vmatprep.subr.bf16.mxu0 0
      %2649 = vmatpush1.bf16.msra.mxu0 %v2589
      %2650 = vmatprep.subr.bf16.mxu0 0
      %2651 = vmatpush1.bf16.msra.mxu0 %v2590
      %2652 = vmatprep.subr.bf16.mxu0 0
      %2653 = vmatpush1.bf16.msra.mxu0 %v2591
      %2654 = vmatprep.subr.bf16.mxu0 0
      %2655 = vmatpush1.bf16.msra.mxu0 %v2592
      %2656 = vmatprep.subr.bf16.mxu0 0
      %2657 = vmatpush1.bf16.msra.mxu0 %v2593
      %2658 = vmatprep.mubr.bf16.mxu0 %v2619
      %2659 = vmatmul.mubr.bf16.gmra.mrb[0].mxu0 %v2618
      %v2660 = vpop.f32.mrb[0].mxu0
      %v2661 = vadd.f32 %v2601, %v2660
      %v2662 = vpop.f32.mrb[0].mxu0
      %v2663 = vpop.f32.mrb[0].mxu0
      %v2664 = vadd.f32 %v2606, %v2663
      %v2665 = vpop.f32.mrb[0].mxu0
      %2666 = vdwg.mxu0
      %2667 = vmatprep.subr.bf16.mxu0 0
      %2668 = vmatpush1.bf16.msra.mxu0 %v2594
      %2669 = vmatprep.subr.bf16.mxu0 0
      %2670 = vmatpush1.bf16.msra.mxu0 %v2595
      %2671 = vmatprep.subr.bf16.mxu0 0
      %2672 = vmatpush1.bf16.msra.mxu0 0
      %2673 = vmatprep.subr.bf16.mxu0 0
      %2674 = vmatpush1.bf16.msra.mxu0 0
      %2675 = vmatprep.subr.bf16.mxu0 0
      %2676 = vmatpush1.bf16.msra.mxu0 0
      %2677 = vmatprep.subr.bf16.mxu0 0
      %2678 = vmatpush1.bf16.msra.mxu0 0
      %2679 = vmatprep.subr.bf16.mxu0 0
      %2680 = vmatpush1.bf16.msra.mxu0 0
      %2681 = vmatprep.subr.bf16.mxu0 0
      %2682 = vmatpush1.bf16.msra.mxu0 0
      %2683 = vmatprep.subr.bf16.mxu0 0
      %2684 = vmatpush1.bf16.msra.mxu0 0
      %2685 = vmatprep.subr.bf16.mxu0 0
      %2686 = vmatpush1.bf16.msra.mxu0 0
      %2687 = vmatprep.subr.bf16.mxu0 0
      %2688 = vmatpush1.bf16.msra.mxu0 0
      %2689 = vmatprep.subr.bf16.mxu0 0
      %2690 = vmatpush1.bf16.msra.mxu0 0
      %2691 = vmatprep.subr.bf16.mxu0 0
      %2692 = vmatpush1.bf16.msra.mxu0 0
      %2693 = vmatprep.subr.bf16.mxu0 0
      %2694 = vmatpush1.bf16.msra.mxu0 0
      %2695 = vmatprep.subr.bf16.mxu0 0
      %2696 = vmatpush1.bf16.msra.mxu0 0
      %2697 = vmatprep.subr.bf16.mxu0 0
      %2698 = vmatpush1.bf16.msra.mxu0 0
      %2699 = vmatprep.mubr.bf16.mxu0 0
      %2700 = vmatmul.mubr.bf16.gmra.mrb[0].mxu0 %v2624
      %v2701 = vpop.f32.mrb[0].mxu0
      %v2702 = vadd.f32 %v2661, %v2701
      %v2703 = vpop.f32.mrb[0].mxu0
      %v2704 = vpop.f32.mrb[0].mxu0
      %v2705 = vadd.f32 %v2664, %v2704
      %v2706 = vpop.f32.mrb[0].mxu0
      %2707 = vdwg.mxu0
      %v2708 = vld [vmem:[%s1026] sm:$0xff]
      %v2709 = vtanh.pop %v2702
      %2711 = vset.pattern.permute.xlu0 0
      %2712 = vperm.xlu0 %2711, %v2708
      %v2713 = vpop.permute.xlu0 %2712
      %v2715 = vmul.f32 %v2713, %v2709
      %v2716 = vadd.f32 %v1869, %v2705
      %v2717 = vmul.f32 %v2715, 1.442695
      %v2718 = vpow.pop %v2717
      %v2719 = vmul.f32 %v2716, %v2718
      %v2720 = vsel %vm1425, %v2715, 0.0
      %2721 = vadd.xlane.f32.xlu0 %v2720
      %v2722 = vpop.xlane.xlu0 %2721
      %v2723 = vrot.slane %v2722, 4
      %v2724 = vadd.f32 %v2722, %v2723
      %v2725 = vrot.slane %v2724, 2
      %v2726 = vadd.f32 %v2724, %v2725
      %v2727 = vrot.slane %v2726, 1
      %v2728 = vadd.f32 %v2726, %v2727
      %v2729 = vadd.f32 %v1883, %v2728
      %2730 = vst.msk [vmem:[#allocation2] sm:$0xff] %vm1425, %v2719
      %2731 = vst.msk [vmem:[#allocation2 + $0x8] sm:$0xff] %vm1425, %v1870
      %v2732 = vld [vmem:[#allocation5] sm:$0x1]
      %v2733 = vadd.f32 %v2732, %v2729
      %vm2734 = vcmask 0
      %2735 = vst.msk [vmem:[#allocation5] sm:$0x1] %vm2734, %v2733
      %p2736 = scmp.eq.s32.totalorder %s38, 1
      // Predicated region
      $region105: #{glow_forward.3} parent=99 // pred_check
        %p2737 = pneg %p2736
      $region106: #{glow_forward.3} parent=99 // pred_check_branch
        %2739 = sbr.rel (%p2737) target = $region108
      $region107: #{glow_forward.3} parent=99 // pred_region
        %v2740 = vld [vmem:[#allocation2] sm:$0xff]
        %v2741 = vld [vmem:[#allocation2 + $0x8] sm:$0xff]
        %2742 = vst.msk [vmem:[%s1031] sm:$0xff] %vm1425, %v2740
        %2743 = vst.msk [vmem:[%s1031 + $0x8] sm:$0xff] %vm1425, %v2741
        %v2744 = vld [vmem:[#allocation5] sm:$0x1]
        %2746 = vset.pattern.permute.xlu0 0
        %2747 = vperm.xlu0 %2746, %v2744
        %v2748 = vpop.permute.xlu0 %2747
        %v2750 = vlaneseq
        %v2751 = vshrl.u32 %v2750, 7
        %v2752 = vsub.s32 0, %v2751
        %v2753 = vrot.slane %v2748, %v2752
        %2754 = vst [vmem:[%s1034] sm:$0x1] %v2753
      $region108: #{glow_forward.3} parent=99 // pred_fallthru
        _
      %p2755 = scmp.lt.s32.totalorder %s37, 1
      %s2756 = scalar_select %p2755, %s37, 1
      %s2757 = smul.addr %s2756, 2
      %s2758 = smul.addr %s2757, 8
      %s2759 = scalar_lea.vmem %s20, %s2758
      %p2760 = scmp.lt.s32.totalorder %s37, 1
      %s2761 = scalar_select %p2760, %s37, 1
      %s2762 = scalar_lea.vmem %s21, %s2761
      // Predicated region
      $region109: #{glow_forward.3} parent=99 // pred_check
        %p2763 = pneg %p578
      $region110: #{glow_forward.3} parent=99 // pred_check_branch
        %2765 = sbr.rel (%p2763) target = $region112
      $region111: #{glow_forward.3} parent=99 // pred_region
        _
      $region112: #{glow_forward.3} parent=99 // pred_fallthru
        _
      // Predicated region
      $region113: #{glow_forward.3} parent=99 // pred_check
        %p2766 = pneg %p604
      $region114: #{glow_forward.3} parent=99 // pred_check_branch
        %2768 = sbr.rel (%p2766) target = $region116
      $region115: #{glow_forward.3} parent=99 // pred_region
        _
      $region116: #{glow_forward.3} parent=99 // pred_fallthru
        _
    $region100: #{glow_forward.3} parent=5 // pred_fallthru
      _
    %p2769 = scmp.le.s32.totalorder 2, %s28
    // Predicated region
    $region117: #{glow_forward.3} parent=5 // pred_check
      %p2770 = pneg %p2769
    $region118: #{glow_forward.3} parent=5 // pred_check_branch
      %2772 = sbr.rel (%p2770) target = $region120
    $region119: #{glow_forward.3} parent=5 // pred_region
      %s2773 = ssub.s32 %s28, 2
      // Predicated region
      $region121: #{glow_forward.3} parent=119 // pred_check
        %p2774 = pneg %p584
      $region122: #{glow_forward.3} parent=119 // pred_check_branch
        %2776 = sbr.rel (%p2774) target = $region124
      $region123: #{glow_forward.3} parent=119 // pred_region
        %p2777 = scmp.lt.s32.totalorder %s39, 1
        %s2778 = scalar_select %p2777, %s39, 1
        %s2779 = smul.addr %s2778, 2
        %s2780 = smul.addr %s2779, 8
        %s2781 = scalar_lea.vmem %s20, %s2780
      $region124: #{glow_forward.3} parent=119 // pred_fallthru
        _
      // Predicated region
      $region125: #{glow_forward.3} parent=119 // pred_check
        %p2782 = pneg %p610
      $region126: #{glow_forward.3} parent=119 // pred_check_branch
        %2784 = sbr.rel (%p2782) target = $region128
      $region127: #{glow_forward.3} parent=119 // pred_region
        %p2785 = scmp.lt.s32.totalorder %s39, 1
        %s2786 = scalar_select %p2785, %s39, 1
        %s2787 = scalar_lea.vmem %s21, %s2786
      $region128: #{glow_forward.3} parent=119 // pred_fallthru
        _
    $region120: #{glow_forward.3} parent=5 // pred_fallthru
      _
  $region6: #{glow_forward.3} parent=0 // loop_footer
    %s32 = sadd.s32 1, %s28
  $region7: #{glow_forward.3} parent=0 // loop_footer_branch
    %27 = sbr.rel target = $region3
  $region8: #{glow_forward.3} parent=0 // loop_exit
    _

// kernel: glow_forward.2
$region0: #{glow_forward.2}
  #allocation0 [shape = 'u32[]', space=smem, size = 0x4, offset = 0x4, fixed_abs, tag = 'smem constant byte address 0x4 - core index']
  #allocation1 [shape = 'u32[144,128]{1,0:T(1,128)}', space=vmem, size = 0x12000, scoped, tag = 'internal scratch']
  #allocation2 [shape = 'f32[4,256]{1,0:T(4,128)}', space=vmem, size = 0x1000, scoped, tag = 'scratch operand']
  #allocation3 [shape = 'bf16[288,256]{1,0:T(16,128)(2,1)}', space=vmem, size = 0x24000, scoped, tag = 'scratch operand']
  #allocation4 [shape = 'bf16[18,256]{1,0:T(8,128)(2,1)}', space=vmem, size = 0x3000, scoped, tag = 'scratch operand']
  #allocation5 [shape = 'f32[1,1]{1,0:T(1,128)}', space=vmem, size = 0x200, scoped, tag = 'scratch operand']
  %s0 = inlined_call_operand.vmem [shape: f32[2,4,256], index: 0, kind: input, shape index: {}]
  %s1 = inlined_call_operand.vmem [shape: bf16[2,36,256], index: 1, kind: input, shape index: {}]
  %s2 = inlined_call_operand.vmem [shape: f32[9,1,256], index: 2, kind: input, shape index: {}]
  %s3 = inlined_call_operand.vmem [shape: bf16[2,4,4], index: 3, kind: input, shape index: {}]
  %s4 = inlined_call_operand.vmem [shape: f32[2,4,1], index: 4, kind: input, shape index: {}]
  %s5 = inlined_call_operand.vmem [shape: bf16[2,32,36], index: 5, kind: input, shape index: {}]
  %s6 = inlined_call_operand.vmem [shape: f32[2,32,1], index: 6, kind: input, shape index: {}]
  %s7 = inlined_call_operand.vmem [shape: bf16[2,32,32], index: 7, kind: input, shape index: {}]
  %s8 = inlined_call_operand.vmem [shape: f32[2,32,1], index: 8, kind: input, shape index: {}]
  %s9 = inlined_call_operand.vmem [shape: bf16[2,8,288], index: 9, kind: input, shape index: {}]
  %s10 = inlined_call_operand.vmem [shape: f32[2,8,1], index: 10, kind: input, shape index: {}]
  %s11 = inlined_call_operand.vmem [shape: f32[2,4,1], index: 11, kind: input, shape index: {}]
  %s12 = inlined_call_operand.vmem [shape: bf16[2,32,18], index: 12, kind: input, shape index: {}]
  %s13 = inlined_call_operand.vmem [shape: bf16[2,32,36], index: 13, kind: input, shape index: {}]
  %s14 = inlined_call_operand.vmem [shape: f32[2,32,1], index: 14, kind: input, shape index: {}]
  %s15 = inlined_call_operand.vmem [shape: bf16[2,32,32], index: 15, kind: input, shape index: {}]
  %s16 = inlined_call_operand.vmem [shape: f32[2,32,1], index: 16, kind: input, shape index: {}]
  %s17 = inlined_call_operand.vmem [shape: bf16[2,4,288], index: 17, kind: input, shape index: {}]
  %s18 = inlined_call_operand.vmem [shape: f32[2,4,1], index: 18, kind: input, shape index: {}]
  %s19 = inlined_call_operand.vmem [shape: f32[2,2,1], index: 19, kind: input, shape index: {}]
  %s20 = inlined_call_operand.vmem [shape: f32[2,4,256], index: 20, kind: output, shape index: {0}]
  %s21 = inlined_call_operand.vmem [shape: f32[2,1,128], index: 21, kind: output, shape index: {1}]
  %22 = xla_tuple %s20, %s21
  %s23 = sld [smem:[#allocation0]]
  $region129: #{glow_forward.2} parent=0
    _
  %s25 = ssub.s32 1, %s23
  %s26 = scalar_select 0, %s25, %s23
  loop: start=0, step=1, limit=6
  $region2: #{glow_forward.2} parent=0 // loop_pre_header
    _
  $region3: #{glow_forward.2} parent=0 // loop_header
    %s28 = sphi 0, %s32
    %p29 = scmp.ge.s32.totalorder %s28, 6
    %s35 = sphi 0, %s47
    %s36 = sphi 0, %s43
    %s37 = sphi 0, %s35
    %s38 = sphi 0, %s36
    %s39 = sphi 0, %s37
    %s40 = sphi 0, %s38
    %s50 = sphi 0, %s52
    %s53 = sphi 0, %s50
    %s54 = sphi 0, %s53
    %s70 = sphi 0, %s54
    %s76 = sphi 0, %s78
    %s79 = sphi 0, %s76
    %s80 = sphi 0, %s79
    %s96 = sphi 0, %s80
    %s100 = sphi 0, %s100
    %s102 = sphi 0, %s100
    %s103 = sphi 0, %s102
    %s117 = sphi 0, %s103
    %s123 = sphi 0, %s125
    %s126 = sphi 0, %s123
    %s127 = sphi 0, %s126
    %s143 = sphi 0, %s127
    %s149 = sphi 0, %s151
    %s152 = sphi 0, %s149
    %s153 = sphi 0, %s152
    %s169 = sphi 0, %s153
    %s175 = sphi 0, %s177
    %s178 = sphi 0, %s175
    %s179 = sphi 0, %s178
    %s195 = sphi 0, %s179
    %s201 = sphi 0, %s203
    %s204 = sphi 0, %s201
    %s205 = sphi 0, %s204
    %s221 = sphi 0, %s205
    %s227 = sphi 0, %s229
    %s230 = sphi 0, %s227
    %s231 = sphi 0, %s230
    %s247 = sphi 0, %s231
    %s253 = sphi 0, %s255
    %s256 = sphi 0, %s253
    %s257 = sphi 0, %s256
    %s273 = sphi 0, %s257
    %s279 = sphi 0, %s281
    %s282 = sphi 0, %s279
    %s283 = sphi 0, %s282
    %s299 = sphi 0, %s283
    %s305 = sphi 0, %s307
    %s308 = sphi 0, %s305
    %s309 = sphi 0, %s308
    %s325 = sphi 0, %s309
    %s331 = sphi 0, %s333
    %s334 = sphi 0, %s331
    %s335 = sphi 0, %s334
    %s351 = sphi 0, %s335
    %s357 = sphi 0, %s359
    %s360 = sphi 0, %s357
    %s361 = sphi 0, %s360
    %s377 = sphi 0, %s361
    %s383 = sphi 0, %s385
    %s386 = sphi 0, %s383
    %s387 = sphi 0, %s386
    %s403 = sphi 0, %s387
    %s409 = sphi 0, %s411
    %s412 = sphi 0, %s409
    %s413 = sphi 0, %s412
    %s429 = sphi 0, %s413
    %s435 = sphi 0, %s437
    %s438 = sphi 0, %s435
    %s439 = sphi 0, %s438
    %s455 = sphi 0, %s439
    %s461 = sphi 0, %s463
    %s464 = sphi 0, %s461
    %s465 = sphi 0, %s464
    %s481 = sphi 0, %s465
    %s487 = sphi 0, %s489
    %s490 = sphi 0, %s487
    %s491 = sphi 0, %s490
    %s507 = sphi 0, %s491
    %s513 = sphi 0, %s515
    %s516 = sphi 0, %s513
    %s517 = sphi 0, %s516
    %s533 = sphi 0, %s517
    %s539 = sphi 0, %s541
    %s542 = sphi 0, %s539
    %s543 = sphi 0, %s542
    %s559 = sphi 0, %s543
    %s565 = sphi 0, %s567
    %s568 = sphi 0, %s565
    %s569 = sphi 0, %s568
    %s585 = sphi 0, %s569
    %s591 = sphi 0, %s593
    %s594 = sphi 0, %s591
    %s595 = sphi 0, %s594
    %s611 = sphi 0, %s595
  $region4: #{glow_forward.2} parent=0 // loop_header_branch
    %31 = sbr.rel (%p29) target = $region8
  $region5: #{glow_forward.2} parent=0 // loop_body
    %s33 = ssub.s32 %s28, 1
    %s34 = ssub.s32 %s28, 2
    %s41 = sadd.s32 1, %s36
    %p42 = scmp.ge.s32.totalorder %s41, 2
    %s43 = scalar_select %p42, 0, %s41
    %s44 = sadd.s32 1, %s35
    %s45 = scalar_select %p42, %s44, %s35
    %p46 = scmp.ge.s32.totalorder %s45, 2
    %s47 = scalar_select %p46, 0, %s45
    %s48 = ssub.s32 %s35, %s47
    %p49 = scmp.eq.s32.totalorder %s48, 0
    %s51 = sadd.s32 %s50, 1
    %s52 = scalar_select %p49, %s50, %s51
    %p55 = pneg %p49
    %p56 = scmp.eq.s32.totalorder %s28, 3
    %p57 = por %p55, %p56
    %p58 = scmp.ne.s32.totalorder %s50, %s53
    %p59 = scmp.eq.s32.totalorder %s28, 0
    %p60 = por %p58, %p59
    %p61 = scmp.ne.s32.totalorder %s50, %s53
    %p62 = scmp.eq.s32.totalorder %s33, 3
    %p63 = por %p61, %p62
    %p64 = scmp.ne.s32.totalorder %s53, %s54
    %p65 = scmp.eq.s32.totalorder %s33, 0
    %p66 = por %p64, %p65
    %p67 = scmp.ne.s32.totalorder %s53, %s54
    %p68 = scmp.eq.s32.totalorder %s34, 3
    %p69 = por %p67, %p68
    %p71 = scmp.ne.s32.totalorder %s54, %s70
    %p72 = scmp.eq.s32.totalorder %s34, 0
    %p73 = por %p71, %p72
    %s74 = ssub.s32 %s35, %s47
    %p75 = scmp.eq.s32.totalorder %s74, 0
    %s77 = sadd.s32 %s76, 1
    %s78 = scalar_select %p75, %s76, %s77
    %p81 = pneg %p75
    %p82 = scmp.eq.s32.totalorder %s28, 3
    %p83 = por %p81, %p82
    %p84 = scmp.ne.s32.totalorder %s76, %s79
    %p85 = scmp.eq.s32.totalorder %s28, 0
    %p86 = por %p84, %p85
    %p87 = scmp.ne.s32.totalorder %s76, %s79
    %p88 = scmp.eq.s32.totalorder %s33, 3
    %p89 = por %p87, %p88
    %p90 = scmp.ne.s32.totalorder %s79, %s80
    %p91 = scmp.eq.s32.totalorder %s33, 0
    %p92 = por %p90, %p91
    %p93 = scmp.ne.s32.totalorder %s79, %s80
    %p94 = scmp.eq.s32.totalorder %s34, 3
    %p95 = por %p93, %p94
    %p97 = scmp.ne.s32.totalorder %s80, %s96
    %p98 = scmp.eq.s32.totalorder %s34, 0
    %p99 = por %p97, %p98
    %s101 = sadd.s32 %s100, 1
    %p104 = scmp.eq.s32.totalorder %s28, 3
    %p105 = scmp.ne.s32.totalorder %s100, %s102
    %p106 = scmp.eq.s32.totalorder %s28, 0
    %p107 = por %p105, %p106
    %p108 = scmp.ne.s32.totalorder %s100, %s102
    %p109 = scmp.eq.s32.totalorder %s33, 3
    %p110 = por %p108, %p109
    %p111 = scmp.ne.s32.totalorder %s102, %s103
    %p112 = scmp.eq.s32.totalorder %s33, 0
    %p113 = por %p111, %p112
    %p114 = scmp.ne.s32.totalorder %s102, %s103
    %p115 = scmp.eq.s32.totalorder %s34, 3
    %p116 = por %p114, %p115
    %p118 = scmp.ne.s32.totalorder %s103, %s117
    %p119 = scmp.eq.s32.totalorder %s34, 0
    %p120 = por %p118, %p119
    %s121 = ssub.s32 %s36, %s43
    %p122 = scmp.eq.s32.totalorder %s121, 0
    %s124 = sadd.s32 %s123, 1
    %s125 = scalar_select %p122, %s123, %s124
    %p128 = pneg %p122
    %p129 = scmp.eq.s32.totalorder %s28, 3
    %p130 = por %p128, %p129
    %p131 = scmp.ne.s32.totalorder %s123, %s126
    %p132 = scmp.eq.s32.totalorder %s28, 0
    %p133 = por %p131, %p132
    %p134 = scmp.ne.s32.totalorder %s123, %s126
    %p135 = scmp.eq.s32.totalorder %s33, 3
    %p136 = por %p134, %p135
    %p137 = scmp.ne.s32.totalorder %s126, %s127
    %p138 = scmp.eq.s32.totalorder %s33, 0
    %p139 = por %p137, %p138
    %p140 = scmp.ne.s32.totalorder %s126, %s127
    %p141 = scmp.eq.s32.totalorder %s34, 3
    %p142 = por %p140, %p141
    %p144 = scmp.ne.s32.totalorder %s127, %s143
    %p145 = scmp.eq.s32.totalorder %s34, 0
    %p146 = por %p144, %p145
    %s147 = ssub.s32 %s36, %s43
    %p148 = scmp.eq.s32.totalorder %s147, 0
    %s150 = sadd.s32 %s149, 1
    %s151 = scalar_select %p148, %s149, %s150
    %p154 = pneg %p148
    %p155 = scmp.eq.s32.totalorder %s28, 3
    %p156 = por %p154, %p155
    %p157 = scmp.ne.s32.totalorder %s149, %s152
    %p158 = scmp.eq.s32.totalorder %s28, 0
    %p159 = por %p157, %p158
    %p160 = scmp.ne.s32.totalorder %s149, %s152
    %p161 = scmp.eq.s32.totalorder %s33, 3
    %p162 = por %p160, %p161
    %p163 = scmp.ne.s32.totalorder %s152, %s153
    %p164 = scmp.eq.s32.totalorder %s33, 0
    %p165 = por %p163, %p164
    %p166 = scmp.ne.s32.totalorder %s152, %s153
    %p167 = scmp.eq.s32.totalorder %s34, 3
    %p168 = por %p166, %p167
    %p170 = scmp.ne.s32.totalorder %s153, %s169
    %p171 = scmp.eq.s32.totalorder %s34, 0
    %p172 = por %p170, %p171
    %s173 = ssub.s32 %s36, %s43
    %p174 = scmp.eq.s32.totalorder %s173, 0
    %s176 = sadd.s32 %s175, 1
    %s177 = scalar_select %p174, %s175, %s176
    %p180 = pneg %p174
    %p181 = scmp.eq.s32.totalorder %s28, 3
    %p182 = por %p180, %p181
    %p183 = scmp.ne.s32.totalorder %s175, %s178
    %p184 = scmp.eq.s32.totalorder %s28, 0
    %p185 = por %p183, %p184
    %p186 = scmp.ne.s32.totalorder %s175, %s178
    %p187 = scmp.eq.s32.totalorder %s33, 3
    %p188 = por %p186, %p187
    %p189 = scmp.ne.s32.totalorder %s178, %s179
    %p190 = scmp.eq.s32.totalorder %s33, 0
    %p191 = por %p189, %p190
    %p192 = scmp.ne.s32.totalorder %s178, %s179
    %p193 = scmp.eq.s32.totalorder %s34, 3
    %p194 = por %p192, %p193
    %p196 = scmp.ne.s32.totalorder %s179, %s195
    %p197 = scmp.eq.s32.totalorder %s34, 0
    %p198 = por %p196, %p197
    %s199 = ssub.s32 %s36, %s43
    %p200 = scmp.eq.s32.totalorder %s199, 0
    %s202 = sadd.s32 %s201, 1
    %s203 = scalar_select %p200, %s201, %s202
    %p206 = pneg %p200
    %p207 = scmp.eq.s32.totalorder %s28, 3
    %p208 = por %p206, %p207
    %p209 = scmp.ne.s32.totalorder %s201, %s204
    %p210 = scmp.eq.s32.totalorder %s28, 0
    %p211 = por %p209, %p210
    %p212 = scmp.ne.s32.totalorder %s201, %s204
    %p213 = scmp.eq.s32.totalorder %s33, 3
    %p214 = por %p212, %p213
    %p215 = scmp.ne.s32.totalorder %s204, %s205
    %p216 = scmp.eq.s32.totalorder %s33, 0
    %p217 = por %p215, %p216
    %p218 = scmp.ne.s32.totalorder %s204, %s205
    %p219 = scmp.eq.s32.totalorder %s34, 3
    %p220 = por %p218, %p219
    %p222 = scmp.ne.s32.totalorder %s205, %s221
    %p223 = scmp.eq.s32.totalorder %s34, 0
    %p224 = por %p222, %p223
    %s225 = ssub.s32 %s36, %s43
    %p226 = scmp.eq.s32.totalorder %s225, 0
    %s228 = sadd.s32 %s227, 1
    %s229 = scalar_select %p226, %s227, %s228
    %p232 = pneg %p226
    %p233 = scmp.eq.s32.totalorder %s28, 3
    %p234 = por %p232, %p233
    %p235 = scmp.ne.s32.totalorder %s227, %s230
    %p236 = scmp.eq.s32.totalorder %s28, 0
    %p237 = por %p235, %p236
    %p238 = scmp.ne.s32.totalorder %s227, %s230
    %p239 = scmp.eq.s32.totalorder %s33, 3
    %p240 = por %p238, %p239
    %p241 = scmp.ne.s32.totalorder %s230, %s231
    %p242 = scmp.eq.s32.totalorder %s33, 0
    %p243 = por %p241, %p242
    %p244 = scmp.ne.s32.totalorder %s230, %s231
    %p245 = scmp.eq.s32.totalorder %s34, 3
    %p246 = por %p244, %p245
    %p248 = scmp.ne.s32.totalorder %s231, %s247
    %p249 = scmp.eq.s32.totalorder %s34, 0
    %p250 = por %p248, %p249
    %s251 = ssub.s32 %s36, %s43
    %p252 = scmp.eq.s32.totalorder %s251, 0
    %s254 = sadd.s32 %s253, 1
    %s255 = scalar_select %p252, %s253, %s254
    %p258 = pneg %p252
    %p259 = scmp.eq.s32.totalorder %s28, 3
    %p260 = por %p258, %p259
    %p261 = scmp.ne.s32.totalorder %s253, %s256
    %p262 = scmp.eq.s32.totalorder %s28, 0
    %p263 = por %p261, %p262
    %p264 = scmp.ne.s32.totalorder %s253, %s256
    %p265 = scmp.eq.s32.totalorder %s33, 3
    %p266 = por %p264, %p265
    %p267 = scmp.ne.s32.totalorder %s256, %s257
    %p268 = scmp.eq.s32.totalorder %s33, 0
    %p269 = por %p267, %p268
    %p270 = scmp.ne.s32.totalorder %s256, %s257
    %p271 = scmp.eq.s32.totalorder %s34, 3
    %p272 = por %p270, %p271
    %p274 = scmp.ne.s32.totalorder %s257, %s273
    %p275 = scmp.eq.s32.totalorder %s34, 0
    %p276 = por %p274, %p275
    %s277 = ssub.s32 %s36, %s43
    %p278 = scmp.eq.s32.totalorder %s277, 0
    %s280 = sadd.s32 %s279, 1
    %s281 = scalar_select %p278, %s279, %s280
    %p284 = pneg %p278
    %p285 = scmp.eq.s32.totalorder %s28, 3
    %p286 = por %p284, %p285
    %p287 = scmp.ne.s32.totalorder %s279, %s282
    %p288 = scmp.eq.s32.totalorder %s28, 0
    %p289 = por %p287, %p288
    %p290 = scmp.ne.s32.totalorder %s279, %s282
    %p291 = scmp.eq.s32.totalorder %s33, 3
    %p292 = por %p290, %p291
    %p293 = scmp.ne.s32.totalorder %s282, %s283
    %p294 = scmp.eq.s32.totalorder %s33, 0
    %p295 = por %p293, %p294
    %p296 = scmp.ne.s32.totalorder %s282, %s283
    %p297 = scmp.eq.s32.totalorder %s34, 3
    %p298 = por %p296, %p297
    %p300 = scmp.ne.s32.totalorder %s283, %s299
    %p301 = scmp.eq.s32.totalorder %s34, 0
    %p302 = por %p300, %p301
    %s303 = ssub.s32 %s36, %s43
    %p304 = scmp.eq.s32.totalorder %s303, 0
    %s306 = sadd.s32 %s305, 1
    %s307 = scalar_select %p304, %s305, %s306
    %p310 = pneg %p304
    %p311 = scmp.eq.s32.totalorder %s28, 3
    %p312 = por %p310, %p311
    %p313 = scmp.ne.s32.totalorder %s305, %s308
    %p314 = scmp.eq.s32.totalorder %s28, 0
    %p315 = por %p313, %p314
    %p316 = scmp.ne.s32.totalorder %s305, %s308
    %p317 = scmp.eq.s32.totalorder %s33, 3
    %p318 = por %p316, %p317
    %p319 = scmp.ne.s32.totalorder %s308, %s309
    %p320 = scmp.eq.s32.totalorder %s33, 0
    %p321 = por %p319, %p320
    %p322 = scmp.ne.s32.totalorder %s308, %s309
    %p323 = scmp.eq.s32.totalorder %s34, 3
    %p324 = por %p322, %p323
    %p326 = scmp.ne.s32.totalorder %s309, %s325
    %p327 = scmp.eq.s32.totalorder %s34, 0
    %p328 = por %p326, %p327
    %s329 = ssub.s32 %s36, %s43
    %p330 = scmp.eq.s32.totalorder %s329, 0
    %s332 = sadd.s32 %s331, 1
    %s333 = scalar_select %p330, %s331, %s332
    %p336 = pneg %p330
    %p337 = scmp.eq.s32.totalorder %s28, 3
    %p338 = por %p336, %p337
    %p339 = scmp.ne.s32.totalorder %s331, %s334
    %p340 = scmp.eq.s32.totalorder %s28, 0
    %p341 = por %p339, %p340
    %p342 = scmp.ne.s32.totalorder %s331, %s334
    %p343 = scmp.eq.s32.totalorder %s33, 3
    %p344 = por %p342, %p343
    %p345 = scmp.ne.s32.totalorder %s334, %s335
    %p346 = scmp.eq.s32.totalorder %s33, 0
    %p347 = por %p345, %p346
    %p348 = scmp.ne.s32.totalorder %s334, %s335
    %p349 = scmp.eq.s32.totalorder %s34, 3
    %p350 = por %p348, %p349
    %p352 = scmp.ne.s32.totalorder %s335, %s351
    %p353 = scmp.eq.s32.totalorder %s34, 0
    %p354 = por %p352, %p353
    %s355 = ssub.s32 %s36, %s43
    %p356 = scmp.eq.s32.totalorder %s355, 0
    %s358 = sadd.s32 %s357, 1
    %s359 = scalar_select %p356, %s357, %s358
    %p362 = pneg %p356
    %p363 = scmp.eq.s32.totalorder %s28, 3
    %p364 = por %p362, %p363
    %p365 = scmp.ne.s32.totalorder %s357, %s360
    %p366 = scmp.eq.s32.totalorder %s28, 0
    %p367 = por %p365, %p366
    %p368 = scmp.ne.s32.totalorder %s357, %s360
    %p369 = scmp.eq.s32.totalorder %s33, 3
    %p370 = por %p368, %p369
    %p371 = scmp.ne.s32.totalorder %s360, %s361
    %p372 = scmp.eq.s32.totalorder %s33, 0
    %p373 = por %p371, %p372
    %p374 = scmp.ne.s32.totalorder %s360, %s361
    %p375 = scmp.eq.s32.totalorder %s34, 3
    %p376 = por %p374, %p375
    %p378 = scmp.ne.s32.totalorder %s361, %s377
    %p379 = scmp.eq.s32.totalorder %s34, 0
    %p380 = por %p378, %p379
    %s381 = ssub.s32 %s36, %s43
    %p382 = scmp.eq.s32.totalorder %s381, 0
    %s384 = sadd.s32 %s383, 1
    %s385 = scalar_select %p382, %s383, %s384
    %p388 = pneg %p382
    %p389 = scmp.eq.s32.totalorder %s28, 3
    %p390 = por %p388, %p389
    %p391 = scmp.ne.s32.totalorder %s383, %s386
    %p392 = scmp.eq.s32.totalorder %s28, 0
    %p393 = por %p391, %p392
    %p394 = scmp.ne.s32.totalorder %s383, %s386
    %p395 = scmp.eq.s32.totalorder %s33, 3
    %p396 = por %p394, %p395
    %p397 = scmp.ne.s32.totalorder %s386, %s387
    %p398 = scmp.eq.s32.totalorder %s33, 0
    %p399 = por %p397, %p398
    %p400 = scmp.ne.s32.totalorder %s386, %s387
    %p401 = scmp.eq.s32.totalorder %s34, 3
    %p402 = por %p400, %p401
    %p404 = scmp.ne.s32.totalorder %s387, %s403
    %p405 = scmp.eq.s32.totalorder %s34, 0
    %p406 = por %p404, %p405
    %s407 = ssub.s32 %s36, %s43
    %p408 = scmp.eq.s32.totalorder %s407, 0
    %s410 = sadd.s32 %s409, 1
    %s411 = scalar_select %p408, %s409, %s410
    %p414 = pneg %p408
    %p415 = scmp.eq.s32.totalorder %s28, 3
    %p416 = por %p414, %p415
    %p417 = scmp.ne.s32.totalorder %s409, %s412
    %p418 = scmp.eq.s32.totalorder %s28, 0
    %p419 = por %p417, %p418
    %p420 = scmp.ne.s32.totalorder %s409, %s412
    %p421 = scmp.eq.s32.totalorder %s33, 3
    %p422 = por %p420, %p421
    %p423 = scmp.ne.s32.totalorder %s412, %s413
    %p424 = scmp.eq.s32.totalorder %s33, 0
    %p425 = por %p423, %p424
    %p426 = scmp.ne.s32.totalorder %s412, %s413
    %p427 = scmp.eq.s32.totalorder %s34, 3
    %p428 = por %p426, %p427
    %p430 = scmp.ne.s32.totalorder %s413, %s429
    %p431 = scmp.eq.s32.totalorder %s34, 0
    %p432 = por %p430, %p431
    %s433 = ssub.s32 %s36, %s43
    %p434 = scmp.eq.s32.totalorder %s433, 0
    %s436 = sadd.s32 %s435, 1
    %s437 = scalar_select %p434, %s435, %s436
    %p440 = pneg %p434
    %p441 = scmp.eq.s32.totalorder %s28, 3
    %p442 = por %p440, %p441
    %p443 = scmp.ne.s32.totalorder %s435, %s438
    %p444 = scmp.eq.s32.totalorder %s28, 0
    %p445 = por %p443, %p444
    %p446 = scmp.ne.s32.totalorder %s435, %s438
    %p447 = scmp.eq.s32.totalorder %s33, 3
    %p448 = por %p446, %p447
    %p449 = scmp.ne.s32.totalorder %s438, %s439
    %p450 = scmp.eq.s32.totalorder %s33, 0
    %p451 = por %p449, %p450
    %p452 = scmp.ne.s32.totalorder %s438, %s439
    %p453 = scmp.eq.s32.totalorder %s34, 3
    %p454 = por %p452, %p453
    %p456 = scmp.ne.s32.totalorder %s439, %s455
    %p457 = scmp.eq.s32.totalorder %s34, 0
    %p458 = por %p456, %p457
    %s459 = ssub.s32 %s36, %s43
    %p460 = scmp.eq.s32.totalorder %s459, 0
    %s462 = sadd.s32 %s461, 1
    %s463 = scalar_select %p460, %s461, %s462
    %p466 = pneg %p460
    %p467 = scmp.eq.s32.totalorder %s28, 3
    %p468 = por %p466, %p467
    %p469 = scmp.ne.s32.totalorder %s461, %s464
    %p470 = scmp.eq.s32.totalorder %s28, 0
    %p471 = por %p469, %p470
    %p472 = scmp.ne.s32.totalorder %s461, %s464
    %p473 = scmp.eq.s32.totalorder %s33, 3
    %p474 = por %p472, %p473
    %p475 = scmp.ne.s32.totalorder %s464, %s465
    %p476 = scmp.eq.s32.totalorder %s33, 0
    %p477 = por %p475, %p476
    %p478 = scmp.ne.s32.totalorder %s464, %s465
    %p479 = scmp.eq.s32.totalorder %s34, 3
    %p480 = por %p478, %p479
    %p482 = scmp.ne.s32.totalorder %s465, %s481
    %p483 = scmp.eq.s32.totalorder %s34, 0
    %p484 = por %p482, %p483
    %s485 = ssub.s32 %s36, %s43
    %p486 = scmp.eq.s32.totalorder %s485, 0
    %s488 = sadd.s32 %s487, 1
    %s489 = scalar_select %p486, %s487, %s488
    %p492 = pneg %p486
    %p493 = scmp.eq.s32.totalorder %s28, 3
    %p494 = por %p492, %p493
    %p495 = scmp.ne.s32.totalorder %s487, %s490
    %p496 = scmp.eq.s32.totalorder %s28, 0
    %p497 = por %p495, %p496
    %p498 = scmp.ne.s32.totalorder %s487, %s490
    %p499 = scmp.eq.s32.totalorder %s33, 3
    %p500 = por %p498, %p499
    %p501 = scmp.ne.s32.totalorder %s490, %s491
    %p502 = scmp.eq.s32.totalorder %s33, 0
    %p503 = por %p501, %p502
    %p504 = scmp.ne.s32.totalorder %s490, %s491
    %p505 = scmp.eq.s32.totalorder %s34, 3
    %p506 = por %p504, %p505
    %p508 = scmp.ne.s32.totalorder %s491, %s507
    %p509 = scmp.eq.s32.totalorder %s34, 0
    %p510 = por %p508, %p509
    %s511 = ssub.s32 %s36, %s43
    %p512 = scmp.eq.s32.totalorder %s511, 0
    %s514 = sadd.s32 %s513, 1
    %s515 = scalar_select %p512, %s513, %s514
    %p518 = pneg %p512
    %p519 = scmp.eq.s32.totalorder %s28, 3
    %p520 = por %p518, %p519
    %p521 = scmp.ne.s32.totalorder %s513, %s516
    %p522 = scmp.eq.s32.totalorder %s28, 0
    %p523 = por %p521, %p522
    %p524 = scmp.ne.s32.totalorder %s513, %s516
    %p525 = scmp.eq.s32.totalorder %s33, 3
    %p526 = por %p524, %p525
    %p527 = scmp.ne.s32.totalorder %s516, %s517
    %p528 = scmp.eq.s32.totalorder %s33, 0
    %p529 = por %p527, %p528
    %p530 = scmp.ne.s32.totalorder %s516, %s517
    %p531 = scmp.eq.s32.totalorder %s34, 3
    %p532 = por %p530, %p531
    %p534 = scmp.ne.s32.totalorder %s517, %s533
    %p535 = scmp.eq.s32.totalorder %s34, 0
    %p536 = por %p534, %p535
    %s537 = ssub.s32 %s36, %s43
    %p538 = scmp.eq.s32.totalorder %s537, 0
    %s540 = sadd.s32 %s539, 1
    %s541 = scalar_select %p538, %s539, %s540
    %p544 = pneg %p538
    %p545 = scmp.eq.s32.totalorder %s28, 3
    %p546 = por %p544, %p545
    %p547 = scmp.ne.s32.totalorder %s539, %s542
    %p548 = scmp.eq.s32.totalorder %s28, 0
    %p549 = por %p547, %p548
    %p550 = scmp.ne.s32.totalorder %s539, %s542
    %p551 = scmp.eq.s32.totalorder %s33, 3
    %p552 = por %p550, %p551
    %p553 = scmp.ne.s32.totalorder %s542, %s543
    %p554 = scmp.eq.s32.totalorder %s33, 0
    %p555 = por %p553, %p554
    %p556 = scmp.ne.s32.totalorder %s542, %s543
    %p557 = scmp.eq.s32.totalorder %s34, 3
    %p558 = por %p556, %p557
    %p560 = scmp.ne.s32.totalorder %s543, %s559
    %p561 = scmp.eq.s32.totalorder %s34, 0
    %p562 = por %p560, %p561
    %s563 = ssub.s32 %s35, %s47
    %p564 = scmp.eq.s32.totalorder %s563, 0
    %s566 = sadd.s32 %s565, 1
    %s567 = scalar_select %p564, %s565, %s566
    %p570 = pneg %p564
    %p571 = scmp.eq.s32.totalorder %s28, 3
    %p572 = por %p570, %p571
    %p573 = scmp.ne.s32.totalorder %s565, %s568
    %p574 = scmp.eq.s32.totalorder %s28, 0
    %p575 = por %p573, %p574
    %p576 = scmp.ne.s32.totalorder %s565, %s568
    %p577 = scmp.eq.s32.totalorder %s33, 3
    %p578 = por %p576, %p577
    %p579 = scmp.ne.s32.totalorder %s568, %s569
    %p580 = scmp.eq.s32.totalorder %s33, 0
    %p581 = por %p579, %p580
    %p582 = scmp.ne.s32.totalorder %s568, %s569
    %p583 = scmp.eq.s32.totalorder %s34, 3
    %p584 = por %p582, %p583
    %p586 = scmp.ne.s32.totalorder %s569, %s585
    %p587 = scmp.eq.s32.totalorder %s34, 0
    %p588 = por %p586, %p587
    %s589 = ssub.s32 %s35, %s47
    %p590 = scmp.eq.s32.totalorder %s589, 0
    %s592 = sadd.s32 %s591, 1
    %s593 = scalar_select %p590, %s591, %s592
    %p596 = pneg %p590
    %p597 = scmp.eq.s32.totalorder %s28, 3
    %p598 = por %p596, %p597
    %p599 = scmp.ne.s32.totalorder %s591, %s594
    %p600 = scmp.eq.s32.totalorder %s28, 0
    %p601 = por %p599, %p600
    %p602 = scmp.ne.s32.totalorder %s591, %s594
    %p603 = scmp.eq.s32.totalorder %s33, 3
    %p604 = por %p602, %p603
    %p605 = scmp.ne.s32.totalorder %s594, %s595
    %p606 = scmp.eq.s32.totalorder %s33, 0
    %p607 = por %p605, %p606
    %p608 = scmp.ne.s32.totalorder %s594, %s595
    %p609 = scmp.eq.s32.totalorder %s34, 3
    %p610 = por %p608, %p609
    %p612 = scmp.ne.s32.totalorder %s595, %s611
    %p613 = scmp.eq.s32.totalorder %s34, 0
    %p614 = por %p612, %p613
    %p615 = scmp.le.s32.totalorder 1, %s28
    %p616 = scmp.lt.s32.totalorder %s28, 5
    %p617 = pnand %p615, %p616
    %p618 = pneg %p617
    // Predicated region
    $region9: #{glow_forward.2} parent=5 // pred_check
      _
    $region10: #{glow_forward.2} parent=5 // pred_check_branch
      %620 = sbr.rel (%p617) target = $region12
    $region11: #{glow_forward.2} parent=5 // pred_region
      %s621 = ssub.s32 %s28, 1
      // Predicated region
      $region13: #{glow_forward.2} parent=11 // pred_check
        %p622 = pneg %p113
      $region14: #{glow_forward.2} parent=11 // pred_check_branch
        %624 = sbr.rel (%p622) target = $region16
      $region15: #{glow_forward.2} parent=11 // pred_region
        _
      $region16: #{glow_forward.2} parent=11 // pred_fallthru
        _
    $region12: #{glow_forward.2} parent=5 // pred_fallthru
      _
    %p625 = scmp.lt.s32.totalorder %s28, 4
    // Predicated region
    $region17: #{glow_forward.2} parent=5 // pred_check
      %p626 = pneg %p625
    $region18: #{glow_forward.2} parent=5 // pred_check_branch
      %628 = sbr.rel (%p626) target = $region20
    $region19: #{glow_forward.2} parent=5 // pred_region
      // Predicated region
      $region21: #{glow_forward.2} parent=19 // pred_check
        %p629 = pneg %p60
      $region22: #{glow_forward.2} parent=19 // pred_check_branch
        %631 = sbr.rel (%p629) target = $region24
      $region23: #{glow_forward.2} parent=19 // pred_region
        %p632 = scmp.lt.s32.totalorder %s35, 1
        %s633 = scalar_select %p632, %s35, 1
        %s634 = smul.addr %s633, 2
        %s635 = smul.addr %s634, 4
        %s636 = scalar_lea.vmem %s0, %s635
      $region24: #{glow_forward.2} parent=19 // pred_fallthru
        _
      // Predicated region
      $region25: #{glow_forward.2} parent=19 // pred_check
        %p637 = pneg %p86
      $region26: #{glow_forward.2} parent=19 // pred_check_branch
        %639 = sbr.rel (%p637) target = $region28
      $region27: #{glow_forward.2} parent=19 // pred_region
        %p640 = scmp.lt.s32.totalorder %s35, 1
        %s641 = scalar_select %p640, %s35, 1
        %s642 = smul.addr %s641, 10
        %s643 = smul.addr %s642, 4
        %s644 = scalar_lea.vmem %s1, %s643
      $region28: #{glow_forward.2} parent=19 // pred_fallthru
        _
      // Predicated region
      $region29: #{glow_forward.2} parent=19 // pred_check
        %p645 = pneg %p133
      $region30: #{glow_forward.2} parent=19 // pred_check_branch
        %647 = sbr.rel (%p645) target = $region32
      $region31: #{glow_forward.2} parent=19 // pred_region
        %p648 = scmp.lt.s32.totalorder %s36, 1
        %s649 = scalar_select %p648, %s36, 1
        %s650 = smul.addr %s649, 2
        %s651 = scalar_lea.vmem %s3, %s650
      $region32: #{glow_forward.2} parent=19 // pred_fallthru
        _
      // Predicated region
      $region33: #{glow_forward.2} parent=19 // pred_check
        %p652 = pneg %p159
      $region34: #{glow_forward.2} parent=19 // pred_check_branch
        %654 = sbr.rel (%p652) target = $region36
      $region35: #{glow_forward.2} parent=19 // pred_region
        %p655 = scmp.lt.s32.totalorder %s36, 1
        %s656 = scalar_select %p655, %s36, 1
        %s657 = smul.addr %s656, 4
        %s658 = scalar_lea.vmem %s4, %s657
      $region36: #{glow_forward.2} parent=19 // pred_fallthru
        _
      // Predicated region
      $region37: #{glow_forward.2} parent=19 // pred_check
        %p659 = pneg %p185
      $region38: #{glow_forward.2} parent=19 // pred_check_branch
        %661 = sbr.rel (%p659) target = $region40
      $region39: #{glow_forward.2} parent=19 // pred_region
        %p662 = scmp.lt.s32.totalorder %s36, 1
        %s663 = scalar_select %p662, %s36, 1
        %s664 = smul.addr %s663, 4
        %s665 = smul.addr %s664, 4
        %s666 = scalar_lea.vmem %s5, %s665
      $region40: #{glow_forward.2} parent=19 // pred_fallthru
        _
      // Predicated region
      $region41: #{glow_forward.2} parent=19 // pred_check
        %p667 = pneg %p211
      $region42: #{glow_forward.2} parent=19 // pred_check_branch
        %669 = sbr.rel (%p667) target = $region44
      $region43: #{glow_forward.2} parent=19 // pred_region
        %p670 = scmp.lt.s32.totalorder %s36, 1
        %s671 = scalar_select %p670, %s36, 1
        %s672 = smul.addr %s671, 4
        %s673 = smul.addr %s672, 8
        %s674 = scalar_lea.vmem %s6, %s673
      $region44: #{glow_forward.2} parent=19 // pred_fallthru
        _
      // Predicated region
      $region45: #{glow_forward.2} parent=19 // pred_check
        %p675 = pneg %p237
      $region46: #{glow_forward.2} parent=19 // pred_check_branch
        %677 = sbr.rel (%p675) target = $region48
      $region47: #{glow_forward.2} parent=19 // pred_region
        %p678 = scmp.lt.s32.totalorder %s36, 1
        %s679 = scalar_select %p678, %s36, 1
        %s680 = smul.addr %s679, 4
        %s681 = smul.addr %s680, 4
        %s682 = scalar_lea.vmem %s7, %s681
      $region48: #{glow_forward.2} parent=19 // pred_fallthru
        _
      // Predicated region
      $region49: #{glow_forward.2} parent=19 // pred_check
        %p683 = pneg %p263
      $region50: #{glow_forward.2} parent=19 // pred_check_branch
        %685 = sbr.rel (%p683) target = $region52
      $region51: #{glow_forward.2} parent=19 // pred_region
        %p686 = scmp.lt.s32.totalorder %s36, 1
        %s687 = scalar_select %p686, %s36, 1
        %s688 = smul.addr %s687, 4
        %s689 = smul.addr %s688, 8
        %s690 = scalar_lea.vmem %s8, %s689
      $region52: #{glow_forward.2} parent=19 // pred_fallthru
        _
      // Predicated region
      $region53: #{glow_forward.2} parent=19 // pred_check
        %p691 = pneg %p289
      $region54: #{glow_forward.2} parent=19 // pred_check_branch
        %693 = sbr.rel (%p691) target = $region56
      $region55: #{glow_forward.2} parent=19 // pred_region
        %p694 = scmp.lt.s32.totalorder %s36, 1
        %s695 = scalar_select %p694, %s36, 1
        %s696 = smul.addr %s695, 3
        %s697 = smul.addr %s696, 4
        %s698 = scalar_lea.vmem %s9, %s697
      $region56: #{glow_forward.2} parent=19 // pred_fallthru
        _
      // Predicated region
      $region57: #{glow_forward.2} parent=19 // pred_check
        %p699 = pneg %p315
      $region58: #{glow_forward.2} parent=19 // pred_check_branch
        %701 = sbr.rel (%p699) target = $region60
      $region59: #{glow_forward.2} parent=19 // pred_region
        %p702 = scmp.lt.s32.totalorder %s36, 1
        %s703 = scalar_select %p702, %s36, 1
        %s704 = smul.addr %s703, 8
        %s705 = scalar_lea.vmem %s10, %s704
      $region60: #{glow_forward.2} parent=19 // pred_fallthru
        _
      // Predicated region
      $region61: #{glow_forward.2} parent=19 // pred_check
        %p706 = pneg %p341
      $region62: #{glow_forward.2} parent=19 // pred_check_branch
        %708 = sbr.rel (%p706) target = $region64
      $region63: #{glow_forward.2} parent=19 // pred_region
        %p709 = scmp.lt.s32.totalorder %s36, 1
        %s710 = scalar_select %p709, %s36, 1
        %s711 = smul.addr %s710, 4
        %s712 = scalar_lea.vmem %s11, %s711
      $region64: #{glow_forward.2} parent=19 // pred_fallthru
        _
      // Predicated region
      $region65: #{glow_forward.2} parent=19 // pred_check
        %p713 = pneg %p367
      $region66: #{glow_forward.2} parent=19 // pred_check_branch
        %715 = sbr.rel (%p713) target = $region68
      $region67: #{glow_forward.2} parent=19 // pred_region
        %p716 = scmp.lt.s32.totalorder %s36, 1
        %s717 = scalar_select %p716, %s36, 1
        %s718 = smul.addr %s717, 4
        %s719 = smul.addr %s718, 4
        %s720 = scalar_lea.vmem %s12, %s719
      $region68: #{glow_forward.2} parent=19 // pred_fallthru
        _
      // Predicated region
      $region69: #{glow_forward.2} parent=19 // pred_check
        %p721 = pneg %p393
      $region70: #{glow_forward.2} parent=19 // pred_check_branch
        %723 = sbr.rel (%p721) target = $region72
      $region71: #{glow_forward.2} parent=19 // pred_region
        %p724 = scmp.lt.s32.totalorder %s36, 1
        %s725 = scalar_select %p724, %s36, 1
        %s726 = smul.addr %s725, 4
        %s727 = smul.addr %s726, 4
        %s728 = scalar_lea.vmem %s13, %s727
      $region72: #{glow_forward.2} parent=19 // pred_fallthru
        _
      // Predicated region
      $region73: #{glow_forward.2} parent=19 // pred_check
        %p729 = pneg %p419
      $region74: #{glow_forward.2} parent=19 // pred_check_branch
        %731 = sbr.rel (%p729) target = $region76
      $region75: #{glow_forward.2} parent=19 // pred_region
        %p732 = scmp.lt.s32.totalorder %s36, 1
        %s733 = scalar_select %p732, %s36, 1
        %s734 = smul.addr %s733, 4
        %s735 = smul.addr %s734, 8
        %s736 = scalar_lea.vmem %s14, %s735
      $region76: #{glow_forward.2} parent=19 // pred_fallthru
        _
      // Predicated region
      $region77: #{glow_forward.2} parent=19 // pred_check
        %p737 = pneg %p445
      $region78: #{glow_forward.2} parent=19 // pred_check_branch
        %739 = sbr.rel (%p737) target = $region80
      $region79: #{glow_forward.2} parent=19 // pred_region
        %p740 = scmp.lt.s32.totalorder %s36, 1
        %s741 = scalar_select %p740, %s36, 1
        %s742 = smul.addr %s741, 4
        %s743 = smul.addr %s742, 4
        %s744 = scalar_lea.vmem %s15, %s743
      $region80: #{glow_forward.2} parent=19 // pred_fallthru
        _
      // Predicated region
      $region81: #{glow_forward.2} parent=19 // pred_check
        %p745 = pneg %p471
      $region82: #{glow_forward.2} parent=19 // pred_check_branch
        %747 = sbr.rel (%p745) target = $region84
      $region83: #{glow_forward.2} parent=19 // pred_region
        %p748 = scmp.lt.s32.totalorder %s36, 1
        %s749 = scalar_select %p748, %s36, 1
        %s750 = smul.addr %s749, 4
        %s751 = smul.addr %s750, 8
        %s752 = scalar_lea.vmem %s16, %s751
      $region84: #{glow_forward.2} parent=19 // pred_fallthru
        _
      // Predicated region
      $region85: #{glow_forward.2} parent=19 // pred_check
        %p753 = pneg %p497
      $region86: #{glow_forward.2} parent=19 // pred_check_branch
        %755 = sbr.rel (%p753) target = $region88
      $region87: #{glow_forward.2} parent=19 // pred_region
        %p756 = scmp.lt.s32.totalorder %s36, 1
        %s757 = scalar_select %p756, %s36, 1
        %s758 = smul.addr %s757, 3
        %s759 = smul.addr %s758, 2
        %s760 = scalar_lea.vmem %s17, %s759
      $region88: #{glow_forward.2} parent=19 // pred_fallthru
        _
      // Predicated region
      $region89: #{glow_forward.2} parent=19 // pred_check
        %p761 = pneg %p523
      $region90: #{glow_forward.2} parent=19 // pred_check_branch
        %763 = sbr.rel (%p761) target = $region92
      $region91: #{glow_forward.2} parent=19 // pred_region
        %p764 = scmp.lt.s32.totalorder %s36, 1
        %s765 = scalar_select %p764, %s36, 1
        %s766 = smul.addr %s765, 4
        %s767 = scalar_lea.vmem %s18, %s766
      $region92: #{glow_forward.2} parent=19 // pred_fallthru
        _
      // Predicated region
      $region93: #{glow_forward.2} parent=19 // pred_check
        %p768 = pneg %p549
      $region94: #{glow_forward.2} parent=19 // pred_check_branch
        %770 = sbr.rel (%p768) target = $region96
      $region95: #{glow_forward.2} parent=19 // pred_region
        %p771 = scmp.lt.s32.totalorder %s36, 1
        %s772 = scalar_select %p771, %s36, 1
        %s773 = smul.addr %s772, 2
        %s774 = scalar_lea.vmem %s19, %s773
      $region96: #{glow_forward.2} parent=19 // pred_fallthru
        _
    $region20: #{glow_forward.2} parent=5 // pred_fallthru
      _
    %p775 = scmp.le.s32.totalorder 1, %s28
    %p776 = scmp.lt.s32.totalorder %s28, 5
    %p777 = pnand %p775, %p776
    %p778 = pneg %p777
    // Predicated region
    $region97: #{glow_forward.2} parent=5 // pred_check
      _
    $region98: #{glow_forward.2} parent=5 // pred_check_branch
      %780 = sbr.rel (%p777) target = $region100
    $region99: #{glow_forward.2} parent=5 // pred_region
      %s781 = ssub.s32 %s28, 1
      %p782 = scmp.lt.s32.totalorder %s37, 1
      %s783 = scalar_select %p782, %s37, 1
      %s784 = smul.addr %s783, 2
      %s785 = smul.addr %s784, 4
      %s786 = scalar_lea.vmem %s0, %s785
      %p787 = pneg %p66
      %p788 = pneg %p63
      %p789 = scmp.lt.s32.totalorder %s37, 1
      %s790 = scalar_select %p789, %s37, 1
      %s791 = smul.addr %s790, 10
      %s792 = smul.addr %s791, 4
      %s793 = scalar_lea.vmem %s1, %s792
      %p794 = pneg %p92
      %p795 = pneg %p89
      %p796 = pneg %p113
      %p797 = pneg %p110
      %p798 = scmp.lt.s32.totalorder %s38, 1
      %s799 = scalar_select %p798, %s38, 1
      %s800 = smul.addr %s799, 2
      %s801 = scalar_lea.vmem %s3, %s800
      %p802 = pneg %p139
      %p803 = pneg %p136
      %p804 = scmp.lt.s32.totalorder %s38, 1
      %s805 = scalar_select %p804, %s38, 1
      %s806 = smul.addr %s805, 4
      %s807 = scalar_lea.vmem %s4, %s806
      %p808 = pneg %p165
      %p809 = pneg %p162
      %p810 = scmp.lt.s32.totalorder %s38, 1
      %s811 = scalar_select %p810, %s38, 1
      %s812 = smul.addr %s811, 4
      %s813 = smul.addr %s812, 4
      %s814 = scalar_lea.vmem %s5, %s813
      %p815 = pneg %p191
      %p816 = pneg %p188
      %p817 = scmp.lt.s32.totalorder %s38, 1
      %s818 = scalar_select %p817, %s38, 1
      %s819 = smul.addr %s818, 4
      %s820 = smul.addr %s819, 8
      %s821 = scalar_lea.vmem %s6, %s820
      %p822 = pneg %p217
      %p823 = pneg %p214
      %p824 = scmp.lt.s32.totalorder %s38, 1
      %s825 = scalar_select %p824, %s38, 1
      %s826 = smul.addr %s825, 4
      %s827 = smul.addr %s826, 4
      %s828 = scalar_lea.vmem %s7, %s827
      %p829 = pneg %p243
      %p830 = pneg %p240
      %p831 = scmp.lt.s32.totalorder %s38, 1
      %s832 = scalar_select %p831, %s38, 1
      %s833 = smul.addr %s832, 4
      %s834 = smul.addr %s833, 8
      %s835 = scalar_lea.vmem %s8, %s834
      %p836 = pneg %p269
      %p837 = pneg %p266
      %p838 = scmp.lt.s32.totalorder %s38, 1
      %s839 = scalar_select %p838, %s38, 1
      %s840 = smul.addr %s839, 3
      %s841 = smul.addr %s840, 4
      %s842 = scalar_lea.vmem %s9, %s841
      %p843 = pneg %p295
      %p844 = pneg %p292
      %p845 = scmp.lt.s32.totalorder %s38, 1
      %s846 = scalar_select %p845, %s38, 1
      %s847 = smul.addr %s846, 8
      %s848 = scalar_lea.vmem %s10, %s847
      %p849 = pneg %p321
      %p850 = pneg %p318
      %p851 = scmp.lt.s32.totalorder %s38, 1
      %s852 = scalar_select %p851, %s38, 1
      %s853 = smul.addr %s852, 4
      %s854 = scalar_lea.vmem %s11, %s853
      %p855 = pneg %p347
      %p856 = pneg %p344
      %p857 = scmp.lt.s32.totalorder %s38, 1
      %s858 = scalar_select %p857, %s38, 1
      %s859 = smul.addr %s858, 4
      %s860 = smul.addr %s859, 4
      %s861 = scalar_lea.vmem %s12, %s860
      %p862 = pneg %p373
      %p863 = pneg %p370
      %p864 = scmp.lt.s32.totalorder %s38, 1
      %s865 = scalar_select %p864, %s38, 1
      %s866 = smul.addr %s865, 4
      %s867 = smul.addr %s866, 4
      %s868 = scalar_lea.vmem %s13, %s867
      %p869 = pneg %p399
      %p870 = pneg %p396
      %p871 = scmp.lt.s32.totalorder %s38, 1
      %s872 = scalar_select %p871, %s38, 1
      %s873 = smul.addr %s872, 4
      %s874 = smul.addr %s873, 8
      %s875 = scalar_lea.vmem %s14, %s874
      %p876 = pneg %p425
      %p877 = pneg %p422
      %p878 = scmp.lt.s32.totalorder %s38, 1
      %s879 = scalar_select %p878, %s38, 1
      %s880 = smul.addr %s879, 4
      %s881 = smul.addr %s880, 4
      %s882 = scalar_lea.vmem %s15, %s881
      %p883 = pneg %p451
      %p884 = pneg %p448
      %p885 = scmp.lt.s32.totalorder %s38, 1
      %s886 = scalar_select %p885, %s38, 1
      %s887 = smul.addr %s886, 4
      %s888 = smul.addr %s887, 8
      %s889 = scalar_lea.vmem %s16, %s888
      %p890 = pneg %p477
      %p891 = pneg %p474
      %p892 = scmp.lt.s32.totalorder %s38, 1
      %s893 = scalar_select %p892, %s38, 1
      %s894 = smul.addr %s893, 3
      %s895 = smul.addr %s894, 2
      %s896 = scalar_lea.vmem %s17, %s895
      %p897 = pneg %p503
      %p898 = pneg %p500
      %p899 = scmp.lt.s32.totalorder %s38, 1
      %s900 = scalar_select %p899, %s38, 1
      %s901 = smul.addr %s900, 4
      %s902 = scalar_lea.vmem %s18, %s901
      %p903 = pneg %p529
      %p904 = pneg %p526
      %p905 = scmp.lt.s32.totalorder %s38, 1
      %s906 = scalar_select %p905, %s38, 1
      %s907 = smul.addr %s906, 2
      %s908 = scalar_lea.vmem %s19, %s907
      %p909 = pneg %p555
      %p910 = pneg %p552
      %p911 = pneg %p581
      %p912 = pneg %p578
      %p913 = scmp.lt.s32.totalorder %s37, 1
      %s914 = scalar_select %p913, %s37, 1
      %s915 = smul.addr %s914, 2
      %s916 = smul.addr %s915, 4
      %s917 = scalar_lea.vmem %s20, %s916
      %p918 = pneg %p607
      %p919 = pneg %p604
      %p920 = scmp.lt.s32.totalorder %s37, 1
      %s921 = scalar_select %p920, %s37, 1
      %s922 = scalar_lea.vmem %s21, %s921
      %p923 = scmp.lt.s32.totalorder %s37, 1
      %s924 = scalar_select %p923, %s37, 1
      %s925 = smul.addr %s924, 2
      %s926 = smul.addr %s925, 4
      %s927 = scalar_lea.vmem %s0, %s926
      %p928 = scmp.lt.s32.totalorder %s37, 1
      %s929 = scalar_select %p928, %s37, 1
      %s930 = smul.addr %s929, 10
      %s931 = smul.addr %s930, 4
      %s932 = scalar_lea.vmem %s1, %s931
      %p933 = scmp.lt.s32.totalorder %s38, 1
      %s934 = scalar_select %p933, %s38, 1
      %s935 = smul.addr %s934, 2
      %s936 = scalar_lea.vmem %s3, %s935
      %p937 = scmp.lt.s32.totalorder %s38, 1
      %s938 = scalar_select %p937, %s38, 1
      %s939 = smul.addr %s938, 4
      %s940 = scalar_lea.vmem %s4, %s939
      %p941 = scmp.lt.s32.totalorder %s38, 1
      %s942 = scalar_select %p941, %s38, 1
      %s943 = smul.addr %s942, 4
      %s944 = smul.addr %s943, 4
      %s945 = scalar_lea.vmem %s5, %s944
      %p946 = scmp.lt.s32.totalorder %s38, 1
      %s947 = scalar_select %p946, %s38, 1
      %s948 = smul.addr %s947, 4
      %s949 = smul.addr %s948, 8
      %s950 = scalar_lea.vmem %s6, %s949
      %p951 = scmp.lt.s32.totalorder %s38, 1
      %s952 = scalar_select %p951, %s38, 1
      %s953 = smul.addr %s952, 4
      %s954 = smul.addr %s953, 4
      %s955 = scalar_lea.vmem %s7, %s954
      %p956 = scmp.lt.s32.totalorder %s38, 1
      %s957 = scalar_select %p956, %s38, 1
      %s958 = smul.addr %s957, 4
      %s959 = smul.addr %s958, 8
      %s960 = scalar_lea.vmem %s8, %s959
      %p961 = scmp.lt.s32.totalorder %s38, 1
      %s962 = scalar_select %p961, %s38, 1
      %s963 = smul.addr %s962, 3
      %s964 = smul.addr %s963, 4
      %s965 = scalar_lea.vmem %s9, %s964
      %p966 = scmp.lt.s32.totalorder %s38, 1
      %s967 = scalar_select %p966, %s38, 1
      %s968 = smul.addr %s967, 8
      %s969 = scalar_lea.vmem %s10, %s968
      %p970 = scmp.lt.s32.totalorder %s38, 1
      %s971 = scalar_select %p970, %s38, 1
      %s972 = smul.addr %s971, 4
      %s973 = scalar_lea.vmem %s11, %s972
      %p974 = scmp.lt.s32.totalorder %s38, 1
      %s975 = scalar_select %p974, %s38, 1
      %s976 = smul.addr %s975, 4
      %s977 = smul.addr %s976, 4
      %s978 = scalar_lea.vmem %s12, %s977
      %p979 = scmp.lt.s32.totalorder %s38, 1
      %s980 = scalar_select %p979, %s38, 1
      %s981 = smul.addr %s980, 4
      %s982 = smul.addr %s981, 4
      %s983 = scalar_lea.vmem %s13, %s982
      %p984 = scmp.lt.s32.totalorder %s38, 1
      %s985 = scalar_select %p984, %s38, 1
      %s986 = smul.addr %s985, 4
      %s987 = smul.addr %s986, 8
      %s988 = scalar_lea.vmem %s14, %s987
      %p989 = scmp.lt.s32.totalorder %s38, 1
      %s990 = scalar_select %p989, %s38, 1
      %s991 = smul.addr %s990, 4
      %s992 = smul.addr %s991, 4
      %s993 = scalar_lea.vmem %s15, %s992
      %p994 = scmp.lt.s32.totalorder %s38, 1
      %s995 = scalar_select %p994, %s38, 1
      %s996 = smul.addr %s995, 4
      %s997 = smul.addr %s996, 8
      %s998 = scalar_lea.vmem %s16, %s997
      %p999 = scmp.lt.s32.totalorder %s38, 1
      %s1000 = scalar_select %p999, %s38, 1
      %s1001 = smul.addr %s1000, 3
      %s1002 = smul.addr %s1001, 2
      %s1003 = scalar_lea.vmem %s17, %s1002
      %p1004 = scmp.lt.s32.totalorder %s38, 1
      %s1005 = scalar_select %p1004, %s38, 1
      %s1006 = smul.addr %s1005, 4
      %s1007 = scalar_lea.vmem %s18, %s1006
      %p1008 = scmp.lt.s32.totalorder %s38, 1
      %s1009 = scalar_select %p1008, %s38, 1
      %s1010 = smul.addr %s1009, 2
      %s1011 = scalar_lea.vmem %s19, %s1010
      %p1012 = scmp.lt.s32.totalorder %s37, 1
      %s1013 = scalar_select %p1012, %s37, 1
      %s1014 = smul.addr %s1013, 2
      %s1015 = smul.addr %s1014, 4
      %s1016 = scalar_lea.vmem %s20, %s1015
      %p1017 = scmp.lt.s32.totalorder %s37, 1
      %s1018 = scalar_select %p1017, %s37, 1
      %s1019 = scalar_lea.vmem %s21, %s1018
      %p1021 = scmp.eq.s32.totalorder %s38, 0
      // Predicated region
      $region101: #{glow_forward.2} parent=99 // pred_check
        %p1022 = pneg %p1021
      $region102: #{glow_forward.2} parent=99 // pred_check_branch
        %1024 = sbr.rel (%p1022) target = $region104
      $region103: #{glow_forward.2} parent=99 // pred_region
        %v1025 = vld [vmem:[%s927] sm:$0xff]
        %1026 = vst [vmem:[#allocation2] sm:$0xff] %v1025
        %vm1027 = vcmask 0
        %1028 = vst.msk [vmem:[#allocation5] sm:$0x1] %vm1027, 0.0
      $region104: #{glow_forward.2} parent=99 // pred_fallthru
        _
      %v1029 = vld [vmem:[#allocation2] sm:$0xff]
      %v1030 = vld [vmem:[%s932] sm:$0xff]
      %v1031 = vld [vmem:[%s932 + $0x8] sm:$0xff]
      %v1032 = vld [vmem:[%s932 + $0x10] sm:$0xff]
      %v1033 = vld [vmem:[%s932 + $0x18] sm:$0xff]
      %v1034 = vld [vmem:[%s932 + $0x20] sm:$0x33]
      %v1035 = vld [vmem:[%s936] sm:$0x3]
      %v1037 = vcombine.high %v1029, %v1029
      %v1039 = vpack.c.bf16 %v1029, %v1029
      %v1040 = vpack.c.bf16 %v1037, %v1037
      %v1041 = vld [vmem:[%s940] sm:$0xf]
      %1043 = vset.pattern.permute.xlu0 0
      %1044 = vperm.xlu0 %1043, %v1041
      %v1045 = vpop.permute.xlu0 %1044
      %vm1047 = vcmask 31744
      %v1049 = vsel %vm1047, %v1035, 0
      %vm1051 = vcmask 1041408
      %v1053 = vsel %vm1051, %v1039, 0
      %v1056 = vsel %vm1051, %v1040, 0
      %1058 = vmatprep.subr.bf16.mxu0 %v1056
      %1059 = vmatpush1.bf16.msra.mxu0 %v1053
      %1060 = vmatprep.subr.bf16.mxu0 0
      %1061 = vmatpush1.bf16.msra.mxu0 0
      %1062 = vmatprep.subr.bf16.mxu0 0
      %1063 = vmatpush1.bf16.msra.mxu0 0
      %1064 = vmatprep.subr.bf16.mxu0 0
      %1065 = vmatpush1.bf16.msra.mxu0 0
      %1066 = vmatprep.subr.bf16.mxu0 0
      %1067 = vmatpush1.bf16.msra.mxu0 0
      %1068 = vmatprep.subr.bf16.mxu0 0
      %1069 = vmatpush1.bf16.msra.mxu0 0
      %1070 = vmatprep.subr.bf16.mxu0 0
      %1071 = vmatpush1.bf16.msra.mxu0 0
      %1072 = vmatprep.subr.bf16.mxu0 0
      %1073 = vmatpush1.bf16.msra.mxu0 0
      %1074 = vmatprep.subr.bf16.mxu0 0
      %1075 = vmatpush1.bf16.msra.mxu0 0
      %1076 = vmatprep.subr.bf16.mxu0 0
      %1077 = vmatpush1.bf16.msra.mxu0 0
      %1078 = vmatprep.subr.bf16.mxu0 0
      %1079 = vmatpush1.bf16.msra.mxu0 0
      %1080 = vmatprep.subr.bf16.mxu0 0
      %1081 = vmatpush1.bf16.msra.mxu0 0
      %1082 = vmatprep.subr.bf16.mxu0 0
      %1083 = vmatpush1.bf16.msra.mxu0 0
      %1084 = vmatprep.subr.bf16.mxu0 0
      %1085 = vmatpush1.bf16.msra.mxu0 0
      %1086 = vmatprep.subr.bf16.mxu0 0
      %1087 = vmatpush1.bf16.msra.mxu0 0
      %1088 = vmatprep.subr.bf16.mxu0 0
      %1089 = vmatpush1.bf16.msra.mxu0 0
      %1090 = vmatprep.mubr.bf16.mxu0 0
      %1091 = vmatmul.mubr.bf16.gmra.mrb[0].mxu0 %v1049
      %v1092 = vpop.f32.mrb[0].mxu0
      %v1093 = vadd.f32 %v1045, %v1092
      %v1094 = vpop.f32.mrb[0].mxu0
      %v1095 = vadd.f32 %v1045, %v1094
      %v1096 = vpop.f32.mrb[0].mxu0
      %v1097 = vpop.f32.mrb[0].mxu0
      %1098 = vdwg.mxu0
      %v1099 = vld [vmem:[%s945] sm:$0xf]
      %v1100 = vld [vmem:[%s945 + $0x4] sm:$0xf]
      %v1101 = vld [vmem:[%s945 + $0x8] sm:$0xf]
      %v1102 = vld [vmem:[%s945 + $0xc] sm:$0xf]
      %v1103 = vld [vmem:[%s950] sm:$0xff]
      %v1104 = vld [vmem:[%s950 + $0x8] sm:$0xff]
      %v1105 = vld [vmem:[%s950 + $0x10] sm:$0xff]
      %v1106 = vld [vmem:[%s950 + $0x18] sm:$0xff]
      %1108 = vset.pattern.permute.xlu0 0
      %1109 = vperm.xlu0 %1108, %v1103
      %v1110 = vpop.permute.xlu0 %1109
      %1113 = vset.pattern.permute.xlu0 0
      %1114 = vperm.xlu0 %1113, %v1104
      %v1115 = vpop.permute.xlu0 %1114
      %1118 = vset.pattern.permute.xlu0 0
      %1119 = vperm.xlu0 %1118, %v1105
      %v1120 = vpop.permute.xlu0 %1119
      %1123 = vset.pattern.permute.xlu0 0
      %1124 = vperm.xlu0 %1123, %v1106
      %v1125 = vpop.permute.xlu0 %1124
      %v1131 = vunpack.c.l.b16 %v1099
      %v1132 = vunpack.c.l.b16 %v1100
      %v1133 = vunpack.c.l.b16 %v1101
      %v1134 = vunpack.c.l.b16 %v1102
      %v1135 = vpack.c.b16 %v1132, %v1131
      %v1136 = vpack.c.b16 %v1134, %v1133
      %v1142 = vunpack.c.l.b16 %v1030
      %v1143 = vunpack.c.h.b16 %v1030
      %v1144 = vunpack.c.l.b16 %v1031
      %v1145 = vunpack.c.h.b16 %v1031
      %v1146 = vunpack.c.l.b16 %v1032
      %v1147 = vunpack.c.h.b16 %v1032
      %v1148 = vunpack.c.l.b16 %v1033
      %v1149 = vunpack.c.h.b16 %v1033
      %v1150 = vunpack.c.l.b16 %v1034
      %v1151 = vunpack.c.h.b16 %v1034
      %v1152 = vpack.c.b16 %v1144, %v1142
      %v1153 = vpack.c.b16 %v1145, %v1143
      %v1154 = vpack.c.b16 %v1148, %v1146
      %v1155 = vpack.c.b16 %v1149, %v1147
      %v1156 = vpack.c.b16 %v1150, %v1150
      %v1157 = vpack.c.b16 %v1151, %v1151
      %vm1162 = vcmask 293888
      %v1164 = vsel %vm1162, %v1135, 0
      %v1167 = vsel %vm1162, %v1136, 0
      %v1170 = vsel %vm1051, %v1156, 0
      %v1173 = vsel %vm1051, %v1157, 0
      %1175 = vmatprep.subr.bf16.mxu0 %v1153
      %1176 = vmatpush1.bf16.msra.mxu0 %v1152
      %1177 = vmatprep.subr.bf16.mxu0 %v1155
      %1178 = vmatpush1.bf16.msra.mxu0 %v1154
      %1179 = vmatprep.subr.bf16.mxu0 %v1173
      %1180 = vmatpush1.bf16.msra.mxu0 %v1170
      %1181 = vmatprep.subr.bf16.mxu0 0
      %1182 = vmatpush1.bf16.msra.mxu0 0
      %1183 = vmatprep.subr.bf16.mxu0 0
      %1184 = vmatpush1.bf16.msra.mxu0 0
      %1185 = vmatprep.subr.bf16.mxu0 0
      %1186 = vmatpush1.bf16.msra.mxu0 0
      %1187 = vmatprep.subr.bf16.mxu0 0
      %1188 = vmatpush1.bf16.msra.mxu0 0
      %1189 = vmatprep.subr.bf16.mxu0 0
      %1190 = vmatpush1.bf16.msra.mxu0 0
      %1191 = vmatprep.subr.bf16.mxu0 0
      %1192 = vmatpush1.bf16.msra.mxu0 0
      %1193 = vmatprep.subr.bf16.mxu0 0
      %1194 = vmatpush1.bf16.msra.mxu0 0
      %1195 = vmatprep.subr.bf16.mxu0 0
      %1196 = vmatpush1.bf16.msra.mxu0 0
      %1197 = vmatprep.subr.bf16.mxu0 0
      %1198 = vmatpush1.bf16.msra.mxu0 0
      %1199 = vmatprep.subr.bf16.mxu0 0
      %1200 = vmatpush1.bf16.msra.mxu0 0
      %1201 = vmatprep.subr.bf16.mxu0 0
      %1202 = vmatpush1.bf16.msra.mxu0 0
      %1203 = vmatprep.subr.bf16.mxu0 0
      %1204 = vmatpush1.bf16.msra.mxu0 0
      %1205 = vmatprep.subr.bf16.mxu0 0
      %1206 = vmatpush1.bf16.msra.mxu0 0
      %1207 = vmatprep.mubr.bf16.mxu0 0
      %1208 = vmatmul.mubr.bf16.gmra.mrb[0].mxu0 %v1164
      %v1209 = vpop.f32.mrb[0].mxu0
      %v1210 = vadd.f32 %v1110, %v1209
      %v1211 = vpop.f32.mrb[0].mxu0
      %v1212 = vadd.f32 %v1110, %v1211
      %v1213 = vpop.f32.mrb[0].mxu0
      %v1214 = vadd.f32 %v1115, %v1213
      %v1215 = vpop.f32.mrb[0].mxu0
      %v1216 = vadd.f32 %v1115, %v1215
      %1217 = vmatprep.mubr.bf16.mxu0 0
      %1218 = vmatmul.mubr.bf16.gmra.mrb[0].mxu0 %v1167
      %v1219 = vpop.f32.mrb[0].mxu0
      %v1220 = vadd.f32 %v1120, %v1219
      %v1221 = vpop.f32.mrb[0].mxu0
      %v1222 = vadd.f32 %v1120, %v1221
      %v1223 = vpop.f32.mrb[0].mxu0
      %v1224 = vadd.f32 %v1125, %v1223
      %v1225 = vpop.f32.mrb[0].mxu0
      %v1226 = vadd.f32 %v1125, %v1225
      %1227 = vdwg.mxu0
      %v1228 = vmax.f32 %v1210, 0.0
      %v1229 = vmax.f32 %v1212, 0.0
      %v1230 = vmax.f32 %v1214, 0.0
      %v1231 = vmax.f32 %v1216, 0.0
      %v1232 = vmax.f32 %v1220, 0.0
      %v1233 = vmax.f32 %v1222, 0.0
      %v1234 = vmax.f32 %v1224, 0.0
      %v1235 = vmax.f32 %v1226, 0.0
      %v1236 = vld [vmem:[%s955] sm:$0xf]
      %v1237 = vld [vmem:[%s955 + $0x4] sm:$0xf]
      %v1238 = vld [vmem:[%s955 + $0x8] sm:$0xf]
      %v1239 = vld [vmem:[%s955 + $0xc] sm:$0xf]
      %v1240 = vpack.c.bf16 %v1230, %v1228
      %v1241 = vpack.c.bf16 %v1231, %v1229
      %v1242 = vpack.c.bf16 %v1234, %v1232
      %v1243 = vpack.c.bf16 %v1235, %v1233
      %v1244 = vld [vmem:[%s960] sm:$0xff]
      %v1245 = vld [vmem:[%s960 + $0x8] sm:$0xff]
      %v1246 = vld [vmem:[%s960 + $0x10] sm:$0xff]
      %v1247 = vld [vmem:[%s960 + $0x18] sm:$0xff]
      %1249 = vset.pattern.permute.xlu0 0
      %1250 = vperm.xlu0 %1249, %v1244
      %v1251 = vpop.permute.xlu0 %1250
      %1254 = vset.pattern.permute.xlu0 0
      %1255 = vperm.xlu0 %1254, %v1245
      %v1256 = vpop.permute.xlu0 %1255
      %1259 = vset.pattern.permute.xlu0 0
      %1260 = vperm.xlu0 %1259, %v1246
      %v1261 = vpop.permute.xlu0 %1260
      %1264 = vset.pattern.permute.xlu0 0
      %1265 = vperm.xlu0 %1264, %v1247
      %v1266 = vpop.permute.xlu0 %1265
      %v1272 = vunpack.c.l.b16 %v1236
      %v1273 = vunpack.c.l.b16 %v1237
      %v1274 = vunpack.c.l.b16 %v1238
      %v1275 = vunpack.c.l.b16 %v1239
      %v1276 = vpack.c.b16 %v1273, %v1272
      %v1277 = vpack.c.b16 %v1275, %v1274
      %vm1278 = vcmask 261120
      %v1280 = vsel %vm1278, %v1276, 0
      %v1283 = vsel %vm1278, %v1277, 0
      %1285 = vmatprep.subr.bf16.mxu0 %v1241
      %1286 = vmatpush1.bf16.msra.mxu0 %v1240
      %1287 = vmatprep.subr.bf16.mxu0 %v1243
      %1288 = vmatpush1.bf16.msra.mxu0 %v1242
      %1289 = vmatprep.subr.bf16.mxu0 0
      %1290 = vmatpush1.bf16.msra.mxu0 0
      %1291 = vmatprep.subr.bf16.mxu0 0
      %1292 = vmatpush1.bf16.msra.mxu0 0
      %1293 = vmatprep.subr.bf16.mxu0 0
      %1294 = vmatpush1.bf16.msra.mxu0 0
      %1295 = vmatprep.subr.bf16.mxu0 0
      %1296 = vmatpush1.bf16.msra.mxu0 0
      %1297 = vmatprep.subr.bf16.mxu0 0
      %1298 = vmatpush1.bf16.msra.mxu0 0
      %1299 = vmatprep.subr.bf16.mxu0 0
      %1300 = vmatpush1.bf16.msra.mxu0 0
      %1301 = vmatprep.subr.bf16.mxu0 0
      %1302 = vmatpush1.bf16.msra.mxu0 0
      %1303 = vmatprep.subr.bf16.mxu0 0
      %1304 = vmatpush1.bf16.msra.mxu0 0
      %1305 = vmatprep.subr.bf16.mxu0 0
      %1306 = vmatpush1.bf16.msra.mxu0 0
      %1307 = vmatprep.subr.bf16.mxu0 0
      %1308 = vmatpush1.bf16.msra.mxu0 0
      %1309 = vmatprep.subr.bf16.mxu0 0
      %1310 = vmatpush1.bf16.msra.mxu0 0
      %1311 = vmatprep.subr.bf16.mxu0 0
      %1312 = vmatpush1.bf16.msra.mxu0 0
      %1313 = vmatprep.subr.bf16.mxu0 0
      %1314 = vmatpush1.bf16.msra.mxu0 0
      %1315 = vmatprep.subr.bf16.mxu0 0
      %1316 = vmatpush1.bf16.msra.mxu0 0
      %1317 = vmatprep.mubr.bf16.mxu0 0
      %1318 = vmatmul.mubr.bf16.gmra.mrb[0].mxu0 %v1280
      %v1319 = vpop.f32.mrb[0].mxu0
      %v1320 = vadd.f32 %v1251, %v1319
      %v1321 = vpop.f32.mrb[0].mxu0
      %v1322 = vadd.f32 %v1251, %v1321
      %v1323 = vpop.f32.mrb[0].mxu0
      %v1324 = vadd.f32 %v1256, %v1323
      %v1325 = vpop.f32.mrb[0].mxu0
      %v1326 = vadd.f32 %v1256, %v1325
      %1327 = vmatprep.mubr.bf16.mxu0 0
      %1328 = vmatmul.mubr.bf16.gmra.mrb[0].mxu0 %v1283
      %v1329 = vpop.f32.mrb[0].mxu0
      %v1330 = vadd.f32 %v1261, %v1329
      %v1331 = vpop.f32.mrb[0].mxu0
      %v1332 = vadd.f32 %v1261, %v1331
      %v1333 = vpop.f32.mrb[0].mxu0
      %v1334 = vadd.f32 %v1266, %v1333
      %v1335 = vpop.f32.mrb[0].mxu0
      %v1336 = vadd.f32 %v1266, %v1335
      %1337 = vdwg.mxu0
      %v1338 = vmax.f32 %v1320, 0.0
      %v1339 = vmax.f32 %v1322, 0.0
      %v1340 = vmax.f32 %v1324, 0.0
      %v1341 = vmax.f32 %v1326, 0.0
      %v1342 = vmax.f32 %v1330, 0.0
      %v1343 = vmax.f32 %v1332, 0.0
      %v1344 = vmax.f32 %v1334, 0.0
      %v1345 = vmax.f32 %v1336, 0.0
      %1354 = vrot.lane.b32.xlu0 %v1338, 17
      %v1355 = vpop.permute.xlu0 %1354
      %1356 = vrot.lane.b32.xlu0 %v1339, 17
      %v1357 = vpop.permute.xlu0 %1356
      %1358 = vrot.lane.b32.xlu0 %v1340, 17
      %v1359 = vpop.permute.xlu0 %1358
      %1360 = vrot.lane.b32.xlu0 %v1341, 17
      %v1361 = vpop.permute.xlu0 %1360
      %1362 = vrot.lane.b32.xlu0 %v1342, 17
      %v1363 = vpop.permute.xlu0 %1362
      %1364 = vrot.lane.b32.xlu0 %v1343, 17
      %v1365 = vpop.permute.xlu0 %1364
      %1366 = vrot.lane.b32.xlu0 %v1344, 17
      %v1367 = vpop.permute.xlu0 %1366
      %1368 = vrot.lane.b32.xlu0 %v1345, 17
      %v1369 = vpop.permute.xlu0 %1368
      %vm1370 = vcmask 138240
      %v1371 = vsel %vm1370, %v1355, %v1357
      %v1372 = vsel %vm1370, %v1359, %v1361
      %v1373 = vsel %vm1370, %v1363, %v1365
      %v1374 = vsel %vm1370, %v1367, %v1369
      %v1383 = vsel %vm1370, 0.0, %v1355
      %v1384 = vsel %vm1370, 0.0, %v1359
      %v1385 = vsel %vm1370, 0.0, %v1363
      %v1386 = vsel %vm1370, 0.0, %v1367
      %v1387 = vld [vmem:[%s2] sm:$0x3]
      %v1389 = vlaneseq
      %v1390 = vshrl.u32 %v1389, 7
      %v1391 = vsub.s32 0, %v1390
      %v1392 = vrot.slane %v1387, %v1391
      %v1393 = vlaneseq
      %v1394 = vshrl.u32 %v1393, 7
      %v1395 = vsub.s32 1, %v1394
      %v1396 = vrot.slane %v1387, %v1395
      %v1399 = vmul.f32 %v1383, %v1392
      %v1400 = vmul.f32 %v1371, %v1396
      %v1401 = vmul.f32 %v1384, %v1392
      %v1402 = vmul.f32 %v1372, %v1396
      %v1403 = vmul.f32 %v1385, %v1392
      %v1404 = vmul.f32 %v1373, %v1396
      %v1405 = vmul.f32 %v1386, %v1392
      %v1406 = vmul.f32 %v1374, %v1396
      %v1407 = vpack.c.bf16 %v1401, %v1399
      %v1408 = vpack.c.bf16 %v1402, %v1400
      %v1409 = vpack.c.bf16 %v1405, %v1403
      %v1410 = vpack.c.bf16 %v1406, %v1404
      %1411 = vst [vmem:[#allocation3] sm:$0xff] %v1407
      %1412 = vst [vmem:[#allocation3 + $0x8] sm:$0xff] %v1408
      %1413 = vst [vmem:[#allocation3 + $0x10] sm:$0xff] %v1409
      %1414 = vst [vmem:[#allocation3 + $0x18] sm:$0xff] %v1410
      %1415 = vrot.lane.b32.xlu0 %v1338, 16
      %v1416 = vpop.permute.xlu0 %1415
      %1417 = vrot.lane.b32.xlu0 %v1339, 16
      %v1418 = vpop.permute.xlu0 %1417
      %1419 = vrot.lane.b32.xlu0 %v1340, 16
      %v1420 = vpop.permute.xlu0 %1419
      %1421 = vrot.lane.b32.xlu0 %v1341, 16
      %v1422 = vpop.permute.xlu0 %1421
      %1423 = vrot.lane.b32.xlu0 %v1342, 16
      %v1424 = vpop.permute.xlu0 %1423
      %1425 = vrot.lane.b32.xlu0 %v1343, 16
      %v1426 = vpop.permute.xlu0 %1425
      %1427 = vrot.lane.b32.xlu0 %v1344, 16
      %v1428 = vpop.permute.xlu0 %1427
      %1429 = vrot.lane.b32.xlu0 %v1345, 16
      %v1430 = vpop.permute.xlu0 %1429
      %vm1431 = vcmask 130048
      %v1432 = vsel %vm1431, %v1416, %v1418
      %v1433 = vsel %vm1431, %v1420, %v1422
      %v1434 = vsel %vm1431, %v1424, %v1426
      %v1435 = vsel %vm1431, %v1428, %v1430
      %v1444 = vsel %vm1431, 0.0, %v1416
      %v1445 = vsel %vm1431, 0.0, %v1420
      %v1446 = vsel %vm1431, 0.0, %v1424
      %v1447 = vsel %vm1431, 0.0, %v1428
      %s1448 = scalar_lea.vmem %s2, 2
      %v1449 = vld [vmem:[%s1448] sm:$0x3]
      %v1451 = vlaneseq
      %v1452 = vshrl.u32 %v1451, 7
      %v1453 = vsub.s32 0, %v1452
      %v1454 = vrot.slane %v1449, %v1453
      %v1455 = vlaneseq
      %v1456 = vshrl.u32 %v1455, 7
      %v1457 = vsub.s32 1, %v1456
      %v1458 = vrot.slane %v1449, %v1457
      %v1461 = vmul.f32 %v1444, %v1454
      %v1462 = vmul.f32 %v1432, %v1458
      %v1463 = vmul.f32 %v1445, %v1454
      %v1464 = vmul.f32 %v1433, %v1458
      %v1465 = vmul.f32 %v1446, %v1454
      %v1466 = vmul.f32 %v1434, %v1458
      %v1467 = vmul.f32 %v1447, %v1454
      %v1468 = vmul.f32 %v1435, %v1458
      %v1469 = vpack.c.bf16 %v1463, %v1461
      %v1470 = vpack.c.bf16 %v1464, %v1462
      %v1471 = vpack.c.bf16 %v1467, %v1465
      %v1472 = vpack.c.bf16 %v1468, %v1466
      %1473 = vst [vmem:[#allocation3 + $0x20] sm:$0xff] %v1469
      %1474 = vst [vmem:[#allocation3 + $0x28] sm:$0xff] %v1470
      %1475 = vst [vmem:[#allocation3 + $0x30] sm:$0xff] %v1471
      %1476 = vst [vmem:[#allocation3 + $0x38] sm:$0xff] %v1472
      %1477 = vrot.lane.b32.xlu0 %v1338, 15
      %v1478 = vpop.permute.xlu0 %1477
      %1479 = vrot.lane.b32.xlu0 %v1339, 15
      %v1480 = vpop.permute.xlu0 %1479
      %1481 = vrot.lane.b32.xlu0 %v1340, 15
      %v1482 = vpop.permute.xlu0 %1481
      %1483 = vrot.lane.b32.xlu0 %v1341, 15
      %v1484 = vpop.permute.xlu0 %1483
      %1485 = vrot.lane.b32.xlu0 %v1342, 15
      %v1486 = vpop.permute.xlu0 %1485
      %1487 = vrot.lane.b32.xlu0 %v1343, 15
      %v1488 = vpop.permute.xlu0 %1487
      %1489 = vrot.lane.b32.xlu0 %v1344, 15
      %v1490 = vpop.permute.xlu0 %1489
      %1491 = vrot.lane.b32.xlu0 %v1345, 15
      %v1492 = vpop.permute.xlu0 %1491
      %vm1493 = vcmask 121856
      %v1494 = vsel %vm1493, %v1478, %v1480
      %v1495 = vsel %vm1493, %v1482, %v1484
      %v1496 = vsel %vm1493, %v1486, %v1488
      %v1497 = vsel %vm1493, %v1490, %v1492
      %v1506 = vsel %vm1493, 0.0, %v1478
      %v1507 = vsel %vm1493, 0.0, %v1482
      %v1508 = vsel %vm1493, 0.0, %v1486
      %v1509 = vsel %vm1493, 0.0, %v1490
      %s1510 = scalar_lea.vmem %s2, 4
      %v1511 = vld [vmem:[%s1510] sm:$0x3]
      %v1513 = vlaneseq
      %v1514 = vshrl.u32 %v1513, 7
      %v1515 = vsub.s32 0, %v1514
      %v1516 = vrot.slane %v1511, %v1515
      %v1517 = vlaneseq
      %v1518 = vshrl.u32 %v1517, 7
      %v1519 = vsub.s32 1, %v1518
      %v1520 = vrot.slane %v1511, %v1519
      %v1523 = vmul.f32 %v1506, %v1516
      %v1524 = vmul.f32 %v1494, %v1520
      %v1525 = vmul.f32 %v1507, %v1516
      %v1526 = vmul.f32 %v1495, %v1520
      %v1527 = vmul.f32 %v1508, %v1516
      %v1528 = vmul.f32 %v1496, %v1520
      %v1529 = vmul.f32 %v1509, %v1516
      %v1530 = vmul.f32 %v1497, %v1520
      %v1531 = vpack.c.bf16 %v1525, %v1523
      %v1532 = vpack.c.bf16 %v1526, %v1524
      %v1533 = vpack.c.bf16 %v1529, %v1527
      %v1534 = vpack.c.bf16 %v1530, %v1528
      %1535 = vst [vmem:[#allocation3 + $0x40] sm:$0xff] %v1531
      %1536 = vst [vmem:[#allocation3 + $0x48] sm:$0xff] %v1532
      %1537 = vst [vmem:[#allocation3 + $0x50] sm:$0xff] %v1533
      %1538 = vst [vmem:[#allocation3 + $0x58] sm:$0xff] %v1534
      %1539 = vrot.lane.b32.xlu0 %v1338, 1
      %v1540 = vpop.permute.xlu0 %1539
      %1541 = vrot.lane.b32.xlu0 %v1339, 1
      %v1542 = vpop.permute.xlu0 %1541
      %1543 = vrot.lane.b32.xlu0 %v1340, 1
      %v1544 = vpop.permute.xlu0 %1543
      %1545 = vrot.lane.b32.xlu0 %v1341, 1
      %v1546 = vpop.permute.xlu0 %1545
      %1547 = vrot.lane.b32.xlu0 %v1342, 1
      %v1548 = vpop.permute.xlu0 %1547
      %1549 = vrot.lane.b32.xlu0 %v1343, 1
      %v1550 = vpop.permute.xlu0 %1549
      %1551 = vrot.lane.b32.xlu0 %v1344, 1
      %v1552 = vpop.permute.xlu0 %1551
      %1553 = vrot.lane.b32.xlu0 %v1345, 1
      %v1554 = vpop.permute.xlu0 %1553
      %vm1555 = vcmask 7168
      %v1556 = vsel %vm1555, %v1540, %v1542
      %v1557 = vsel %vm1555, %v1544, %v1546
      %v1558 = vsel %vm1555, %v1548, %v1550
      %v1559 = vsel %vm1555, %v1552, %v1554
      %v1568 = vsel %vm1555, 0.0, %v1540
      %v1569 = vsel %vm1555, 0.0, %v1544
      %v1570 = vsel %vm1555, 0.0, %v1548
      %v1571 = vsel %vm1555, 0.0, %v1552
      %s1572 = scalar_lea.vmem %s2, 6
      %v1573 = vld [vmem:[%s1572] sm:$0x3]
      %v1575 = vlaneseq
      %v1576 = vshrl.u32 %v1575, 7
      %v1577 = vsub.s32 0, %v1576
      %v1578 = vrot.slane %v1573, %v1577
      %v1579 = vlaneseq
      %v1580 = vshrl.u32 %v1579, 7
      %v1581 = vsub.s32 1, %v1580
      %v1582 = vrot.slane %v1573, %v1581
      %v1585 = vmul.f32 %v1568, %v1578
      %v1586 = vmul.f32 %v1556, %v1582
      %v1587 = vmul.f32 %v1569, %v1578
      %v1588 = vmul.f32 %v1557, %v1582
      %v1589 = vmul.f32 %v1570, %v1578
      %v1590 = vmul.f32 %v1558, %v1582
      %v1591 = vmul.f32 %v1571, %v1578
      %v1592 = vmul.f32 %v1559, %v1582
      %v1593 = vpack.c.bf16 %v1587, %v1585
      %v1594 = vpack.c.bf16 %v1588, %v1586
      %v1595 = vpack.c.bf16 %v1591, %v1589
      %v1596 = vpack.c.bf16 %v1592, %v1590
      %1597 = vst [vmem:[#allocation3 + $0x60] sm:$0xff] %v1593
      %1598 = vst [vmem:[#allocation3 + $0x68] sm:$0xff] %v1594
      %1599 = vst [vmem:[#allocation3 + $0x70] sm:$0xff] %v1595
      %1600 = vst [vmem:[#allocation3 + $0x78] sm:$0xff] %v1596
      %v1601 = vpack.c.bf16 %v1340, %v1338
      %v1602 = vpack.c.bf16 %v1341, %v1339
      %v1603 = vpack.c.bf16 %v1344, %v1342
      %v1604 = vpack.c.bf16 %v1345, %v1343
      %1605 = vst [vmem:[#allocation3 + $0x80] sm:$0xff] %v1601
      %1606 = vst [vmem:[#allocation3 + $0x88] sm:$0xff] %v1602
      %1607 = vst [vmem:[#allocation3 + $0x90] sm:$0xff] %v1603
      %1608 = vst [vmem:[#allocation3 + $0x98] sm:$0xff] %v1604
      %1609 = vrot.lane.b32.xlu0 %v1338, 127
      %v1610 = vpop.permute.xlu0 %1609
      %1611 = vrot.lane.b32.xlu0 %v1339, 127
      %v1612 = vpop.permute.xlu0 %1611
      %1613 = vrot.lane.b32.xlu0 %v1340, 127
      %v1614 = vpop.permute.xlu0 %1613
      %1615 = vrot.lane.b32.xlu0 %v1341, 127
      %v1616 = vpop.permute.xlu0 %1615
      %1617 = vrot.lane.b32.xlu0 %v1342, 127
      %v1618 = vpop.permute.xlu0 %1617
      %1619 = vrot.lane.b32.xlu0 %v1343, 127
      %v1620 = vpop.permute.xlu0 %1619
      %1621 = vrot.lane.b32.xlu0 %v1344, 127
      %v1622 = vpop.permute.xlu0 %1621
      %1623 = vrot.lane.b32.xlu0 %v1345, 127
      %v1624 = vpop.permute.xlu0 %1623
      %vm1625 = vcmask 1039360
      %v1626 = vsel %vm1625, %v1610, %v1612
      %v1627 = vsel %vm1625, %v1614, %v1616
      %v1628 = vsel %vm1625, %v1618, %v1620
      %v1629 = vsel %vm1625, %v1622, %v1624
      %v1638 = vsel %vm1625, %v1612, 0.0
      %v1639 = vsel %vm1625, %v1616, 0.0
      %v1640 = vsel %vm1625, %v1620, 0.0
      %v1641 = vsel %vm1625, %v1624, 0.0
      %s1642 = scalar_lea.vmem %s2, 10
      %v1643 = vld [vmem:[%s1642] sm:$0x3]
      %v1645 = vlaneseq
      %v1646 = vshrl.u32 %v1645, 7
      %v1647 = vsub.s32 0, %v1646
      %v1648 = vrot.slane %v1643, %v1647
      %v1649 = vlaneseq
      %v1650 = vshrl.u32 %v1649, 7
      %v1651 = vsub.s32 1, %v1650
      %v1652 = vrot.slane %v1643, %v1651
      %v1655 = vmul.f32 %v1626, %v1648
      %v1656 = vmul.f32 %v1638, %v1652
      %v1657 = vmul.f32 %v1627, %v1648
      %v1658 = vmul.f32 %v1639, %v1652
      %v1659 = vmul.f32 %v1628, %v1648
      %v1660 = vmul.f32 %v1640, %v1652
      %v1661 = vmul.f32 %v1629, %v1648
      %v1662 = vmul.f32 %v1641, %v1652
      %v1663 = vpack.c.bf16 %v1657, %v1655
      %v1664 = vpack.c.bf16 %v1658, %v1656
      %v1665 = vpack.c.bf16 %v1661, %v1659
      %v1666 = vpack.c.bf16 %v1662, %v1660
      %1667 = vst [vmem:[#allocation3 + $0xa0] sm:$0xff] %v1663
      %1668 = vst [vmem:[#allocation3 + $0xa8] sm:$0xff] %v1664
      %1669 = vst [vmem:[#allocation3 + $0xb0] sm:$0xff] %v1665
      %1670 = vst [vmem:[#allocation3 + $0xb8] sm:$0xff] %v1666
      %1671 = vrot.lane.b32.xlu0 %v1338, 113
      %v1672 = vpop.permute.xlu0 %1671
      %1673 = vrot.lane.b32.xlu0 %v1339, 113
      %v1674 = vpop.permute.xlu0 %1673
      %1675 = vrot.lane.b32.xlu0 %v1340, 113
      %v1676 = vpop.permute.xlu0 %1675
      %1677 = vrot.lane.b32.xlu0 %v1341, 113
      %v1678 = vpop.permute.xlu0 %1677
      %1679 = vrot.lane.b32.xlu0 %v1342, 113
      %v1680 = vpop.permute.xlu0 %1679
      %1681 = vrot.lane.b32.xlu0 %v1343, 113
      %v1682 = vpop.permute.xlu0 %1681
      %1683 = vrot.lane.b32.xlu0 %v1344, 113
      %v1684 = vpop.permute.xlu0 %1683
      %1685 = vrot.lane.b32.xlu0 %v1345, 113
      %v1686 = vpop.permute.xlu0 %1685
      %vm1687 = vcmask 924672
      %v1688 = vsel %vm1687, %v1672, %v1674
      %v1689 = vsel %vm1687, %v1676, %v1678
      %v1690 = vsel %vm1687, %v1680, %v1682
      %v1691 = vsel %vm1687, %v1684, %v1686
      %v1700 = vsel %vm1687, %v1674, 0.0
      %v1701 = vsel %vm1687, %v1678, 0.0
      %v1702 = vsel %vm1687, %v1682, 0.0
      %v1703 = vsel %vm1687, %v1686, 0.0
      %s1704 = scalar_lea.vmem %s2, 12
      %v1705 = vld [vmem:[%s1704] sm:$0x3]
      %v1707 = vlaneseq
      %v1708 = vshrl.u32 %v1707, 7
      %v1709 = vsub.s32 0, %v1708
      %v1710 = vrot.slane %v1705, %v1709
      %v1711 = vlaneseq
      %v1712 = vshrl.u32 %v1711, 7
      %v1713 = vsub.s32 1, %v1712
      %v1714 = vrot.slane %v1705, %v1713
      %v1717 = vmul.f32 %v1688, %v1710
      %v1718 = vmul.f32 %v1700, %v1714
      %v1719 = vmul.f32 %v1689, %v1710
      %v1720 = vmul.f32 %v1701, %v1714
      %v1721 = vmul.f32 %v1690, %v1710
      %v1722 = vmul.f32 %v1702, %v1714
      %v1723 = vmul.f32 %v1691, %v1710
      %v1724 = vmul.f32 %v1703, %v1714
      %v1725 = vpack.c.bf16 %v1719, %v1717
      %v1726 = vpack.c.bf16 %v1720, %v1718
      %v1727 = vpack.c.bf16 %v1723, %v1721
      %v1728 = vpack.c.bf16 %v1724, %v1722
      %1729 = vst [vmem:[#allocation3 + $0xc0] sm:$0xff] %v1725
      %1730 = vst [vmem:[#allocation3 + $0xc8] sm:$0xff] %v1726
      %1731 = vst [vmem:[#allocation3 + $0xd0] sm:$0xff] %v1727
      %1732 = vst [vmem:[#allocation3 + $0xd8] sm:$0xff] %v1728
      %1733 = vrot.lane.b32.xlu0 %v1338, 112
      %v1734 = vpop.permute.xlu0 %1733
      %1735 = vrot.lane.b32.xlu0 %v1339, 112
      %v1736 = vpop.permute.xlu0 %1735
      %1737 = vrot.lane.b32.xlu0 %v1340, 112
      %v1738 = vpop.permute.xlu0 %1737
      %1739 = vrot.lane.b32.xlu0 %v1341, 112
      %v1740 = vpop.permute.xlu0 %1739
      %1741 = vrot.lane.b32.xlu0 %v1342, 112
      %v1742 = vpop.permute.xlu0 %1741
      %1743 = vrot.lane.b32.xlu0 %v1343, 112
      %v1744 = vpop.permute.xlu0 %1743
      %1745 = vrot.lane.b32.xlu0 %v1344, 112
      %v1746 = vpop.permute.xlu0 %1745
      %1747 = vrot.lane.b32.xlu0 %v1345, 112
      %v1748 = vpop.permute.xlu0 %1747
      %vm1749 = vcmask 916480
      %v1750 = vsel %vm1749, %v1734, %v1736
      %v1751 = vsel %vm1749, %v1738, %v1740
      %v1752 = vsel %vm1749, %v1742, %v1744
      %v1753 = vsel %vm1749, %v1746, %v1748
      %v1762 = vsel %vm1749, %v1736, 0.0
      %v1763 = vsel %vm1749, %v1740, 0.0
      %v1764 = vsel %vm1749, %v1744, 0.0
      %v1765 = vsel %vm1749, %v1748, 0.0
      %s1766 = scalar_lea.vmem %s2, 14
      %v1767 = vld [vmem:[%s1766] sm:$0x3]
      %v1769 = vlaneseq
      %v1770 = vshrl.u32 %v1769, 7
      %v1771 = vsub.s32 0, %v1770
      %v1772 = vrot.slane %v1767, %v1771
      %v1773 = vlaneseq
      %v1774 = vshrl.u32 %v1773, 7
      %v1775 = vsub.s32 1, %v1774
      %v1776 = vrot.slane %v1767, %v1775
      %v1779 = vmul.f32 %v1750, %v1772
      %v1780 = vmul.f32 %v1762, %v1776
      %v1781 = vmul.f32 %v1751, %v1772
      %v1782 = vmul.f32 %v1763, %v1776
      %v1783 = vmul.f32 %v1752, %v1772
      %v1784 = vmul.f32 %v1764, %v1776
      %v1785 = vmul.f32 %v1753, %v1772
      %v1786 = vmul.f32 %v1765, %v1776
      %v1787 = vpack.c.bf16 %v1781, %v1779
      %v1788 = vpack.c.bf16 %v1782, %v1780
      %v1789 = vpack.c.bf16 %v1785, %v1783
      %v1790 = vpack.c.bf16 %v1786, %v1784
      %1791 = vst [vmem:[#allocation3 + $0xe0] sm:$0xff] %v1787
      %1792 = vst [vmem:[#allocation3 + $0xe8] sm:$0xff] %v1788
      %1793 = vst [vmem:[#allocation3 + $0xf0] sm:$0xff] %v1789
      %1794 = vst [vmem:[#allocation3 + $0xf8] sm:$0xff] %v1790
      %1795 = vrot.lane.b32.xlu0 %v1338, 111
      %v1796 = vpop.permute.xlu0 %1795
      %1797 = vrot.lane.b32.xlu0 %v1339, 111
      %v1798 = vpop.permute.xlu0 %1797
      %1799 = vrot.lane.b32.xlu0 %v1340, 111
      %v1800 = vpop.permute.xlu0 %1799
      %1801 = vrot.lane.b32.xlu0 %v1341, 111
      %v1802 = vpop.permute.xlu0 %1801
      %1803 = vrot.lane.b32.xlu0 %v1342, 111
      %v1804 = vpop.permute.xlu0 %1803
      %1805 = vrot.lane.b32.xlu0 %v1343, 111
      %v1806 = vpop.permute.xlu0 %1805
      %1807 = vrot.lane.b32.xlu0 %v1344, 111
      %v1808 = vpop.permute.xlu0 %1807
      %1809 = vrot.lane.b32.xlu0 %v1345, 111
      %v1810 = vpop.permute.xlu0 %1809
      %vm1811 = vcmask 908288
      %v1812 = vsel %vm1811, %v1796, %v1798
      %v1813 = vsel %vm1811, %v1800, %v1802
      %v1814 = vsel %vm1811, %v1804, %v1806
      %v1815 = vsel %vm1811, %v1808, %v1810
      %v1824 = vsel %vm1811, %v1798, 0.0
      %v1825 = vsel %vm1811, %v1802, 0.0
      %v1826 = vsel %vm1811, %v1806, 0.0
      %v1827 = vsel %vm1811, %v1810, 0.0
      %s1828 = scalar_lea.vmem %s2, 16
      %v1829 = vld [vmem:[%s1828] sm:$0x3]
      %v1831 = vlaneseq
      %v1832 = vshrl.u32 %v1831, 7
      %v1833 = vsub.s32 0, %v1832
      %v1834 = vrot.slane %v1829, %v1833
      %v1835 = vlaneseq
      %v1836 = vshrl.u32 %v1835, 7
      %v1837 = vsub.s32 1, %v1836
      %v1838 = vrot.slane %v1829, %v1837
      %v1841 = vmul.f32 %v1812, %v1834
      %v1842 = vmul.f32 %v1824, %v1838
      %v1843 = vmul.f32 %v1813, %v1834
      %v1844 = vmul.f32 %v1825, %v1838
      %v1845 = vmul.f32 %v1814, %v1834
      %v1846 = vmul.f32 %v1826, %v1838
      %v1847 = vmul.f32 %v1815, %v1834
      %v1848 = vmul.f32 %v1827, %v1838
      %v1849 = vpack.c.bf16 %v1843, %v1841
      %v1850 = vpack.c.bf16 %v1844, %v1842
      %v1851 = vpack.c.bf16 %v1847, %v1845
      %v1852 = vpack.c.bf16 %v1848, %v1846
      %1853 = vst [vmem:[#allocation3 + $0x100] sm:$0xff] %v1849
      %1854 = vst [vmem:[#allocation3 + $0x108] sm:$0xff] %v1850
      %1855 = vst [vmem:[#allocation3 + $0x110] sm:$0xff] %v1851
      %1856 = vst [vmem:[#allocation3 + $0x118] sm:$0xff] %v1852
      %v1857 = vld [vmem:[%s965] sm:$0xff]
      %v1858 = vld [vmem:[%s965 + $0x8] sm:$0xf]
      %v1859 = vld [vmem:[#allocation3] sm:$0xff]
      %v1860 = vld [vmem:[#allocation3 + $0x8] sm:$0xff]
      %v1861 = vld [vmem:[#allocation3 + $0x10] sm:$0xff]
      %v1862 = vld [vmem:[#allocation3 + $0x18] sm:$0xff]
      %v1863 = vld [vmem:[#allocation3 + $0x20] sm:$0xff]
      %v1864 = vld [vmem:[#allocation3 + $0x28] sm:$0xff]
      %v1865 = vld [vmem:[#allocation3 + $0x30] sm:$0xff]
      %v1866 = vld [vmem:[#allocation3 + $0x38] sm:$0xff]
      %v1867 = vld [vmem:[#allocation3 + $0x40] sm:$0xff]
      %v1868 = vld [vmem:[#allocation3 + $0x48] sm:$0xff]
      %v1869 = vld [vmem:[#allocation3 + $0x50] sm:$0xff]
      %v1870 = vld [vmem:[#allocation3 + $0x58] sm:$0xff]
      %v1871 = vld [vmem:[#allocation3 + $0x60] sm:$0xff]
      %v1872 = vld [vmem:[#allocation3 + $0x68] sm:$0xff]
      %v1873 = vld [vmem:[#allocation3 + $0x70] sm:$0xff]
      %v1874 = vld [vmem:[#allocation3 + $0x78] sm:$0xff]
      %v1875 = vld [vmem:[#allocation3 + $0x80] sm:$0xff]
      %v1876 = vld [vmem:[#allocation3 + $0x88] sm:$0xff]
      %v1877 = vld [vmem:[#allocation3 + $0x90] sm:$0xff]
      %v1878 = vld [vmem:[#allocation3 + $0x98] sm:$0xff]
      %v1879 = vld [vmem:[#allocation3 + $0xa0] sm:$0xff]
      %v1880 = vld [vmem:[#allocation3 + $0xa8] sm:$0xff]
      %v1881 = vld [vmem:[#allocation3 + $0xb0] sm:$0xff]
      %v1882 = vld [vmem:[#allocation3 + $0xb8] sm:$0xff]
      %v1883 = vld [vmem:[#allocation3 + $0xc0] sm:$0xff]
      %v1884 = vld [vmem:[#allocation3 + $0xc8] sm:$0xff]
      %v1885 = vld [vmem:[#allocation3 + $0xd0] sm:$0xff]
      %v1886 = vld [vmem:[#allocation3 + $0xd8] sm:$0xff]
      %v1887 = vld [vmem:[#allocation3 + $0xe0] sm:$0xff]
      %v1888 = vld [vmem:[#allocation3 + $0xe8] sm:$0xff]
      %v1889 = vld [vmem:[#allocation3 + $0xf0] sm:$0xff]
      %v1890 = vld [vmem:[#allocation3 + $0xf8] sm:$0xff]
      %v1891 = vld [vmem:[#allocation3 + $0x100] sm:$0xff]
      %v1892 = vld [vmem:[#allocation3 + $0x108] sm:$0xff]
      %v1893 = vld [vmem:[#allocation3 + $0x110] sm:$0xff]
      %v1894 = vld [vmem:[#allocation3 + $0x118] sm:$0xff]
      %v1895 = vld [vmem:[%s969] sm:$0xff]
      %1897 = vset.pattern.permute.xlu0 0
      %1898 = vperm.xlu0 %1897, %v1895
      %v1899 = vpop.permute.xlu0 %1898
      %v1903 = vunpack.c.l.b16 %v1857
      %v1904 = vunpack.c.h.b16 %v1857
      %v1905 = vunpack.c.l.b16 %v1858
      %v1906 = vpack.c.b16 %v1903, %v1903
      %v1907 = vpack.c.b16 %v1904, %v1904
      %v1908 = vpack.c.b16 %v1905, %v1905
      %v1912 = vsel %vm1278, %v1908, 0
      %1914 = vmatprep.subr.bf16.mxu0 %v1860
      %1915 = vmatpush1.bf16.msra.mxu0 %v1859
      %1916 = vmatprep.subr.bf16.mxu0 %v1862
      %1917 = vmatpush1.bf16.msra.mxu0 %v1861
      %1918 = vmatprep.subr.bf16.mxu0 %v1864
      %1919 = vmatpush1.bf16.msra.mxu0 %v1863
      %1920 = vmatprep.subr.bf16.mxu0 %v1866
      %1921 = vmatpush1.bf16.msra.mxu0 %v1865
      %1922 = vmatprep.subr.bf16.mxu0 %v1868
      %1923 = vmatpush1.bf16.msra.mxu0 %v1867
      %1924 = vmatprep.subr.bf16.mxu0 %v1870
      %1925 = vmatpush1.bf16.msra.mxu0 %v1869
      %1926 = vmatprep.subr.bf16.mxu0 %v1872
      %1927 = vmatpush1.bf16.msra.mxu0 %v1871
      %1928 = vmatprep.subr.bf16.mxu0 %v1874
      %1929 = vmatpush1.bf16.msra.mxu0 %v1873
      %1930 = vmatprep.subr.bf16.mxu0 %v1876
      %1931 = vmatpush1.bf16.msra.mxu0 %v1875
      %1932 = vmatprep.subr.bf16.mxu0 %v1878
      %1933 = vmatpush1.bf16.msra.mxu0 %v1877
      %1934 = vmatprep.subr.bf16.mxu0 %v1880
      %1935 = vmatpush1.bf16.msra.mxu0 %v1879
      %1936 = vmatprep.subr.bf16.mxu0 %v1882
      %1937 = vmatpush1.bf16.msra.mxu0 %v1881
      %1938 = vmatprep.subr.bf16.mxu0 %v1884
      %1939 = vmatpush1.bf16.msra.mxu0 %v1883
      %1940 = vmatprep.subr.bf16.mxu0 %v1886
      %1941 = vmatpush1.bf16.msra.mxu0 %v1885
      %1942 = vmatprep.subr.bf16.mxu0 %v1888
      %1943 = vmatpush1.bf16.msra.mxu0 %v1887
      %1944 = vmatprep.subr.bf16.mxu0 %v1890
      %1945 = vmatpush1.bf16.msra.mxu0 %v1889
      %1946 = vmatprep.mubr.bf16.mxu0 %v1907
      %1947 = vmatmul.mubr.bf16.gmra.mrb[0].mxu0 %v1906
      %v1948 = vpop.f32.mrb[0].mxu0
      %v1949 = vadd.f32 %v1899, %v1948
      %v1950 = vpop.f32.mrb[0].mxu0
      %v1951 = vadd.f32 %v1899, %v1950
      %v1952 = vpop.f32.mrb[0].mxu0
      %v1953 = vpop.f32.mrb[0].mxu0
      %1954 = vdwg.mxu0
      %1955 = vmatprep.subr.bf16.mxu0 %v1892
      %1956 = vmatpush1.bf16.msra.mxu0 %v1891
      %1957 = vmatprep.subr.bf16.mxu0 %v1894
      %1958 = vmatpush1.bf16.msra.mxu0 %v1893
      %1959 = vmatprep.subr.bf16.mxu0 0
      %1960 = vmatpush1.bf16.msra.mxu0 0
      %1961 = vmatprep.subr.bf16.mxu0 0
      %1962 = vmatpush1.bf16.msra.mxu0 0
      %1963 = vmatprep.subr.bf16.mxu0 0
      %1964 = vmatpush1.bf16.msra.mxu0 0
      %1965 = vmatprep.subr.bf16.mxu0 0
      %1966 = vmatpush1.bf16.msra.mxu0 0
      %1967 = vmatprep.subr.bf16.mxu0 0
      %1968 = vmatpush1.bf16.msra.mxu0 0
      %1969 = vmatprep.subr.bf16.mxu0 0
      %1970 = vmatpush1.bf16.msra.mxu0 0
      %1971 = vmatprep.subr.bf16.mxu0 0
      %1972 = vmatpush1.bf16.msra.mxu0 0
      %1973 = vmatprep.subr.bf16.mxu0 0
      %1974 = vmatpush1.bf16.msra.mxu0 0
      %1975 = vmatprep.subr.bf16.mxu0 0
      %1976 = vmatpush1.bf16.msra.mxu0 0
      %1977 = vmatprep.subr.bf16.mxu0 0
      %1978 = vmatpush1.bf16.msra.mxu0 0
      %1979 = vmatprep.subr.bf16.mxu0 0
      %1980 = vmatpush1.bf16.msra.mxu0 0
      %1981 = vmatprep.subr.bf16.mxu0 0
      %1982 = vmatpush1.bf16.msra.mxu0 0
      %1983 = vmatprep.subr.bf16.mxu0 0
      %1984 = vmatpush1.bf16.msra.mxu0 0
      %1985 = vmatprep.subr.bf16.mxu0 0
      %1986 = vmatpush1.bf16.msra.mxu0 0
      %1987 = vmatprep.mubr.bf16.mxu0 0
      %1988 = vmatmul.mubr.bf16.gmra.mrb[0].mxu0 %v1912
      %v1989 = vpop.f32.mrb[0].mxu0
      %v1990 = vadd.f32 %v1949, %v1989
      %v1991 = vpop.f32.mrb[0].mxu0
      %v1992 = vadd.f32 %v1951, %v1991
      %v1993 = vpop.f32.mrb[0].mxu0
      %v1994 = vpop.f32.mrb[0].mxu0
      %1995 = vdwg.mxu0
      %v1996 = vld [vmem:[%s973] sm:$0xf]
      %v1997 = vtanh.pop %v1990
      %v1998 = vtanh.pop %v1992
      %2000 = vset.pattern.permute.xlu0 0
      %2001 = vperm.xlu0 %2000, %v1996
      %v2002 = vpop.permute.xlu0 %2001
      %v2004 = vmul.f32 %v2002, %v1997
      %v2005 = vmul.f32 %v2002, %v1998
      %v2008 = vrot.slane %v1990, 4
      %v2009 = vrot.slane %v1992, 4
      %v2012 = vadd.f32 %v1093, %v2008
      %v2013 = vadd.f32 %v1095, %v2009
      %v2014 = vmul.f32 %v2004, 1.442695
      %v2015 = vpow.pop %v2014
      %v2016 = vmul.f32 %v2005, 1.442695
      %v2017 = vpow.pop %v2016
      %v2018 = vmul.f32 %v2012, %v2015
      %v2019 = vmul.f32 %v2013, %v2017
      %vm2020 = vcmask 1043456
      %v2021 = vsel %vm2020, %v2004, 0.0
      %v2022 = vsel %vm2020, %v2005, 0.0
      %v2023 = vadd.f32 %v2021, %v2022
      %2024 = vadd.xlane.f32.xlu0 %v2023
      %v2025 = vpop.xlane.xlu0 %2024
      %v2026 = vsel %vm2020, %v2025, 0.0
      %v2027 = vrot.slane %v2026, 4
      %v2028 = vadd.f32 %v2026, %v2027
      %v2029 = vrot.slane %v2028, 2
      %v2030 = vadd.f32 %v2028, %v2029
      %v2031 = vrot.slane %v2030, 1
      %v2032 = vadd.f32 %v2030, %v2031
      %v2035 = vrot.slane %v2018, 2
      %v2036 = vrot.slane %v2019, 2
      %2037 = vrot.lane.b32.xlu0 %v2035, 17
      %v2038 = vpop.permute.xlu0 %2037
      %2039 = vrot.lane.b32.xlu0 %v2036, 17
      %v2040 = vpop.permute.xlu0 %2039
      %v2041 = vsel %vm1370, %v2038, %v2040
      %v2044 = vsel %vm1370, 0.0, %v2038
      %v2045 = vld [vmem:[%s2] sm:$0x3]
      %v2047 = vlaneseq
      %v2048 = vshrl.u32 %v2047, 7
      %v2049 = vsub.s32 0, %v2048
      %v2050 = vrot.slane %v2045, %v2049
      %v2051 = vlaneseq
      %v2052 = vshrl.u32 %v2051, 7
      %v2053 = vsub.s32 1, %v2052
      %v2054 = vrot.slane %v2045, %v2053
      %v2057 = vmul.f32 %v2044, %v2050
      %v2058 = vmul.f32 %v2041, %v2054
      %v2059 = vpack.c.bf16 %v2057, %v2057
      %v2060 = vpack.c.bf16 %v2058, %v2058
      %v2063 = vunpack.c.l.b16 %v2059
      %v2064 = vunpack.c.l.b16 %v2060
      %v2065 = vpack.c.b16 %v2064, %v2063
      %2067 = vst [vmem:[#allocation4] sm:$0x11] %v2065
      %2068 = vrot.lane.b32.xlu0 %v2035, 16
      %v2069 = vpop.permute.xlu0 %2068
      %2070 = vrot.lane.b32.xlu0 %v2036, 16
      %v2071 = vpop.permute.xlu0 %2070
      %v2072 = vsel %vm1431, %v2069, %v2071
      %v2075 = vsel %vm1431, 0.0, %v2069
      %v2076 = vld [vmem:[%s1448] sm:$0x3]
      %v2078 = vlaneseq
      %v2079 = vshrl.u32 %v2078, 7
      %v2080 = vsub.s32 0, %v2079
      %v2081 = vrot.slane %v2076, %v2080
      %v2082 = vlaneseq
      %v2083 = vshrl.u32 %v2082, 7
      %v2084 = vsub.s32 1, %v2083
      %v2085 = vrot.slane %v2076, %v2084
      %v2088 = vmul.f32 %v2075, %v2081
      %v2089 = vmul.f32 %v2072, %v2085
      %v2090 = vpack.c.bf16 %v2088, %v2088
      %v2091 = vpack.c.bf16 %v2089, %v2089
      %v2094 = vunpack.c.l.b16 %v2090
      %v2095 = vunpack.c.l.b16 %v2091
      %v2096 = vpack.c.b16 %v2095, %v2094
      %v2097 = vrot.slane %v2096, 7
      %2099 = vst [vmem:[#allocation4] sm:$0x22] %v2097
      %2100 = vrot.lane.b32.xlu0 %v2035, 15
      %v2101 = vpop.permute.xlu0 %2100
      %2102 = vrot.lane.b32.xlu0 %v2036, 15
      %v2103 = vpop.permute.xlu0 %2102
      %v2104 = vsel %vm1493, %v2101, %v2103
      %v2107 = vsel %vm1493, 0.0, %v2101
      %v2108 = vld [vmem:[%s1510] sm:$0x3]
      %v2110 = vlaneseq
      %v2111 = vshrl.u32 %v2110, 7
      %v2112 = vsub.s32 0, %v2111
      %v2113 = vrot.slane %v2108, %v2112
      %v2114 = vlaneseq
      %v2115 = vshrl.u32 %v2114, 7
      %v2116 = vsub.s32 1, %v2115
      %v2117 = vrot.slane %v2108, %v2116
      %v2120 = vmul.f32 %v2107, %v2113
      %v2121 = vmul.f32 %v2104, %v2117
      %v2122 = vpack.c.bf16 %v2120, %v2120
      %v2123 = vpack.c.bf16 %v2121, %v2121
      %v2126 = vunpack.c.l.b16 %v2122
      %v2127 = vunpack.c.l.b16 %v2123
      %v2128 = vpack.c.b16 %v2127, %v2126
      %v2129 = vrot.slane %v2128, 6
      %2131 = vst [vmem:[#allocation4] sm:$0x44] %v2129
      %2132 = vrot.lane.b32.xlu0 %v2035, 1
      %v2133 = vpop.permute.xlu0 %2132
      %2134 = vrot.lane.b32.xlu0 %v2036, 1
      %v2135 = vpop.permute.xlu0 %2134
      %v2136 = vsel %vm1555, %v2133, %v2135
      %v2139 = vsel %vm1555, 0.0, %v2133
      %v2140 = vld [vmem:[%s1572] sm:$0x3]
      %v2142 = vlaneseq
      %v2143 = vshrl.u32 %v2142, 7
      %v2144 = vsub.s32 0, %v2143
      %v2145 = vrot.slane %v2140, %v2144
      %v2146 = vlaneseq
      %v2147 = vshrl.u32 %v2146, 7
      %v2148 = vsub.s32 1, %v2147
      %v2149 = vrot.slane %v2140, %v2148
      %v2152 = vmul.f32 %v2139, %v2145
      %v2153 = vmul.f32 %v2136, %v2149
      %v2154 = vpack.c.bf16 %v2152, %v2152
      %v2155 = vpack.c.bf16 %v2153, %v2153
      %v2158 = vunpack.c.l.b16 %v2154
      %v2159 = vunpack.c.l.b16 %v2155
      %v2160 = vpack.c.b16 %v2159, %v2158
      %v2161 = vrot.slane %v2160, 5
      %2163 = vst [vmem:[#allocation4] sm:$0x88] %v2161
      %v2164 = vpack.c.bf16 %v2018, %v2018
      %v2165 = vpack.c.bf16 %v2019, %v2019
      %v2168 = vunpack.c.l.b16 %v2164
      %v2169 = vunpack.c.l.b16 %v2165
      %v2170 = vpack.c.b16 %v2169, %v2168
      %v2171 = vrot.slane %v2170, 5
      %v2172 = vrot.slane %v2171, 4
      %2174 = vst [vmem:[#allocation4 + $0x8] sm:$0x11] %v2172
      %2175 = vrot.lane.b32.xlu0 %v2018, 127
      %v2176 = vpop.permute.xlu0 %2175
      %2177 = vrot.lane.b32.xlu0 %v2019, 127
      %v2178 = vpop.permute.xlu0 %2177
      %v2179 = vsel %vm1625, %v2176, %v2178
      %v2182 = vsel %vm1625, %v2178, 0.0
      %v2183 = vld [vmem:[%s1642] sm:$0x3]
      %v2185 = vlaneseq
      %v2186 = vshrl.u32 %v2185, 7
      %v2187 = vsub.s32 0, %v2186
      %v2188 = vrot.slane %v2183, %v2187
      %v2189 = vlaneseq
      %v2190 = vshrl.u32 %v2189, 7
      %v2191 = vsub.s32 1, %v2190
      %v2192 = vrot.slane %v2183, %v2191
      %v2195 = vmul.f32 %v2179, %v2188
      %v2196 = vmul.f32 %v2182, %v2192
      %v2197 = vpack.c.bf16 %v2195, %v2195
      %v2198 = vpack.c.bf16 %v2196, %v2196
      %v2201 = vunpack.c.l.b16 %v2197
      %v2202 = vunpack.c.l.b16 %v2198
      %v2203 = vpack.c.b16 %v2202, %v2201
      %2205 = vst [vmem:[#allocation4 + $0x8] sm:$0x22] %v2203
      %2206 = vrot.lane.b32.xlu0 %v2018, 113
      %v2207 = vpop.permute.xlu0 %2206
      %2208 = vrot.lane.b32.xlu0 %v2019, 113
      %v2209 = vpop.permute.xlu0 %2208
      %v2210 = vsel %vm1687, %v2207, %v2209
      %v2213 = vsel %vm1687, %v2209, 0.0
      %v2214 = vld [vmem:[%s1704] sm:$0x3]
      %v2216 = vlaneseq
      %v2217 = vshrl.u32 %v2216, 7
      %v2218 = vsub.s32 0, %v2217
      %v2219 = vrot.slane %v2214, %v2218
      %v2220 = vlaneseq
      %v2221 = vshrl.u32 %v2220, 7
      %v2222 = vsub.s32 1, %v2221
      %v2223 = vrot.slane %v2214, %v2222
      %v2226 = vmul.f32 %v2210, %v2219
      %v2227 = vmul.f32 %v2213, %v2223
      %v2228 = vpack.c.bf16 %v2226, %v2226
      %v2229 = vpack.c.bf16 %v2227, %v2227
      %v2232 = vunpack.c.l.b16 %v2228
      %v2233 = vunpack.c.l.b16 %v2229
      %v2234 = vpack.c.b16 %v2233, %v2232
      %v2235 = vrot.slane %v2234, 7
      %2237 = vst [vmem:[#allocation4 + $0x8] sm:$0x44] %v2235
      %2238 = vrot.lane.b32.xlu0 %v2018, 112
      %v2239 = vpop.permute.xlu0 %2238
      %2240 = vrot.lane.b32.xlu0 %v2019, 112
      %v2241 = vpop.permute.xlu0 %2240
      %v2242 = vsel %vm1749, %v2239, %v2241
      %v2245 = vsel %vm1749, %v2241, 0.0
      %v2246 = vld [vmem:[%s1766] sm:$0x3]
      %v2248 = vlaneseq
      %v2249 = vshrl.u32 %v2248, 7
      %v2250 = vsub.s32 0, %v2249
      %v2251 = vrot.slane %v2246, %v2250
      %v2252 = vlaneseq
      %v2253 = vshrl.u32 %v2252, 7
      %v2254 = vsub.s32 1, %v2253
      %v2255 = vrot.slane %v2246, %v2254
      %v2258 = vmul.f32 %v2242, %v2251
      %v2259 = vmul.f32 %v2245, %v2255
      %v2260 = vpack.c.bf16 %v2258, %v2258
      %v2261 = vpack.c.bf16 %v2259, %v2259
      %v2264 = vunpack.c.l.b16 %v2260
      %v2265 = vunpack.c.l.b16 %v2261
      %v2266 = vpack.c.b16 %v2265, %v2264
      %v2267 = vrot.slane %v2266, 6
      %2269 = vst [vmem:[#allocation4 + $0x8] sm:$0x88] %v2267
      %2270 = vrot.lane.b32.xlu0 %v2018, 111
      %v2271 = vpop.permute.xlu0 %2270
      %2272 = vrot.lane.b32.xlu0 %v2019, 111
      %v2273 = vpop.permute.xlu0 %2272
      %v2274 = vsel %vm1811, %v2271, %v2273
      %v2277 = vsel %vm1811, %v2273, 0.0
      %v2278 = vld [vmem:[%s1828] sm:$0x3]
      %v2280 = vlaneseq
      %v2281 = vshrl.u32 %v2280, 7
      %v2282 = vsub.s32 0, %v2281
      %v2283 = vrot.slane %v2278, %v2282
      %v2284 = vlaneseq
      %v2285 = vshrl.u32 %v2284, 7
      %v2286 = vsub.s32 1, %v2285
      %v2287 = vrot.slane %v2278, %v2286
      %v2290 = vmul.f32 %v2274, %v2283
      %v2291 = vmul.f32 %v2277, %v2287
      %v2292 = vpack.c.bf16 %v2290, %v2290
      %v2293 = vpack.c.bf16 %v2291, %v2291
      %v2296 = vunpack.c.l.b16 %v2292
      %v2297 = vunpack.c.l.b16 %v2293
      %v2298 = vpack.c.b16 %v2297, %v2296
      %v2299 = vrot.slane %v2298, 5
      %v2300 = vrot.slane %v2299, 4
      %2302 = vst [vmem:[#allocation4 + $0x10] sm:$0x11] %v2300
      %v2303 = vld [vmem:[%s978] sm:$0xf]
      %v2304 = vld [vmem:[%s978 + $0x4] sm:$0xf]
      %v2305 = vld [vmem:[%s978 + $0x8] sm:$0xf]
      %v2306 = vld [vmem:[%s978 + $0xc] sm:$0xf]
      %v2307 = vld [vmem:[#allocation4] sm:$0xff]
      %v2308 = vld [vmem:[#allocation4 + $0x8] sm:$0xff]
      %v2309 = vld [vmem:[#allocation4 + $0x10] sm:$0x11]
      %v2310 = vld [vmem:[%s983] sm:$0xf]
      %v2311 = vld [vmem:[%s983 + $0x4] sm:$0xf]
      %v2312 = vld [vmem:[%s983 + $0x8] sm:$0xf]
      %v2313 = vld [vmem:[%s983 + $0xc] sm:$0xf]
      %v2318 = vunpack.c.l.b16 %v2310
      %v2319 = vunpack.c.l.b16 %v2311
      %v2320 = vunpack.c.l.b16 %v2312
      %v2321 = vunpack.c.l.b16 %v2313
      %v2322 = vpack.c.b16 %v2319, %v2318
      %v2323 = vpack.c.b16 %v2321, %v2320
      %v2325 = vsel %vm1162, %v2322, 0
      %v2328 = vsel %vm1162, %v2323, 0
      %2330 = vmatprep.subr.bf16.mxu0 %v1153
      %2331 = vmatpush1.bf16.msra.mxu0 %v1152
      %2332 = vmatprep.subr.bf16.mxu0 %v1155
      %2333 = vmatpush1.bf16.msra.mxu0 %v1154
      %2334 = vmatprep.subr.bf16.mxu0 %v1173
      %2335 = vmatpush1.bf16.msra.mxu0 %v1170
      %2336 = vmatprep.subr.bf16.mxu0 0
      %2337 = vmatpush1.bf16.msra.mxu0 0
      %2338 = vmatprep.subr.bf16.mxu0 0
      %2339 = vmatpush1.bf16.msra.mxu0 0
      %2340 = vmatprep.subr.bf16.mxu0 0
      %2341 = vmatpush1.bf16.msra.mxu0 0
      %2342 = vmatprep.subr.bf16.mxu0 0
      %2343 = vmatpush1.bf16.msra.mxu0 0
      %2344 = vmatprep.subr.bf16.mxu0 0
      %2345 = vmatpush1.bf16.msra.mxu0 0
      %2346 = vmatprep.subr.bf16.mxu0 0
      %2347 = vmatpush1.bf16.msra.mxu0 0
      %2348 = vmatprep.subr.bf16.mxu0 0
      %2349 = vmatpush1.bf16.msra.mxu0 0
      %2350 = vmatprep.subr.bf16.mxu0 0
      %2351 = vmatpush1.bf16.msra.mxu0 0
      %2352 = vmatprep.subr.bf16.mxu0 0
      %2353 = vmatpush1.bf16.msra.mxu0 0
      %2354 = vmatprep.subr.bf16.mxu0 0
      %2355 = vmatpush1.bf16.msra.mxu0 0
      %2356 = vmatprep.subr.bf16.mxu0 0
      %2357 = vmatpush1.bf16.msra.mxu0 0
      %2358 = vmatprep.subr.bf16.mxu0 0
      %2359 = vmatpush1.bf16.msra.mxu0 0
      %2360 = vmatprep.subr.bf16.mxu0 0
      %2361 = vmatpush1.bf16.msra.mxu0 0
      %2362 = vmatprep.mubr.bf16.mxu0 0
      %2363 = vmatmul.mubr.bf16.gmra.mrb[0].mxu0 %v2325
      %v2364 = vpop.f32.mrb[0].mxu0
      %v2365 = vadd.f32 0.0, %v2364
      %v2366 = vpop.f32.mrb[0].mxu0
      %v2367 = vadd.f32 0.0, %v2366
      %v2368 = vpop.f32.mrb[0].mxu0
      %v2369 = vadd.f32 0.0, %v2368
      %v2370 = vpop.f32.mrb[0].mxu0
      %v2371 = vadd.f32 0.0, %v2370
      %2372 = vmatprep.mubr.bf16.mxu0 0
      %2373 = vmatmul.mubr.bf16.gmra.mrb[0].mxu0 %v2328
      %v2374 = vpop.f32.mrb[0].mxu0
      %v2375 = vadd.f32 0.0, %v2374
      %v2376 = vpop.f32.mrb[0].mxu0
      %v2377 = vadd.f32 0.0, %v2376
      %v2378 = vpop.f32.mrb[0].mxu0
      %v2379 = vadd.f32 0.0, %v2378
      %v2380 = vpop.f32.mrb[0].mxu0
      %v2381 = vadd.f32 0.0, %v2380
      %2382 = vdwg.mxu0
      %v2387 = vunpack.c.l.b16 %v2303
      %v2388 = vunpack.c.l.b16 %v2304
      %v2389 = vunpack.c.l.b16 %v2305
      %v2390 = vunpack.c.l.b16 %v2306
      %v2391 = vpack.c.b16 %v2388, %v2387
      %v2392 = vpack.c.b16 %v2390, %v2389
      %v2396 = vunpack.c.l.b16 %v2307
      %v2397 = vunpack.c.h.b16 %v2307
      %v2398 = vunpack.c.l.b16 %v2308
      %v2399 = vunpack.c.h.b16 %v2308
      %v2400 = vunpack.c.l.b16 %v2309
      %v2401 = vunpack.c.h.b16 %v2309
      %v2402 = vpack.c.b16 %v2398, %v2396
      %v2403 = vpack.c.b16 %v2399, %v2397
      %v2404 = vpack.c.b16 %v2400, %v2400
      %v2405 = vpack.c.b16 %v2401, %v2401
      %vm2408 = vcmask 146432
      %v2410 = vsel %vm2408, %v2391, 0
      %v2413 = vsel %vm2408, %v2392, 0
      %vm2415 = vcmask 1040384
      %v2417 = vsel %vm2415, %v2404, 0
      %v2420 = vsel %vm2415, %v2405, 0
      %2422 = vmatprep.subr.bf16.mxu0 %v2403
      %2423 = vmatpush1.bf16.msra.mxu0 %v2402
      %2424 = vmatprep.subr.bf16.mxu0 %v2420
      %2425 = vmatpush1.bf16.msra.mxu0 %v2417
      %2426 = vmatprep.subr.bf16.mxu0 0
      %2427 = vmatpush1.bf16.msra.mxu0 0
      %2428 = vmatprep.subr.bf16.mxu0 0
      %2429 = vmatpush1.bf16.msra.mxu0 0
      %2430 = vmatprep.subr.bf16.mxu0 0
      %2431 = vmatpush1.bf16.msra.mxu0 0
      %2432 = vmatprep.subr.bf16.mxu0 0
      %2433 = vmatpush1.bf16.msra.mxu0 0
      %2434 = vmatprep.subr.bf16.mxu0 0
      %2435 = vmatpush1.bf16.msra.mxu0 0
      %2436 = vmatprep.subr.bf16.mxu0 0
      %2437 = vmatpush1.bf16.msra.mxu0 0
      %2438 = vmatprep.subr.bf16.mxu0 0
      %2439 = vmatpush1.bf16.msra.mxu0 0
      %2440 = vmatprep.subr.bf16.mxu0 0
      %2441 = vmatpush1.bf16.msra.mxu0 0
      %2442 = vmatprep.subr.bf16.mxu0 0
      %2443 = vmatpush1.bf16.msra.mxu0 0
      %2444 = vmatprep.subr.bf16.mxu0 0
      %2445 = vmatpush1.bf16.msra.mxu0 0
      %2446 = vmatprep.subr.bf16.mxu0 0
      %2447 = vmatpush1.bf16.msra.mxu0 0
      %2448 = vmatprep.subr.bf16.mxu0 0
      %2449 = vmatpush1.bf16.msra.mxu0 0
      %2450 = vmatprep.subr.bf16.mxu0 0
      %2451 = vmatpush1.bf16.msra.mxu0 0
      %2452 = vmatprep.subr.bf16.mxu0 0
      %2453 = vmatpush1.bf16.msra.mxu0 0
      %2454 = vmatprep.mubr.bf16.mxu0 0
      %2455 = vmatmul.mubr.bf16.gmra.mrb[0].mxu0 %v2410
      %v2456 = vpop.f32.mrb[0].mxu0
      %v2457 = vadd.f32 %v2365, %v2456
      %v2458 = vpop.f32.mrb[0].mxu0
      %v2459 = vadd.f32 %v2367, %v2458
      %v2460 = vpop.f32.mrb[0].mxu0
      %v2461 = vadd.f32 %v2369, %v2460
      %v2462 = vpop.f32.mrb[0].mxu0
      %v2463 = vadd.f32 %v2371, %v2462
      %2464 = vmatprep.mubr.bf16.mxu0 0
      %2465 = vmatmul.mubr.bf16.gmra.mrb[0].mxu0 %v2413
      %v2466 = vpop.f32.mrb[0].mxu0
      %v2467 = vadd.f32 %v2375, %v2466
      %v2468 = vpop.f32.mrb[0].mxu0
      %v2469 = vadd.f32 %v2377, %v2468
      %v2470 = vpop.f32.mrb[0].mxu0
      %v2471 = vadd.f32 %v2379, %v2470
      %v2472 = vpop.f32.mrb[0].mxu0
      %v2473 = vadd.f32 %v2381, %v2472
      %2474 = vdwg.mxu0
      %v2475 = vld [vmem:[%s988] sm:$0xff]
      %v2476 = vld [vmem:[%s988 + $0x8] sm:$0xff]
      %v2477 = vld [vmem:[%s988 + $0x10] sm:$0xff]
      %v2478 = vld [vmem:[%s988 + $0x18] sm:$0xff]
      %2480 = vset.pattern.permute.xlu0 0
      %2481 = vperm.xlu0 %2480, %v2475
      %v2482 = vpop.permute.xlu0 %2481
      %2485 = vset.pattern.permute.xlu0 0
      %2486 = vperm.xlu0 %2485, %v2476
      %v2487 = vpop.permute.xlu0 %2486
      %2490 = vset.pattern.permute.xlu0 0
      %2491 = vperm.xlu0 %2490, %v2477
      %v2492 = vpop.permute.xlu0 %2491
      %2495 = vset.pattern.permute.xlu0 0
      %2496 = vperm.xlu0 %2495, %v2478
      %v2497 = vpop.permute.xlu0 %2496
      %v2499 = vadd.f32 %v2457, %v2482
      %v2500 = vadd.f32 %v2459, %v2482
      %v2501 = vadd.f32 %v2461, %v2487
      %v2502 = vadd.f32 %v2463, %v2487
      %v2503 = vadd.f32 %v2467, %v2492
      %v2504 = vadd.f32 %v2469, %v2492
      %v2505 = vadd.f32 %v2471, %v2497
      %v2506 = vadd.f32 %v2473, %v2497
      %v2507 = vmax.f32 %v2499, 0.0
      %v2508 = vmax.f32 %v2500, 0.0
      %v2509 = vmax.f32 %v2501, 0.0
      %v2510 = vmax.f32 %v2502, 0.0
      %v2511 = vmax.f32 %v2503, 0.0
      %v2512 = vmax.f32 %v2504, 0.0
      %v2513 = vmax.f32 %v2505, 0.0
      %v2514 = vmax.f32 %v2506, 0.0
      %v2515 = vld [vmem:[%s993] sm:$0xf]
      %v2516 = vld [vmem:[%s993 + $0x4] sm:$0xf]
      %v2517 = vld [vmem:[%s993 + $0x8] sm:$0xf]
      %v2518 = vld [vmem:[%s993 + $0xc] sm:$0xf]
      %v2519 = vpack.c.bf16 %v2509, %v2507
      %v2520 = vpack.c.bf16 %v2510, %v2508
      %v2521 = vpack.c.bf16 %v2513, %v2511
      %v2522 = vpack.c.bf16 %v2514, %v2512
      %v2523 = vld [vmem:[%s998] sm:$0xff]
      %v2524 = vld [vmem:[%s998 + $0x8] sm:$0xff]
      %v2525 = vld [vmem:[%s998 + $0x10] sm:$0xff]
      %v2526 = vld [vmem:[%s998 + $0x18] sm:$0xff]
      %2528 = vset.pattern.permute.xlu0 0
      %2529 = vperm.xlu0 %2528, %v2523
      %v2530 = vpop.permute.xlu0 %2529
      %2533 = vset.pattern.permute.xlu0 0
      %2534 = vperm.xlu0 %2533, %v2524
      %v2535 = vpop.permute.xlu0 %2534
      %2538 = vset.pattern.permute.xlu0 0
      %2539 = vperm.xlu0 %2538, %v2525
      %v2540 = vpop.permute.xlu0 %2539
      %2543 = vset.pattern.permute.xlu0 0
      %2544 = vperm.xlu0 %2543, %v2526
      %v2545 = vpop.permute.xlu0 %2544
      %v2551 = vunpack.c.l.b16 %v2515
      %v2552 = vunpack.c.l.b16 %v2516
      %v2553 = vunpack.c.l.b16 %v2517
      %v2554 = vunpack.c.l.b16 %v2518
      %v2555 = vpack.c.b16 %v2552, %v2551
      %v2556 = vpack.c.b16 %v2554, %v2553
      %v2558 = vsel %vm1278, %v2555, 0
      %v2561 = vsel %vm1278, %v2556, 0
      %2563 = vmatprep.subr.bf16.mxu0 %v2520
      %2564 = vmatpush1.bf16.msra.mxu0 %v2519
      %2565 = vmatprep.subr.bf16.mxu0 %v2522
      %2566 = vmatpush1.bf16.msra.mxu0 %v2521
      %2567 = vmatprep.subr.bf16.mxu0 0
      %2568 = vmatpush1.bf16.msra.mxu0 0
      %2569 = vmatprep.subr.bf16.mxu0 0
      %2570 = vmatpush1.bf16.msra.mxu0 0
      %2571 = vmatprep.subr.bf16.mxu0 0
      %2572 = vmatpush1.bf16.msra.mxu0 0
      %2573 = vmatprep.subr.bf16.mxu0 0
      %2574 = vmatpush1.bf16.msra.mxu0 0
      %2575 = vmatprep.subr.bf16.mxu0 0
      %2576 = vmatpush1.bf16.msra.mxu0 0
      %2577 = vmatprep.subr.bf16.mxu0 0
      %2578 = vmatpush1.bf16.msra.mxu0 0
      %2579 = vmatprep.subr.bf16.mxu0 0
      %2580 = vmatpush1.bf16.msra.mxu0 0
      %2581 = vmatprep.subr.bf16.mxu0 0
      %2582 = vmatpush1.bf16.msra.mxu0 0
      %2583 = vmatprep.subr.bf16.mxu0 0
      %2584 = vmatpush1.bf16.msra.mxu0 0
      %2585 = vmatprep.subr.bf16.mxu0 0
      %2586 = vmatpush1.bf16.msra.mxu0 0
      %2587 = vmatprep.subr.bf16.mxu0 0
      %2588 = vmatpush1.bf16.msra.mxu0 0
      %2589 = vmatprep.subr.bf16.mxu0 0
      %2590 = vmatpush1.bf16.msra.mxu0 0
      %2591 = vmatprep.subr.bf16.mxu0 0
      %2592 = vmatpush1.bf16.msra.mxu0 0
      %2593 = vmatprep.subr.bf16.mxu0 0
      %2594 = vmatpush1.bf16.msra.mxu0 0
      %2595 = vmatprep.mubr.bf16.mxu0 0
      %2596 = vmatmul.mubr.bf16.gmra.mrb[0].mxu0 %v2558
      %v2597 = vpop.f32.mrb[0].mxu0
      %v2598 = vadd.f32 %v2530, %v2597
      %v2599 = vpop.f32.mrb[0].mxu0
      %v2600 = vadd.f32 %v2530, %v2599
      %v2601 = vpop.f32.mrb[0].mxu0
      %v2602 = vadd.f32 %v2535, %v2601
      %v2603 = vpop.f32.mrb[0].mxu0
      %v2604 = vadd.f32 %v2535, %v2603
      %2605 = vmatprep.mubr.bf16.mxu0 0
      %2606 = vmatmul.mubr.bf16.gmra.mrb[0].mxu0 %v2561
      %v2607 = vpop.f32.mrb[0].mxu0
      %v2608 = vadd.f32 %v2540, %v2607
      %v2609 = vpop.f32.mrb[0].mxu0
      %v2610 = vadd.f32 %v2540, %v2609
      %v2611 = vpop.f32.mrb[0].mxu0
      %v2612 = vadd.f32 %v2545, %v2611
      %v2613 = vpop.f32.mrb[0].mxu0
      %v2614 = vadd.f32 %v2545, %v2613
      %2615 = vdwg.mxu0
      %v2616 = vmax.f32 %v2598, 0.0
      %v2617 = vmax.f32 %v2600, 0.0
      %v2618 = vmax.f32 %v2602, 0.0
      %v2619 = vmax.f32 %v2604, 0.0
      %v2620 = vmax.f32 %v2608, 0.0
      %v2621 = vmax.f32 %v2610, 0.0
      %v2622 = vmax.f32 %v2612, 0.0
      %v2623 = vmax.f32 %v2614, 0.0
      %2632 = vrot.lane.b32.xlu0 %v2616, 17
      %v2633 = vpop.permute.xlu0 %2632
      %2634 = vrot.lane.b32.xlu0 %v2617, 17
      %v2635 = vpop.permute.xlu0 %2634
      %2636 = vrot.lane.b32.xlu0 %v2618, 17
      %v2637 = vpop.permute.xlu0 %2636
      %2638 = vrot.lane.b32.xlu0 %v2619, 17
      %v2639 = vpop.permute.xlu0 %2638
      %2640 = vrot.lane.b32.xlu0 %v2620, 17
      %v2641 = vpop.permute.xlu0 %2640
      %2642 = vrot.lane.b32.xlu0 %v2621, 17
      %v2643 = vpop.permute.xlu0 %2642
      %2644 = vrot.lane.b32.xlu0 %v2622, 17
      %v2645 = vpop.permute.xlu0 %2644
      %2646 = vrot.lane.b32.xlu0 %v2623, 17
      %v2647 = vpop.permute.xlu0 %2646
      %v2648 = vsel %vm1370, %v2633, %v2635
      %v2649 = vsel %vm1370, %v2637, %v2639
      %v2650 = vsel %vm1370, %v2641, %v2643
      %v2651 = vsel %vm1370, %v2645, %v2647
      %v2660 = vsel %vm1370, 0.0, %v2633
      %v2661 = vsel %vm1370, 0.0, %v2637
      %v2662 = vsel %vm1370, 0.0, %v2641
      %v2663 = vsel %vm1370, 0.0, %v2645
      %v2664 = vld [vmem:[%s2] sm:$0x3]
      %v2666 = vlaneseq
      %v2667 = vshrl.u32 %v2666, 7
      %v2668 = vsub.s32 0, %v2667
      %v2669 = vrot.slane %v2664, %v2668
      %v2670 = vlaneseq
      %v2671 = vshrl.u32 %v2670, 7
      %v2672 = vsub.s32 1, %v2671
      %v2673 = vrot.slane %v2664, %v2672
      %v2676 = vmul.f32 %v2660, %v2669
      %v2677 = vmul.f32 %v2648, %v2673
      %v2678 = vmul.f32 %v2661, %v2669
      %v2679 = vmul.f32 %v2649, %v2673
      %v2680 = vmul.f32 %v2662, %v2669
      %v2681 = vmul.f32 %v2650, %v2673
      %v2682 = vmul.f32 %v2663, %v2669
      %v2683 = vmul.f32 %v2651, %v2673
      %v2684 = vpack.c.bf16 %v2678, %v2676
      %v2685 = vpack.c.bf16 %v2679, %v2677
      %v2686 = vpack.c.bf16 %v2682, %v2680
      %v2687 = vpack.c.bf16 %v2683, %v2681
      %2688 = vst [vmem:[#allocation3] sm:$0xff] %v2684
      %2689 = vst [vmem:[#allocation3 + $0x8] sm:$0xff] %v2685
      %2690 = vst [vmem:[#allocation3 + $0x10] sm:$0xff] %v2686
      %2691 = vst [vmem:[#allocation3 + $0x18] sm:$0xff] %v2687
      %2692 = vrot.lane.b32.xlu0 %v2616, 16
      %v2693 = vpop.permute.xlu0 %2692
      %2694 = vrot.lane.b32.xlu0 %v2617, 16
      %v2695 = vpop.permute.xlu0 %2694
      %2696 = vrot.lane.b32.xlu0 %v2618, 16
      %v2697 = vpop.permute.xlu0 %2696
      %2698 = vrot.lane.b32.xlu0 %v2619, 16
      %v2699 = vpop.permute.xlu0 %2698
      %2700 = vrot.lane.b32.xlu0 %v2620, 16
      %v2701 = vpop.permute.xlu0 %2700
      %2702 = vrot.lane.b32.xlu0 %v2621, 16
      %v2703 = vpop.permute.xlu0 %2702
      %2704 = vrot.lane.b32.xlu0 %v2622, 16
      %v2705 = vpop.permute.xlu0 %2704
      %2706 = vrot.lane.b32.xlu0 %v2623, 16
      %v2707 = vpop.permute.xlu0 %2706
      %v2708 = vsel %vm1431, %v2693, %v2695
      %v2709 = vsel %vm1431, %v2697, %v2699
      %v2710 = vsel %vm1431, %v2701, %v2703
      %v2711 = vsel %vm1431, %v2705, %v2707
      %v2720 = vsel %vm1431, 0.0, %v2693
      %v2721 = vsel %vm1431, 0.0, %v2697
      %v2722 = vsel %vm1431, 0.0, %v2701
      %v2723 = vsel %vm1431, 0.0, %v2705
      %v2724 = vld [vmem:[%s1448] sm:$0x3]
      %v2726 = vlaneseq
      %v2727 = vshrl.u32 %v2726, 7
      %v2728 = vsub.s32 0, %v2727
      %v2729 = vrot.slane %v2724, %v2728
      %v2730 = vlaneseq
      %v2731 = vshrl.u32 %v2730, 7
      %v2732 = vsub.s32 1, %v2731
      %v2733 = vrot.slane %v2724, %v2732
      %v2736 = vmul.f32 %v2720, %v2729
      %v2737 = vmul.f32 %v2708, %v2733
      %v2738 = vmul.f32 %v2721, %v2729
      %v2739 = vmul.f32 %v2709, %v2733
      %v2740 = vmul.f32 %v2722, %v2729
      %v2741 = vmul.f32 %v2710, %v2733
      %v2742 = vmul.f32 %v2723, %v2729
      %v2743 = vmul.f32 %v2711, %v2733
      %v2744 = vpack.c.bf16 %v2738, %v2736
      %v2745 = vpack.c.bf16 %v2739, %v2737
      %v2746 = vpack.c.bf16 %v2742, %v2740
      %v2747 = vpack.c.bf16 %v2743, %v2741
      %2748 = vst [vmem:[#allocation3 + $0x20] sm:$0xff] %v2744
      %2749 = vst [vmem:[#allocation3 + $0x28] sm:$0xff] %v2745
      %2750 = vst [vmem:[#allocation3 + $0x30] sm:$0xff] %v2746
      %2751 = vst [vmem:[#allocation3 + $0x38] sm:$0xff] %v2747
      %2752 = vrot.lane.b32.xlu0 %v2616, 15
      %v2753 = vpop.permute.xlu0 %2752
      %2754 = vrot.lane.b32.xlu0 %v2617, 15
      %v2755 = vpop.permute.xlu0 %2754
      %2756 = vrot.lane.b32.xlu0 %v2618, 15
      %v2757 = vpop.permute.xlu0 %2756
      %2758 = vrot.lane.b32.xlu0 %v2619, 15
      %v2759 = vpop.permute.xlu0 %2758
      %2760 = vrot.lane.b32.xlu0 %v2620, 15
      %v2761 = vpop.permute.xlu0 %2760
      %2762 = vrot.lane.b32.xlu0 %v2621, 15
      %v2763 = vpop.permute.xlu0 %2762
      %2764 = vrot.lane.b32.xlu0 %v2622, 15
      %v2765 = vpop.permute.xlu0 %2764
      %2766 = vrot.lane.b32.xlu0 %v2623, 15
      %v2767 = vpop.permute.xlu0 %2766
      %v2768 = vsel %vm1493, %v2753, %v2755
      %v2769 = vsel %vm1493, %v2757, %v2759
      %v2770 = vsel %vm1493, %v2761, %v2763
      %v2771 = vsel %vm1493, %v2765, %v2767
      %v2780 = vsel %vm1493, 0.0, %v2753
      %v2781 = vsel %vm1493, 0.0, %v2757
      %v2782 = vsel %vm1493, 0.0, %v2761
      %v2783 = vsel %vm1493, 0.0, %v2765
      %v2784 = vld [vmem:[%s1510] sm:$0x3]
      %v2786 = vlaneseq
      %v2787 = vshrl.u32 %v2786, 7
      %v2788 = vsub.s32 0, %v2787
      %v2789 = vrot.slane %v2784, %v2788
      %v2790 = vlaneseq
      %v2791 = vshrl.u32 %v2790, 7
      %v2792 = vsub.s32 1, %v2791
      %v2793 = vrot.slane %v2784, %v2792
      %v2796 = vmul.f32 %v2780, %v2789
      %v2797 = vmul.f32 %v2768, %v2793
      %v2798 = vmul.f32 %v2781, %v2789
      %v2799 = vmul.f32 %v2769, %v2793
      %v2800 = vmul.f32 %v2782, %v2789
      %v2801 = vmul.f32 %v2770, %v2793
      %v2802 = vmul.f32 %v2783, %v2789
      %v2803 = vmul.f32 %v2771, %v2793
      %v2804 = vpack.c.bf16 %v2798, %v2796
      %v2805 = vpack.c.bf16 %v2799, %v2797
      %v2806 = vpack.c.bf16 %v2802, %v2800
      %v2807 = vpack.c.bf16 %v2803, %v2801
      %2808 = vst [vmem:[#allocation3 + $0x40] sm:$0xff] %v2804
      %2809 = vst [vmem:[#allocation3 + $0x48] sm:$0xff] %v2805
      %2810 = vst [vmem:[#allocation3 + $0x50] sm:$0xff] %v2806
      %2811 = vst [vmem:[#allocation3 + $0x58] sm:$0xff] %v2807
      %2812 = vrot.lane.b32.xlu0 %v2616, 1
      %v2813 = vpop.permute.xlu0 %2812
      %2814 = vrot.lane.b32.xlu0 %v2617, 1
      %v2815 = vpop.permute.xlu0 %2814
      %2816 = vrot.lane.b32.xlu0 %v2618, 1
      %v2817 = vpop.permute.xlu0 %2816
      %2818 = vrot.lane.b32.xlu0 %v2619, 1
      %v2819 = vpop.permute.xlu0 %2818
      %2820 = vrot.lane.b32.xlu0 %v2620, 1
      %v2821 = vpop.permute.xlu0 %2820
      %2822 = vrot.lane.b32.xlu0 %v2621, 1
      %v2823 = vpop.permute.xlu0 %2822
      %2824 = vrot.lane.b32.xlu0 %v2622, 1
      %v2825 = vpop.permute.xlu0 %2824
      %2826 = vrot.lane.b32.xlu0 %v2623, 1
      %v2827 = vpop.permute.xlu0 %2826
      %v2828 = vsel %vm1555, %v2813, %v2815
      %v2829 = vsel %vm1555, %v2817, %v2819
      %v2830 = vsel %vm1555, %v2821, %v2823
      %v2831 = vsel %vm1555, %v2825, %v2827
      %v2840 = vsel %vm1555, 0.0, %v2813
      %v2841 = vsel %vm1555, 0.0, %v2817
      %v2842 = vsel %vm1555, 0.0, %v2821
      %v2843 = vsel %vm1555, 0.0, %v2825
      %v2844 = vld [vmem:[%s1572] sm:$0x3]
      %v2846 = vlaneseq
      %v2847 = vshrl.u32 %v2846, 7
      %v2848 = vsub.s32 0, %v2847
      %v2849 = vrot.slane %v2844, %v2848
      %v2850 = vlaneseq
      %v2851 = vshrl.u32 %v2850, 7
      %v2852 = vsub.s32 1, %v2851
      %v2853 = vrot.slane %v2844, %v2852
      %v2856 = vmul.f32 %v2840, %v2849
      %v2857 = vmul.f32 %v2828, %v2853
      %v2858 = vmul.f32 %v2841, %v2849
      %v2859 = vmul.f32 %v2829, %v2853
      %v2860 = vmul.f32 %v2842, %v2849
      %v2861 = vmul.f32 %v2830, %v2853
      %v2862 = vmul.f32 %v2843, %v2849
      %v2863 = vmul.f32 %v2831, %v2853
      %v2864 = vpack.c.bf16 %v2858, %v2856
      %v2865 = vpack.c.bf16 %v2859, %v2857
      %v2866 = vpack.c.bf16 %v2862, %v2860
      %v2867 = vpack.c.bf16 %v2863, %v2861
      %2868 = vst [vmem:[#allocation3 + $0x60] sm:$0xff] %v2864
      %2869 = vst [vmem:[#allocation3 + $0x68] sm:$0xff] %v2865
      %2870 = vst [vmem:[#allocation3 + $0x70] sm:$0xff] %v2866
      %2871 = vst [vmem:[#allocation3 + $0x78] sm:$0xff] %v2867
      %v2872 = vpack.c.bf16 %v2618, %v2616
      %v2873 = vpack.c.bf16 %v2619, %v2617
      %v2874 = vpack.c.bf16 %v2622, %v2620
      %v2875 = vpack.c.bf16 %v2623, %v2621
      %2876 = vst [vmem:[#allocation3 + $0x80] sm:$0xff] %v2872
      %2877 = vst [vmem:[#allocation3 + $0x88] sm:$0xff] %v2873
      %2878 = vst [vmem:[#allocation3 + $0x90] sm:$0xff] %v2874
      %2879 = vst [vmem:[#allocation3 + $0x98] sm:$0xff] %v2875
      %2880 = vrot.lane.b32.xlu0 %v2616, 127
      %v2881 = vpop.permute.xlu0 %2880
      %2882 = vrot.lane.b32.xlu0 %v2617, 127
      %v2883 = vpop.permute.xlu0 %2882
      %2884 = vrot.lane.b32.xlu0 %v2618, 127
      %v2885 = vpop.permute.xlu0 %2884
      %2886 = vrot.lane.b32.xlu0 %v2619, 127
      %v2887 = vpop.permute.xlu0 %2886
      %2888 = vrot.lane.b32.xlu0 %v2620, 127
      %v2889 = vpop.permute.xlu0 %2888
      %2890 = vrot.lane.b32.xlu0 %v2621, 127
      %v2891 = vpop.permute.xlu0 %2890
      %2892 = vrot.lane.b32.xlu0 %v2622, 127
      %v2893 = vpop.permute.xlu0 %2892
      %2894 = vrot.lane.b32.xlu0 %v2623, 127
      %v2895 = vpop.permute.xlu0 %2894
      %v2896 = vsel %vm1625, %v2881, %v2883
      %v2897 = vsel %vm1625, %v2885, %v2887
      %v2898 = vsel %vm1625, %v2889, %v2891
      %v2899 = vsel %vm1625, %v2893, %v2895
      %v2908 = vsel %vm1625, %v2883, 0.0
      %v2909 = vsel %vm1625, %v2887, 0.0
      %v2910 = vsel %vm1625, %v2891, 0.0
      %v2911 = vsel %vm1625, %v2895, 0.0
      %v2912 = vld [vmem:[%s1642] sm:$0x3]
      %v2914 = vlaneseq
      %v2915 = vshrl.u32 %v2914, 7
      %v2916 = vsub.s32 0, %v2915
      %v2917 = vrot.slane %v2912, %v2916
      %v2918 = vlaneseq
      %v2919 = vshrl.u32 %v2918, 7
      %v2920 = vsub.s32 1, %v2919
      %v2921 = vrot.slane %v2912, %v2920
      %v2924 = vmul.f32 %v2896, %v2917
      %v2925 = vmul.f32 %v2908, %v2921
      %v2926 = vmul.f32 %v2897, %v2917
      %v2927 = vmul.f32 %v2909, %v2921
      %v2928 = vmul.f32 %v2898, %v2917
      %v2929 = vmul.f32 %v2910, %v2921
      %v2930 = vmul.f32 %v2899, %v2917
      %v2931 = vmul.f32 %v2911, %v2921
      %v2932 = vpack.c.bf16 %v2926, %v2924
      %v2933 = vpack.c.bf16 %v2927, %v2925
      %v2934 = vpack.c.bf16 %v2930, %v2928
      %v2935 = vpack.c.bf16 %v2931, %v2929
      %2936 = vst [vmem:[#allocation3 + $0xa0] sm:$0xff] %v2932
      %2937 = vst [vmem:[#allocation3 + $0xa8] sm:$0xff] %v2933
      %2938 = vst [vmem:[#allocation3 + $0xb0] sm:$0xff] %v2934
      %2939 = vst [vmem:[#allocation3 + $0xb8] sm:$0xff] %v2935
      %2940 = vrot.lane.b32.xlu0 %v2616, 113
      %v2941 = vpop.permute.xlu0 %2940
      %2942 = vrot.lane.b32.xlu0 %v2617, 113
      %v2943 = vpop.permute.xlu0 %2942
      %2944 = vrot.lane.b32.xlu0 %v2618, 113
      %v2945 = vpop.permute.xlu0 %2944
      %2946 = vrot.lane.b32.xlu0 %v2619, 113
      %v2947 = vpop.permute.xlu0 %2946
      %2948 = vrot.lane.b32.xlu0 %v2620, 113
      %v2949 = vpop.permute.xlu0 %2948
      %2950 = vrot.lane.b32.xlu0 %v2621, 113
      %v2951 = vpop.permute.xlu0 %2950
      %2952 = vrot.lane.b32.xlu0 %v2622, 113
      %v2953 = vpop.permute.xlu0 %2952
      %2954 = vrot.lane.b32.xlu0 %v2623, 113
      %v2955 = vpop.permute.xlu0 %2954
      %v2956 = vsel %vm1687, %v2941, %v2943
      %v2957 = vsel %vm1687, %v2945, %v2947
      %v2958 = vsel %vm1687, %v2949, %v2951
      %v2959 = vsel %vm1687, %v2953, %v2955
      %v2968 = vsel %vm1687, %v2943, 0.0
      %v2969 = vsel %vm1687, %v2947, 0.0
      %v2970 = vsel %vm1687, %v2951, 0.0
      %v2971 = vsel %vm1687, %v2955, 0.0
      %v2972 = vld [vmem:[%s1704] sm:$0x3]
      %v2974 = vlaneseq
      %v2975 = vshrl.u32 %v2974, 7
      %v2976 = vsub.s32 0, %v2975
      %v2977 = vrot.slane %v2972, %v2976
      %v2978 = vlaneseq
      %v2979 = vshrl.u32 %v2978, 7
      %v2980 = vsub.s32 1, %v2979
      %v2981 = vrot.slane %v2972, %v2980
      %v2984 = vmul.f32 %v2956, %v2977
      %v2985 = vmul.f32 %v2968, %v2981
      %v2986 = vmul.f32 %v2957, %v2977
      %v2987 = vmul.f32 %v2969, %v2981
      %v2988 = vmul.f32 %v2958, %v2977
      %v2989 = vmul.f32 %v2970, %v2981
      %v2990 = vmul.f32 %v2959, %v2977
      %v2991 = vmul.f32 %v2971, %v2981
      %v2992 = vpack.c.bf16 %v2986, %v2984
      %v2993 = vpack.c.bf16 %v2987, %v2985
      %v2994 = vpack.c.bf16 %v2990, %v2988
      %v2995 = vpack.c.bf16 %v2991, %v2989
      %2996 = vst [vmem:[#allocation3 + $0xc0] sm:$0xff] %v2992
      %2997 = vst [vmem:[#allocation3 + $0xc8] sm:$0xff] %v2993
      %2998 = vst [vmem:[#allocation3 + $0xd0] sm:$0xff] %v2994
      %2999 = vst [vmem:[#allocation3 + $0xd8] sm:$0xff] %v2995
      %3000 = vrot.lane.b32.xlu0 %v2616, 112
      %v3001 = vpop.permute.xlu0 %3000
      %3002 = vrot.lane.b32.xlu0 %v2617, 112
      %v3003 = vpop.permute.xlu0 %3002
      %3004 = vrot.lane.b32.xlu0 %v2618, 112
      %v3005 = vpop.permute.xlu0 %3004
      %3006 = vrot.lane.b32.xlu0 %v2619, 112
      %v3007 = vpop.permute.xlu0 %3006
      %3008 = vrot.lane.b32.xlu0 %v2620, 112
      %v3009 = vpop.permute.xlu0 %3008
      %3010 = vrot.lane.b32.xlu0 %v2621, 112
      %v3011 = vpop.permute.xlu0 %3010
      %3012 = vrot.lane.b32.xlu0 %v2622, 112
      %v3013 = vpop.permute.xlu0 %3012
      %3014 = vrot.lane.b32.xlu0 %v2623, 112
      %v3015 = vpop.permute.xlu0 %3014
      %v3016 = vsel %vm1749, %v3001, %v3003
      %v3017 = vsel %vm1749, %v3005, %v3007
      %v3018 = vsel %vm1749, %v3009, %v3011
      %v3019 = vsel %vm1749, %v3013, %v3015
      %v3028 = vsel %vm1749, %v3003, 0.0
      %v3029 = vsel %vm1749, %v3007, 0.0
      %v3030 = vsel %vm1749, %v3011, 0.0
      %v3031 = vsel %vm1749, %v3015, 0.0
      %v3032 = vld [vmem:[%s1766] sm:$0x3]
      %v3034 = vlaneseq
      %v3035 = vshrl.u32 %v3034, 7
      %v3036 = vsub.s32 0, %v3035
      %v3037 = vrot.slane %v3032, %v3036
      %v3038 = vlaneseq
      %v3039 = vshrl.u32 %v3038, 7
      %v3040 = vsub.s32 1, %v3039
      %v3041 = vrot.slane %v3032, %v3040
      %v3044 = vmul.f32 %v3016, %v3037
      %v3045 = vmul.f32 %v3028, %v3041
      %v3046 = vmul.f32 %v3017, %v3037
      %v3047 = vmul.f32 %v3029, %v3041
      %v3048 = vmul.f32 %v3018, %v3037
      %v3049 = vmul.f32 %v3030, %v3041
      %v3050 = vmul.f32 %v3019, %v3037
      %v3051 = vmul.f32 %v3031, %v3041
      %v3052 = vpack.c.bf16 %v3046, %v3044
      %v3053 = vpack.c.bf16 %v3047, %v3045
      %v3054 = vpack.c.bf16 %v3050, %v3048
      %v3055 = vpack.c.bf16 %v3051, %v3049
      %3056 = vst [vmem:[#allocation3 + $0xe0] sm:$0xff] %v3052
      %3057 = vst [vmem:[#allocation3 + $0xe8] sm:$0xff] %v3053
      %3058 = vst [vmem:[#allocation3 + $0xf0] sm:$0xff] %v3054
      %3059 = vst [vmem:[#allocation3 + $0xf8] sm:$0xff] %v3055
      %3060 = vrot.lane.b32.xlu0 %v2616, 111
      %v3061 = vpop.permute.xlu0 %3060
      %3062 = vrot.lane.b32.xlu0 %v2617, 111
      %v3063 = vpop.permute.xlu0 %3062
      %3064 = vrot.lane.b32.xlu0 %v2618, 111
      %v3065 = vpop.permute.xlu0 %3064
      %3066 = vrot.lane.b32.xlu0 %v2619, 111
      %v3067 = vpop.permute.xlu0 %3066
      %3068 = vrot.lane.b32.xlu0 %v2620, 111
      %v3069 = vpop.permute.xlu0 %3068
      %3070 = vrot.lane.b32.xlu0 %v2621, 111
      %v3071 = vpop.permute.xlu0 %3070
      %3072 = vrot.lane.b32.xlu0 %v2622, 111
      %v3073 = vpop.permute.xlu0 %3072
      %3074 = vrot.lane.b32.xlu0 %v2623, 111
      %v3075 = vpop.permute.xlu0 %3074
      %v3076 = vsel %vm1811, %v3061, %v3063
      %v3077 = vsel %vm1811, %v3065, %v3067
      %v3078 = vsel %vm1811, %v3069, %v3071
      %v3079 = vsel %vm1811, %v3073, %v3075
      %v3088 = vsel %vm1811, %v3063, 0.0
      %v3089 = vsel %vm1811, %v3067, 0.0
      %v3090 = vsel %vm1811, %v3071, 0.0
      %v3091 = vsel %vm1811, %v3075, 0.0
      %v3092 = vld [vmem:[%s1828] sm:$0x3]
      %v3094 = vlaneseq
      %v3095 = vshrl.u32 %v3094, 7
      %v3096 = vsub.s32 0, %v3095
      %v3097 = vrot.slane %v3092, %v3096
      %v3098 = vlaneseq
      %v3099 = vshrl.u32 %v3098, 7
      %v3100 = vsub.s32 1, %v3099
      %v3101 = vrot.slane %v3092, %v3100
      %v3104 = vmul.f32 %v3076, %v3097
      %v3105 = vmul.f32 %v3088, %v3101
      %v3106 = vmul.f32 %v3077, %v3097
      %v3107 = vmul.f32 %v3089, %v3101
      %v3108 = vmul.f32 %v3078, %v3097
      %v3109 = vmul.f32 %v3090, %v3101
      %v3110 = vmul.f32 %v3079, %v3097
      %v3111 = vmul.f32 %v3091, %v3101
      %v3112 = vpack.c.bf16 %v3106, %v3104
      %v3113 = vpack.c.bf16 %v3107, %v3105
      %v3114 = vpack.c.bf16 %v3110, %v3108
      %v3115 = vpack.c.bf16 %v3111, %v3109
      %3116 = vst [vmem:[#allocation3 + $0x100] sm:$0xff] %v3112
      %3117 = vst [vmem:[#allocation3 + $0x108] sm:$0xff] %v3113
      %3118 = vst [vmem:[#allocation3 + $0x110] sm:$0xff] %v3114
      %3119 = vst [vmem:[#allocation3 + $0x118] sm:$0xff] %v3115
      %v3120 = vld [vmem:[%s1003] sm:$0x3f]
      %v3121 = vld [vmem:[#allocation3] sm:$0xff]
      %v3122 = vld [vmem:[#allocation3 + $0x8] sm:$0xff]
      %v3123 = vld [vmem:[#allocation3 + $0x10] sm:$0xff]
      %v3124 = vld [vmem:[#allocation3 + $0x18] sm:$0xff]
      %v3125 = vld [vmem:[#allocation3 + $0x20] sm:$0xff]
      %v3126 = vld [vmem:[#allocation3 + $0x28] sm:$0xff]
      %v3127 = vld [vmem:[#allocation3 + $0x30] sm:$0xff]
      %v3128 = vld [vmem:[#allocation3 + $0x38] sm:$0xff]
      %v3129 = vld [vmem:[#allocation3 + $0x40] sm:$0xff]
      %v3130 = vld [vmem:[#allocation3 + $0x48] sm:$0xff]
      %v3131 = vld [vmem:[#allocation3 + $0x50] sm:$0xff]
      %v3132 = vld [vmem:[#allocation3 + $0x58] sm:$0xff]
      %v3133 = vld [vmem:[#allocation3 + $0x60] sm:$0xff]
      %v3134 = vld [vmem:[#allocation3 + $0x68] sm:$0xff]
      %v3135 = vld [vmem:[#allocation3 + $0x70] sm:$0xff]
      %v3136 = vld [vmem:[#allocation3 + $0x78] sm:$0xff]
      %v3137 = vld [vmem:[#allocation3 + $0x80] sm:$0xff]
      %v3138 = vld [vmem:[#allocation3 + $0x88] sm:$0xff]
      %v3139 = vld [vmem:[#allocation3 + $0x90] sm:$0xff]
      %v3140 = vld [vmem:[#allocation3 + $0x98] sm:$0xff]
      %v3141 = vld [vmem:[#allocation3 + $0xa0] sm:$0xff]
      %v3142 = vld [vmem:[#allocation3 + $0xa8] sm:$0xff]
      %v3143 = vld [vmem:[#allocation3 + $0xb0] sm:$0xff]
      %v3144 = vld [vmem:[#allocation3 + $0xb8] sm:$0xff]
      %v3145 = vld [vmem:[#allocation3 + $0xc0] sm:$0xff]
      %v3146 = vld [vmem:[#allocation3 + $0xc8] sm:$0xff]
      %v3147 = vld [vmem:[#allocation3 + $0xd0] sm:$0xff]
      %v3148 = vld [vmem:[#allocation3 + $0xd8] sm:$0xff]
      %v3149 = vld [vmem:[#allocation3 + $0xe0] sm:$0xff]
      %v3150 = vld [vmem:[#allocation3 + $0xe8] sm:$0xff]
      %v3151 = vld [vmem:[#allocation3 + $0xf0] sm:$0xff]
      %v3152 = vld [vmem:[#allocation3 + $0xf8] sm:$0xff]
      %v3153 = vld [vmem:[#allocation3 + $0x100] sm:$0xff]
      %v3154 = vld [vmem:[#allocation3 + $0x108] sm:$0xff]
      %v3155 = vld [vmem:[#allocation3 + $0x110] sm:$0xff]
      %v3156 = vld [vmem:[#allocation3 + $0x118] sm:$0xff]
      %v3157 = vld [vmem:[%s1007] sm:$0xf]
      %3159 = vset.pattern.permute.xlu0 0
      %3160 = vperm.xlu0 %3159, %v3157
      %v3161 = vpop.permute.xlu0 %3160
      %v3164 = vcombine.high %v3120, %v3120
      %v3166 = vunpack.c.l.s4 1983009808
      %v3167 = vunpack.c.0.s8 %v3166
      %v3168 = vlaneseq
      %v3169 = vshrl.u32 %v3168, 7
      %v3170 = vsub.s32 %v3167, %v3169
      %v3171 = vrot.slane %v3120, %v3170
      %v3173 = vunpack.c.l.s4 1983009808
      %v3174 = vunpack.c.0.s8 %v3173
      %v3175 = vlaneseq
      %v3176 = vshrl.u32 %v3175, 7
      %v3177 = vsub.s32 %v3174, %v3176
      %v3178 = vrot.slane %v3164, %v3177
      %v3179 = vcombine.high %v3171, %v3171
      %v3183 = vsel %vm1278, %v3178, 0
      %3185 = vmatprep.subr.bf16.mxu0 %v3122
      %3186 = vmatpush1.bf16.msra.mxu0 %v3121
      %3187 = vmatprep.subr.bf16.mxu0 %v3124
      %3188 = vmatpush1.bf16.msra.mxu0 %v3123
      %3189 = vmatprep.subr.bf16.mxu0 %v3126
      %3190 = vmatpush1.bf16.msra.mxu0 %v3125
      %3191 = vmatprep.subr.bf16.mxu0 %v3128
      %3192 = vmatpush1.bf16.msra.mxu0 %v3127
      %3193 = vmatprep.subr.bf16.mxu0 %v3130
      %3194 = vmatpush1.bf16.msra.mxu0 %v3129
      %3195 = vmatprep.subr.bf16.mxu0 %v3132
      %3196 = vmatpush1.bf16.msra.mxu0 %v3131
      %3197 = vmatprep.subr.bf16.mxu0 %v3134
      %3198 = vmatpush1.bf16.msra.mxu0 %v3133
      %3199 = vmatprep.subr.bf16.mxu0 %v3136
      %3200 = vmatpush1.bf16.msra.mxu0 %v3135
      %3201 = vmatprep.subr.bf16.mxu0 %v3138
      %3202 = vmatpush1.bf16.msra.mxu0 %v3137
      %3203 = vmatprep.subr.bf16.mxu0 %v3140
      %3204 = vmatpush1.bf16.msra.mxu0 %v3139
      %3205 = vmatprep.subr.bf16.mxu0 %v3142
      %3206 = vmatpush1.bf16.msra.mxu0 %v3141
      %3207 = vmatprep.subr.bf16.mxu0 %v3144
      %3208 = vmatpush1.bf16.msra.mxu0 %v3143
      %3209 = vmatprep.subr.bf16.mxu0 %v3146
      %3210 = vmatpush1.bf16.msra.mxu0 %v3145
      %3211 = vmatprep.subr.bf16.mxu0 %v3148
      %3212 = vmatpush1.bf16.msra.mxu0 %v3147
      %3213 = vmatprep.subr.bf16.mxu0 %v3150
      %3214 = vmatpush1.bf16.msra.mxu0 %v3149
      %3215 = vmatprep.subr.bf16.mxu0 %v3152
      %3216 = vmatpush1.bf16.msra.mxu0 %v3151
      %3217 = vmatprep.mubr.bf16.mxu0 %v3179
      %3218 = vmatmul.mubr.bf16.gmra.mrb[0].mxu0 %v3171
      %v3219 = vpop.f32.mrb[0].mxu0
      %v3220 = vadd.f32 %v3161, %v3219
      %v3221 = vpop.f32.mrb[0].mxu0
      %v3222 = vadd.f32 %v3161, %v3221
      %v3223 = vpop.f32.mrb[0].mxu0
      %v3224 = vpop.f32.mrb[0].mxu0
      %3225 = vdwg.mxu0
      %3226 = vmatprep.subr.bf16.mxu0 %v3154
      %3227 = vmatpush1.bf16.msra.mxu0 %v3153
      %3228 = vmatprep.subr.bf16.mxu0 %v3156
      %3229 = vmatpush1.bf16.msra.mxu0 %v3155
      %3230 = vmatprep.subr.bf16.mxu0 0
      %3231 = vmatpush1.bf16.msra.mxu0 0
      %3232 = vmatprep.subr.bf16.mxu0 0
      %3233 = vmatpush1.bf16.msra.mxu0 0
      %3234 = vmatprep.subr.bf16.mxu0 0
      %3235 = vmatpush1.bf16.msra.mxu0 0
      %3236 = vmatprep.subr.bf16.mxu0 0
      %3237 = vmatpush1.bf16.msra.mxu0 0
      %3238 = vmatprep.subr.bf16.mxu0 0
      %3239 = vmatpush1.bf16.msra.mxu0 0
      %3240 = vmatprep.subr.bf16.mxu0 0
      %3241 = vmatpush1.bf16.msra.mxu0 0
      %3242 = vmatprep.subr.bf16.mxu0 0
      %3243 = vmatpush1.bf16.msra.mxu0 0
      %3244 = vmatprep.subr.bf16.mxu0 0
      %3245 = vmatpush1.bf16.msra.mxu0 0
      %3246 = vmatprep.subr.bf16.mxu0 0
      %3247 = vmatpush1.bf16.msra.mxu0 0
      %3248 = vmatprep.subr.bf16.mxu0 0
      %3249 = vmatpush1.bf16.msra.mxu0 0
      %3250 = vmatprep.subr.bf16.mxu0 0
      %3251 = vmatpush1.bf16.msra.mxu0 0
      %3252 = vmatprep.subr.bf16.mxu0 0
      %3253 = vmatpush1.bf16.msra.mxu0 0
      %3254 = vmatprep.subr.bf16.mxu0 0
      %3255 = vmatpush1.bf16.msra.mxu0 0
      %3256 = vmatprep.subr.bf16.mxu0 0
      %3257 = vmatpush1.bf16.msra.mxu0 0
      %3258 = vmatprep.mubr.bf16.mxu0 0
      %3259 = vmatmul.mubr.bf16.gmra.mrb[0].mxu0 %v3183
      %v3260 = vpop.f32.mrb[0].mxu0
      %v3261 = vadd.f32 %v3220, %v3260
      %v3262 = vpop.f32.mrb[0].mxu0
      %v3263 = vadd.f32 %v3222, %v3262
      %v3264 = vpop.f32.mrb[0].mxu0
      %v3265 = vpop.f32.mrb[0].mxu0
      %3266 = vdwg.mxu0
      %v3267 = vld [vmem:[%s1011] sm:$0x3]
      %v3268 = vtanh.pop %v3261
      %v3269 = vtanh.pop %v3263
      %3271 = vset.pattern.permute.xlu0 0
      %3272 = vperm.xlu0 %3271, %v3267
      %v3273 = vpop.permute.xlu0 %3272
      %v3275 = vmul.f32 %v3273, %v3268
      %v3276 = vmul.f32 %v3273, %v3269
      %v3279 = vrot.slane %v3261, 2
      %v3280 = vrot.slane %v3263, 2
      %v3283 = vadd.f32 %v2018, %v3279
      %v3284 = vadd.f32 %v2019, %v3280
      %v3285 = vmul.f32 %v3275, 1.442695
      %v3286 = vpow.pop %v3285
      %v3287 = vmul.f32 %v3276, 1.442695
      %v3288 = vpow.pop %v3287
      %v3289 = vmul.f32 %v3283, %v3286
      %v3290 = vmul.f32 %v3284, %v3288
      %v3291 = vsel %vm1051, %v3275, 0.0
      %v3292 = vsel %vm1051, %v3276, 0.0
      %v3293 = vadd.f32 %v3291, %v3292
      %3294 = vadd.xlane.f32.xlu0 %v3293
      %v3295 = vpop.xlane.xlu0 %3294
      %v3296 = vsel %vm1051, %v3295, 0.0
      %v3297 = vrot.slane %v3296, 4
      %v3298 = vadd.f32 %v3296, %v3297
      %v3299 = vrot.slane %v3298, 2
      %v3300 = vadd.f32 %v3298, %v3299
      %v3301 = vrot.slane %v3300, 1
      %v3302 = vadd.f32 %v3300, %v3301
      %v3303 = vadd.f32 %v2032, %v3302
      %v3306 = vcombine.low %v3289, %v3290
      %3308 = vst [vmem:[#allocation2] sm:$0x33] %v3306
      %v3309 = vcombine.low %v2018, %v2019
      %3311 = vst [vmem:[#allocation2] sm:$0xcc] %v3309
      %v3312 = vld [vmem:[#allocation5] sm:$0x1]
      %v3313 = vadd.f32 %v3312, %v3303
      %vm3314 = vcmask 0
      %3315 = vst.msk [vmem:[#allocation5] sm:$0x1] %vm3314, %v3313
      %p3316 = scmp.eq.s32.totalorder %s38, 1
      // Predicated region
      $region105: #{glow_forward.2} parent=99 // pred_check
        %p3317 = pneg %p3316
      $region106: #{glow_forward.2} parent=99 // pred_check_branch
        %3319 = sbr.rel (%p3317) target = $region108
      $region107: #{glow_forward.2} parent=99 // pred_region
        %v3320 = vld [vmem:[#allocation2] sm:$0xff]
        %3321 = vst [vmem:[%s1016] sm:$0xff] %v3320
        %v3322 = vld [vmem:[#allocation5] sm:$0x1]
        %3324 = vset.pattern.permute.xlu0 0
        %3325 = vperm.xlu0 %3324, %v3322
        %v3326 = vpop.permute.xlu0 %3325
        %v3328 = vlaneseq
        %v3329 = vshrl.u32 %v3328, 7
        %v3330 = vsub.s32 0, %v3329
        %v3331 = vrot.slane %v3326, %v3330
        %3332 = vst [vmem:[%s1019] sm:$0x1] %v3331
      $region108: #{glow_forward.2} parent=99 // pred_fallthru
        _
      %p3333 = scmp.lt.s32.totalorder %s37, 1
      %s3334 = scalar_select %p3333, %s37, 1
      %s3335 = smul.addr %s3334, 2
      %s3336 = smul.addr %s3335, 4
      %s3337 = scalar_lea.vmem %s20, %s3336
      %p3338 = scmp.lt.s32.totalorder %s37, 1
      %s3339 = scalar_select %p3338, %s37, 1
      %s3340 = scalar_lea.vmem %s21, %s3339
      // Predicated region
      $region109: #{glow_forward.2} parent=99 // pred_check
        %p3341 = pneg %p578
      $region110: #{glow_forward.2} parent=99 // pred_check_branch
        %3343 = sbr.rel (%p3341) target = $region112
      $region111: #{glow_forward.2} parent=99 // pred_region
        _
      $region112: #{glow_forward.2} parent=99 // pred_fallthru
        _
      // Predicated region
      $region113: #{glow_forward.2} parent=99 // pred_check
        %p3344 = pneg %p604
      $region114: #{glow_forward.2} parent=99 // pred_check_branch
        %3346 = sbr.rel (%p3344) target = $region116
      $region115: #{glow_forward.2} parent=99 // pred_region
        _
      $region116: #{glow_forward.2} parent=99 // pred_fallthru
        _
    $region100: #{glow_forward.2} parent=5 // pred_fallthru
      _
    %p3347 = scmp.le.s32.totalorder 2, %s28
    // Predicated region
    $region117: #{glow_forward.2} parent=5 // pred_check
      %p3348 = pneg %p3347
    $region118: #{glow_forward.2} parent=5 // pred_check_branch
      %3350 = sbr.rel (%p3348) target = $region120
    $region119: #{glow_forward.2} parent=5 // pred_region
      %s3351 = ssub.s32 %s28, 2
      // Predicated region
      $region121: #{glow_forward.2} parent=119 // pred_check
        %p3352 = pneg %p584
      $region122: #{glow_forward.2} parent=119 // pred_check_branch
        %3354 = sbr.rel (%p3352) target = $region124
      $region123: #{glow_forward.2} parent=119 // pred_region
        %p3355 = scmp.lt.s32.totalorder %s39, 1
        %s3356 = scalar_select %p3355, %s39, 1
        %s3357 = smul.addr %s3356, 2
        %s3358 = smul.addr %s3357, 4
        %s3359 = scalar_lea.vmem %s20, %s3358
      $region124: #{glow_forward.2} parent=119 // pred_fallthru
        _
      // Predicated region
      $region125: #{glow_forward.2} parent=119 // pred_check
        %p3360 = pneg %p610
      $region126: #{glow_forward.2} parent=119 // pred_check_branch
        %3362 = sbr.rel (%p3360) target = $region128
      $region127: #{glow_forward.2} parent=119 // pred_region
        %p3363 = scmp.lt.s32.totalorder %s39, 1
        %s3364 = scalar_select %p3363, %s39, 1
        %s3365 = scalar_lea.vmem %s21, %s3364
      $region128: #{glow_forward.2} parent=119 // pred_fallthru
        _
    $region120: #{glow_forward.2} parent=5 // pred_fallthru
      _
  $region6: #{glow_forward.2} parent=0 // loop_footer
    %s32 = sadd.s32 1, %s28
  $region7: #{glow_forward.2} parent=0 // loop_footer_branch
    %27 = sbr.rel target = $region3
  $region8: #{glow_forward.2} parent=0 // loop_exit
    _

</llo_original>
